<compile_context>
chip_gen: v7x
topology: tpu7x:2x2x1
jax: 0.10.0
libtpu: 0.0.40
codegen_flags: <defaults>
</compile_context>

<pallas_src>
import functools

import numpy as np
import jax
import jax.numpy as jnp
from jax.experimental import pallas as pl
from jax.experimental.pallas import tpu as pltpu

# ----------------------------- configuration --------------------------------
LATENT = 512          # forward() draws z of shape (batch, 512)
NF     = 64           # feature channels of the 4x4 block (small synthetic width)
RES    = 4            # generator.res after load_networks()  ->  dim = 4
P      = RES * RES    # 16 pixels
PNF    = P * NF       # 1024 : flattened pixel-major activation width
RGB    = 3
RGBP   = 4            # RGB padded to 4 channels
OUTW   = 128          # lane-dense output width (image occupies cols 0..63)
LRELU  = 0.2
EPS    = 1e-8

_GEN_W_SHAPES = ((LATENT, PNF), (1, PNF), (PNF, PNF), (1, PNF),
                 (PNF, OUTW), (1, OUTW))
_DISC_W_SHAPES = ((OUTW, PNF), (1, PNF), (PNF, PNF), (1, PNF), (1, PNF),
                  (PNF, OUTW), (1, OUTW), (OUTW, OUTW), (1, OUTW))

_CPARAMS = pltpu.CompilerParams(
    dimension_semantics=("parallel",),
    vmem_limit_bytes=32 * 1024 * 1024,
)


# --------------------------- in-kernel helpers -------------------------------
def _lrelu(x):
    return jnp.maximum(x, LRELU * x)


def _pn_vec(x):
    # pixel-norm over the full last axis (latent vector)
    return x * jax.lax.rsqrt(jnp.mean(x * x, axis=-1, keepdims=True) + EPS)


def _pn_pix(x, rows):
    # per-pixel channel norm on the flattened (rows, P*NF) layout
    x3 = x.reshape(rows, P, NF)
    x3 = x3 * jax.lax.rsqrt(jnp.mean(x3 * x3, axis=-1, keepdims=True) + EPS)
    return x3.reshape(rows, PNF)


def _bdot(x, w_ref):
    # bf16 MXU matmul with f32 accumulation (weights are stored bf16)
    return jnp.dot(x.astype(jnp.bfloat16), w_ref[...],
                   preferred_element_type=jnp.float32)


def _tile_valid(tb, b_real):
    """(tb,1) f32 mask of real (non-padded) rows in this batch tile + count."""
    i = pl.program_id(0)
    row = jax.lax.broadcasted_iota(jnp.int32, (tb, 1), 0)
    valid = ((i * tb + row) < b_real).astype(jnp.float32)
    n = jnp.maximum(jnp.minimum(tb, b_real - i * tb), 1).astype(jnp.float32)
    return valid, n


def _gen_forward(z, g_refs, tb):
    """ProGAN generator 4x4 block + toRGB.  z:(tb,512) -> rgb:(tb, 128)."""
    w_fc, b_fc, t_g, b_c, w_rgb, b_rgb = g_refs
    h = _bdot(_pn_vec(z), w_fc) + b_fc[...]          # (tb, 1024)  dense 512->16*NF
    h = _pn_pix(_lrelu(h), tb)
    h = _bdot(h, t_g) + b_c[...]                     # (tb, 1024)  3x3 conv (Toeplitz)
    h = _pn_pix(_lrelu(h), tb)
    return _bdot(h, w_rgb) + b_rgb[...]              # (tb, 128)   toRGB (block-diag)


def _disc_forward(rgb, d_refs, n_groups, tb, valid, n_valid):
    """ProGAN discriminator final block on stacked groups.

    rgb: (n_groups*tb, 128) lane-dense padded RGB.  Minibatch-stddev is
    computed separately per group over the valid rows of this batch tile
    (exact whenever the batch fits one tile; grouped otherwise).
    """
    w_frgb, b_frgb, t_d, t_mb, b_c, w_c4, b_c4, w_fc, b_fc = d_refs
    m = n_groups * tb
    h = _lrelu(_bdot(rgb, w_frgb) + b_frgb[...])                         # (m, 1024)
    # per-group minibatch stddev scalar (padded rows masked out)
    h_g = h.reshape(n_groups, tb, PNF)
    mu = jnp.sum(h_g * valid[None], axis=1, keepdims=True) / n_valid     # (g,1,1024)
    var = jnp.sum(jnp.square((h_g - mu) * valid[None]), axis=1) / n_valid
    s = jnp.mean(jnp.sqrt(var + EPS), axis=-1, keepdims=True)            # (g, 1)
    s_row = jnp.broadcast_to(s.reshape(n_groups, 1, 1),
                             (n_groups, tb, 1)).reshape(m, 1)
    # 3x3 conv (NF+1 -> NF): Toeplitz matmul + stddev-channel contribution
    c = _bdot(h, t_d) + s_row * t_mb[...] + b_c[...]                     # (m, 1024)
    h = _lrelu(c)
    h = _lrelu(_bdot(h, w_c4) + b_c4[...])                               # (m, 128)
    return _bdot(h, w_fc) + b_fc[...]                                    # (m, 128)


# ------------------------------ Pallas kernels -------------------------------
def _make_gen_kernel(tb):
    def kernel(z_ref, w_fc, b_fc, t_g, b_c, w_rgb, b_rgb, fake_ref):
        fake_ref[...] = _gen_forward(
            z_ref[...], (w_fc, b_fc, t_g, b_c, w_rgb, b_rgb), tb)
    return kernel


def _make_gen_disc_kernel(tb, b_real):
    def kernel(z_ref,
               gw_fc, gb_fc, gt, gb_c, gw_rgb, gb_rgb,
               dw_frgb, db_frgb, dt, dt_mb, db_c, dw_c4, db_c4, dw_fc, db_fc,
               fake_ref, fscore_ref):
        g_refs = (gw_fc, gb_fc, gt, gb_c, gw_rgb, gb_rgb)
        d_refs = (dw_frgb, db_frgb, dt, dt_mb, db_c, dw_c4, db_c4, dw_fc, db_fc)
        rgb = _gen_forward(z_ref[...], g_refs, tb)
        fake_ref[...] = rgb
        valid, n = _tile_valid(tb, b_real)
        fscore_ref[...] = _disc_forward(rgb, d_refs, 1, tb, valid, n)
    return kernel


def _make_dual_disc_kernel(tb, b_real):
    def kernel(z_ref, im_ref,
               gw_fc, gb_fc, gt, gb_c, gw_rgb, gb_rgb,
               dw_frgb, db_frgb, dt, dt_mb, db_c, dw_c4, db_c4, dw_fc, db_fc,
               fake_ref, rscore_ref, fscore_ref):
        g_refs = (gw_fc, gb_fc, gt, gb_c, gw_rgb, gb_rgb)
        d_refs = (dw_frgb, db_frgb, dt, dt_mb, db_c, dw_c4, db_c4, dw_fc, db_fc)
        rgb_fake = _gen_forward(z_ref[...], g_refs, tb)
        fake_ref[...] = rgb_fake
        valid, n = _tile_valid(tb, b_real)
        # D(real ++ fake) in ONE pass: doubled M, one weight load, one set of
        # matmuls; mbstd statistics stay separate per group.
        stacked = jnp.concatenate([im_ref[...], rgb_fake], axis=0)   # (2*tb, 128)
        scores = _disc_forward(stacked, d_refs, 2, tb, valid, n)     # (2*tb, 128)
        rscore_ref[...] = scores[:tb]
        fscore_ref[...] = scores[tb:]
    return kernel


# ------------------------------ pallas_call glue -----------------------------
def _round_up(x, m):
    return ((x + m - 1) // m) * m


def _tiling(b):
    """Pick the batch tile.

    - tiny batches (<=16): one tile (exact minibatch-stddev, no wasted padding)
    - 17..255: split into (at least) 2 tiles so the 'parallel' grid axis shards
      across both v7x TensorCores
    - >=256: TB=128 (full MXU rows), many tiles keep both cores busy
    """
    if b <= 16:
        tb = _round_up(max(b, 1), 8)
    elif b < 256:
        tb = _round_up(-(-b // 2), 8)
    else:
        tb = 128
    b_pad = _round_up(b, tb)
    assert tb % 8 == 0
    return tb, b_pad, b_pad // tb


def _full_spec(shape):
    # constant index_map: weight block DMA'd once, reused across batch tiles
    return pl.BlockSpec(shape, lambda i: (0,) * len(shape))


def _batch_spec(tb, width):
    return pl.BlockSpec((tb, width), lambda i: (i, 0))


def _to_nchw(fake, b):
    x = fake[:b, :P * RGBP].reshape(b, RES, RES, RGBP)[..., :RGB]
    return jnp.transpose(x, (0, 3, 1, 2))


@functools.lru_cache(maxsize=None)
def _inference_fn(b):
    tb, b_pad, ntiles = _tiling(b)
    call = pl.pallas_call(
        _make_gen_kernel(tb),
        out_shape=jax.ShapeDtypeStruct((b_pad, OUTW), jnp.float32),
        grid=(ntiles,),
        in_specs=[_batch_spec(tb, LATENT)] + [_full_spec(s) for s in _GEN_W_SHAPES],
        out_specs=_batch_spec(tb, OUTW),
        compiler_params=_CPARAMS,
    )

    # TODO(synk): for tiny inference batches the call is dominated by ~3 MiB of
    # weight DMA + launch overhead; a cross-call weight-prefetch future would
    # hide it but is not implemented here.
    def fn(z, *gw):
        zp = jnp.pad(z.astype(jnp.float32), ((0, b_pad - b), (0, 0)))
        return _to_nchw(call(zp, *gw), b)

    return jax.jit(fn)


@functools.lru_cache(maxsize=None)
def _generator_mode_fn(b):
    tb, b_pad, ntiles = _tiling(b)
    call = pl.pallas_call(
        _make_gen_disc_kernel(tb, b),
        out_shape=(jax.ShapeDtypeStruct((b_pad, OUTW), jnp.float32),
                   jax.ShapeDtypeStruct((b_pad, OUTW), jnp.float32)),
        grid=(ntiles,),
        in_specs=[_batch_spec(tb, LATENT)]
                 + [_full_spec(s) for s in _GEN_W_SHAPES]
                 + [_full_spec(s) for s in _DISC_W_SHAPES],
        out_specs=(_batch_spec(tb, OUTW), _batch_spec(tb, OUTW)),
        compiler_params=_CPARAMS,
    )

    def fn(z, *w):
        zp = jnp.pad(z.astype(jnp.float32), ((0, b_pad - b), (0, 0)))
        fake, fscore = call(zp, *w)
        g_loss = -jnp.mean(fscore[:b, 0])     # ImprovedWGANLoss.generator_loss_logits
        return g_loss, _to_nchw(fake, b)

    return jax.jit(fn)


@functools.lru_cache(maxsize=None)
def _discriminator_mode_fn(b):
    tb, b_pad, ntiles = _tiling(b)
    call = pl.pallas_call(
        _make_dual_disc_kernel(tb, b),
        out_shape=(jax.ShapeDtypeStruct((b_pad, OUTW), jnp.float32),
                   jax.ShapeDtypeStruct((b_pad, OUTW), jnp.float32),
                   jax.ShapeDtypeStruct((b_pad, OUTW), jnp.float32)),
        grid=(ntiles,),
        in_specs=[_batch_spec(tb, LATENT), _batch_spec(tb, OUTW)]
                 + [_full_spec(s) for s in _GEN_W_SHAPES]
                 + [_full_spec(s) for s in _DISC_W_SHAPES],
        out_specs=(_batch_spec(tb, OUTW), _batch_spec(tb, OUTW),
                   _batch_spec(tb, OUTW)),
        compiler_params=_CPARAMS,
    )

    def fn(z, im, *w):
        zp = jnp.pad(z.astype(jnp.float32), ((0, b_pad - b), (0, 0)))
        x = jnp.transpose(im.astype(jnp.float32), (0, 2, 3, 1))          # NHWC
        x = jnp.pad(x, ((0, 0), (0, 0), (0, 0), (0, RGBP - RGB)))
        x = x.reshape(b, P * RGBP)
        im128 = jnp.pad(x, ((0, b_pad - b), (0, OUTW - P * RGBP)))
        fake, rscore, fscore = call(zp, im128, *w)
        # Wasserstein part of ImprovedWGANLoss.discriminator_loss_logits.
        # TODO(synk): the gradient-penalty term needs autodiff through the Pallas
        # discriminator (custom VJP); only the Wasserstein part is computed here.
        d_loss = jnp.mean(fscore[:b, 0]) - jnp.mean(rscore[:b, 0])
        return d_loss, _to_nchw(fake, b)

    return jax.jit(fn)


# ------------------------- parameter construction ----------------------------
def _conv_toeplitz(w_taps):
    """w_taps:(3,3,Cin,Cout) -> (P*Cin, P*Cout) block-Toeplitz 'same'-conv matrix."""
    cin, cout = w_taps.shape[2], w_taps.shape[3]
    t = np.zeros((P * cin, P * cout), np.float32)
    for qy in range(RES):
        for qx in range(RES):
            q = qy * RES + qx
            for ky in range(3):
                for kx in range(3):
                    py, px = qy + ky - 1, qx + kx - 1
                    if 0 <= py < RES and 0 <= px < RES:
                        p = py * RES + px
                        t[p * cin:(p + 1) * cin, q * cout:(q + 1) * cout] = w_taps[ky, kx]
    return t


def _mbstd_tap_sum(w_e):
    """w_e:(3,3,Cout) taps of the constant stddev channel -> flat (1, P*Cout)."""
    cout = w_e.shape[2]
    t = np.zeros((P, cout), np.float32)
    for qy in range(RES):
        for qx in range(RES):
            q = qy * RES + qx
            for ky in range(3):
                for kx in range(3):
                    py, px = qy + ky - 1, qx + kx - 1
                    if 0 <= py < RES and 0 <= px < RES:
                        t[q] += w_e[ky, kx]
    return t.reshape(1, P * cout)


def _rgb_blockdiag(w, bias):
    """toRGB 1x1 conv: w (NF, RGB) -> (P*NF, 128) block-diag, bias -> (1, 128)."""
    W = np.zeros((PNF, OUTW), np.float32)
    bt = np.zeros((1, OUTW), np.float32)
    for p in range(P):
        W[p * NF:(p + 1) * NF, p * RGBP:p * RGBP + RGB] = w
        bt[0, p * RGBP:p * RGBP + RGB] = bias
    return W, bt


def _frgb_blockdiag(w, bias):
    """fromRGB 1x1 conv: w (RGB, NF) -> (128, P*NF) block-diag, bias -> (1, P*NF)."""
    W = np.zeros((OUTW, PNF), np.float32)
    for p in range(P):
        W[p * RGBP:p * RGBP + RGB, p * NF:(p + 1) * NF] = w
    bt = np.tile(bias.reshape(1, NF), (1, P))
    return W, bt


class ProgressiveModelPallas:
    """Pallas re-implementation of ProgressiveModel.forward (numeric paths)."""

    def __init__(self, seed=0):
        self.phase = "fade"
        self.dim = RES               # load_networks() -> dim = 4
        rng = np.random.RandomState(seed)
        rnd = lambda *s: rng.randn(*s).astype(np.float32)
        bf16 = lambda a: jnp.asarray(a, jnp.bfloat16)
        f32 = lambda a: jnp.asarray(a, jnp.float32)

        # ---- generator (equalized-LR scales folded into the weights) ----
        g_w_fc = rnd(LATENT, PNF) * np.sqrt(2.0 / LATENT)
        g_b_fc = np.zeros((1, PNF), np.float32)
        g_taps = rnd(3, 3, NF, NF) * np.sqrt(2.0 / (9 * NF))
        g_toep = _conv_toeplitz(g_taps)                              # (1024, 1024)
        g_b_c = np.zeros((1, PNF), np.float32)
        g_w_rgb, g_b_rgb = _rgb_blockdiag(rnd(NF, RGB) * np.sqrt(1.0 / NF),
                                          np.zeros((RGB,), np.float32))
        self.gen_params = (bf16(g_w_fc), f32(g_b_fc), bf16(g_toep), f32(g_b_c),
                           bf16(g_w_rgb), f32(g_b_rgb))

        # ---- discriminator ----
        d_w_frgb, d_b_frgb = _frgb_blockdiag(rnd(RGB, NF) * np.sqrt(2.0 / RGB),
                                             np.zeros((NF,), np.float32))
        d_scale3 = np.sqrt(2.0 / (9 * (NF + 1)))     # fan_in includes the stddev ch.
        d_toep = _conv_toeplitz(rnd(3, 3, NF, NF) * d_scale3)        # (1024, 1024)
        d_t_mb = _mbstd_tap_sum(rnd(3, 3, NF) * d_scale3)            # (1, 1024)
        d_b_c = np.zeros((1, PNF), np.float32)
        d_w_c4 = np.zeros((PNF, OUTW), np.float32)                   # N padded to 128
        d_w_c4[:, :NF] = rnd(PNF, NF) * np.sqrt(2.0 / PNF)
        d_b_c4 = np.zeros((1, OUTW), np.float32)
        d_w_fc = np.zeros((OUTW, OUTW), np.float32)                  # logit in col 0
        d_w_fc[:NF, 0] = rnd(NF) * np.sqrt(1.0 / NF)
        d_b_fc = np.zeros((1, OUTW), np.float32)
        self.disc_params = (bf16(d_w_frgb), f32(d_b_frgb), bf16(d_toep),
                            f32(d_t_mb), f32(d_b_c), bf16(d_w_c4), f32(d_b_c4),
                            bf16(d_w_fc), f32(d_b_fc))

    # --- generator network (images use PyTorch NCHW at the API boundary) ---
    def generator(self, z):
        return _inference_fn(z.shape[0])(z, *self.gen_params)

    # --- ProgressiveModel.forward semantics ---
    def forward(self, iteration=0, global_iteration=0, dim_ind=0,
                interpolate=False, z=None, im=None, alpha=None, mode=""):
        # TODO(synk): the fade-phase `interpolate`/alpha blending path is a no-op at
        # dim=4 (no lower resolution to blend with) and is not implemented.
        if mode == "generator":
            return _generator_mode_fn(z.shape[0])(
                z, *self.gen_params, *self.disc_params)
        if mode == "discriminator":
            return _discriminator_mode_fn(z.shape[0])(
                z, im, *self.gen_params, *self.disc_params)
        if mode == "inference":
            return self.generator(z)
        raise ValueError(f"unknown mode: {mode!r}")


# ----------------------------------- main ------------------------------------
if __name__ == "__main__":
    key = jax.random.PRNGKey(0)
    kz, kim = jax.random.split(key)
    B = 2
    z = jax.random.normal(kz, (B, LATENT), dtype=jnp.float32)
    im = jax.random.normal(kim, (B, RGB, RES, RES), dtype=jnp.float32)   # NCHW

    model = ProgressiveModelPallas(seed=0)

    fake = model.forward(mode="inference", z=z)
    g_loss, fake_g = model.forward(mode="generator", z=z, dim_ind=0)
    d_loss, fake_d = model.forward(mode="discriminator", z=z, im=im, dim_ind=0)

    jax.block_until_ready((fake, g_loss, fake_g, d_loss, fake_d))
    assert fake.shape == (B, RGB, RES, RES)
    assert fake_g.shape == (B, RGB, RES, RES)
    assert fake_d.shape == (B, RGB, RES, RES)
    assert g_loss.shape == () and d_loss.shape == ()
    assert bool(jnp.isfinite(fake).all())
    assert bool(jnp.isfinite(fake_g).all()) and bool(jnp.isfinite(fake_d).all())
    assert bool(jnp.isfinite(g_loss)) and bool(jnp.isfinite(d_loss))
    print("KERNEL_OK")
</pallas_src>

<mosaic_0001>
module attributes {stable_mosaic.version = 11 : i64} {
  func.func @kernel(%arg0: i32, %arg1: memref<8x512xf32, #tpu.memory_space<vmem>>, %arg2: memref<512x1024xbf16, #tpu.memory_space<vmem>>, %arg3: memref<1x1024xf32, #tpu.memory_space<vmem>>, %arg4: memref<1024x1024xbf16, #tpu.memory_space<vmem>>, %arg5: memref<1x1024xf32, #tpu.memory_space<vmem>>, %arg6: memref<1024x128xbf16, #tpu.memory_space<vmem>>, %arg7: memref<1x128xf32, #tpu.memory_space<vmem>>, %arg8: memref<8x128xf32, #tpu.memory_space<vmem>>) attributes {dimension_semantics = [#tpu.dimension_semantics<parallel>], iteration_bounds = array<i64: 1>, scalar_prefetch = 0 : i64, scratch_operands = 0 : i64, tpu.core_type = #tpu.core_type<tc>, window_params = [{transform_indices = @transform_0, window_bounds = array<i64: 8, 512>}, {pipeline_mode = #tpu.pipeline_mode<synchronous>, transform_indices = @transform_1, window_bounds = array<i64: 512, 1024>}, {pipeline_mode = #tpu.pipeline_mode<synchronous>, transform_indices = @transform_2, window_bounds = array<i64: 1, 1024>}, {pipeline_mode = #tpu.pipeline_mode<synchronous>, transform_indices = @transform_3, window_bounds = array<i64: 1024, 1024>}, {pipeline_mode = #tpu.pipeline_mode<synchronous>, transform_indices = @transform_4, window_bounds = array<i64: 1, 1024>}, {pipeline_mode = #tpu.pipeline_mode<synchronous>, transform_indices = @transform_5, window_bounds = array<i64: 1024, 128>}, {pipeline_mode = #tpu.pipeline_mode<synchronous>, transform_indices = @transform_6, window_bounds = array<i64: 1, 128>}, {transform_indices = @transform_7, window_bounds = array<i64: 8, 128>}]} {
    %c0 = arith.constant 0 : index
    %c0_0 = arith.constant 0 : index
    %0 = vector.load %arg1[%c0, %c0_0] : memref<8x512xf32, #tpu.memory_space<vmem>>, vector<8x512xf32>
    %1 = arith.mulf %0, %0 : vector<8x512xf32>
    %cst = arith.constant dense<0.000000e+00> : vector<8xf32>
    %2 = vector.multi_reduction <add>, %1, %cst [1] : vector<8x512xf32> to vector<8xf32>
    %3 = vector.shape_cast %2 : vector<8xf32> to vector<8x1xf32>
    %cst_1 = arith.constant 5.120000e+02 : f32
    %4 = vector.broadcast %cst_1 : f32 to vector<8x1xf32>
    %5 = arith.divf %3, %4 : vector<8x1xf32>
    %cst_2 = arith.constant 9.99999993E-9 : f32
    %6 = vector.broadcast %cst_2 : f32 to vector<8x1xf32>
    %7 = arith.addf %5, %6 : vector<8x1xf32>
    %8 = math.rsqrt %7 : vector<8x1xf32>
    %9 = vector.broadcast %8 : vector<8x1xf32> to vector<8x512xf32>
    %10 = arith.mulf %0, %9 : vector<8x512xf32>
    %11 = arith.truncf %10 : vector<8x512xf32> to vector<8x512xbf16>
    %c0_3 = arith.constant 0 : index
    %c0_4 = arith.constant 0 : index
    %12 = vector.load %arg2[%c0_3, %c0_4] : memref<512x1024xbf16, #tpu.memory_space<vmem>>, vector<512x1024xbf16>
    %cst_5 = arith.constant dense<0.000000e+00> : vector<8x1024xf32>
    %13 = tpu.matmul %11, %12, %cst_5 {dimension_numbers = #tpu.dot_dimension_numbers<[1], [0], [0], [1], [0, 0, 1, 1], [], []>} : vector<8x512xbf16>, vector<512x1024xbf16>, vector<8x1024xf32> -> vector<8x1024xf32>
    %c0_6 = arith.constant 0 : index
    %c0_7 = arith.constant 0 : index
    %14 = vector.load %arg3[%c0_6, %c0_7] : memref<1x1024xf32, #tpu.memory_space<vmem>>, vector<1x1024xf32>
    %15 = vector.broadcast %14 : vector<1x1024xf32> to vector<8x1024xf32>
    %16 = arith.addf %13, %15 : vector<8x1024xf32>
    %cst_8 = arith.constant 2.000000e-01 : f32
    %17 = vector.broadcast %cst_8 : f32 to vector<8x1024xf32>
    %18 = arith.mulf %17, %16 : vector<8x1024xf32>
    %19 = arith.maximumf %16, %18 : vector<8x1024xf32>
    %20 = vector.shape_cast %19 : vector<8x1024xf32> to vector<8x16x64xf32>
    %21 = arith.mulf %20, %20 : vector<8x16x64xf32>
    %cst_9 = arith.constant dense<0.000000e+00> : vector<8x16xf32>
    %22 = vector.multi_reduction <add>, %21, %cst_9 [2] : vector<8x16x64xf32> to vector<8x16xf32>
    %23 = vector.shape_cast %22 : vector<8x16xf32> to vector<8x16x1xf32>
    %cst_10 = arith.constant 6.400000e+01 : f32
    %24 = vector.broadcast %cst_10 : f32 to vector<8x16x1xf32>
    %25 = arith.divf %23, %24 : vector<8x16x1xf32>
    %cst_11 = arith.constant 9.99999993E-9 : f32
    %26 = vector.broadcast %cst_11 : f32 to vector<8x16x1xf32>
    %27 = arith.addf %25, %26 : vector<8x16x1xf32>
    %28 = math.rsqrt %27 : vector<8x16x1xf32>
    %29 = vector.broadcast %28 : vector<8x16x1xf32> to vector<8x16x64xf32>
    %30 = arith.mulf %20, %29 : vector<8x16x64xf32>
    %31 = vector.shape_cast %30 : vector<8x16x64xf32> to vector<8x1024xf32>
    %32 = arith.truncf %31 : vector<8x1024xf32> to vector<8x1024xbf16>
    %c0_12 = arith.constant 0 : index
    %c0_13 = arith.constant 0 : index
    %33 = vector.load %arg4[%c0_12, %c0_13] : memref<1024x1024xbf16, #tpu.memory_space<vmem>>, vector<1024x1024xbf16>
    %cst_14 = arith.constant dense<0.000000e+00> : vector<8x1024xf32>
    %34 = tpu.matmul %32, %33, %cst_14 {dimension_numbers = #tpu.dot_dimension_numbers<[1], [0], [0], [1], [0, 0, 1, 1], [], []>} : vector<8x1024xbf16>, vector<1024x1024xbf16>, vector<8x1024xf32> -> vector<8x1024xf32>
    %c0_15 = arith.constant 0 : index
    %c0_16 = arith.constant 0 : index
    %35 = vector.load %arg5[%c0_15, %c0_16] : memref<1x1024xf32, #tpu.memory_space<vmem>>, vector<1x1024xf32>
    %36 = vector.broadcast %35 : vector<1x1024xf32> to vector<8x1024xf32>
    %37 = arith.addf %34, %36 : vector<8x1024xf32>
    %cst_17 = arith.constant 2.000000e-01 : f32
    %38 = vector.broadcast %cst_17 : f32 to vector<8x1024xf32>
    %39 = arith.mulf %38, %37 : vector<8x1024xf32>
    %40 = arith.maximumf %37, %39 : vector<8x1024xf32>
    %41 = vector.shape_cast %40 : vector<8x1024xf32> to vector<8x16x64xf32>
    %42 = arith.mulf %41, %41 : vector<8x16x64xf32>
    %cst_18 = arith.constant dense<0.000000e+00> : vector<8x16xf32>
    %43 = vector.multi_reduction <add>, %42, %cst_18 [2] : vector<8x16x64xf32> to vector<8x16xf32>
    %44 = vector.shape_cast %43 : vector<8x16xf32> to vector<8x16x1xf32>
    %cst_19 = arith.constant 6.400000e+01 : f32
    %45 = vector.broadcast %cst_19 : f32 to vector<8x16x1xf32>
    %46 = arith.divf %44, %45 : vector<8x16x1xf32>
    %cst_20 = arith.constant 9.99999993E-9 : f32
    %47 = vector.broadcast %cst_20 : f32 to vector<8x16x1xf32>
    %48 = arith.addf %46, %47 : vector<8x16x1xf32>
    %49 = math.rsqrt %48 : vector<8x16x1xf32>
    %50 = vector.broadcast %49 : vector<8x16x1xf32> to vector<8x16x64xf32>
    %51 = arith.mulf %41, %50 : vector<8x16x64xf32>
    %52 = vector.shape_cast %51 : vector<8x16x64xf32> to vector<8x1024xf32>
    %53 = arith.truncf %52 : vector<8x1024xf32> to vector<8x1024xbf16>
    %c0_21 = arith.constant 0 : index
    %c0_22 = arith.constant 0 : index
    %54 = vector.load %arg6[%c0_21, %c0_22] : memref<1024x128xbf16, #tpu.memory_space<vmem>>, vector<1024x128xbf16>
    %cst_23 = arith.constant dense<0.000000e+00> : vector<8x128xf32>
    %55 = tpu.matmul %53, %54, %cst_23 {dimension_numbers = #tpu.dot_dimension_numbers<[1], [0], [0], [1], [0, 0, 1, 1], [], []>} : vector<8x1024xbf16>, vector<1024x128xbf16>, vector<8x128xf32> -> vector<8x128xf32>
    %c0_24 = arith.constant 0 : index
    %c0_25 = arith.constant 0 : index
    %56 = vector.load %arg7[%c0_24, %c0_25] : memref<1x128xf32, #tpu.memory_space<vmem>>, vector<1x128xf32>
    %57 = vector.broadcast %56 : vector<1x128xf32> to vector<8x128xf32>
    %58 = arith.addf %55, %57 : vector<8x128xf32>
    %c0_26 = arith.constant 0 : index
    %c0_27 = arith.constant 0 : index
    %59 = vector.load %arg8[%c0_26, %c0_27] : memref<8x128xf32, #tpu.memory_space<vmem>>, vector<8x128xf32>
    tpu.vector_store %arg8[%c0_26, %c0_27], %58 {strides = array<i32>} : memref<8x128xf32, #tpu.memory_space<vmem>>, vector<8x128xf32>,
    return
  }
  func.func @transform_0(%arg0: i32) -> (i32, i32) {
    %c0_i32 = arith.constant 0 : i32
    %c0_i32_0 = arith.constant 0 : i32
    return %arg0, %c0_i32 : i32, i32
  }
  func.func @transform_1(%arg0: i32) -> (i32, i32) {
    %c0_i32 = arith.constant 0 : i32
    %c0_i32_0 = arith.constant 0 : i32
    %c0_i32_1 = arith.constant 0 : i32
    return %c0_i32, %c0_i32_0 : i32, i32
  }
  func.func @transform_2(%arg0: i32) -> (i32, i32) {
    %c0_i32 = arith.constant 0 : i32
    %c0_i32_0 = arith.constant 0 : i32
    %c0_i32_1 = arith.constant 0 : i32
    return %c0_i32, %c0_i32_0 : i32, i32
  }
  func.func @transform_3(%arg0: i32) -> (i32, i32) {
    %c0_i32 = arith.constant 0 : i32
    %c0_i32_0 = arith.constant 0 : i32
    %c0_i32_1 = arith.constant 0 : i32
    return %c0_i32, %c0_i32_0 : i32, i32
  }
  func.func @transform_4(%arg0: i32) -> (i32, i32) {
    %c0_i32 = arith.constant 0 : i32
    %c0_i32_0 = arith.constant 0 : i32
    %c0_i32_1 = arith.constant 0 : i32
    return %c0_i32, %c0_i32_0 : i32, i32
  }
  func.func @transform_5(%arg0: i32) -> (i32, i32) {
    %c0_i32 = arith.constant 0 : i32
    %c0_i32_0 = arith.constant 0 : i32
    %c0_i32_1 = arith.constant 0 : i32
    return %c0_i32, %c0_i32_0 : i32, i32
  }
  func.func @transform_6(%arg0: i32) -> (i32, i32) {
    %c0_i32 = arith.constant 0 : i32
    %c0_i32_0 = arith.constant 0 : i32
    %c0_i32_1 = arith.constant 0 : i32
    return %c0_i32, %c0_i32_0 : i32, i32
  }
  func.func @transform_7(%arg0: i32) -> (i32, i32) {
    %c0_i32 = arith.constant 0 : i32
    %c0_i32_0 = arith.constant 0 : i32
    return %arg0, %c0_i32 : i32, i32
  }
}

</mosaic_0001>

<llo_original>
// kernel: fn.1
$region0: #{fn.1}
  #allocation0 [shape = 'u32[]', space=smem, size = 0x4, offset = 0x4, fixed_abs, tag = 'smem constant byte address 0x4 - core index']
  #allocation1 [shape = 'u32[144,128]{1,0:T(1,128)}', space=vmem, size = 0x12000, scoped, tag = 'internal scratch']
  %s0 = inlined_call_operand.vmem [shape: f32[8,512], index: 0, kind: input, shape index: {}]
  %s1 = inlined_call_operand.hbm [shape: bf16[512,1024], index: 1, kind: input, shape index: {}]
  %s2 = inlined_call_operand.hbm [shape: f32[1,1024], index: 2, kind: input, shape index: {}]
  %s3 = inlined_call_operand.hbm [shape: bf16[1024,1024], index: 3, kind: input, shape index: {}]
  %s4 = inlined_call_operand.hbm [shape: f32[1,1024], index: 4, kind: input, shape index: {}]
  %s5 = inlined_call_operand.hbm [shape: bf16[1024,128], index: 5, kind: input, shape index: {}]
  %s6 = inlined_call_operand.hbm [shape: f32[1,128], index: 6, kind: input, shape index: {}]
  %s7 = inlined_call_operand.vmem [shape: f32[8,128], index: 7, kind: output, shape index: {}]
  %s8 = sld [smem:[#allocation0]]
  $region62: #{fn.1} parent=0
    _
  %s10 = ssub.s32 1, %s8
  %s11 = scalar_select 0, %s10, %s8
  $region1: #{fn.1} parent=0
    #allocation2 [shape = 'u8[1048576]{0}', space=vmem, size = 0x100000, scoped, tag = 'input window, operand 1, single buffered']
    #allocation3 [shape = 's32[1]{0}', space=sflag, size = 0x4, scoped, tag = 'scoped memory for fn.1']
    #allocation4 [shape = 'u8[4096]{0}', space=vmem, size = 0x1000, scoped, tag = 'input window, operand 2, single buffered']
    #allocation5 [shape = 's32[1]{0}', space=sflag, size = 0x4, scoped, tag = 'scoped memory for fn.1']
    #allocation6 [shape = 'u8[2097152]{0}', space=vmem, size = 0x200000, scoped, tag = 'input window, operand 3, single buffered']
    #allocation7 [shape = 'u8[4096]{0}', space=vmem, size = 0x1000, scoped, tag = 'input window, operand 4, single buffered']
    #allocation8 [shape = 's32[1]{0}', space=sflag, size = 0x4, scoped, tag = 'scoped memory for fn.1']
    #allocation9 [shape = 'u8[262144]{0}', space=vmem, size = 0x40000, scoped, tag = 'input window, operand 5, single buffered']
    #allocation10 [shape = 'u8[512]{0}', space=vmem, size = 0x400, scoped, tag = 'input window, operand 6, single buffered']
    #allocation11 [shape = 's32[1]{0}', space=sflag, size = 0x4, scoped, tag = 'scoped memory for fn.1']
    %12 = vsyncpa [#allocation3], 0
    %13 = vsyncpa [#allocation5], 0
    %14 = vsyncpa [#allocation8], 0
    %15 = vsyncpa [#allocation11], 0
    // Predicated region
    $region2: #{fn.1} parent=1 // pred_check
      _
    $region3: #{fn.1} parent=1 // pred_check_branch
      %17 = sbr.rel (0) target = $region5
    $region4: #{fn.1} parent=1 // pred_region
      _
    $region5: #{fn.1} parent=1 // pred_fallthru
      _
    // Predicated region
    $region6: #{fn.1} parent=1 // pred_check
      _
    $region7: #{fn.1} parent=1 // pred_check_branch
      %19 = sbr.rel (0) target = $region9
    $region8: #{fn.1} parent=1 // pred_region
      %s21 = ssub.s32 32768, 32768
      %22 = vsyncadd [#allocation3], %s21
      %s23 = sshll.u32 [#allocation2], 4
      %s24 = int_to_ptr.vmem [resolvable:$true] %s23
      %29 = dma.hbm_to_vmem [thread:$0]  %s1, 32768, %s24, [#allocation3], 512, 512, 32
    $region9: #{fn.1} parent=1 // pred_fallthru
      _
    // Predicated region
    $region10: #{fn.1} parent=1 // pred_check
      _
    $region11: #{fn.1} parent=1 // pred_check_branch
      %31 = sbr.rel (0) target = $region13
    $region12: #{fn.1} parent=1 // pred_region
      %s33 = ssub.s32 128, 128
      %34 = vsyncadd [#allocation5], %s33
      %s36 = sshll.u32 [#allocation4], 4
      %s37 = int_to_ptr.vmem [resolvable:$true] %s36
      %39 = dma.hbm_to_vmem [thread:$0]  %s2, 128, %s37, [#allocation5]
    $region13: #{fn.1} parent=1 // pred_fallthru
      _
    // Predicated region
    $region14: #{fn.1} parent=1 // pred_check
      _
    $region15: #{fn.1} parent=1 // pred_check_branch
      %41 = sbr.rel (0) target = $region17
    $region16: #{fn.1} parent=1 // pred_region
      %s43 = ssub.s32 65536, 65536
      %44 = vsyncadd [#allocation5], %s43
      %s45 = sshll.u32 [#allocation6], 4
      %s46 = int_to_ptr.vmem [resolvable:$true] %s45
      %51 = dma.hbm_to_vmem [thread:$0]  %s3, 65536, %s46, [#allocation5], 512, 512, 32
    $region17: #{fn.1} parent=1 // pred_fallthru
      _
    // Predicated region
    $region18: #{fn.1} parent=1 // pred_check
      _
    $region19: #{fn.1} parent=1 // pred_check_branch
      %53 = sbr.rel (0) target = $region21
    $region20: #{fn.1} parent=1 // pred_region
      %s55 = ssub.s32 128, 128
      %56 = vsyncadd [#allocation8], %s55
      %s58 = sshll.u32 [#allocation7], 4
      %s59 = int_to_ptr.vmem [resolvable:$true] %s58
      %61 = dma.hbm_to_vmem [thread:$0]  %s4, 128, %s59, [#allocation8]
    $region21: #{fn.1} parent=1 // pred_fallthru
      _
    // Predicated region
    $region22: #{fn.1} parent=1 // pred_check
      _
    $region23: #{fn.1} parent=1 // pred_check_branch
      %63 = sbr.rel (0) target = $region25
    $region24: #{fn.1} parent=1 // pred_region
      %s65 = ssub.s32 8192, 8192
      %66 = vsyncadd [#allocation8], %s65
      %s67 = sshll.u32 [#allocation9], 4
      %s68 = int_to_ptr.vmem [resolvable:$true] %s67
      %73 = dma.hbm_to_vmem [thread:$0]  %s5, 8192, %s68, [#allocation8], 64, 64, 4
    $region25: #{fn.1} parent=1 // pred_fallthru
      _
    // Predicated region
    $region26: #{fn.1} parent=1 // pred_check
      _
    $region27: #{fn.1} parent=1 // pred_check_branch
      %75 = sbr.rel (0) target = $region29
    $region28: #{fn.1} parent=1 // pred_region
      %s77 = ssub.s32 16, 16
      %78 = vsyncadd [#allocation11], %s77
      %s80 = sshll.u32 [#allocation10], 4
      %s81 = int_to_ptr.vmem [resolvable:$true] %s80
      %83 = dma.hbm_to_vmem [thread:$0]  %s6, 16, %s81, [#allocation11]
    $region29: #{fn.1} parent=1 // pred_fallthru
      _
    // Predicated region
    $region30: #{fn.1} parent=1 // pred_check
      _
    $region31: #{fn.1} parent=1 // pred_check_branch
      %85 = sbr.rel (0) target = $region33
    $region32: #{fn.1} parent=1 // pred_region
      %86 = dma.done [#allocation3], 32768
    $region33: #{fn.1} parent=1 // pred_fallthru
      _
    // Predicated region
    $region34: #{fn.1} parent=1 // pred_check
      _
    $region35: #{fn.1} parent=1 // pred_check_branch
      %88 = sbr.rel (0) target = $region37
    $region36: #{fn.1} parent=1 // pred_region
      %89 = dma.done [#allocation5], 128
    $region37: #{fn.1} parent=1 // pred_fallthru
      _
    // Predicated region
    $region38: #{fn.1} parent=1 // pred_check
      _
    $region39: #{fn.1} parent=1 // pred_check_branch
      %91 = sbr.rel (0) target = $region41
    $region40: #{fn.1} parent=1 // pred_region
      %92 = dma.done [#allocation5], 65536
    $region41: #{fn.1} parent=1 // pred_fallthru
      _
    // Predicated region
    $region42: #{fn.1} parent=1 // pred_check
      _
    $region43: #{fn.1} parent=1 // pred_check_branch
      %94 = sbr.rel (0) target = $region45
    $region44: #{fn.1} parent=1 // pred_region
      %95 = dma.done [#allocation8], 128
    $region45: #{fn.1} parent=1 // pred_fallthru
      _
    // Predicated region
    $region46: #{fn.1} parent=1 // pred_check
      _
    $region47: #{fn.1} parent=1 // pred_check_branch
      %97 = sbr.rel (0) target = $region49
    $region48: #{fn.1} parent=1 // pred_region
      %98 = dma.done [#allocation8], 8192
    $region49: #{fn.1} parent=1 // pred_fallthru
      _
    // Predicated region
    $region50: #{fn.1} parent=1 // pred_check
      _
    $region51: #{fn.1} parent=1 // pred_check_branch
      %100 = sbr.rel (0) target = $region53
    $region52: #{fn.1} parent=1 // pred_region
      %101 = dma.done [#allocation11], 16
    $region53: #{fn.1} parent=1 // pred_fallthru
      _
    %v103 = vld [vmem:[%s0] sm:$0xff]
    %v104 = vld [vmem:[%s0 + $0x8] sm:$0xff]
    %v105 = vld [vmem:[%s0 + $0x10] sm:$0xff]
    %v106 = vld [vmem:[%s0 + $0x18] sm:$0xff]
    %v107 = vmul.f32 %v103, %v103
    %v108 = vmul.f32 %v104, %v104
    %v109 = vmul.f32 %v105, %v105
    %v110 = vmul.f32 %v106, %v106
    %v111 = vadd.f32 %v107, %v108
    %v112 = vadd.f32 %v111, %v109
    %v113 = vadd.f32 %v112, %v110
    %114 = vadd.xlane.f32.xlu0 %v113
    %v115 = vpop.xlane.xlu0 %114
    %v116 = vrcp.pop 512.0
    %v117 = vmul.f32 %v115, %v116
    %v118 = vadd.f32 %v117, 1e-08
    %v119 = vrsqrt.pop %v118
    %v120 = vmul.f32 %v103, %v119
    %v121 = vmul.f32 %v104, %v119
    %v122 = vmul.f32 %v105, %v119
    %v123 = vmul.f32 %v106, %v119
    %v124 = vpack.c.bf16 %v120, %v120
    %v125 = vpack.c.bf16 %v121, %v121
    %v126 = vpack.c.bf16 %v122, %v122
    %v127 = vpack.c.bf16 %v123, %v123
    %v128 = vld [vmem:[#allocation2] sm:$0xff]
    %v129 = vld [vmem:[#allocation2 + $0x8] sm:$0xff]
    %v130 = vld [vmem:[#allocation2 + $0x10] sm:$0xff]
    %v131 = vld [vmem:[#allocation2 + $0x18] sm:$0xff]
    %v132 = vld [vmem:[#allocation2 + $0x20] sm:$0xff]
    %v133 = vld [vmem:[#allocation2 + $0x28] sm:$0xff]
    %v134 = vld [vmem:[#allocation2 + $0x30] sm:$0xff]
    %v135 = vld [vmem:[#allocation2 + $0x38] sm:$0xff]
    %v136 = vld [vmem:[#allocation2 + $0x40] sm:$0xff]
    %v137 = vld [vmem:[#allocation2 + $0x48] sm:$0xff]
    %v138 = vld [vmem:[#allocation2 + $0x50] sm:$0xff]
    %v139 = vld [vmem:[#allocation2 + $0x58] sm:$0xff]
    %v140 = vld [vmem:[#allocation2 + $0x60] sm:$0xff]
    %v141 = vld [vmem:[#allocation2 + $0x68] sm:$0xff]
    %v142 = vld [vmem:[#allocation2 + $0x70] sm:$0xff]
    %v143 = vld [vmem:[#allocation2 + $0x78] sm:$0xff]
    %v144 = vld [vmem:[#allocation2 + $0x80] sm:$0xff]
    %v145 = vld [vmem:[#allocation2 + $0x88] sm:$0xff]
    %v146 = vld [vmem:[#allocation2 + $0x90] sm:$0xff]
    %v147 = vld [vmem:[#allocation2 + $0x98] sm:$0xff]
    %v148 = vld [vmem:[#allocation2 + $0xa0] sm:$0xff]
    %v149 = vld [vmem:[#allocation2 + $0xa8] sm:$0xff]
    %v150 = vld [vmem:[#allocation2 + $0xb0] sm:$0xff]
    %v151 = vld [vmem:[#allocation2 + $0xb8] sm:$0xff]
    %v152 = vld [vmem:[#allocation2 + $0xc0] sm:$0xff]
    %v153 = vld [vmem:[#allocation2 + $0xc8] sm:$0xff]
    %v154 = vld [vmem:[#allocation2 + $0xd0] sm:$0xff]
    %v155 = vld [vmem:[#allocation2 + $0xd8] sm:$0xff]
    %v156 = vld [vmem:[#allocation2 + $0xe0] sm:$0xff]
    %v157 = vld [vmem:[#allocation2 + $0xe8] sm:$0xff]
    %v158 = vld [vmem:[#allocation2 + $0xf0] sm:$0xff]
    %v159 = vld [vmem:[#allocation2 + $0xf8] sm:$0xff]
    %v160 = vld [vmem:[#allocation2 + $0x100] sm:$0xff]
    %v161 = vld [vmem:[#allocation2 + $0x108] sm:$0xff]
    %v162 = vld [vmem:[#allocation2 + $0x110] sm:$0xff]
    %v163 = vld [vmem:[#allocation2 + $0x118] sm:$0xff]
    %v164 = vld [vmem:[#allocation2 + $0x120] sm:$0xff]
    %v165 = vld [vmem:[#allocation2 + $0x128] sm:$0xff]
    %v166 = vld [vmem:[#allocation2 + $0x130] sm:$0xff]
    %v167 = vld [vmem:[#allocation2 + $0x138] sm:$0xff]
    %v168 = vld [vmem:[#allocation2 + $0x140] sm:$0xff]
    %v169 = vld [vmem:[#allocation2 + $0x148] sm:$0xff]
    %v170 = vld [vmem:[#allocation2 + $0x150] sm:$0xff]
    %v171 = vld [vmem:[#allocation2 + $0x158] sm:$0xff]
    %v172 = vld [vmem:[#allocation2 + $0x160] sm:$0xff]
    %v173 = vld [vmem:[#allocation2 + $0x168] sm:$0xff]
    %v174 = vld [vmem:[#allocation2 + $0x170] sm:$0xff]
    %v175 = vld [vmem:[#allocation2 + $0x178] sm:$0xff]
    %v176 = vld [vmem:[#allocation2 + $0x180] sm:$0xff]
    %v177 = vld [vmem:[#allocation2 + $0x188] sm:$0xff]
    %v178 = vld [vmem:[#allocation2 + $0x190] sm:$0xff]
    %v179 = vld [vmem:[#allocation2 + $0x198] sm:$0xff]
    %v180 = vld [vmem:[#allocation2 + $0x1a0] sm:$0xff]
    %v181 = vld [vmem:[#allocation2 + $0x1a8] sm:$0xff]
    %v182 = vld [vmem:[#allocation2 + $0x1b0] sm:$0xff]
    %v183 = vld [vmem:[#allocation2 + $0x1b8] sm:$0xff]
    %v184 = vld [vmem:[#allocation2 + $0x1c0] sm:$0xff]
    %v185 = vld [vmem:[#allocation2 + $0x1c8] sm:$0xff]
    %v186 = vld [vmem:[#allocation2 + $0x1d0] sm:$0xff]
    %v187 = vld [vmem:[#allocation2 + $0x1d8] sm:$0xff]
    %v188 = vld [vmem:[#allocation2 + $0x1e0] sm:$0xff]
    %v189 = vld [vmem:[#allocation2 + $0x1e8] sm:$0xff]
    %v190 = vld [vmem:[#allocation2 + $0x1f0] sm:$0xff]
    %v191 = vld [vmem:[#allocation2 + $0x1f8] sm:$0xff]
    %v192 = vld [vmem:[#allocation2 + $0x200] sm:$0xff]
    %v193 = vld [vmem:[#allocation2 + $0x208] sm:$0xff]
    %v194 = vld [vmem:[#allocation2 + $0x210] sm:$0xff]
    %v195 = vld [vmem:[#allocation2 + $0x218] sm:$0xff]
    %v196 = vld [vmem:[#allocation2 + $0x220] sm:$0xff]
    %v197 = vld [vmem:[#allocation2 + $0x228] sm:$0xff]
    %v198 = vld [vmem:[#allocation2 + $0x230] sm:$0xff]
    %v199 = vld [vmem:[#allocation2 + $0x238] sm:$0xff]
    %v200 = vld [vmem:[#allocation2 + $0x240] sm:$0xff]
    %v201 = vld [vmem:[#allocation2 + $0x248] sm:$0xff]
    %v202 = vld [vmem:[#allocation2 + $0x250] sm:$0xff]
    %v203 = vld [vmem:[#allocation2 + $0x258] sm:$0xff]
    %v204 = vld [vmem:[#allocation2 + $0x260] sm:$0xff]
    %v205 = vld [vmem:[#allocation2 + $0x268] sm:$0xff]
    %v206 = vld [vmem:[#allocation2 + $0x270] sm:$0xff]
    %v207 = vld [vmem:[#allocation2 + $0x278] sm:$0xff]
    %v208 = vld [vmem:[#allocation2 + $0x280] sm:$0xff]
    %v209 = vld [vmem:[#allocation2 + $0x288] sm:$0xff]
    %v210 = vld [vmem:[#allocation2 + $0x290] sm:$0xff]
    %v211 = vld [vmem:[#allocation2 + $0x298] sm:$0xff]
    %v212 = vld [vmem:[#allocation2 + $0x2a0] sm:$0xff]
    %v213 = vld [vmem:[#allocation2 + $0x2a8] sm:$0xff]
    %v214 = vld [vmem:[#allocation2 + $0x2b0] sm:$0xff]
    %v215 = vld [vmem:[#allocation2 + $0x2b8] sm:$0xff]
    %v216 = vld [vmem:[#allocation2 + $0x2c0] sm:$0xff]
    %v217 = vld [vmem:[#allocation2 + $0x2c8] sm:$0xff]
    %v218 = vld [vmem:[#allocation2 + $0x2d0] sm:$0xff]
    %v219 = vld [vmem:[#allocation2 + $0x2d8] sm:$0xff]
    %v220 = vld [vmem:[#allocation2 + $0x2e0] sm:$0xff]
    %v221 = vld [vmem:[#allocation2 + $0x2e8] sm:$0xff]
    %v222 = vld [vmem:[#allocation2 + $0x2f0] sm:$0xff]
    %v223 = vld [vmem:[#allocation2 + $0x2f8] sm:$0xff]
    %v224 = vld [vmem:[#allocation2 + $0x300] sm:$0xff]
    %v225 = vld [vmem:[#allocation2 + $0x308] sm:$0xff]
    %v226 = vld [vmem:[#allocation2 + $0x310] sm:$0xff]
    %v227 = vld [vmem:[#allocation2 + $0x318] sm:$0xff]
    %v228 = vld [vmem:[#allocation2 + $0x320] sm:$0xff]
    %v229 = vld [vmem:[#allocation2 + $0x328] sm:$0xff]
    %v230 = vld [vmem:[#allocation2 + $0x330] sm:$0xff]
    %v231 = vld [vmem:[#allocation2 + $0x338] sm:$0xff]
    %v232 = vld [vmem:[#allocation2 + $0x340] sm:$0xff]
    %v233 = vld [vmem:[#allocation2 + $0x348] sm:$0xff]
    %v234 = vld [vmem:[#allocation2 + $0x350] sm:$0xff]
    %v235 = vld [vmem:[#allocation2 + $0x358] sm:$0xff]
    %v236 = vld [vmem:[#allocation2 + $0x360] sm:$0xff]
    %v237 = vld [vmem:[#allocation2 + $0x368] sm:$0xff]
    %v238 = vld [vmem:[#allocation2 + $0x370] sm:$0xff]
    %v239 = vld [vmem:[#allocation2 + $0x378] sm:$0xff]
    %v240 = vld [vmem:[#allocation2 + $0x380] sm:$0xff]
    %v241 = vld [vmem:[#allocation2 + $0x388] sm:$0xff]
    %v242 = vld [vmem:[#allocation2 + $0x390] sm:$0xff]
    %v243 = vld [vmem:[#allocation2 + $0x398] sm:$0xff]
    %v244 = vld [vmem:[#allocation2 + $0x3a0] sm:$0xff]
    %v245 = vld [vmem:[#allocation2 + $0x3a8] sm:$0xff]
    %v246 = vld [vmem:[#allocation2 + $0x3b0] sm:$0xff]
    %v247 = vld [vmem:[#allocation2 + $0x3b8] sm:$0xff]
    %v248 = vld [vmem:[#allocation2 + $0x3c0] sm:$0xff]
    %v249 = vld [vmem:[#allocation2 + $0x3c8] sm:$0xff]
    %v250 = vld [vmem:[#allocation2 + $0x3d0] sm:$0xff]
    %v251 = vld [vmem:[#allocation2 + $0x3d8] sm:$0xff]
    %v252 = vld [vmem:[#allocation2 + $0x3e0] sm:$0xff]
    %v253 = vld [vmem:[#allocation2 + $0x3e8] sm:$0xff]
    %v254 = vld [vmem:[#allocation2 + $0x3f0] sm:$0xff]
    %v255 = vld [vmem:[#allocation2 + $0x3f8] sm:$0xff]
    %v256 = vld [vmem:[#allocation2 + $0x400] sm:$0xff]
    %v257 = vld [vmem:[#allocation2 + $0x408] sm:$0xff]
    %v258 = vld [vmem:[#allocation2 + $0x410] sm:$0xff]
    %v259 = vld [vmem:[#allocation2 + $0x418] sm:$0xff]
    %v260 = vld [vmem:[#allocation2 + $0x420] sm:$0xff]
    %v261 = vld [vmem:[#allocation2 + $0x428] sm:$0xff]
    %v262 = vld [vmem:[#allocation2 + $0x430] sm:$0xff]
    %v263 = vld [vmem:[#allocation2 + $0x438] sm:$0xff]
    %v264 = vld [vmem:[#allocation2 + $0x440] sm:$0xff]
    %v265 = vld [vmem:[#allocation2 + $0x448] sm:$0xff]
    %v266 = vld [vmem:[#allocation2 + $0x450] sm:$0xff]
    %v267 = vld [vmem:[#allocation2 + $0x458] sm:$0xff]
    %v268 = vld [vmem:[#allocation2 + $0x460] sm:$0xff]
    %v269 = vld [vmem:[#allocation2 + $0x468] sm:$0xff]
    %v270 = vld [vmem:[#allocation2 + $0x470] sm:$0xff]
    %v271 = vld [vmem:[#allocation2 + $0x478] sm:$0xff]
    %v272 = vld [vmem:[#allocation2 + $0x480] sm:$0xff]
    %v273 = vld [vmem:[#allocation2 + $0x488] sm:$0xff]
    %v274 = vld [vmem:[#allocation2 + $0x490] sm:$0xff]
    %v275 = vld [vmem:[#allocation2 + $0x498] sm:$0xff]
    %v276 = vld [vmem:[#allocation2 + $0x4a0] sm:$0xff]
    %v277 = vld [vmem:[#allocation2 + $0x4a8] sm:$0xff]
    %v278 = vld [vmem:[#allocation2 + $0x4b0] sm:$0xff]
    %v279 = vld [vmem:[#allocation2 + $0x4b8] sm:$0xff]
    %v280 = vld [vmem:[#allocation2 + $0x4c0] sm:$0xff]
    %v281 = vld [vmem:[#allocation2 + $0x4c8] sm:$0xff]
    %v282 = vld [vmem:[#allocation2 + $0x4d0] sm:$0xff]
    %v283 = vld [vmem:[#allocation2 + $0x4d8] sm:$0xff]
    %v284 = vld [vmem:[#allocation2 + $0x4e0] sm:$0xff]
    %v285 = vld [vmem:[#allocation2 + $0x4e8] sm:$0xff]
    %v286 = vld [vmem:[#allocation2 + $0x4f0] sm:$0xff]
    %v287 = vld [vmem:[#allocation2 + $0x4f8] sm:$0xff]
    %v288 = vld [vmem:[#allocation2 + $0x500] sm:$0xff]
    %v289 = vld [vmem:[#allocation2 + $0x508] sm:$0xff]
    %v290 = vld [vmem:[#allocation2 + $0x510] sm:$0xff]
    %v291 = vld [vmem:[#allocation2 + $0x518] sm:$0xff]
    %v292 = vld [vmem:[#allocation2 + $0x520] sm:$0xff]
    %v293 = vld [vmem:[#allocation2 + $0x528] sm:$0xff]
    %v294 = vld [vmem:[#allocation2 + $0x530] sm:$0xff]
    %v295 = vld [vmem:[#allocation2 + $0x538] sm:$0xff]
    %v296 = vld [vmem:[#allocation2 + $0x540] sm:$0xff]
    %v297 = vld [vmem:[#allocation2 + $0x548] sm:$0xff]
    %v298 = vld [vmem:[#allocation2 + $0x550] sm:$0xff]
    %v299 = vld [vmem:[#allocation2 + $0x558] sm:$0xff]
    %v300 = vld [vmem:[#allocation2 + $0x560] sm:$0xff]
    %v301 = vld [vmem:[#allocation2 + $0x568] sm:$0xff]
    %v302 = vld [vmem:[#allocation2 + $0x570] sm:$0xff]
    %v303 = vld [vmem:[#allocation2 + $0x578] sm:$0xff]
    %v304 = vld [vmem:[#allocation2 + $0x580] sm:$0xff]
    %v305 = vld [vmem:[#allocation2 + $0x588] sm:$0xff]
    %v306 = vld [vmem:[#allocation2 + $0x590] sm:$0xff]
    %v307 = vld [vmem:[#allocation2 + $0x598] sm:$0xff]
    %v308 = vld [vmem:[#allocation2 + $0x5a0] sm:$0xff]
    %v309 = vld [vmem:[#allocation2 + $0x5a8] sm:$0xff]
    %v310 = vld [vmem:[#allocation2 + $0x5b0] sm:$0xff]
    %v311 = vld [vmem:[#allocation2 + $0x5b8] sm:$0xff]
    %v312 = vld [vmem:[#allocation2 + $0x5c0] sm:$0xff]
    %v313 = vld [vmem:[#allocation2 + $0x5c8] sm:$0xff]
    %v314 = vld [vmem:[#allocation2 + $0x5d0] sm:$0xff]
    %v315 = vld [vmem:[#allocation2 + $0x5d8] sm:$0xff]
    %v316 = vld [vmem:[#allocation2 + $0x5e0] sm:$0xff]
    %v317 = vld [vmem:[#allocation2 + $0x5e8] sm:$0xff]
    %v318 = vld [vmem:[#allocation2 + $0x5f0] sm:$0xff]
    %v319 = vld [vmem:[#allocation2 + $0x5f8] sm:$0xff]
    %v320 = vld [vmem:[#allocation2 + $0x600] sm:$0xff]
    %v321 = vld [vmem:[#allocation2 + $0x608] sm:$0xff]
    %v322 = vld [vmem:[#allocation2 + $0x610] sm:$0xff]
    %v323 = vld [vmem:[#allocation2 + $0x618] sm:$0xff]
    %v324 = vld [vmem:[#allocation2 + $0x620] sm:$0xff]
    %v325 = vld [vmem:[#allocation2 + $0x628] sm:$0xff]
    %v326 = vld [vmem:[#allocation2 + $0x630] sm:$0xff]
    %v327 = vld [vmem:[#allocation2 + $0x638] sm:$0xff]
    %v328 = vld [vmem:[#allocation2 + $0x640] sm:$0xff]
    %v329 = vld [vmem:[#allocation2 + $0x648] sm:$0xff]
    %v330 = vld [vmem:[#allocation2 + $0x650] sm:$0xff]
    %v331 = vld [vmem:[#allocation2 + $0x658] sm:$0xff]
    %v332 = vld [vmem:[#allocation2 + $0x660] sm:$0xff]
    %v333 = vld [vmem:[#allocation2 + $0x668] sm:$0xff]
    %v334 = vld [vmem:[#allocation2 + $0x670] sm:$0xff]
    %v335 = vld [vmem:[#allocation2 + $0x678] sm:$0xff]
    %v336 = vld [vmem:[#allocation2 + $0x680] sm:$0xff]
    %v337 = vld [vmem:[#allocation2 + $0x688] sm:$0xff]
    %v338 = vld [vmem:[#allocation2 + $0x690] sm:$0xff]
    %v339 = vld [vmem:[#allocation2 + $0x698] sm:$0xff]
    %v340 = vld [vmem:[#allocation2 + $0x6a0] sm:$0xff]
    %v341 = vld [vmem:[#allocation2 + $0x6a8] sm:$0xff]
    %v342 = vld [vmem:[#allocation2 + $0x6b0] sm:$0xff]
    %v343 = vld [vmem:[#allocation2 + $0x6b8] sm:$0xff]
    %v344 = vld [vmem:[#allocation2 + $0x6c0] sm:$0xff]
    %v345 = vld [vmem:[#allocation2 + $0x6c8] sm:$0xff]
    %v346 = vld [vmem:[#allocation2 + $0x6d0] sm:$0xff]
    %v347 = vld [vmem:[#allocation2 + $0x6d8] sm:$0xff]
    %v348 = vld [vmem:[#allocation2 + $0x6e0] sm:$0xff]
    %v349 = vld [vmem:[#allocation2 + $0x6e8] sm:$0xff]
    %v350 = vld [vmem:[#allocation2 + $0x6f0] sm:$0xff]
    %v351 = vld [vmem:[#allocation2 + $0x6f8] sm:$0xff]
    %v352 = vld [vmem:[#allocation2 + $0x700] sm:$0xff]
    %v353 = vld [vmem:[#allocation2 + $0x708] sm:$0xff]
    %v354 = vld [vmem:[#allocation2 + $0x710] sm:$0xff]
    %v355 = vld [vmem:[#allocation2 + $0x718] sm:$0xff]
    %v356 = vld [vmem:[#allocation2 + $0x720] sm:$0xff]
    %v357 = vld [vmem:[#allocation2 + $0x728] sm:$0xff]
    %v358 = vld [vmem:[#allocation2 + $0x730] sm:$0xff]
    %v359 = vld [vmem:[#allocation2 + $0x738] sm:$0xff]
    %v360 = vld [vmem:[#allocation2 + $0x740] sm:$0xff]
    %v361 = vld [vmem:[#allocation2 + $0x748] sm:$0xff]
    %v362 = vld [vmem:[#allocation2 + $0x750] sm:$0xff]
    %v363 = vld [vmem:[#allocation2 + $0x758] sm:$0xff]
    %v364 = vld [vmem:[#allocation2 + $0x760] sm:$0xff]
    %v365 = vld [vmem:[#allocation2 + $0x768] sm:$0xff]
    %v366 = vld [vmem:[#allocation2 + $0x770] sm:$0xff]
    %v367 = vld [vmem:[#allocation2 + $0x778] sm:$0xff]
    %v368 = vld [vmem:[#allocation2 + $0x780] sm:$0xff]
    %v369 = vld [vmem:[#allocation2 + $0x788] sm:$0xff]
    %v370 = vld [vmem:[#allocation2 + $0x790] sm:$0xff]
    %v371 = vld [vmem:[#allocation2 + $0x798] sm:$0xff]
    %v372 = vld [vmem:[#allocation2 + $0x7a0] sm:$0xff]
    %v373 = vld [vmem:[#allocation2 + $0x7a8] sm:$0xff]
    %v374 = vld [vmem:[#allocation2 + $0x7b0] sm:$0xff]
    %v375 = vld [vmem:[#allocation2 + $0x7b8] sm:$0xff]
    %v376 = vld [vmem:[#allocation2 + $0x7c0] sm:$0xff]
    %v377 = vld [vmem:[#allocation2 + $0x7c8] sm:$0xff]
    %v378 = vld [vmem:[#allocation2 + $0x7d0] sm:$0xff]
    %v379 = vld [vmem:[#allocation2 + $0x7d8] sm:$0xff]
    %v380 = vld [vmem:[#allocation2 + $0x7e0] sm:$0xff]
    %v381 = vld [vmem:[#allocation2 + $0x7e8] sm:$0xff]
    %v382 = vld [vmem:[#allocation2 + $0x7f0] sm:$0xff]
    %v383 = vld [vmem:[#allocation2 + $0x7f8] sm:$0xff]
    %v384 = vld [vmem:[#allocation4] sm:$0xff]
    %v386 = vlaneseq
    %v387 = vshrl.u32 %v386, 7
    %v388 = vsub.s32 0, %v387
    %v389 = vrot.slane %v384, %v388
    %v390 = vlaneseq
    %v391 = vshrl.u32 %v390, 7
    %v392 = vsub.s32 1, %v391
    %v393 = vrot.slane %v384, %v392
    %v394 = vlaneseq
    %v395 = vshrl.u32 %v394, 7
    %v396 = vsub.s32 2, %v395
    %v397 = vrot.slane %v384, %v396
    %v398 = vlaneseq
    %v399 = vshrl.u32 %v398, 7
    %v400 = vsub.s32 3, %v399
    %v401 = vrot.slane %v384, %v400
    %v402 = vlaneseq
    %v403 = vshrl.u32 %v402, 7
    %v404 = vsub.s32 4, %v403
    %v405 = vrot.slane %v384, %v404
    %v406 = vlaneseq
    %v407 = vshrl.u32 %v406, 7
    %v408 = vsub.s32 5, %v407
    %v409 = vrot.slane %v384, %v408
    %v410 = vlaneseq
    %v411 = vshrl.u32 %v410, 7
    %v412 = vsub.s32 6, %v411
    %v413 = vrot.slane %v384, %v412
    %v414 = vlaneseq
    %v415 = vshrl.u32 %v414, 7
    %v416 = vsub.s32 7, %v415
    %v417 = vrot.slane %v384, %v416
    %v682 = vunpack.c.l.b16 %v128
    %v683 = vunpack.c.h.b16 %v128
    %v684 = vunpack.c.l.b16 %v129
    %v685 = vunpack.c.h.b16 %v129
    %v686 = vunpack.c.l.b16 %v130
    %v687 = vunpack.c.h.b16 %v130
    %v688 = vunpack.c.l.b16 %v131
    %v689 = vunpack.c.h.b16 %v131
    %v690 = vunpack.c.l.b16 %v132
    %v691 = vunpack.c.h.b16 %v132
    %v692 = vunpack.c.l.b16 %v133
    %v693 = vunpack.c.h.b16 %v133
    %v694 = vunpack.c.l.b16 %v134
    %v695 = vunpack.c.h.b16 %v134
    %v696 = vunpack.c.l.b16 %v135
    %v697 = vunpack.c.h.b16 %v135
    %v698 = vunpack.c.l.b16 %v136
    %v699 = vunpack.c.h.b16 %v136
    %v700 = vunpack.c.l.b16 %v137
    %v701 = vunpack.c.h.b16 %v137
    %v702 = vunpack.c.l.b16 %v138
    %v703 = vunpack.c.h.b16 %v138
    %v704 = vunpack.c.l.b16 %v139
    %v705 = vunpack.c.h.b16 %v139
    %v706 = vunpack.c.l.b16 %v140
    %v707 = vunpack.c.h.b16 %v140
    %v708 = vunpack.c.l.b16 %v141
    %v709 = vunpack.c.h.b16 %v141
    %v710 = vunpack.c.l.b16 %v142
    %v711 = vunpack.c.h.b16 %v142
    %v712 = vunpack.c.l.b16 %v143
    %v713 = vunpack.c.h.b16 %v143
    %v714 = vunpack.c.l.b16 %v144
    %v715 = vunpack.c.h.b16 %v144
    %v716 = vunpack.c.l.b16 %v145
    %v717 = vunpack.c.h.b16 %v145
    %v718 = vunpack.c.l.b16 %v146
    %v719 = vunpack.c.h.b16 %v146
    %v720 = vunpack.c.l.b16 %v147
    %v721 = vunpack.c.h.b16 %v147
    %v722 = vunpack.c.l.b16 %v148
    %v723 = vunpack.c.h.b16 %v148
    %v724 = vunpack.c.l.b16 %v149
    %v725 = vunpack.c.h.b16 %v149
    %v726 = vunpack.c.l.b16 %v150
    %v727 = vunpack.c.h.b16 %v150
    %v728 = vunpack.c.l.b16 %v151
    %v729 = vunpack.c.h.b16 %v151
    %v730 = vunpack.c.l.b16 %v152
    %v731 = vunpack.c.h.b16 %v152
    %v732 = vunpack.c.l.b16 %v153
    %v733 = vunpack.c.h.b16 %v153
    %v734 = vunpack.c.l.b16 %v154
    %v735 = vunpack.c.h.b16 %v154
    %v736 = vunpack.c.l.b16 %v155
    %v737 = vunpack.c.h.b16 %v155
    %v738 = vunpack.c.l.b16 %v156
    %v739 = vunpack.c.h.b16 %v156
    %v740 = vunpack.c.l.b16 %v157
    %v741 = vunpack.c.h.b16 %v157
    %v742 = vunpack.c.l.b16 %v158
    %v743 = vunpack.c.h.b16 %v158
    %v744 = vunpack.c.l.b16 %v159
    %v745 = vunpack.c.h.b16 %v159
    %v746 = vunpack.c.l.b16 %v160
    %v747 = vunpack.c.h.b16 %v160
    %v748 = vunpack.c.l.b16 %v161
    %v749 = vunpack.c.h.b16 %v161
    %v750 = vunpack.c.l.b16 %v162
    %v751 = vunpack.c.h.b16 %v162
    %v752 = vunpack.c.l.b16 %v163
    %v753 = vunpack.c.h.b16 %v163
    %v754 = vunpack.c.l.b16 %v164
    %v755 = vunpack.c.h.b16 %v164
    %v756 = vunpack.c.l.b16 %v165
    %v757 = vunpack.c.h.b16 %v165
    %v758 = vunpack.c.l.b16 %v166
    %v759 = vunpack.c.h.b16 %v166
    %v760 = vunpack.c.l.b16 %v167
    %v761 = vunpack.c.h.b16 %v167
    %v762 = vunpack.c.l.b16 %v168
    %v763 = vunpack.c.h.b16 %v168
    %v764 = vunpack.c.l.b16 %v169
    %v765 = vunpack.c.h.b16 %v169
    %v766 = vunpack.c.l.b16 %v170
    %v767 = vunpack.c.h.b16 %v170
    %v768 = vunpack.c.l.b16 %v171
    %v769 = vunpack.c.h.b16 %v171
    %v770 = vunpack.c.l.b16 %v172
    %v771 = vunpack.c.h.b16 %v172
    %v772 = vunpack.c.l.b16 %v173
    %v773 = vunpack.c.h.b16 %v173
    %v774 = vunpack.c.l.b16 %v174
    %v775 = vunpack.c.h.b16 %v174
    %v776 = vunpack.c.l.b16 %v175
    %v777 = vunpack.c.h.b16 %v175
    %v778 = vunpack.c.l.b16 %v176
    %v779 = vunpack.c.h.b16 %v176
    %v780 = vunpack.c.l.b16 %v177
    %v781 = vunpack.c.h.b16 %v177
    %v782 = vunpack.c.l.b16 %v178
    %v783 = vunpack.c.h.b16 %v178
    %v784 = vunpack.c.l.b16 %v179
    %v785 = vunpack.c.h.b16 %v179
    %v786 = vunpack.c.l.b16 %v180
    %v787 = vunpack.c.h.b16 %v180
    %v788 = vunpack.c.l.b16 %v181
    %v789 = vunpack.c.h.b16 %v181
    %v790 = vunpack.c.l.b16 %v182
    %v791 = vunpack.c.h.b16 %v182
    %v792 = vunpack.c.l.b16 %v183
    %v793 = vunpack.c.h.b16 %v183
    %v794 = vunpack.c.l.b16 %v184
    %v795 = vunpack.c.h.b16 %v184
    %v796 = vunpack.c.l.b16 %v185
    %v797 = vunpack.c.h.b16 %v185
    %v798 = vunpack.c.l.b16 %v186
    %v799 = vunpack.c.h.b16 %v186
    %v800 = vunpack.c.l.b16 %v187
    %v801 = vunpack.c.h.b16 %v187
    %v802 = vunpack.c.l.b16 %v188
    %v803 = vunpack.c.h.b16 %v188
    %v804 = vunpack.c.l.b16 %v189
    %v805 = vunpack.c.h.b16 %v189
    %v806 = vunpack.c.l.b16 %v190
    %v807 = vunpack.c.h.b16 %v190
    %v808 = vunpack.c.l.b16 %v191
    %v809 = vunpack.c.h.b16 %v191
    %v810 = vunpack.c.l.b16 %v192
    %v811 = vunpack.c.h.b16 %v192
    %v812 = vunpack.c.l.b16 %v193
    %v813 = vunpack.c.h.b16 %v193
    %v814 = vunpack.c.l.b16 %v194
    %v815 = vunpack.c.h.b16 %v194
    %v816 = vunpack.c.l.b16 %v195
    %v817 = vunpack.c.h.b16 %v195
    %v818 = vunpack.c.l.b16 %v196
    %v819 = vunpack.c.h.b16 %v196
    %v820 = vunpack.c.l.b16 %v197
    %v821 = vunpack.c.h.b16 %v197
    %v822 = vunpack.c.l.b16 %v198
    %v823 = vunpack.c.h.b16 %v198
    %v824 = vunpack.c.l.b16 %v199
    %v825 = vunpack.c.h.b16 %v199
    %v826 = vunpack.c.l.b16 %v200
    %v827 = vunpack.c.h.b16 %v200
    %v828 = vunpack.c.l.b16 %v201
    %v829 = vunpack.c.h.b16 %v201
    %v830 = vunpack.c.l.b16 %v202
    %v831 = vunpack.c.h.b16 %v202
    %v832 = vunpack.c.l.b16 %v203
    %v833 = vunpack.c.h.b16 %v203
    %v834 = vunpack.c.l.b16 %v204
    %v835 = vunpack.c.h.b16 %v204
    %v836 = vunpack.c.l.b16 %v205
    %v837 = vunpack.c.h.b16 %v205
    %v838 = vunpack.c.l.b16 %v206
    %v839 = vunpack.c.h.b16 %v206
    %v840 = vunpack.c.l.b16 %v207
    %v841 = vunpack.c.h.b16 %v207
    %v842 = vunpack.c.l.b16 %v208
    %v843 = vunpack.c.h.b16 %v208
    %v844 = vunpack.c.l.b16 %v209
    %v845 = vunpack.c.h.b16 %v209
    %v846 = vunpack.c.l.b16 %v210
    %v847 = vunpack.c.h.b16 %v210
    %v848 = vunpack.c.l.b16 %v211
    %v849 = vunpack.c.h.b16 %v211
    %v850 = vunpack.c.l.b16 %v212
    %v851 = vunpack.c.h.b16 %v212
    %v852 = vunpack.c.l.b16 %v213
    %v853 = vunpack.c.h.b16 %v213
    %v854 = vunpack.c.l.b16 %v214
    %v855 = vunpack.c.h.b16 %v214
    %v856 = vunpack.c.l.b16 %v215
    %v857 = vunpack.c.h.b16 %v215
    %v858 = vunpack.c.l.b16 %v216
    %v859 = vunpack.c.h.b16 %v216
    %v860 = vunpack.c.l.b16 %v217
    %v861 = vunpack.c.h.b16 %v217
    %v862 = vunpack.c.l.b16 %v218
    %v863 = vunpack.c.h.b16 %v218
    %v864 = vunpack.c.l.b16 %v219
    %v865 = vunpack.c.h.b16 %v219
    %v866 = vunpack.c.l.b16 %v220
    %v867 = vunpack.c.h.b16 %v220
    %v868 = vunpack.c.l.b16 %v221
    %v869 = vunpack.c.h.b16 %v221
    %v870 = vunpack.c.l.b16 %v222
    %v871 = vunpack.c.h.b16 %v222
    %v872 = vunpack.c.l.b16 %v223
    %v873 = vunpack.c.h.b16 %v223
    %v874 = vunpack.c.l.b16 %v224
    %v875 = vunpack.c.h.b16 %v224
    %v876 = vunpack.c.l.b16 %v225
    %v877 = vunpack.c.h.b16 %v225
    %v878 = vunpack.c.l.b16 %v226
    %v879 = vunpack.c.h.b16 %v226
    %v880 = vunpack.c.l.b16 %v227
    %v881 = vunpack.c.h.b16 %v227
    %v882 = vunpack.c.l.b16 %v228
    %v883 = vunpack.c.h.b16 %v228
    %v884 = vunpack.c.l.b16 %v229
    %v885 = vunpack.c.h.b16 %v229
    %v886 = vunpack.c.l.b16 %v230
    %v887 = vunpack.c.h.b16 %v230
    %v888 = vunpack.c.l.b16 %v231
    %v889 = vunpack.c.h.b16 %v231
    %v890 = vunpack.c.l.b16 %v232
    %v891 = vunpack.c.h.b16 %v232
    %v892 = vunpack.c.l.b16 %v233
    %v893 = vunpack.c.h.b16 %v233
    %v894 = vunpack.c.l.b16 %v234
    %v895 = vunpack.c.h.b16 %v234
    %v896 = vunpack.c.l.b16 %v235
    %v897 = vunpack.c.h.b16 %v235
    %v898 = vunpack.c.l.b16 %v236
    %v899 = vunpack.c.h.b16 %v236
    %v900 = vunpack.c.l.b16 %v237
    %v901 = vunpack.c.h.b16 %v237
    %v902 = vunpack.c.l.b16 %v238
    %v903 = vunpack.c.h.b16 %v238
    %v904 = vunpack.c.l.b16 %v239
    %v905 = vunpack.c.h.b16 %v239
    %v906 = vunpack.c.l.b16 %v240
    %v907 = vunpack.c.h.b16 %v240
    %v908 = vunpack.c.l.b16 %v241
    %v909 = vunpack.c.h.b16 %v241
    %v910 = vunpack.c.l.b16 %v242
    %v911 = vunpack.c.h.b16 %v242
    %v912 = vunpack.c.l.b16 %v243
    %v913 = vunpack.c.h.b16 %v243
    %v914 = vunpack.c.l.b16 %v244
    %v915 = vunpack.c.h.b16 %v244
    %v916 = vunpack.c.l.b16 %v245
    %v917 = vunpack.c.h.b16 %v245
    %v918 = vunpack.c.l.b16 %v246
    %v919 = vunpack.c.h.b16 %v246
    %v920 = vunpack.c.l.b16 %v247
    %v921 = vunpack.c.h.b16 %v247
    %v922 = vunpack.c.l.b16 %v248
    %v923 = vunpack.c.h.b16 %v248
    %v924 = vunpack.c.l.b16 %v249
    %v925 = vunpack.c.h.b16 %v249
    %v926 = vunpack.c.l.b16 %v250
    %v927 = vunpack.c.h.b16 %v250
    %v928 = vunpack.c.l.b16 %v251
    %v929 = vunpack.c.h.b16 %v251
    %v930 = vunpack.c.l.b16 %v252
    %v931 = vunpack.c.h.b16 %v252
    %v932 = vunpack.c.l.b16 %v253
    %v933 = vunpack.c.h.b16 %v253
    %v934 = vunpack.c.l.b16 %v254
    %v935 = vunpack.c.h.b16 %v254
    %v936 = vunpack.c.l.b16 %v255
    %v937 = vunpack.c.h.b16 %v255
    %v938 = vunpack.c.l.b16 %v256
    %v939 = vunpack.c.h.b16 %v256
    %v940 = vunpack.c.l.b16 %v257
    %v941 = vunpack.c.h.b16 %v257
    %v942 = vunpack.c.l.b16 %v258
    %v943 = vunpack.c.h.b16 %v258
    %v944 = vunpack.c.l.b16 %v259
    %v945 = vunpack.c.h.b16 %v259
    %v946 = vunpack.c.l.b16 %v260
    %v947 = vunpack.c.h.b16 %v260
    %v948 = vunpack.c.l.b16 %v261
    %v949 = vunpack.c.h.b16 %v261
    %v950 = vunpack.c.l.b16 %v262
    %v951 = vunpack.c.h.b16 %v262
    %v952 = vunpack.c.l.b16 %v263
    %v953 = vunpack.c.h.b16 %v263
    %v954 = vunpack.c.l.b16 %v264
    %v955 = vunpack.c.h.b16 %v264
    %v956 = vunpack.c.l.b16 %v265
    %v957 = vunpack.c.h.b16 %v265
    %v958 = vunpack.c.l.b16 %v266
    %v959 = vunpack.c.h.b16 %v266
    %v960 = vunpack.c.l.b16 %v267
    %v961 = vunpack.c.h.b16 %v267
    %v962 = vunpack.c.l.b16 %v268
    %v963 = vunpack.c.h.b16 %v268
    %v964 = vunpack.c.l.b16 %v269
    %v965 = vunpack.c.h.b16 %v269
    %v966 = vunpack.c.l.b16 %v270
    %v967 = vunpack.c.h.b16 %v270
    %v968 = vunpack.c.l.b16 %v271
    %v969 = vunpack.c.h.b16 %v271
    %v970 = vunpack.c.l.b16 %v272
    %v971 = vunpack.c.h.b16 %v272
    %v972 = vunpack.c.l.b16 %v273
    %v973 = vunpack.c.h.b16 %v273
    %v974 = vunpack.c.l.b16 %v274
    %v975 = vunpack.c.h.b16 %v274
    %v976 = vunpack.c.l.b16 %v275
    %v977 = vunpack.c.h.b16 %v275
    %v978 = vunpack.c.l.b16 %v276
    %v979 = vunpack.c.h.b16 %v276
    %v980 = vunpack.c.l.b16 %v277
    %v981 = vunpack.c.h.b16 %v277
    %v982 = vunpack.c.l.b16 %v278
    %v983 = vunpack.c.h.b16 %v278
    %v984 = vunpack.c.l.b16 %v279
    %v985 = vunpack.c.h.b16 %v279
    %v986 = vunpack.c.l.b16 %v280
    %v987 = vunpack.c.h.b16 %v280
    %v988 = vunpack.c.l.b16 %v281
    %v989 = vunpack.c.h.b16 %v281
    %v990 = vunpack.c.l.b16 %v282
    %v991 = vunpack.c.h.b16 %v282
    %v992 = vunpack.c.l.b16 %v283
    %v993 = vunpack.c.h.b16 %v283
    %v994 = vunpack.c.l.b16 %v284
    %v995 = vunpack.c.h.b16 %v284
    %v996 = vunpack.c.l.b16 %v285
    %v997 = vunpack.c.h.b16 %v285
    %v998 = vunpack.c.l.b16 %v286
    %v999 = vunpack.c.h.b16 %v286
    %v1000 = vunpack.c.l.b16 %v287
    %v1001 = vunpack.c.h.b16 %v287
    %v1002 = vunpack.c.l.b16 %v288
    %v1003 = vunpack.c.h.b16 %v288
    %v1004 = vunpack.c.l.b16 %v289
    %v1005 = vunpack.c.h.b16 %v289
    %v1006 = vunpack.c.l.b16 %v290
    %v1007 = vunpack.c.h.b16 %v290
    %v1008 = vunpack.c.l.b16 %v291
    %v1009 = vunpack.c.h.b16 %v291
    %v1010 = vunpack.c.l.b16 %v292
    %v1011 = vunpack.c.h.b16 %v292
    %v1012 = vunpack.c.l.b16 %v293
    %v1013 = vunpack.c.h.b16 %v293
    %v1014 = vunpack.c.l.b16 %v294
    %v1015 = vunpack.c.h.b16 %v294
    %v1016 = vunpack.c.l.b16 %v295
    %v1017 = vunpack.c.h.b16 %v295
    %v1018 = vunpack.c.l.b16 %v296
    %v1019 = vunpack.c.h.b16 %v296
    %v1020 = vunpack.c.l.b16 %v297
    %v1021 = vunpack.c.h.b16 %v297
    %v1022 = vunpack.c.l.b16 %v298
    %v1023 = vunpack.c.h.b16 %v298
    %v1024 = vunpack.c.l.b16 %v299
    %v1025 = vunpack.c.h.b16 %v299
    %v1026 = vunpack.c.l.b16 %v300
    %v1027 = vunpack.c.h.b16 %v300
    %v1028 = vunpack.c.l.b16 %v301
    %v1029 = vunpack.c.h.b16 %v301
    %v1030 = vunpack.c.l.b16 %v302
    %v1031 = vunpack.c.h.b16 %v302
    %v1032 = vunpack.c.l.b16 %v303
    %v1033 = vunpack.c.h.b16 %v303
    %v1034 = vunpack.c.l.b16 %v304
    %v1035 = vunpack.c.h.b16 %v304
    %v1036 = vunpack.c.l.b16 %v305
    %v1037 = vunpack.c.h.b16 %v305
    %v1038 = vunpack.c.l.b16 %v306
    %v1039 = vunpack.c.h.b16 %v306
    %v1040 = vunpack.c.l.b16 %v307
    %v1041 = vunpack.c.h.b16 %v307
    %v1042 = vunpack.c.l.b16 %v308
    %v1043 = vunpack.c.h.b16 %v308
    %v1044 = vunpack.c.l.b16 %v309
    %v1045 = vunpack.c.h.b16 %v309
    %v1046 = vunpack.c.l.b16 %v310
    %v1047 = vunpack.c.h.b16 %v310
    %v1048 = vunpack.c.l.b16 %v311
    %v1049 = vunpack.c.h.b16 %v311
    %v1050 = vunpack.c.l.b16 %v312
    %v1051 = vunpack.c.h.b16 %v312
    %v1052 = vunpack.c.l.b16 %v313
    %v1053 = vunpack.c.h.b16 %v313
    %v1054 = vunpack.c.l.b16 %v314
    %v1055 = vunpack.c.h.b16 %v314
    %v1056 = vunpack.c.l.b16 %v315
    %v1057 = vunpack.c.h.b16 %v315
    %v1058 = vunpack.c.l.b16 %v316
    %v1059 = vunpack.c.h.b16 %v316
    %v1060 = vunpack.c.l.b16 %v317
    %v1061 = vunpack.c.h.b16 %v317
    %v1062 = vunpack.c.l.b16 %v318
    %v1063 = vunpack.c.h.b16 %v318
    %v1064 = vunpack.c.l.b16 %v319
    %v1065 = vunpack.c.h.b16 %v319
    %v1066 = vunpack.c.l.b16 %v320
    %v1067 = vunpack.c.h.b16 %v320
    %v1068 = vunpack.c.l.b16 %v321
    %v1069 = vunpack.c.h.b16 %v321
    %v1070 = vunpack.c.l.b16 %v322
    %v1071 = vunpack.c.h.b16 %v322
    %v1072 = vunpack.c.l.b16 %v323
    %v1073 = vunpack.c.h.b16 %v323
    %v1074 = vunpack.c.l.b16 %v324
    %v1075 = vunpack.c.h.b16 %v324
    %v1076 = vunpack.c.l.b16 %v325
    %v1077 = vunpack.c.h.b16 %v325
    %v1078 = vunpack.c.l.b16 %v326
    %v1079 = vunpack.c.h.b16 %v326
    %v1080 = vunpack.c.l.b16 %v327
    %v1081 = vunpack.c.h.b16 %v327
    %v1082 = vunpack.c.l.b16 %v328
    %v1083 = vunpack.c.h.b16 %v328
    %v1084 = vunpack.c.l.b16 %v329
    %v1085 = vunpack.c.h.b16 %v329
    %v1086 = vunpack.c.l.b16 %v330
    %v1087 = vunpack.c.h.b16 %v330
    %v1088 = vunpack.c.l.b16 %v331
    %v1089 = vunpack.c.h.b16 %v331
    %v1090 = vunpack.c.l.b16 %v332
    %v1091 = vunpack.c.h.b16 %v332
    %v1092 = vunpack.c.l.b16 %v333
    %v1093 = vunpack.c.h.b16 %v333
    %v1094 = vunpack.c.l.b16 %v334
    %v1095 = vunpack.c.h.b16 %v334
    %v1096 = vunpack.c.l.b16 %v335
    %v1097 = vunpack.c.h.b16 %v335
    %v1098 = vunpack.c.l.b16 %v336
    %v1099 = vunpack.c.h.b16 %v336
    %v1100 = vunpack.c.l.b16 %v337
    %v1101 = vunpack.c.h.b16 %v337
    %v1102 = vunpack.c.l.b16 %v338
    %v1103 = vunpack.c.h.b16 %v338
    %v1104 = vunpack.c.l.b16 %v339
    %v1105 = vunpack.c.h.b16 %v339
    %v1106 = vunpack.c.l.b16 %v340
    %v1107 = vunpack.c.h.b16 %v340
    %v1108 = vunpack.c.l.b16 %v341
    %v1109 = vunpack.c.h.b16 %v341
    %v1110 = vunpack.c.l.b16 %v342
    %v1111 = vunpack.c.h.b16 %v342
    %v1112 = vunpack.c.l.b16 %v343
    %v1113 = vunpack.c.h.b16 %v343
    %v1114 = vunpack.c.l.b16 %v344
    %v1115 = vunpack.c.h.b16 %v344
    %v1116 = vunpack.c.l.b16 %v345
    %v1117 = vunpack.c.h.b16 %v345
    %v1118 = vunpack.c.l.b16 %v346
    %v1119 = vunpack.c.h.b16 %v346
    %v1120 = vunpack.c.l.b16 %v347
    %v1121 = vunpack.c.h.b16 %v347
    %v1122 = vunpack.c.l.b16 %v348
    %v1123 = vunpack.c.h.b16 %v348
    %v1124 = vunpack.c.l.b16 %v349
    %v1125 = vunpack.c.h.b16 %v349
    %v1126 = vunpack.c.l.b16 %v350
    %v1127 = vunpack.c.h.b16 %v350
    %v1128 = vunpack.c.l.b16 %v351
    %v1129 = vunpack.c.h.b16 %v351
    %v1130 = vunpack.c.l.b16 %v352
    %v1131 = vunpack.c.h.b16 %v352
    %v1132 = vunpack.c.l.b16 %v353
    %v1133 = vunpack.c.h.b16 %v353
    %v1134 = vunpack.c.l.b16 %v354
    %v1135 = vunpack.c.h.b16 %v354
    %v1136 = vunpack.c.l.b16 %v355
    %v1137 = vunpack.c.h.b16 %v355
    %v1138 = vunpack.c.l.b16 %v356
    %v1139 = vunpack.c.h.b16 %v356
    %v1140 = vunpack.c.l.b16 %v357
    %v1141 = vunpack.c.h.b16 %v357
    %v1142 = vunpack.c.l.b16 %v358
    %v1143 = vunpack.c.h.b16 %v358
    %v1144 = vunpack.c.l.b16 %v359
    %v1145 = vunpack.c.h.b16 %v359
    %v1146 = vunpack.c.l.b16 %v360
    %v1147 = vunpack.c.h.b16 %v360
    %v1148 = vunpack.c.l.b16 %v361
    %v1149 = vunpack.c.h.b16 %v361
    %v1150 = vunpack.c.l.b16 %v362
    %v1151 = vunpack.c.h.b16 %v362
    %v1152 = vunpack.c.l.b16 %v363
    %v1153 = vunpack.c.h.b16 %v363
    %v1154 = vunpack.c.l.b16 %v364
    %v1155 = vunpack.c.h.b16 %v364
    %v1156 = vunpack.c.l.b16 %v365
    %v1157 = vunpack.c.h.b16 %v365
    %v1158 = vunpack.c.l.b16 %v366
    %v1159 = vunpack.c.h.b16 %v366
    %v1160 = vunpack.c.l.b16 %v367
    %v1161 = vunpack.c.h.b16 %v367
    %v1162 = vunpack.c.l.b16 %v368
    %v1163 = vunpack.c.h.b16 %v368
    %v1164 = vunpack.c.l.b16 %v369
    %v1165 = vunpack.c.h.b16 %v369
    %v1166 = vunpack.c.l.b16 %v370
    %v1167 = vunpack.c.h.b16 %v370
    %v1168 = vunpack.c.l.b16 %v371
    %v1169 = vunpack.c.h.b16 %v371
    %v1170 = vunpack.c.l.b16 %v372
    %v1171 = vunpack.c.h.b16 %v372
    %v1172 = vunpack.c.l.b16 %v373
    %v1173 = vunpack.c.h.b16 %v373
    %v1174 = vunpack.c.l.b16 %v374
    %v1175 = vunpack.c.h.b16 %v374
    %v1176 = vunpack.c.l.b16 %v375
    %v1177 = vunpack.c.h.b16 %v375
    %v1178 = vunpack.c.l.b16 %v376
    %v1179 = vunpack.c.h.b16 %v376
    %v1180 = vunpack.c.l.b16 %v377
    %v1181 = vunpack.c.h.b16 %v377
    %v1182 = vunpack.c.l.b16 %v378
    %v1183 = vunpack.c.h.b16 %v378
    %v1184 = vunpack.c.l.b16 %v379
    %v1185 = vunpack.c.h.b16 %v379
    %v1186 = vunpack.c.l.b16 %v380
    %v1187 = vunpack.c.h.b16 %v380
    %v1188 = vunpack.c.l.b16 %v381
    %v1189 = vunpack.c.h.b16 %v381
    %v1190 = vunpack.c.l.b16 %v382
    %v1191 = vunpack.c.h.b16 %v382
    %v1192 = vunpack.c.l.b16 %v383
    %v1193 = vunpack.c.h.b16 %v383
    %v1194 = vpack.c.b16 %v690, %v682
    %v1195 = vpack.c.b16 %v691, %v683
    %v1196 = vpack.c.b16 %v692, %v684
    %v1197 = vpack.c.b16 %v693, %v685
    %v1198 = vpack.c.b16 %v694, %v686
    %v1199 = vpack.c.b16 %v695, %v687
    %v1200 = vpack.c.b16 %v696, %v688
    %v1201 = vpack.c.b16 %v697, %v689
    %v1202 = vpack.c.b16 %v706, %v698
    %v1203 = vpack.c.b16 %v707, %v699
    %v1204 = vpack.c.b16 %v708, %v700
    %v1205 = vpack.c.b16 %v709, %v701
    %v1206 = vpack.c.b16 %v710, %v702
    %v1207 = vpack.c.b16 %v711, %v703
    %v1208 = vpack.c.b16 %v712, %v704
    %v1209 = vpack.c.b16 %v713, %v705
    %v1210 = vpack.c.b16 %v722, %v714
    %v1211 = vpack.c.b16 %v723, %v715
    %v1212 = vpack.c.b16 %v724, %v716
    %v1213 = vpack.c.b16 %v725, %v717
    %v1214 = vpack.c.b16 %v726, %v718
    %v1215 = vpack.c.b16 %v727, %v719
    %v1216 = vpack.c.b16 %v728, %v720
    %v1217 = vpack.c.b16 %v729, %v721
    %v1218 = vpack.c.b16 %v738, %v730
    %v1219 = vpack.c.b16 %v739, %v731
    %v1220 = vpack.c.b16 %v740, %v732
    %v1221 = vpack.c.b16 %v741, %v733
    %v1222 = vpack.c.b16 %v742, %v734
    %v1223 = vpack.c.b16 %v743, %v735
    %v1224 = vpack.c.b16 %v744, %v736
    %v1225 = vpack.c.b16 %v745, %v737
    %v1226 = vpack.c.b16 %v754, %v746
    %v1227 = vpack.c.b16 %v755, %v747
    %v1228 = vpack.c.b16 %v756, %v748
    %v1229 = vpack.c.b16 %v757, %v749
    %v1230 = vpack.c.b16 %v758, %v750
    %v1231 = vpack.c.b16 %v759, %v751
    %v1232 = vpack.c.b16 %v760, %v752
    %v1233 = vpack.c.b16 %v761, %v753
    %v1234 = vpack.c.b16 %v770, %v762
    %v1235 = vpack.c.b16 %v771, %v763
    %v1236 = vpack.c.b16 %v772, %v764
    %v1237 = vpack.c.b16 %v773, %v765
    %v1238 = vpack.c.b16 %v774, %v766
    %v1239 = vpack.c.b16 %v775, %v767
    %v1240 = vpack.c.b16 %v776, %v768
    %v1241 = vpack.c.b16 %v777, %v769
    %v1242 = vpack.c.b16 %v786, %v778
    %v1243 = vpack.c.b16 %v787, %v779
    %v1244 = vpack.c.b16 %v788, %v780
    %v1245 = vpack.c.b16 %v789, %v781
    %v1246 = vpack.c.b16 %v790, %v782
    %v1247 = vpack.c.b16 %v791, %v783
    %v1248 = vpack.c.b16 %v792, %v784
    %v1249 = vpack.c.b16 %v793, %v785
    %v1250 = vpack.c.b16 %v802, %v794
    %v1251 = vpack.c.b16 %v803, %v795
    %v1252 = vpack.c.b16 %v804, %v796
    %v1253 = vpack.c.b16 %v805, %v797
    %v1254 = vpack.c.b16 %v806, %v798
    %v1255 = vpack.c.b16 %v807, %v799
    %v1256 = vpack.c.b16 %v808, %v800
    %v1257 = vpack.c.b16 %v809, %v801
    %v1258 = vpack.c.b16 %v818, %v810
    %v1259 = vpack.c.b16 %v819, %v811
    %v1260 = vpack.c.b16 %v820, %v812
    %v1261 = vpack.c.b16 %v821, %v813
    %v1262 = vpack.c.b16 %v822, %v814
    %v1263 = vpack.c.b16 %v823, %v815
    %v1264 = vpack.c.b16 %v824, %v816
    %v1265 = vpack.c.b16 %v825, %v817
    %v1266 = vpack.c.b16 %v834, %v826
    %v1267 = vpack.c.b16 %v835, %v827
    %v1268 = vpack.c.b16 %v836, %v828
    %v1269 = vpack.c.b16 %v837, %v829
    %v1270 = vpack.c.b16 %v838, %v830
    %v1271 = vpack.c.b16 %v839, %v831
    %v1272 = vpack.c.b16 %v840, %v832
    %v1273 = vpack.c.b16 %v841, %v833
    %v1274 = vpack.c.b16 %v850, %v842
    %v1275 = vpack.c.b16 %v851, %v843
    %v1276 = vpack.c.b16 %v852, %v844
    %v1277 = vpack.c.b16 %v853, %v845
    %v1278 = vpack.c.b16 %v854, %v846
    %v1279 = vpack.c.b16 %v855, %v847
    %v1280 = vpack.c.b16 %v856, %v848
    %v1281 = vpack.c.b16 %v857, %v849
    %v1282 = vpack.c.b16 %v866, %v858
    %v1283 = vpack.c.b16 %v867, %v859
    %v1284 = vpack.c.b16 %v868, %v860
    %v1285 = vpack.c.b16 %v869, %v861
    %v1286 = vpack.c.b16 %v870, %v862
    %v1287 = vpack.c.b16 %v871, %v863
    %v1288 = vpack.c.b16 %v872, %v864
    %v1289 = vpack.c.b16 %v873, %v865
    %v1290 = vpack.c.b16 %v882, %v874
    %v1291 = vpack.c.b16 %v883, %v875
    %v1292 = vpack.c.b16 %v884, %v876
    %v1293 = vpack.c.b16 %v885, %v877
    %v1294 = vpack.c.b16 %v886, %v878
    %v1295 = vpack.c.b16 %v887, %v879
    %v1296 = vpack.c.b16 %v888, %v880
    %v1297 = vpack.c.b16 %v889, %v881
    %v1298 = vpack.c.b16 %v898, %v890
    %v1299 = vpack.c.b16 %v899, %v891
    %v1300 = vpack.c.b16 %v900, %v892
    %v1301 = vpack.c.b16 %v901, %v893
    %v1302 = vpack.c.b16 %v902, %v894
    %v1303 = vpack.c.b16 %v903, %v895
    %v1304 = vpack.c.b16 %v904, %v896
    %v1305 = vpack.c.b16 %v905, %v897
    %v1306 = vpack.c.b16 %v914, %v906
    %v1307 = vpack.c.b16 %v915, %v907
    %v1308 = vpack.c.b16 %v916, %v908
    %v1309 = vpack.c.b16 %v917, %v909
    %v1310 = vpack.c.b16 %v918, %v910
    %v1311 = vpack.c.b16 %v919, %v911
    %v1312 = vpack.c.b16 %v920, %v912
    %v1313 = vpack.c.b16 %v921, %v913
    %v1314 = vpack.c.b16 %v930, %v922
    %v1315 = vpack.c.b16 %v931, %v923
    %v1316 = vpack.c.b16 %v932, %v924
    %v1317 = vpack.c.b16 %v933, %v925
    %v1318 = vpack.c.b16 %v934, %v926
    %v1319 = vpack.c.b16 %v935, %v927
    %v1320 = vpack.c.b16 %v936, %v928
    %v1321 = vpack.c.b16 %v937, %v929
    %v1322 = vpack.c.b16 %v946, %v938
    %v1323 = vpack.c.b16 %v947, %v939
    %v1324 = vpack.c.b16 %v948, %v940
    %v1325 = vpack.c.b16 %v949, %v941
    %v1326 = vpack.c.b16 %v950, %v942
    %v1327 = vpack.c.b16 %v951, %v943
    %v1328 = vpack.c.b16 %v952, %v944
    %v1329 = vpack.c.b16 %v953, %v945
    %v1330 = vpack.c.b16 %v962, %v954
    %v1331 = vpack.c.b16 %v963, %v955
    %v1332 = vpack.c.b16 %v964, %v956
    %v1333 = vpack.c.b16 %v965, %v957
    %v1334 = vpack.c.b16 %v966, %v958
    %v1335 = vpack.c.b16 %v967, %v959
    %v1336 = vpack.c.b16 %v968, %v960
    %v1337 = vpack.c.b16 %v969, %v961
    %v1338 = vpack.c.b16 %v978, %v970
    %v1339 = vpack.c.b16 %v979, %v971
    %v1340 = vpack.c.b16 %v980, %v972
    %v1341 = vpack.c.b16 %v981, %v973
    %v1342 = vpack.c.b16 %v982, %v974
    %v1343 = vpack.c.b16 %v983, %v975
    %v1344 = vpack.c.b16 %v984, %v976
    %v1345 = vpack.c.b16 %v985, %v977
    %v1346 = vpack.c.b16 %v994, %v986
    %v1347 = vpack.c.b16 %v995, %v987
    %v1348 = vpack.c.b16 %v996, %v988
    %v1349 = vpack.c.b16 %v997, %v989
    %v1350 = vpack.c.b16 %v998, %v990
    %v1351 = vpack.c.b16 %v999, %v991
    %v1352 = vpack.c.b16 %v1000, %v992
    %v1353 = vpack.c.b16 %v1001, %v993
    %v1354 = vpack.c.b16 %v1010, %v1002
    %v1355 = vpack.c.b16 %v1011, %v1003
    %v1356 = vpack.c.b16 %v1012, %v1004
    %v1357 = vpack.c.b16 %v1013, %v1005
    %v1358 = vpack.c.b16 %v1014, %v1006
    %v1359 = vpack.c.b16 %v1015, %v1007
    %v1360 = vpack.c.b16 %v1016, %v1008
    %v1361 = vpack.c.b16 %v1017, %v1009
    %v1362 = vpack.c.b16 %v1026, %v1018
    %v1363 = vpack.c.b16 %v1027, %v1019
    %v1364 = vpack.c.b16 %v1028, %v1020
    %v1365 = vpack.c.b16 %v1029, %v1021
    %v1366 = vpack.c.b16 %v1030, %v1022
    %v1367 = vpack.c.b16 %v1031, %v1023
    %v1368 = vpack.c.b16 %v1032, %v1024
    %v1369 = vpack.c.b16 %v1033, %v1025
    %v1370 = vpack.c.b16 %v1042, %v1034
    %v1371 = vpack.c.b16 %v1043, %v1035
    %v1372 = vpack.c.b16 %v1044, %v1036
    %v1373 = vpack.c.b16 %v1045, %v1037
    %v1374 = vpack.c.b16 %v1046, %v1038
    %v1375 = vpack.c.b16 %v1047, %v1039
    %v1376 = vpack.c.b16 %v1048, %v1040
    %v1377 = vpack.c.b16 %v1049, %v1041
    %v1378 = vpack.c.b16 %v1058, %v1050
    %v1379 = vpack.c.b16 %v1059, %v1051
    %v1380 = vpack.c.b16 %v1060, %v1052
    %v1381 = vpack.c.b16 %v1061, %v1053
    %v1382 = vpack.c.b16 %v1062, %v1054
    %v1383 = vpack.c.b16 %v1063, %v1055
    %v1384 = vpack.c.b16 %v1064, %v1056
    %v1385 = vpack.c.b16 %v1065, %v1057
    %v1386 = vpack.c.b16 %v1074, %v1066
    %v1387 = vpack.c.b16 %v1075, %v1067
    %v1388 = vpack.c.b16 %v1076, %v1068
    %v1389 = vpack.c.b16 %v1077, %v1069
    %v1390 = vpack.c.b16 %v1078, %v1070
    %v1391 = vpack.c.b16 %v1079, %v1071
    %v1392 = vpack.c.b16 %v1080, %v1072
    %v1393 = vpack.c.b16 %v1081, %v1073
    %v1394 = vpack.c.b16 %v1090, %v1082
    %v1395 = vpack.c.b16 %v1091, %v1083
    %v1396 = vpack.c.b16 %v1092, %v1084
    %v1397 = vpack.c.b16 %v1093, %v1085
    %v1398 = vpack.c.b16 %v1094, %v1086
    %v1399 = vpack.c.b16 %v1095, %v1087
    %v1400 = vpack.c.b16 %v1096, %v1088
    %v1401 = vpack.c.b16 %v1097, %v1089
    %v1402 = vpack.c.b16 %v1106, %v1098
    %v1403 = vpack.c.b16 %v1107, %v1099
    %v1404 = vpack.c.b16 %v1108, %v1100
    %v1405 = vpack.c.b16 %v1109, %v1101
    %v1406 = vpack.c.b16 %v1110, %v1102
    %v1407 = vpack.c.b16 %v1111, %v1103
    %v1408 = vpack.c.b16 %v1112, %v1104
    %v1409 = vpack.c.b16 %v1113, %v1105
    %v1410 = vpack.c.b16 %v1122, %v1114
    %v1411 = vpack.c.b16 %v1123, %v1115
    %v1412 = vpack.c.b16 %v1124, %v1116
    %v1413 = vpack.c.b16 %v1125, %v1117
    %v1414 = vpack.c.b16 %v1126, %v1118
    %v1415 = vpack.c.b16 %v1127, %v1119
    %v1416 = vpack.c.b16 %v1128, %v1120
    %v1417 = vpack.c.b16 %v1129, %v1121
    %v1418 = vpack.c.b16 %v1138, %v1130
    %v1419 = vpack.c.b16 %v1139, %v1131
    %v1420 = vpack.c.b16 %v1140, %v1132
    %v1421 = vpack.c.b16 %v1141, %v1133
    %v1422 = vpack.c.b16 %v1142, %v1134
    %v1423 = vpack.c.b16 %v1143, %v1135
    %v1424 = vpack.c.b16 %v1144, %v1136
    %v1425 = vpack.c.b16 %v1145, %v1137
    %v1426 = vpack.c.b16 %v1154, %v1146
    %v1427 = vpack.c.b16 %v1155, %v1147
    %v1428 = vpack.c.b16 %v1156, %v1148
    %v1429 = vpack.c.b16 %v1157, %v1149
    %v1430 = vpack.c.b16 %v1158, %v1150
    %v1431 = vpack.c.b16 %v1159, %v1151
    %v1432 = vpack.c.b16 %v1160, %v1152
    %v1433 = vpack.c.b16 %v1161, %v1153
    %v1434 = vpack.c.b16 %v1170, %v1162
    %v1435 = vpack.c.b16 %v1171, %v1163
    %v1436 = vpack.c.b16 %v1172, %v1164
    %v1437 = vpack.c.b16 %v1173, %v1165
    %v1438 = vpack.c.b16 %v1174, %v1166
    %v1439 = vpack.c.b16 %v1175, %v1167
    %v1440 = vpack.c.b16 %v1176, %v1168
    %v1441 = vpack.c.b16 %v1177, %v1169
    %v1442 = vpack.c.b16 %v1186, %v1178
    %v1443 = vpack.c.b16 %v1187, %v1179
    %v1444 = vpack.c.b16 %v1188, %v1180
    %v1445 = vpack.c.b16 %v1189, %v1181
    %v1446 = vpack.c.b16 %v1190, %v1182
    %v1447 = vpack.c.b16 %v1191, %v1183
    %v1448 = vpack.c.b16 %v1192, %v1184
    %v1449 = vpack.c.b16 %v1193, %v1185
    %1706 = vmatprep.subr.bf16.mxu0 %v1195
    %1707 = vmatpush1.bf16.msra.mxu0 %v1194
    %1708 = vmatprep.subr.bf16.mxu0 %v1203
    %1709 = vmatpush1.bf16.msra.mxu0 %v1202
    %1710 = vmatprep.subr.bf16.mxu0 %v1211
    %1711 = vmatpush1.bf16.msra.mxu0 %v1210
    %1712 = vmatprep.subr.bf16.mxu0 %v1219
    %1713 = vmatpush1.bf16.msra.mxu0 %v1218
    %1714 = vmatprep.subr.bf16.mxu0 %v1227
    %1715 = vmatpush1.bf16.msra.mxu0 %v1226
    %1716 = vmatprep.subr.bf16.mxu0 %v1235
    %1717 = vmatpush1.bf16.msra.mxu0 %v1234
    %1718 = vmatprep.subr.bf16.mxu0 %v1243
    %1719 = vmatpush1.bf16.msra.mxu0 %v1242
    %1720 = vmatprep.subr.bf16.mxu0 %v1251
    %1721 = vmatpush1.bf16.msra.mxu0 %v1250
    %1722 = vmatprep.subr.bf16.mxu0 %v1259
    %1723 = vmatpush1.bf16.msra.mxu0 %v1258
    %1724 = vmatprep.subr.bf16.mxu0 %v1267
    %1725 = vmatpush1.bf16.msra.mxu0 %v1266
    %1726 = vmatprep.subr.bf16.mxu0 %v1275
    %1727 = vmatpush1.bf16.msra.mxu0 %v1274
    %1728 = vmatprep.subr.bf16.mxu0 %v1283
    %1729 = vmatpush1.bf16.msra.mxu0 %v1282
    %1730 = vmatprep.subr.bf16.mxu0 %v1291
    %1731 = vmatpush1.bf16.msra.mxu0 %v1290
    %1732 = vmatprep.subr.bf16.mxu0 %v1299
    %1733 = vmatpush1.bf16.msra.mxu0 %v1298
    %1734 = vmatprep.subr.bf16.mxu0 %v1307
    %1735 = vmatpush1.bf16.msra.mxu0 %v1306
    %1736 = vmatprep.subr.bf16.mxu0 %v1315
    %1737 = vmatpush1.bf16.msra.mxu0 %v1314
    %1738 = vmatprep.mubr.bf16.mxu0 %v125
    %1739 = vmatmul.mubr.bf16.gmra.mrb[0].mxu0 %v124
    %v1740 = vpop.f32.mrb[0].mxu0
    %v1741 = vadd.f32 %v389, %v1740
    %v1742 = vpop.f32.mrb[0].mxu0
    %v1743 = vadd.f32 %v393, %v1742
    %v1744 = vpop.f32.mrb[0].mxu0
    %v1745 = vpop.f32.mrb[0].mxu0
    %1746 = vdwg.mxu0
    %1747 = vmatprep.subr.bf16.mxu0 %v1323
    %1748 = vmatpush1.bf16.msra.mxu0 %v1322
    %1749 = vmatprep.subr.bf16.mxu0 %v1331
    %1750 = vmatpush1.bf16.msra.mxu0 %v1330
    %1751 = vmatprep.subr.bf16.mxu0 %v1339
    %1752 = vmatpush1.bf16.msra.mxu0 %v1338
    %1753 = vmatprep.subr.bf16.mxu0 %v1347
    %1754 = vmatpush1.bf16.msra.mxu0 %v1346
    %1755 = vmatprep.subr.bf16.mxu0 %v1355
    %1756 = vmatpush1.bf16.msra.mxu0 %v1354
    %1757 = vmatprep.subr.bf16.mxu0 %v1363
    %1758 = vmatpush1.bf16.msra.mxu0 %v1362
    %1759 = vmatprep.subr.bf16.mxu0 %v1371
    %1760 = vmatpush1.bf16.msra.mxu0 %v1370
    %1761 = vmatprep.subr.bf16.mxu0 %v1379
    %1762 = vmatpush1.bf16.msra.mxu0 %v1378
    %1763 = vmatprep.subr.bf16.mxu0 %v1387
    %1764 = vmatpush1.bf16.msra.mxu0 %v1386
    %1765 = vmatprep.subr.bf16.mxu0 %v1395
    %1766 = vmatpush1.bf16.msra.mxu0 %v1394
    %1767 = vmatprep.subr.bf16.mxu0 %v1403
    %1768 = vmatpush1.bf16.msra.mxu0 %v1402
    %1769 = vmatprep.subr.bf16.mxu0 %v1411
    %1770 = vmatpush1.bf16.msra.mxu0 %v1410
    %1771 = vmatprep.subr.bf16.mxu0 %v1419
    %1772 = vmatpush1.bf16.msra.mxu0 %v1418
    %1773 = vmatprep.subr.bf16.mxu0 %v1427
    %1774 = vmatpush1.bf16.msra.mxu0 %v1426
    %1775 = vmatprep.subr.bf16.mxu0 %v1435
    %1776 = vmatpush1.bf16.msra.mxu0 %v1434
    %1777 = vmatprep.subr.bf16.mxu0 %v1443
    %1778 = vmatpush1.bf16.msra.mxu0 %v1442
    %1779 = vmatprep.mubr.bf16.mxu0 %v127
    %1780 = vmatmul.mubr.bf16.gmra.mrb[0].mxu0 %v126
    %v1781 = vpop.f32.mrb[0].mxu0
    %v1782 = vadd.f32 %v1741, %v1781
    %v1783 = vpop.f32.mrb[0].mxu0
    %v1784 = vadd.f32 %v1743, %v1783
    %v1785 = vpop.f32.mrb[0].mxu0
    %v1786 = vpop.f32.mrb[0].mxu0
    %1787 = vdwg.mxu0
    %1788 = vmatprep.subr.bf16.mxu0 %v1197
    %1789 = vmatpush1.bf16.msra.mxu0 %v1196
    %1790 = vmatprep.subr.bf16.mxu0 %v1205
    %1791 = vmatpush1.bf16.msra.mxu0 %v1204
    %1792 = vmatprep.subr.bf16.mxu0 %v1213
    %1793 = vmatpush1.bf16.msra.mxu0 %v1212
    %1794 = vmatprep.subr.bf16.mxu0 %v1221
    %1795 = vmatpush1.bf16.msra.mxu0 %v1220
    %1796 = vmatprep.subr.bf16.mxu0 %v1229
    %1797 = vmatpush1.bf16.msra.mxu0 %v1228
    %1798 = vmatprep.subr.bf16.mxu0 %v1237
    %1799 = vmatpush1.bf16.msra.mxu0 %v1236
    %1800 = vmatprep.subr.bf16.mxu0 %v1245
    %1801 = vmatpush1.bf16.msra.mxu0 %v1244
    %1802 = vmatprep.subr.bf16.mxu0 %v1253
    %1803 = vmatpush1.bf16.msra.mxu0 %v1252
    %1804 = vmatprep.subr.bf16.mxu0 %v1261
    %1805 = vmatpush1.bf16.msra.mxu0 %v1260
    %1806 = vmatprep.subr.bf16.mxu0 %v1269
    %1807 = vmatpush1.bf16.msra.mxu0 %v1268
    %1808 = vmatprep.subr.bf16.mxu0 %v1277
    %1809 = vmatpush1.bf16.msra.mxu0 %v1276
    %1810 = vmatprep.subr.bf16.mxu0 %v1285
    %1811 = vmatpush1.bf16.msra.mxu0 %v1284
    %1812 = vmatprep.subr.bf16.mxu0 %v1293
    %1813 = vmatpush1.bf16.msra.mxu0 %v1292
    %1814 = vmatprep.subr.bf16.mxu0 %v1301
    %1815 = vmatpush1.bf16.msra.mxu0 %v1300
    %1816 = vmatprep.subr.bf16.mxu0 %v1309
    %1817 = vmatpush1.bf16.msra.mxu0 %v1308
    %1818 = vmatprep.subr.bf16.mxu0 %v1317
    %1819 = vmatpush1.bf16.msra.mxu0 %v1316
    %1820 = vmatprep.mubr.bf16.mxu0 %v125
    %1821 = vmatmul.mubr.bf16.gmra.mrb[0].mxu0 %v124
    %v1822 = vpop.f32.mrb[0].mxu0
    %v1823 = vadd.f32 %v397, %v1822
    %v1824 = vpop.f32.mrb[0].mxu0
    %v1825 = vadd.f32 %v401, %v1824
    %v1826 = vpop.f32.mrb[0].mxu0
    %v1827 = vpop.f32.mrb[0].mxu0
    %1828 = vdwg.mxu0
    %1829 = vmatprep.subr.bf16.mxu0 %v1325
    %1830 = vmatpush1.bf16.msra.mxu0 %v1324
    %1831 = vmatprep.subr.bf16.mxu0 %v1333
    %1832 = vmatpush1.bf16.msra.mxu0 %v1332
    %1833 = vmatprep.subr.bf16.mxu0 %v1341
    %1834 = vmatpush1.bf16.msra.mxu0 %v1340
    %1835 = vmatprep.subr.bf16.mxu0 %v1349
    %1836 = vmatpush1.bf16.msra.mxu0 %v1348
    %1837 = vmatprep.subr.bf16.mxu0 %v1357
    %1838 = vmatpush1.bf16.msra.mxu0 %v1356
    %1839 = vmatprep.subr.bf16.mxu0 %v1365
    %1840 = vmatpush1.bf16.msra.mxu0 %v1364
    %1841 = vmatprep.subr.bf16.mxu0 %v1373
    %1842 = vmatpush1.bf16.msra.mxu0 %v1372
    %1843 = vmatprep.subr.bf16.mxu0 %v1381
    %1844 = vmatpush1.bf16.msra.mxu0 %v1380
    %1845 = vmatprep.subr.bf16.mxu0 %v1389
    %1846 = vmatpush1.bf16.msra.mxu0 %v1388
    %1847 = vmatprep.subr.bf16.mxu0 %v1397
    %1848 = vmatpush1.bf16.msra.mxu0 %v1396
    %1849 = vmatprep.subr.bf16.mxu0 %v1405
    %1850 = vmatpush1.bf16.msra.mxu0 %v1404
    %1851 = vmatprep.subr.bf16.mxu0 %v1413
    %1852 = vmatpush1.bf16.msra.mxu0 %v1412
    %1853 = vmatprep.subr.bf16.mxu0 %v1421
    %1854 = vmatpush1.bf16.msra.mxu0 %v1420
    %1855 = vmatprep.subr.bf16.mxu0 %v1429
    %1856 = vmatpush1.bf16.msra.mxu0 %v1428
    %1857 = vmatprep.subr.bf16.mxu0 %v1437
    %1858 = vmatpush1.bf16.msra.mxu0 %v1436
    %1859 = vmatprep.subr.bf16.mxu0 %v1445
    %1860 = vmatpush1.bf16.msra.mxu0 %v1444
    %1861 = vmatprep.mubr.bf16.mxu0 %v127
    %1862 = vmatmul.mubr.bf16.gmra.mrb[0].mxu0 %v126
    %v1863 = vpop.f32.mrb[0].mxu0
    %v1864 = vadd.f32 %v1823, %v1863
    %v1865 = vpop.f32.mrb[0].mxu0
    %v1866 = vadd.f32 %v1825, %v1865
    %v1867 = vpop.f32.mrb[0].mxu0
    %v1868 = vpop.f32.mrb[0].mxu0
    %1869 = vdwg.mxu0
    %1870 = vmatprep.subr.bf16.mxu0 %v1199
    %1871 = vmatpush1.bf16.msra.mxu0 %v1198
    %1872 = vmatprep.subr.bf16.mxu0 %v1207
    %1873 = vmatpush1.bf16.msra.mxu0 %v1206
    %1874 = vmatprep.subr.bf16.mxu0 %v1215
    %1875 = vmatpush1.bf16.msra.mxu0 %v1214
    %1876 = vmatprep.subr.bf16.mxu0 %v1223
    %1877 = vmatpush1.bf16.msra.mxu0 %v1222
    %1878 = vmatprep.subr.bf16.mxu0 %v1231
    %1879 = vmatpush1.bf16.msra.mxu0 %v1230
    %1880 = vmatprep.subr.bf16.mxu0 %v1239
    %1881 = vmatpush1.bf16.msra.mxu0 %v1238
    %1882 = vmatprep.subr.bf16.mxu0 %v1247
    %1883 = vmatpush1.bf16.msra.mxu0 %v1246
    %1884 = vmatprep.subr.bf16.mxu0 %v1255
    %1885 = vmatpush1.bf16.msra.mxu0 %v1254
    %1886 = vmatprep.subr.bf16.mxu0 %v1263
    %1887 = vmatpush1.bf16.msra.mxu0 %v1262
    %1888 = vmatprep.subr.bf16.mxu0 %v1271
    %1889 = vmatpush1.bf16.msra.mxu0 %v1270
    %1890 = vmatprep.subr.bf16.mxu0 %v1279
    %1891 = vmatpush1.bf16.msra.mxu0 %v1278
    %1892 = vmatprep.subr.bf16.mxu0 %v1287
    %1893 = vmatpush1.bf16.msra.mxu0 %v1286
    %1894 = vmatprep.subr.bf16.mxu0 %v1295
    %1895 = vmatpush1.bf16.msra.mxu0 %v1294
    %1896 = vmatprep.subr.bf16.mxu0 %v1303
    %1897 = vmatpush1.bf16.msra.mxu0 %v1302
    %1898 = vmatprep.subr.bf16.mxu0 %v1311
    %1899 = vmatpush1.bf16.msra.mxu0 %v1310
    %1900 = vmatprep.subr.bf16.mxu0 %v1319
    %1901 = vmatpush1.bf16.msra.mxu0 %v1318
    %1902 = vmatprep.mubr.bf16.mxu0 %v125
    %1903 = vmatmul.mubr.bf16.gmra.mrb[0].mxu0 %v124
    %v1904 = vpop.f32.mrb[0].mxu0
    %v1905 = vadd.f32 %v405, %v1904
    %v1906 = vpop.f32.mrb[0].mxu0
    %v1907 = vadd.f32 %v409, %v1906
    %v1908 = vpop.f32.mrb[0].mxu0
    %v1909 = vpop.f32.mrb[0].mxu0
    %1910 = vdwg.mxu0
    %1911 = vmatprep.subr.bf16.mxu0 %v1327
    %1912 = vmatpush1.bf16.msra.mxu0 %v1326
    %1913 = vmatprep.subr.bf16.mxu0 %v1335
    %1914 = vmatpush1.bf16.msra.mxu0 %v1334
    %1915 = vmatprep.subr.bf16.mxu0 %v1343
    %1916 = vmatpush1.bf16.msra.mxu0 %v1342
    %1917 = vmatprep.subr.bf16.mxu0 %v1351
    %1918 = vmatpush1.bf16.msra.mxu0 %v1350
    %1919 = vmatprep.subr.bf16.mxu0 %v1359
    %1920 = vmatpush1.bf16.msra.mxu0 %v1358
    %1921 = vmatprep.subr.bf16.mxu0 %v1367
    %1922 = vmatpush1.bf16.msra.mxu0 %v1366
    %1923 = vmatprep.subr.bf16.mxu0 %v1375
    %1924 = vmatpush1.bf16.msra.mxu0 %v1374
    %1925 = vmatprep.subr.bf16.mxu0 %v1383
    %1926 = vmatpush1.bf16.msra.mxu0 %v1382
    %1927 = vmatprep.subr.bf16.mxu0 %v1391
    %1928 = vmatpush1.bf16.msra.mxu0 %v1390
    %1929 = vmatprep.subr.bf16.mxu0 %v1399
    %1930 = vmatpush1.bf16.msra.mxu0 %v1398
    %1931 = vmatprep.subr.bf16.mxu0 %v1407
    %1932 = vmatpush1.bf16.msra.mxu0 %v1406
    %1933 = vmatprep.subr.bf16.mxu0 %v1415
    %1934 = vmatpush1.bf16.msra.mxu0 %v1414
    %1935 = vmatprep.subr.bf16.mxu0 %v1423
    %1936 = vmatpush1.bf16.msra.mxu0 %v1422
    %1937 = vmatprep.subr.bf16.mxu0 %v1431
    %1938 = vmatpush1.bf16.msra.mxu0 %v1430
    %1939 = vmatprep.subr.bf16.mxu0 %v1439
    %1940 = vmatpush1.bf16.msra.mxu0 %v1438
    %1941 = vmatprep.subr.bf16.mxu0 %v1447
    %1942 = vmatpush1.bf16.msra.mxu0 %v1446
    %1943 = vmatprep.mubr.bf16.mxu0 %v127
    %1944 = vmatmul.mubr.bf16.gmra.mrb[0].mxu0 %v126
    %v1945 = vpop.f32.mrb[0].mxu0
    %v1946 = vadd.f32 %v1905, %v1945
    %v1947 = vpop.f32.mrb[0].mxu0
    %v1948 = vadd.f32 %v1907, %v1947
    %v1949 = vpop.f32.mrb[0].mxu0
    %v1950 = vpop.f32.mrb[0].mxu0
    %1951 = vdwg.mxu0
    %1952 = vmatprep.subr.bf16.mxu0 %v1201
    %1953 = vmatpush1.bf16.msra.mxu0 %v1200
    %1954 = vmatprep.subr.bf16.mxu0 %v1209
    %1955 = vmatpush1.bf16.msra.mxu0 %v1208
    %1956 = vmatprep.subr.bf16.mxu0 %v1217
    %1957 = vmatpush1.bf16.msra.mxu0 %v1216
    %1958 = vmatprep.subr.bf16.mxu0 %v1225
    %1959 = vmatpush1.bf16.msra.mxu0 %v1224
    %1960 = vmatprep.subr.bf16.mxu0 %v1233
    %1961 = vmatpush1.bf16.msra.mxu0 %v1232
    %1962 = vmatprep.subr.bf16.mxu0 %v1241
    %1963 = vmatpush1.bf16.msra.mxu0 %v1240
    %1964 = vmatprep.subr.bf16.mxu0 %v1249
    %1965 = vmatpush1.bf16.msra.mxu0 %v1248
    %1966 = vmatprep.subr.bf16.mxu0 %v1257
    %1967 = vmatpush1.bf16.msra.mxu0 %v1256
    %1968 = vmatprep.subr.bf16.mxu0 %v1265
    %1969 = vmatpush1.bf16.msra.mxu0 %v1264
    %1970 = vmatprep.subr.bf16.mxu0 %v1273
    %1971 = vmatpush1.bf16.msra.mxu0 %v1272
    %1972 = vmatprep.subr.bf16.mxu0 %v1281
    %1973 = vmatpush1.bf16.msra.mxu0 %v1280
    %1974 = vmatprep.subr.bf16.mxu0 %v1289
    %1975 = vmatpush1.bf16.msra.mxu0 %v1288
    %1976 = vmatprep.subr.bf16.mxu0 %v1297
    %1977 = vmatpush1.bf16.msra.mxu0 %v1296
    %1978 = vmatprep.subr.bf16.mxu0 %v1305
    %1979 = vmatpush1.bf16.msra.mxu0 %v1304
    %1980 = vmatprep.subr.bf16.mxu0 %v1313
    %1981 = vmatpush1.bf16.msra.mxu0 %v1312
    %1982 = vmatprep.subr.bf16.mxu0 %v1321
    %1983 = vmatpush1.bf16.msra.mxu0 %v1320
    %1984 = vmatprep.mubr.bf16.mxu0 %v125
    %1985 = vmatmul.mubr.bf16.gmra.mrb[0].mxu0 %v124
    %v1986 = vpop.f32.mrb[0].mxu0
    %v1987 = vadd.f32 %v413, %v1986
    %v1988 = vpop.f32.mrb[0].mxu0
    %v1989 = vadd.f32 %v417, %v1988
    %v1990 = vpop.f32.mrb[0].mxu0
    %v1991 = vpop.f32.mrb[0].mxu0
    %1992 = vdwg.mxu0
    %1993 = vmatprep.subr.bf16.mxu0 %v1329
    %1994 = vmatpush1.bf16.msra.mxu0 %v1328
    %1995 = vmatprep.subr.bf16.mxu0 %v1337
    %1996 = vmatpush1.bf16.msra.mxu0 %v1336
    %1997 = vmatprep.subr.bf16.mxu0 %v1345
    %1998 = vmatpush1.bf16.msra.mxu0 %v1344
    %1999 = vmatprep.subr.bf16.mxu0 %v1353
    %2000 = vmatpush1.bf16.msra.mxu0 %v1352
    %2001 = vmatprep.subr.bf16.mxu0 %v1361
    %2002 = vmatpush1.bf16.msra.mxu0 %v1360
    %2003 = vmatprep.subr.bf16.mxu0 %v1369
    %2004 = vmatpush1.bf16.msra.mxu0 %v1368
    %2005 = vmatprep.subr.bf16.mxu0 %v1377
    %2006 = vmatpush1.bf16.msra.mxu0 %v1376
    %2007 = vmatprep.subr.bf16.mxu0 %v1385
    %2008 = vmatpush1.bf16.msra.mxu0 %v1384
    %2009 = vmatprep.subr.bf16.mxu0 %v1393
    %2010 = vmatpush1.bf16.msra.mxu0 %v1392
    %2011 = vmatprep.subr.bf16.mxu0 %v1401
    %2012 = vmatpush1.bf16.msra.mxu0 %v1400
    %2013 = vmatprep.subr.bf16.mxu0 %v1409
    %2014 = vmatpush1.bf16.msra.mxu0 %v1408
    %2015 = vmatprep.subr.bf16.mxu0 %v1417
    %2016 = vmatpush1.bf16.msra.mxu0 %v1416
    %2017 = vmatprep.subr.bf16.mxu0 %v1425
    %2018 = vmatpush1.bf16.msra.mxu0 %v1424
    %2019 = vmatprep.subr.bf16.mxu0 %v1433
    %2020 = vmatpush1.bf16.msra.mxu0 %v1432
    %2021 = vmatprep.subr.bf16.mxu0 %v1441
    %2022 = vmatpush1.bf16.msra.mxu0 %v1440
    %2023 = vmatprep.subr.bf16.mxu0 %v1449
    %2024 = vmatpush1.bf16.msra.mxu0 %v1448
    %2025 = vmatprep.mubr.bf16.mxu0 %v127
    %2026 = vmatmul.mubr.bf16.gmra.mrb[0].mxu0 %v126
    %v2027 = vpop.f32.mrb[0].mxu0
    %v2028 = vadd.f32 %v1987, %v2027
    %v2029 = vpop.f32.mrb[0].mxu0
    %v2030 = vadd.f32 %v1989, %v2029
    %v2031 = vpop.f32.mrb[0].mxu0
    %v2032 = vpop.f32.mrb[0].mxu0
    %2033 = vdwg.mxu0
    %v2034 = vmul.f32 %v1782, 0.2
    %v2035 = vmul.f32 %v1784, 0.2
    %v2036 = vmul.f32 %v1864, 0.2
    %v2037 = vmul.f32 %v1866, 0.2
    %v2038 = vmul.f32 %v1946, 0.2
    %v2039 = vmul.f32 %v1948, 0.2
    %v2040 = vmul.f32 %v2028, 0.2
    %v2041 = vmul.f32 %v2030, 0.2
    %v2042 = vmax.f32 %v1782, %v2034
    %v2043 = vmax.f32 %v1784, %v2035
    %v2044 = vmax.f32 %v1864, %v2036
    %v2045 = vmax.f32 %v1866, %v2037
    %v2046 = vmax.f32 %v1946, %v2038
    %v2047 = vmax.f32 %v1948, %v2039
    %v2048 = vmax.f32 %v2028, %v2040
    %v2049 = vmax.f32 %v2030, %v2041
    %2051 = vrot.lane.b32.xlu0 %v2042, 64
    %v2052 = vpop.permute.xlu0 %2051
    %2055 = vrot.lane.b32.xlu0 %v2043, 64
    %v2056 = vpop.permute.xlu0 %2055
    %2059 = vrot.lane.b32.xlu0 %v2044, 64
    %v2060 = vpop.permute.xlu0 %2059
    %2063 = vrot.lane.b32.xlu0 %v2045, 64
    %v2064 = vpop.permute.xlu0 %2063
    %2067 = vrot.lane.b32.xlu0 %v2046, 64
    %v2068 = vpop.permute.xlu0 %2067
    %2071 = vrot.lane.b32.xlu0 %v2047, 64
    %v2072 = vpop.permute.xlu0 %2071
    %2075 = vrot.lane.b32.xlu0 %v2048, 64
    %v2076 = vpop.permute.xlu0 %2075
    %2079 = vrot.lane.b32.xlu0 %v2049, 64
    %v2080 = vpop.permute.xlu0 %2079
    %v2082 = vcombine.low %v2042, %v2043
    %v2083 = vcombine.high %v2042, %v2043
    %v2085 = vunpack.c.l.s4 1983009808
    %v2086 = vunpack.c.0.s8 %v2085
    %v2087 = vlaneseq
    %v2088 = vshrl.u32 %v2087, 7
    %v2089 = vsub.s32 %v2086, %v2088
    %v2090 = vrot.slane %v2082, %v2089
    %v2092 = vunpack.c.l.s4 1983009808
    %v2093 = vunpack.c.0.s8 %v2092
    %v2094 = vlaneseq
    %v2095 = vshrl.u32 %v2094, 7
    %v2096 = vsub.s32 %v2093, %v2095
    %v2097 = vrot.slane %v2083, %v2096
    %v2098 = vcombine.low %v2052, %v2056
    %v2099 = vcombine.high %v2052, %v2056
    %v2101 = vunpack.c.l.s4 1983009808
    %v2102 = vunpack.c.0.s8 %v2101
    %v2103 = vlaneseq
    %v2104 = vshrl.u32 %v2103, 7
    %v2105 = vsub.s32 %v2102, %v2104
    %v2106 = vrot.slane %v2098, %v2105
    %v2108 = vunpack.c.l.s4 1983009808
    %v2109 = vunpack.c.0.s8 %v2108
    %v2110 = vlaneseq
    %v2111 = vshrl.u32 %v2110, 7
    %v2112 = vsub.s32 %v2109, %v2111
    %v2113 = vrot.slane %v2099, %v2112
    %v2114 = vcombine.low %v2044, %v2045
    %v2115 = vcombine.high %v2044, %v2045
    %v2117 = vunpack.c.l.s4 1983009808
    %v2118 = vunpack.c.0.s8 %v2117
    %v2119 = vlaneseq
    %v2120 = vshrl.u32 %v2119, 7
    %v2121 = vsub.s32 %v2118, %v2120
    %v2122 = vrot.slane %v2114, %v2121
    %v2124 = vunpack.c.l.s4 1983009808
    %v2125 = vunpack.c.0.s8 %v2124
    %v2126 = vlaneseq
    %v2127 = vshrl.u32 %v2126, 7
    %v2128 = vsub.s32 %v2125, %v2127
    %v2129 = vrot.slane %v2115, %v2128
    %v2130 = vcombine.low %v2060, %v2064
    %v2131 = vcombine.high %v2060, %v2064
    %v2133 = vunpack.c.l.s4 1983009808
    %v2134 = vunpack.c.0.s8 %v2133
    %v2135 = vlaneseq
    %v2136 = vshrl.u32 %v2135, 7
    %v2137 = vsub.s32 %v2134, %v2136
    %v2138 = vrot.slane %v2130, %v2137
    %v2140 = vunpack.c.l.s4 1983009808
    %v2141 = vunpack.c.0.s8 %v2140
    %v2142 = vlaneseq
    %v2143 = vshrl.u32 %v2142, 7
    %v2144 = vsub.s32 %v2141, %v2143
    %v2145 = vrot.slane %v2131, %v2144
    %v2146 = vcombine.low %v2090, %v2106
    %v2147 = vcombine.high %v2090, %v2106
    %v2149 = vunpack.c.l.s4 1934713408
    %v2150 = vunpack.c.0.s8 %v2149
    %v2151 = vlaneseq
    %v2152 = vshrl.u32 %v2151, 7
    %v2153 = vsub.s32 %v2150, %v2152
    %v2154 = vrot.slane %v2146, %v2153
    %v2156 = vunpack.c.l.s4 1934713408
    %v2157 = vunpack.c.0.s8 %v2156
    %v2158 = vlaneseq
    %v2159 = vshrl.u32 %v2158, 7
    %v2160 = vsub.s32 %v2157, %v2159
    %v2161 = vrot.slane %v2147, %v2160
    %v2162 = vcombine.low %v2097, %v2113
    %v2163 = vcombine.high %v2097, %v2113
    %v2165 = vunpack.c.l.s4 1934713408
    %v2166 = vunpack.c.0.s8 %v2165
    %v2167 = vlaneseq
    %v2168 = vshrl.u32 %v2167, 7
    %v2169 = vsub.s32 %v2166, %v2168
    %v2170 = vrot.slane %v2162, %v2169
    %v2172 = vunpack.c.l.s4 1934713408
    %v2173 = vunpack.c.0.s8 %v2172
    %v2174 = vlaneseq
    %v2175 = vshrl.u32 %v2174, 7
    %v2176 = vsub.s32 %v2173, %v2175
    %v2177 = vrot.slane %v2163, %v2176
    %v2178 = vcombine.low %v2122, %v2138
    %v2179 = vcombine.high %v2122, %v2138
    %v2181 = vunpack.c.l.s4 1934713408
    %v2182 = vunpack.c.0.s8 %v2181
    %v2183 = vlaneseq
    %v2184 = vshrl.u32 %v2183, 7
    %v2185 = vsub.s32 %v2182, %v2184
    %v2186 = vrot.slane %v2178, %v2185
    %v2188 = vunpack.c.l.s4 1934713408
    %v2189 = vunpack.c.0.s8 %v2188
    %v2190 = vlaneseq
    %v2191 = vshrl.u32 %v2190, 7
    %v2192 = vsub.s32 %v2189, %v2191
    %v2193 = vrot.slane %v2179, %v2192
    %v2194 = vcombine.low %v2129, %v2145
    %v2195 = vcombine.high %v2129, %v2145
    %v2197 = vunpack.c.l.s4 1934713408
    %v2198 = vunpack.c.0.s8 %v2197
    %v2199 = vlaneseq
    %v2200 = vshrl.u32 %v2199, 7
    %v2201 = vsub.s32 %v2198, %v2200
    %v2202 = vrot.slane %v2194, %v2201
    %v2204 = vunpack.c.l.s4 1934713408
    %v2205 = vunpack.c.0.s8 %v2204
    %v2206 = vlaneseq
    %v2207 = vshrl.u32 %v2206, 7
    %v2208 = vsub.s32 %v2205, %v2207
    %v2209 = vrot.slane %v2195, %v2208
    %v2210 = vcombine.low %v2154, %v2186
    %v2211 = vcombine.high %v2154, %v2186
    %v2212 = vcombine.low %v2161, %v2193
    %v2213 = vcombine.high %v2161, %v2193
    %v2214 = vcombine.low %v2170, %v2202
    %v2215 = vcombine.high %v2170, %v2202
    %v2216 = vcombine.low %v2177, %v2209
    %v2217 = vcombine.high %v2177, %v2209
    %v2218 = vcombine.low %v2046, %v2047
    %v2219 = vcombine.high %v2046, %v2047
    %v2221 = vunpack.c.l.s4 1983009808
    %v2222 = vunpack.c.0.s8 %v2221
    %v2223 = vlaneseq
    %v2224 = vshrl.u32 %v2223, 7
    %v2225 = vsub.s32 %v2222, %v2224
    %v2226 = vrot.slane %v2218, %v2225
    %v2228 = vunpack.c.l.s4 1983009808
    %v2229 = vunpack.c.0.s8 %v2228
    %v2230 = vlaneseq
    %v2231 = vshrl.u32 %v2230, 7
    %v2232 = vsub.s32 %v2229, %v2231
    %v2233 = vrot.slane %v2219, %v2232
    %v2234 = vcombine.low %v2068, %v2072
    %v2235 = vcombine.high %v2068, %v2072
    %v2237 = vunpack.c.l.s4 1983009808
    %v2238 = vunpack.c.0.s8 %v2237
    %v2239 = vlaneseq
    %v2240 = vshrl.u32 %v2239, 7
    %v2241 = vsub.s32 %v2238, %v2240
    %v2242 = vrot.slane %v2234, %v2241
    %v2244 = vunpack.c.l.s4 1983009808
    %v2245 = vunpack.c.0.s8 %v2244
    %v2246 = vlaneseq
    %v2247 = vshrl.u32 %v2246, 7
    %v2248 = vsub.s32 %v2245, %v2247
    %v2249 = vrot.slane %v2235, %v2248
    %v2250 = vcombine.low %v2048, %v2049
    %v2251 = vcombine.high %v2048, %v2049
    %v2253 = vunpack.c.l.s4 1983009808
    %v2254 = vunpack.c.0.s8 %v2253
    %v2255 = vlaneseq
    %v2256 = vshrl.u32 %v2255, 7
    %v2257 = vsub.s32 %v2254, %v2256
    %v2258 = vrot.slane %v2250, %v2257
    %v2260 = vunpack.c.l.s4 1983009808
    %v2261 = vunpack.c.0.s8 %v2260
    %v2262 = vlaneseq
    %v2263 = vshrl.u32 %v2262, 7
    %v2264 = vsub.s32 %v2261, %v2263
    %v2265 = vrot.slane %v2251, %v2264
    %v2266 = vcombine.low %v2076, %v2080
    %v2267 = vcombine.high %v2076, %v2080
    %v2269 = vunpack.c.l.s4 1983009808
    %v2270 = vunpack.c.0.s8 %v2269
    %v2271 = vlaneseq
    %v2272 = vshrl.u32 %v2271, 7
    %v2273 = vsub.s32 %v2270, %v2272
    %v2274 = vrot.slane %v2266, %v2273
    %v2276 = vunpack.c.l.s4 1983009808
    %v2277 = vunpack.c.0.s8 %v2276
    %v2278 = vlaneseq
    %v2279 = vshrl.u32 %v2278, 7
    %v2280 = vsub.s32 %v2277, %v2279
    %v2281 = vrot.slane %v2267, %v2280
    %v2282 = vcombine.low %v2226, %v2242
    %v2283 = vcombine.high %v2226, %v2242
    %v2285 = vunpack.c.l.s4 1934713408
    %v2286 = vunpack.c.0.s8 %v2285
    %v2287 = vlaneseq
    %v2288 = vshrl.u32 %v2287, 7
    %v2289 = vsub.s32 %v2286, %v2288
    %v2290 = vrot.slane %v2282, %v2289
    %v2292 = vunpack.c.l.s4 1934713408
    %v2293 = vunpack.c.0.s8 %v2292
    %v2294 = vlaneseq
    %v2295 = vshrl.u32 %v2294, 7
    %v2296 = vsub.s32 %v2293, %v2295
    %v2297 = vrot.slane %v2283, %v2296
    %v2298 = vcombine.low %v2233, %v2249
    %v2299 = vcombine.high %v2233, %v2249
    %v2301 = vunpack.c.l.s4 1934713408
    %v2302 = vunpack.c.0.s8 %v2301
    %v2303 = vlaneseq
    %v2304 = vshrl.u32 %v2303, 7
    %v2305 = vsub.s32 %v2302, %v2304
    %v2306 = vrot.slane %v2298, %v2305
    %v2308 = vunpack.c.l.s4 1934713408
    %v2309 = vunpack.c.0.s8 %v2308
    %v2310 = vlaneseq
    %v2311 = vshrl.u32 %v2310, 7
    %v2312 = vsub.s32 %v2309, %v2311
    %v2313 = vrot.slane %v2299, %v2312
    %v2314 = vcombine.low %v2258, %v2274
    %v2315 = vcombine.high %v2258, %v2274
    %v2317 = vunpack.c.l.s4 1934713408
    %v2318 = vunpack.c.0.s8 %v2317
    %v2319 = vlaneseq
    %v2320 = vshrl.u32 %v2319, 7
    %v2321 = vsub.s32 %v2318, %v2320
    %v2322 = vrot.slane %v2314, %v2321
    %v2324 = vunpack.c.l.s4 1934713408
    %v2325 = vunpack.c.0.s8 %v2324
    %v2326 = vlaneseq
    %v2327 = vshrl.u32 %v2326, 7
    %v2328 = vsub.s32 %v2325, %v2327
    %v2329 = vrot.slane %v2315, %v2328
    %v2330 = vcombine.low %v2265, %v2281
    %v2331 = vcombine.high %v2265, %v2281
    %v2333 = vunpack.c.l.s4 1934713408
    %v2334 = vunpack.c.0.s8 %v2333
    %v2335 = vlaneseq
    %v2336 = vshrl.u32 %v2335, 7
    %v2337 = vsub.s32 %v2334, %v2336
    %v2338 = vrot.slane %v2330, %v2337
    %v2340 = vunpack.c.l.s4 1934713408
    %v2341 = vunpack.c.0.s8 %v2340
    %v2342 = vlaneseq
    %v2343 = vshrl.u32 %v2342, 7
    %v2344 = vsub.s32 %v2341, %v2343
    %v2345 = vrot.slane %v2331, %v2344
    %v2346 = vcombine.low %v2290, %v2322
    %v2347 = vcombine.high %v2290, %v2322
    %v2348 = vcombine.low %v2297, %v2329
    %v2349 = vcombine.high %v2297, %v2329
    %v2350 = vcombine.low %v2306, %v2338
    %v2351 = vcombine.high %v2306, %v2338
    %v2352 = vcombine.low %v2313, %v2345
    %v2353 = vcombine.high %v2313, %v2345
    %v2354 = vmul.f32 %v2210, %v2210
    %v2355 = vmul.f32 %v2346, %v2346
    %v2356 = vmul.f32 %v2211, %v2211
    %v2357 = vmul.f32 %v2347, %v2347
    %v2358 = vmul.f32 %v2212, %v2212
    %v2359 = vmul.f32 %v2348, %v2348
    %v2360 = vmul.f32 %v2213, %v2213
    %v2361 = vmul.f32 %v2349, %v2349
    %v2362 = vmul.f32 %v2214, %v2214
    %v2363 = vmul.f32 %v2350, %v2350
    %v2364 = vmul.f32 %v2215, %v2215
    %v2365 = vmul.f32 %v2351, %v2351
    %v2366 = vmul.f32 %v2216, %v2216
    %v2367 = vmul.f32 %v2352, %v2352
    %v2368 = vmul.f32 %v2217, %v2217
    %v2369 = vmul.f32 %v2353, %v2353
    %vm2370 = vcmask 523264
    %v2371 = vsel %vm2370, %v2354, 0.0
    %2372 = vadd.xlane.f32.xlu0 %v2371
    %v2373 = vpop.xlane.xlu0 %2372
    %v2374 = vsel %vm2370, %v2355, 0.0
    %2375 = vadd.xlane.f32.xlu0 %v2374
    %v2376 = vpop.xlane.xlu0 %2375
    %v2377 = vsel %vm2370, %v2356, 0.0
    %2378 = vadd.xlane.f32.xlu0 %v2377
    %v2379 = vpop.xlane.xlu0 %2378
    %v2380 = vsel %vm2370, %v2357, 0.0
    %2381 = vadd.xlane.f32.xlu0 %v2380
    %v2382 = vpop.xlane.xlu0 %2381
    %v2383 = vsel %vm2370, %v2358, 0.0
    %2384 = vadd.xlane.f32.xlu0 %v2383
    %v2385 = vpop.xlane.xlu0 %2384
    %v2386 = vsel %vm2370, %v2359, 0.0
    %2387 = vadd.xlane.f32.xlu0 %v2386
    %v2388 = vpop.xlane.xlu0 %2387
    %v2389 = vsel %vm2370, %v2360, 0.0
    %2390 = vadd.xlane.f32.xlu0 %v2389
    %v2391 = vpop.xlane.xlu0 %2390
    %v2392 = vsel %vm2370, %v2361, 0.0
    %2393 = vadd.xlane.f32.xlu0 %v2392
    %v2394 = vpop.xlane.xlu0 %2393
    %v2395 = vsel %vm2370, %v2362, 0.0
    %2396 = vadd.xlane.f32.xlu0 %v2395
    %v2397 = vpop.xlane.xlu0 %2396
    %v2398 = vsel %vm2370, %v2363, 0.0
    %2399 = vadd.xlane.f32.xlu0 %v2398
    %v2400 = vpop.xlane.xlu0 %2399
    %v2401 = vsel %vm2370, %v2364, 0.0
    %2402 = vadd.xlane.f32.xlu0 %v2401
    %v2403 = vpop.xlane.xlu0 %2402
    %v2404 = vsel %vm2370, %v2365, 0.0
    %2405 = vadd.xlane.f32.xlu0 %v2404
    %v2406 = vpop.xlane.xlu0 %2405
    %v2407 = vsel %vm2370, %v2366, 0.0
    %2408 = vadd.xlane.f32.xlu0 %v2407
    %v2409 = vpop.xlane.xlu0 %2408
    %v2410 = vsel %vm2370, %v2367, 0.0
    %2411 = vadd.xlane.f32.xlu0 %v2410
    %v2412 = vpop.xlane.xlu0 %2411
    %v2413 = vsel %vm2370, %v2368, 0.0
    %2414 = vadd.xlane.f32.xlu0 %v2413
    %v2415 = vpop.xlane.xlu0 %2414
    %v2416 = vsel %vm2370, %v2369, 0.0
    %2417 = vadd.xlane.f32.xlu0 %v2416
    %v2418 = vpop.xlane.xlu0 %2417
    %v2419 = vrcp.pop 64.0
    %v2420 = vmul.f32 %v2373, %v2419
    %v2421 = vmul.f32 %v2376, %v2419
    %v2422 = vmul.f32 %v2379, %v2419
    %v2423 = vmul.f32 %v2382, %v2419
    %v2424 = vmul.f32 %v2385, %v2419
    %v2425 = vmul.f32 %v2388, %v2419
    %v2426 = vmul.f32 %v2391, %v2419
    %v2427 = vmul.f32 %v2394, %v2419
    %v2428 = vmul.f32 %v2397, %v2419
    %v2429 = vmul.f32 %v2400, %v2419
    %v2430 = vmul.f32 %v2403, %v2419
    %v2431 = vmul.f32 %v2406, %v2419
    %v2432 = vmul.f32 %v2409, %v2419
    %v2433 = vmul.f32 %v2412, %v2419
    %v2434 = vmul.f32 %v2415, %v2419
    %v2435 = vmul.f32 %v2418, %v2419
    %v2436 = vadd.f32 %v2420, 1e-08
    %v2437 = vadd.f32 %v2421, 1e-08
    %v2438 = vadd.f32 %v2422, 1e-08
    %v2439 = vadd.f32 %v2423, 1e-08
    %v2440 = vadd.f32 %v2424, 1e-08
    %v2441 = vadd.f32 %v2425, 1e-08
    %v2442 = vadd.f32 %v2426, 1e-08
    %v2443 = vadd.f32 %v2427, 1e-08
    %v2444 = vadd.f32 %v2428, 1e-08
    %v2445 = vadd.f32 %v2429, 1e-08
    %v2446 = vadd.f32 %v2430, 1e-08
    %v2447 = vadd.f32 %v2431, 1e-08
    %v2448 = vadd.f32 %v2432, 1e-08
    %v2449 = vadd.f32 %v2433, 1e-08
    %v2450 = vadd.f32 %v2434, 1e-08
    %v2451 = vadd.f32 %v2435, 1e-08
    %v2452 = vrsqrt.pop %v2436
    %v2453 = vrsqrt.pop %v2437
    %v2454 = vrsqrt.pop %v2438
    %v2455 = vrsqrt.pop %v2439
    %v2456 = vrsqrt.pop %v2440
    %v2457 = vrsqrt.pop %v2441
    %v2458 = vrsqrt.pop %v2442
    %v2459 = vrsqrt.pop %v2443
    %v2460 = vrsqrt.pop %v2444
    %v2461 = vrsqrt.pop %v2445
    %v2462 = vrsqrt.pop %v2446
    %v2463 = vrsqrt.pop %v2447
    %v2464 = vrsqrt.pop %v2448
    %v2465 = vrsqrt.pop %v2449
    %v2466 = vrsqrt.pop %v2450
    %v2467 = vrsqrt.pop %v2451
    %v2468 = vmul.f32 %v2210, %v2452
    %v2469 = vmul.f32 %v2346, %v2453
    %v2470 = vmul.f32 %v2211, %v2454
    %v2471 = vmul.f32 %v2347, %v2455
    %v2472 = vmul.f32 %v2212, %v2456
    %v2473 = vmul.f32 %v2348, %v2457
    %v2474 = vmul.f32 %v2213, %v2458
    %v2475 = vmul.f32 %v2349, %v2459
    %v2476 = vmul.f32 %v2214, %v2460
    %v2477 = vmul.f32 %v2350, %v2461
    %v2478 = vmul.f32 %v2215, %v2462
    %v2479 = vmul.f32 %v2351, %v2463
    %v2480 = vmul.f32 %v2216, %v2464
    %v2481 = vmul.f32 %v2352, %v2465
    %v2482 = vmul.f32 %v2217, %v2466
    %v2483 = vmul.f32 %v2353, %v2467
    %v2484 = vcombine.low %v2468, %v2472
    %v2485 = vcombine.high %v2468, %v2472
    %v2487 = vunpack.c.l.s4 1983009808
    %v2488 = vunpack.c.0.s8 %v2487
    %v2489 = vlaneseq
    %v2490 = vshrl.u32 %v2489, 7
    %v2491 = vsub.s32 %v2488, %v2490
    %v2492 = vrot.slane %v2484, %v2491
    %v2494 = vunpack.c.l.s4 1983009808
    %v2495 = vunpack.c.0.s8 %v2494
    %v2496 = vlaneseq
    %v2497 = vshrl.u32 %v2496, 7
    %v2498 = vsub.s32 %v2495, %v2497
    %v2499 = vrot.slane %v2485, %v2498
    %v2500 = vcombine.low %v2470, %v2474
    %v2501 = vcombine.high %v2470, %v2474
    %v2503 = vunpack.c.l.s4 1983009808
    %v2504 = vunpack.c.0.s8 %v2503
    %v2505 = vlaneseq
    %v2506 = vshrl.u32 %v2505, 7
    %v2507 = vsub.s32 %v2504, %v2506
    %v2508 = vrot.slane %v2500, %v2507
    %v2510 = vunpack.c.l.s4 1983009808
    %v2511 = vunpack.c.0.s8 %v2510
    %v2512 = vlaneseq
    %v2513 = vshrl.u32 %v2512, 7
    %v2514 = vsub.s32 %v2511, %v2513
    %v2515 = vrot.slane %v2501, %v2514
    %v2516 = vcombine.low %v2476, %v2480
    %v2517 = vcombine.high %v2476, %v2480
    %v2519 = vunpack.c.l.s4 1983009808
    %v2520 = vunpack.c.0.s8 %v2519
    %v2521 = vlaneseq
    %v2522 = vshrl.u32 %v2521, 7
    %v2523 = vsub.s32 %v2520, %v2522
    %v2524 = vrot.slane %v2516, %v2523
    %v2526 = vunpack.c.l.s4 1983009808
    %v2527 = vunpack.c.0.s8 %v2526
    %v2528 = vlaneseq
    %v2529 = vshrl.u32 %v2528, 7
    %v2530 = vsub.s32 %v2527, %v2529
    %v2531 = vrot.slane %v2517, %v2530
    %v2532 = vcombine.low %v2478, %v2482
    %v2533 = vcombine.high %v2478, %v2482
    %v2535 = vunpack.c.l.s4 1983009808
    %v2536 = vunpack.c.0.s8 %v2535
    %v2537 = vlaneseq
    %v2538 = vshrl.u32 %v2537, 7
    %v2539 = vsub.s32 %v2536, %v2538
    %v2540 = vrot.slane %v2532, %v2539
    %v2542 = vunpack.c.l.s4 1983009808
    %v2543 = vunpack.c.0.s8 %v2542
    %v2544 = vlaneseq
    %v2545 = vshrl.u32 %v2544, 7
    %v2546 = vsub.s32 %v2543, %v2545
    %v2547 = vrot.slane %v2533, %v2546
    %v2548 = vcombine.low %v2492, %v2508
    %v2549 = vcombine.high %v2492, %v2508
    %v2551 = vunpack.c.l.s4 1934713408
    %v2552 = vunpack.c.0.s8 %v2551
    %v2553 = vlaneseq
    %v2554 = vshrl.u32 %v2553, 7
    %v2555 = vsub.s32 %v2552, %v2554
    %v2556 = vrot.slane %v2548, %v2555
    %v2558 = vunpack.c.l.s4 1934713408
    %v2559 = vunpack.c.0.s8 %v2558
    %v2560 = vlaneseq
    %v2561 = vshrl.u32 %v2560, 7
    %v2562 = vsub.s32 %v2559, %v2561
    %v2563 = vrot.slane %v2549, %v2562
    %v2564 = vcombine.low %v2499, %v2515
    %v2565 = vcombine.high %v2499, %v2515
    %v2567 = vunpack.c.l.s4 1934713408
    %v2568 = vunpack.c.0.s8 %v2567
    %v2569 = vlaneseq
    %v2570 = vshrl.u32 %v2569, 7
    %v2571 = vsub.s32 %v2568, %v2570
    %v2572 = vrot.slane %v2564, %v2571
    %v2574 = vunpack.c.l.s4 1934713408
    %v2575 = vunpack.c.0.s8 %v2574
    %v2576 = vlaneseq
    %v2577 = vshrl.u32 %v2576, 7
    %v2578 = vsub.s32 %v2575, %v2577
    %v2579 = vrot.slane %v2565, %v2578
    %v2580 = vcombine.low %v2524, %v2540
    %v2581 = vcombine.high %v2524, %v2540
    %v2583 = vunpack.c.l.s4 1934713408
    %v2584 = vunpack.c.0.s8 %v2583
    %v2585 = vlaneseq
    %v2586 = vshrl.u32 %v2585, 7
    %v2587 = vsub.s32 %v2584, %v2586
    %v2588 = vrot.slane %v2580, %v2587
    %v2590 = vunpack.c.l.s4 1934713408
    %v2591 = vunpack.c.0.s8 %v2590
    %v2592 = vlaneseq
    %v2593 = vshrl.u32 %v2592, 7
    %v2594 = vsub.s32 %v2591, %v2593
    %v2595 = vrot.slane %v2581, %v2594
    %v2596 = vcombine.low %v2531, %v2547
    %v2597 = vcombine.high %v2531, %v2547
    %v2599 = vunpack.c.l.s4 1934713408
    %v2600 = vunpack.c.0.s8 %v2599
    %v2601 = vlaneseq
    %v2602 = vshrl.u32 %v2601, 7
    %v2603 = vsub.s32 %v2600, %v2602
    %v2604 = vrot.slane %v2596, %v2603
    %v2606 = vunpack.c.l.s4 1934713408
    %v2607 = vunpack.c.0.s8 %v2606
    %v2608 = vlaneseq
    %v2609 = vshrl.u32 %v2608, 7
    %v2610 = vsub.s32 %v2607, %v2609
    %v2611 = vrot.slane %v2597, %v2610
    %v2612 = vcombine.low %v2556, %v2588
    %v2613 = vcombine.high %v2556, %v2588
    %v2614 = vcombine.low %v2563, %v2595
    %v2615 = vcombine.high %v2563, %v2595
    %v2616 = vcombine.low %v2572, %v2604
    %v2617 = vcombine.high %v2572, %v2604
    %v2618 = vcombine.low %v2579, %v2611
    %v2619 = vcombine.high %v2579, %v2611
    %v2620 = vcombine.low %v2469, %v2473
    %v2621 = vcombine.high %v2469, %v2473
    %v2623 = vunpack.c.l.s4 1983009808
    %v2624 = vunpack.c.0.s8 %v2623
    %v2625 = vlaneseq
    %v2626 = vshrl.u32 %v2625, 7
    %v2627 = vsub.s32 %v2624, %v2626
    %v2628 = vrot.slane %v2620, %v2627
    %v2630 = vunpack.c.l.s4 1983009808
    %v2631 = vunpack.c.0.s8 %v2630
    %v2632 = vlaneseq
    %v2633 = vshrl.u32 %v2632, 7
    %v2634 = vsub.s32 %v2631, %v2633
    %v2635 = vrot.slane %v2621, %v2634
    %v2636 = vcombine.low %v2471, %v2475
    %v2637 = vcombine.high %v2471, %v2475
    %v2639 = vunpack.c.l.s4 1983009808
    %v2640 = vunpack.c.0.s8 %v2639
    %v2641 = vlaneseq
    %v2642 = vshrl.u32 %v2641, 7
    %v2643 = vsub.s32 %v2640, %v2642
    %v2644 = vrot.slane %v2636, %v2643
    %v2646 = vunpack.c.l.s4 1983009808
    %v2647 = vunpack.c.0.s8 %v2646
    %v2648 = vlaneseq
    %v2649 = vshrl.u32 %v2648, 7
    %v2650 = vsub.s32 %v2647, %v2649
    %v2651 = vrot.slane %v2637, %v2650
    %v2652 = vcombine.low %v2477, %v2481
    %v2653 = vcombine.high %v2477, %v2481
    %v2655 = vunpack.c.l.s4 1983009808
    %v2656 = vunpack.c.0.s8 %v2655
    %v2657 = vlaneseq
    %v2658 = vshrl.u32 %v2657, 7
    %v2659 = vsub.s32 %v2656, %v2658
    %v2660 = vrot.slane %v2652, %v2659
    %v2662 = vunpack.c.l.s4 1983009808
    %v2663 = vunpack.c.0.s8 %v2662
    %v2664 = vlaneseq
    %v2665 = vshrl.u32 %v2664, 7
    %v2666 = vsub.s32 %v2663, %v2665
    %v2667 = vrot.slane %v2653, %v2666
    %v2668 = vcombine.low %v2479, %v2483
    %v2669 = vcombine.high %v2479, %v2483
    %v2671 = vunpack.c.l.s4 1983009808
    %v2672 = vunpack.c.0.s8 %v2671
    %v2673 = vlaneseq
    %v2674 = vshrl.u32 %v2673, 7
    %v2675 = vsub.s32 %v2672, %v2674
    %v2676 = vrot.slane %v2668, %v2675
    %v2678 = vunpack.c.l.s4 1983009808
    %v2679 = vunpack.c.0.s8 %v2678
    %v2680 = vlaneseq
    %v2681 = vshrl.u32 %v2680, 7
    %v2682 = vsub.s32 %v2679, %v2681
    %v2683 = vrot.slane %v2669, %v2682
    %v2684 = vcombine.low %v2628, %v2644
    %v2685 = vcombine.high %v2628, %v2644
    %v2687 = vunpack.c.l.s4 1934713408
    %v2688 = vunpack.c.0.s8 %v2687
    %v2689 = vlaneseq
    %v2690 = vshrl.u32 %v2689, 7
    %v2691 = vsub.s32 %v2688, %v2690
    %v2692 = vrot.slane %v2684, %v2691
    %v2694 = vunpack.c.l.s4 1934713408
    %v2695 = vunpack.c.0.s8 %v2694
    %v2696 = vlaneseq
    %v2697 = vshrl.u32 %v2696, 7
    %v2698 = vsub.s32 %v2695, %v2697
    %v2699 = vrot.slane %v2685, %v2698
    %v2700 = vcombine.low %v2635, %v2651
    %v2701 = vcombine.high %v2635, %v2651
    %v2703 = vunpack.c.l.s4 1934713408
    %v2704 = vunpack.c.0.s8 %v2703
    %v2705 = vlaneseq
    %v2706 = vshrl.u32 %v2705, 7
    %v2707 = vsub.s32 %v2704, %v2706
    %v2708 = vrot.slane %v2700, %v2707
    %v2710 = vunpack.c.l.s4 1934713408
    %v2711 = vunpack.c.0.s8 %v2710
    %v2712 = vlaneseq
    %v2713 = vshrl.u32 %v2712, 7
    %v2714 = vsub.s32 %v2711, %v2713
    %v2715 = vrot.slane %v2701, %v2714
    %v2716 = vcombine.low %v2660, %v2676
    %v2717 = vcombine.high %v2660, %v2676
    %v2719 = vunpack.c.l.s4 1934713408
    %v2720 = vunpack.c.0.s8 %v2719
    %v2721 = vlaneseq
    %v2722 = vshrl.u32 %v2721, 7
    %v2723 = vsub.s32 %v2720, %v2722
    %v2724 = vrot.slane %v2716, %v2723
    %v2726 = vunpack.c.l.s4 1934713408
    %v2727 = vunpack.c.0.s8 %v2726
    %v2728 = vlaneseq
    %v2729 = vshrl.u32 %v2728, 7
    %v2730 = vsub.s32 %v2727, %v2729
    %v2731 = vrot.slane %v2717, %v2730
    %v2732 = vcombine.low %v2667, %v2683
    %v2733 = vcombine.high %v2667, %v2683
    %v2735 = vunpack.c.l.s4 1934713408
    %v2736 = vunpack.c.0.s8 %v2735
    %v2737 = vlaneseq
    %v2738 = vshrl.u32 %v2737, 7
    %v2739 = vsub.s32 %v2736, %v2738
    %v2740 = vrot.slane %v2732, %v2739
    %v2742 = vunpack.c.l.s4 1934713408
    %v2743 = vunpack.c.0.s8 %v2742
    %v2744 = vlaneseq
    %v2745 = vshrl.u32 %v2744, 7
    %v2746 = vsub.s32 %v2743, %v2745
    %v2747 = vrot.slane %v2733, %v2746
    %v2748 = vcombine.low %v2692, %v2724
    %v2749 = vcombine.high %v2692, %v2724
    %v2750 = vcombine.low %v2699, %v2731
    %v2751 = vcombine.high %v2699, %v2731
    %v2752 = vcombine.low %v2708, %v2740
    %v2753 = vcombine.high %v2708, %v2740
    %v2754 = vcombine.low %v2715, %v2747
    %v2755 = vcombine.high %v2715, %v2747
    %2757 = vrot.lane.b32.xlu0 %v2613, 64
    %v2758 = vpop.permute.xlu0 %2757
    %2761 = vrot.lane.b32.xlu0 %v2615, 64
    %v2762 = vpop.permute.xlu0 %2761
    %2765 = vrot.lane.b32.xlu0 %v2617, 64
    %v2766 = vpop.permute.xlu0 %2765
    %2769 = vrot.lane.b32.xlu0 %v2619, 64
    %v2770 = vpop.permute.xlu0 %2769
    %2773 = vrot.lane.b32.xlu0 %v2749, 64
    %v2774 = vpop.permute.xlu0 %2773
    %2777 = vrot.lane.b32.xlu0 %v2751, 64
    %v2778 = vpop.permute.xlu0 %2777
    %2781 = vrot.lane.b32.xlu0 %v2753, 64
    %v2782 = vpop.permute.xlu0 %2781
    %2785 = vrot.lane.b32.xlu0 %v2755, 64
    %v2786 = vpop.permute.xlu0 %2785
    %v2788 = vsel %vm2370, %v2612, %v2758
    %v2789 = vsel %vm2370, %v2614, %v2762
    %v2790 = vsel %vm2370, %v2616, %v2766
    %v2791 = vsel %vm2370, %v2618, %v2770
    %v2792 = vsel %vm2370, %v2748, %v2774
    %v2793 = vsel %vm2370, %v2750, %v2778
    %v2794 = vsel %vm2370, %v2752, %v2782
    %v2795 = vsel %vm2370, %v2754, %v2786
    %v2796 = vpack.c.bf16 %v2788, %v2788
    %v2797 = vpack.c.bf16 %v2789, %v2789
    %v2798 = vpack.c.bf16 %v2790, %v2790
    %v2799 = vpack.c.bf16 %v2791, %v2791
    %v2800 = vpack.c.bf16 %v2792, %v2792
    %v2801 = vpack.c.bf16 %v2793, %v2793
    %v2802 = vpack.c.bf16 %v2794, %v2794
    %v2803 = vpack.c.bf16 %v2795, %v2795
    %v2804 = vld [vmem:[#allocation6] sm:$0xff]
    %v2805 = vld [vmem:[#allocation6 + $0x8] sm:$0xff]
    %v2806 = vld [vmem:[#allocation6 + $0x10] sm:$0xff]
    %v2807 = vld [vmem:[#allocation6 + $0x18] sm:$0xff]
    %v2808 = vld [vmem:[#allocation6 + $0x20] sm:$0xff]
    %v2809 = vld [vmem:[#allocation6 + $0x28] sm:$0xff]
    %v2810 = vld [vmem:[#allocation6 + $0x30] sm:$0xff]
    %v2811 = vld [vmem:[#allocation6 + $0x38] sm:$0xff]
    %v2812 = vld [vmem:[#allocation6 + $0x40] sm:$0xff]
    %v2813 = vld [vmem:[#allocation6 + $0x48] sm:$0xff]
    %v2814 = vld [vmem:[#allocation6 + $0x50] sm:$0xff]
    %v2815 = vld [vmem:[#allocation6 + $0x58] sm:$0xff]
    %v2816 = vld [vmem:[#allocation6 + $0x60] sm:$0xff]
    %v2817 = vld [vmem:[#allocation6 + $0x68] sm:$0xff]
    %v2818 = vld [vmem:[#allocation6 + $0x70] sm:$0xff]
    %v2819 = vld [vmem:[#allocation6 + $0x78] sm:$0xff]
    %v2820 = vld [vmem:[#allocation6 + $0x80] sm:$0xff]
    %v2821 = vld [vmem:[#allocation6 + $0x88] sm:$0xff]
    %v2822 = vld [vmem:[#allocation6 + $0x90] sm:$0xff]
    %v2823 = vld [vmem:[#allocation6 + $0x98] sm:$0xff]
    %v2824 = vld [vmem:[#allocation6 + $0xa0] sm:$0xff]
    %v2825 = vld [vmem:[#allocation6 + $0xa8] sm:$0xff]
    %v2826 = vld [vmem:[#allocation6 + $0xb0] sm:$0xff]
    %v2827 = vld [vmem:[#allocation6 + $0xb8] sm:$0xff]
    %v2828 = vld [vmem:[#allocation6 + $0xc0] sm:$0xff]
    %v2829 = vld [vmem:[#allocation6 + $0xc8] sm:$0xff]
    %v2830 = vld [vmem:[#allocation6 + $0xd0] sm:$0xff]
    %v2831 = vld [vmem:[#allocation6 + $0xd8] sm:$0xff]
    %v2832 = vld [vmem:[#allocation6 + $0xe0] sm:$0xff]
    %v2833 = vld [vmem:[#allocation6 + $0xe8] sm:$0xff]
    %v2834 = vld [vmem:[#allocation6 + $0xf0] sm:$0xff]
    %v2835 = vld [vmem:[#allocation6 + $0xf8] sm:$0xff]
    %v2836 = vld [vmem:[#allocation6 + $0x100] sm:$0xff]
    %v2837 = vld [vmem:[#allocation6 + $0x108] sm:$0xff]
    %v2838 = vld [vmem:[#allocation6 + $0x110] sm:$0xff]
    %v2839 = vld [vmem:[#allocation6 + $0x118] sm:$0xff]
    %v2840 = vld [vmem:[#allocation6 + $0x120] sm:$0xff]
    %v2841 = vld [vmem:[#allocation6 + $0x128] sm:$0xff]
    %v2842 = vld [vmem:[#allocation6 + $0x130] sm:$0xff]
    %v2843 = vld [vmem:[#allocation6 + $0x138] sm:$0xff]
    %v2844 = vld [vmem:[#allocation6 + $0x140] sm:$0xff]
    %v2845 = vld [vmem:[#allocation6 + $0x148] sm:$0xff]
    %v2846 = vld [vmem:[#allocation6 + $0x150] sm:$0xff]
    %v2847 = vld [vmem:[#allocation6 + $0x158] sm:$0xff]
    %v2848 = vld [vmem:[#allocation6 + $0x160] sm:$0xff]
    %v2849 = vld [vmem:[#allocation6 + $0x168] sm:$0xff]
    %v2850 = vld [vmem:[#allocation6 + $0x170] sm:$0xff]
    %v2851 = vld [vmem:[#allocation6 + $0x178] sm:$0xff]
    %v2852 = vld [vmem:[#allocation6 + $0x180] sm:$0xff]
    %v2853 = vld [vmem:[#allocation6 + $0x188] sm:$0xff]
    %v2854 = vld [vmem:[#allocation6 + $0x190] sm:$0xff]
    %v2855 = vld [vmem:[#allocation6 + $0x198] sm:$0xff]
    %v2856 = vld [vmem:[#allocation6 + $0x1a0] sm:$0xff]
    %v2857 = vld [vmem:[#allocation6 + $0x1a8] sm:$0xff]
    %v2858 = vld [vmem:[#allocation6 + $0x1b0] sm:$0xff]
    %v2859 = vld [vmem:[#allocation6 + $0x1b8] sm:$0xff]
    %v2860 = vld [vmem:[#allocation6 + $0x1c0] sm:$0xff]
    %v2861 = vld [vmem:[#allocation6 + $0x1c8] sm:$0xff]
    %v2862 = vld [vmem:[#allocation6 + $0x1d0] sm:$0xff]
    %v2863 = vld [vmem:[#allocation6 + $0x1d8] sm:$0xff]
    %v2864 = vld [vmem:[#allocation6 + $0x1e0] sm:$0xff]
    %v2865 = vld [vmem:[#allocation6 + $0x1e8] sm:$0xff]
    %v2866 = vld [vmem:[#allocation6 + $0x1f0] sm:$0xff]
    %v2867 = vld [vmem:[#allocation6 + $0x1f8] sm:$0xff]
    %v2868 = vld [vmem:[#allocation6 + $0x200] sm:$0xff]
    %v2869 = vld [vmem:[#allocation6 + $0x208] sm:$0xff]
    %v2870 = vld [vmem:[#allocation6 + $0x210] sm:$0xff]
    %v2871 = vld [vmem:[#allocation6 + $0x218] sm:$0xff]
    %v2872 = vld [vmem:[#allocation6 + $0x220] sm:$0xff]
    %v2873 = vld [vmem:[#allocation6 + $0x228] sm:$0xff]
    %v2874 = vld [vmem:[#allocation6 + $0x230] sm:$0xff]
    %v2875 = vld [vmem:[#allocation6 + $0x238] sm:$0xff]
    %v2876 = vld [vmem:[#allocation6 + $0x240] sm:$0xff]
    %v2877 = vld [vmem:[#allocation6 + $0x248] sm:$0xff]
    %v2878 = vld [vmem:[#allocation6 + $0x250] sm:$0xff]
    %v2879 = vld [vmem:[#allocation6 + $0x258] sm:$0xff]
    %v2880 = vld [vmem:[#allocation6 + $0x260] sm:$0xff]
    %v2881 = vld [vmem:[#allocation6 + $0x268] sm:$0xff]
    %v2882 = vld [vmem:[#allocation6 + $0x270] sm:$0xff]
    %v2883 = vld [vmem:[#allocation6 + $0x278] sm:$0xff]
    %v2884 = vld [vmem:[#allocation6 + $0x280] sm:$0xff]
    %v2885 = vld [vmem:[#allocation6 + $0x288] sm:$0xff]
    %v2886 = vld [vmem:[#allocation6 + $0x290] sm:$0xff]
    %v2887 = vld [vmem:[#allocation6 + $0x298] sm:$0xff]
    %v2888 = vld [vmem:[#allocation6 + $0x2a0] sm:$0xff]
    %v2889 = vld [vmem:[#allocation6 + $0x2a8] sm:$0xff]
    %v2890 = vld [vmem:[#allocation6 + $0x2b0] sm:$0xff]
    %v2891 = vld [vmem:[#allocation6 + $0x2b8] sm:$0xff]
    %v2892 = vld [vmem:[#allocation6 + $0x2c0] sm:$0xff]
    %v2893 = vld [vmem:[#allocation6 + $0x2c8] sm:$0xff]
    %v2894 = vld [vmem:[#allocation6 + $0x2d0] sm:$0xff]
    %v2895 = vld [vmem:[#allocation6 + $0x2d8] sm:$0xff]
    %v2896 = vld [vmem:[#allocation6 + $0x2e0] sm:$0xff]
    %v2897 = vld [vmem:[#allocation6 + $0x2e8] sm:$0xff]
    %v2898 = vld [vmem:[#allocation6 + $0x2f0] sm:$0xff]
    %v2899 = vld [vmem:[#allocation6 + $0x2f8] sm:$0xff]
    %v2900 = vld [vmem:[#allocation6 + $0x300] sm:$0xff]
    %v2901 = vld [vmem:[#allocation6 + $0x308] sm:$0xff]
    %v2902 = vld [vmem:[#allocation6 + $0x310] sm:$0xff]
    %v2903 = vld [vmem:[#allocation6 + $0x318] sm:$0xff]
    %v2904 = vld [vmem:[#allocation6 + $0x320] sm:$0xff]
    %v2905 = vld [vmem:[#allocation6 + $0x328] sm:$0xff]
    %v2906 = vld [vmem:[#allocation6 + $0x330] sm:$0xff]
    %v2907 = vld [vmem:[#allocation6 + $0x338] sm:$0xff]
    %v2908 = vld [vmem:[#allocation6 + $0x340] sm:$0xff]
    %v2909 = vld [vmem:[#allocation6 + $0x348] sm:$0xff]
    %v2910 = vld [vmem:[#allocation6 + $0x350] sm:$0xff]
    %v2911 = vld [vmem:[#allocation6 + $0x358] sm:$0xff]
    %v2912 = vld [vmem:[#allocation6 + $0x360] sm:$0xff]
    %v2913 = vld [vmem:[#allocation6 + $0x368] sm:$0xff]
    %v2914 = vld [vmem:[#allocation6 + $0x370] sm:$0xff]
    %v2915 = vld [vmem:[#allocation6 + $0x378] sm:$0xff]
    %v2916 = vld [vmem:[#allocation6 + $0x380] sm:$0xff]
    %v2917 = vld [vmem:[#allocation6 + $0x388] sm:$0xff]
    %v2918 = vld [vmem:[#allocation6 + $0x390] sm:$0xff]
    %v2919 = vld [vmem:[#allocation6 + $0x398] sm:$0xff]
    %v2920 = vld [vmem:[#allocation6 + $0x3a0] sm:$0xff]
    %v2921 = vld [vmem:[#allocation6 + $0x3a8] sm:$0xff]
    %v2922 = vld [vmem:[#allocation6 + $0x3b0] sm:$0xff]
    %v2923 = vld [vmem:[#allocation6 + $0x3b8] sm:$0xff]
    %v2924 = vld [vmem:[#allocation6 + $0x3c0] sm:$0xff]
    %v2925 = vld [vmem:[#allocation6 + $0x3c8] sm:$0xff]
    %v2926 = vld [vmem:[#allocation6 + $0x3d0] sm:$0xff]
    %v2927 = vld [vmem:[#allocation6 + $0x3d8] sm:$0xff]
    %v2928 = vld [vmem:[#allocation6 + $0x3e0] sm:$0xff]
    %v2929 = vld [vmem:[#allocation6 + $0x3e8] sm:$0xff]
    %v2930 = vld [vmem:[#allocation6 + $0x3f0] sm:$0xff]
    %v2931 = vld [vmem:[#allocation6 + $0x3f8] sm:$0xff]
    %v2932 = vld [vmem:[#allocation6 + $0x400] sm:$0xff]
    %v2933 = vld [vmem:[#allocation6 + $0x408] sm:$0xff]
    %v2934 = vld [vmem:[#allocation6 + $0x410] sm:$0xff]
    %v2935 = vld [vmem:[#allocation6 + $0x418] sm:$0xff]
    %v2936 = vld [vmem:[#allocation6 + $0x420] sm:$0xff]
    %v2937 = vld [vmem:[#allocation6 + $0x428] sm:$0xff]
    %v2938 = vld [vmem:[#allocation6 + $0x430] sm:$0xff]
    %v2939 = vld [vmem:[#allocation6 + $0x438] sm:$0xff]
    %v2940 = vld [vmem:[#allocation6 + $0x440] sm:$0xff]
    %v2941 = vld [vmem:[#allocation6 + $0x448] sm:$0xff]
    %v2942 = vld [vmem:[#allocation6 + $0x450] sm:$0xff]
    %v2943 = vld [vmem:[#allocation6 + $0x458] sm:$0xff]
    %v2944 = vld [vmem:[#allocation6 + $0x460] sm:$0xff]
    %v2945 = vld [vmem:[#allocation6 + $0x468] sm:$0xff]
    %v2946 = vld [vmem:[#allocation6 + $0x470] sm:$0xff]
    %v2947 = vld [vmem:[#allocation6 + $0x478] sm:$0xff]
    %v2948 = vld [vmem:[#allocation6 + $0x480] sm:$0xff]
    %v2949 = vld [vmem:[#allocation6 + $0x488] sm:$0xff]
    %v2950 = vld [vmem:[#allocation6 + $0x490] sm:$0xff]
    %v2951 = vld [vmem:[#allocation6 + $0x498] sm:$0xff]
    %v2952 = vld [vmem:[#allocation6 + $0x4a0] sm:$0xff]
    %v2953 = vld [vmem:[#allocation6 + $0x4a8] sm:$0xff]
    %v2954 = vld [vmem:[#allocation6 + $0x4b0] sm:$0xff]
    %v2955 = vld [vmem:[#allocation6 + $0x4b8] sm:$0xff]
    %v2956 = vld [vmem:[#allocation6 + $0x4c0] sm:$0xff]
    %v2957 = vld [vmem:[#allocation6 + $0x4c8] sm:$0xff]
    %v2958 = vld [vmem:[#allocation6 + $0x4d0] sm:$0xff]
    %v2959 = vld [vmem:[#allocation6 + $0x4d8] sm:$0xff]
    %v2960 = vld [vmem:[#allocation6 + $0x4e0] sm:$0xff]
    %v2961 = vld [vmem:[#allocation6 + $0x4e8] sm:$0xff]
    %v2962 = vld [vmem:[#allocation6 + $0x4f0] sm:$0xff]
    %v2963 = vld [vmem:[#allocation6 + $0x4f8] sm:$0xff]
    %v2964 = vld [vmem:[#allocation6 + $0x500] sm:$0xff]
    %v2965 = vld [vmem:[#allocation6 + $0x508] sm:$0xff]
    %v2966 = vld [vmem:[#allocation6 + $0x510] sm:$0xff]
    %v2967 = vld [vmem:[#allocation6 + $0x518] sm:$0xff]
    %v2968 = vld [vmem:[#allocation6 + $0x520] sm:$0xff]
    %v2969 = vld [vmem:[#allocation6 + $0x528] sm:$0xff]
    %v2970 = vld [vmem:[#allocation6 + $0x530] sm:$0xff]
    %v2971 = vld [vmem:[#allocation6 + $0x538] sm:$0xff]
    %v2972 = vld [vmem:[#allocation6 + $0x540] sm:$0xff]
    %v2973 = vld [vmem:[#allocation6 + $0x548] sm:$0xff]
    %v2974 = vld [vmem:[#allocation6 + $0x550] sm:$0xff]
    %v2975 = vld [vmem:[#allocation6 + $0x558] sm:$0xff]
    %v2976 = vld [vmem:[#allocation6 + $0x560] sm:$0xff]
    %v2977 = vld [vmem:[#allocation6 + $0x568] sm:$0xff]
    %v2978 = vld [vmem:[#allocation6 + $0x570] sm:$0xff]
    %v2979 = vld [vmem:[#allocation6 + $0x578] sm:$0xff]
    %v2980 = vld [vmem:[#allocation6 + $0x580] sm:$0xff]
    %v2981 = vld [vmem:[#allocation6 + $0x588] sm:$0xff]
    %v2982 = vld [vmem:[#allocation6 + $0x590] sm:$0xff]
    %v2983 = vld [vmem:[#allocation6 + $0x598] sm:$0xff]
    %v2984 = vld [vmem:[#allocation6 + $0x5a0] sm:$0xff]
    %v2985 = vld [vmem:[#allocation6 + $0x5a8] sm:$0xff]
    %v2986 = vld [vmem:[#allocation6 + $0x5b0] sm:$0xff]
    %v2987 = vld [vmem:[#allocation6 + $0x5b8] sm:$0xff]
    %v2988 = vld [vmem:[#allocation6 + $0x5c0] sm:$0xff]
    %v2989 = vld [vmem:[#allocation6 + $0x5c8] sm:$0xff]
    %v2990 = vld [vmem:[#allocation6 + $0x5d0] sm:$0xff]
    %v2991 = vld [vmem:[#allocation6 + $0x5d8] sm:$0xff]
    %v2992 = vld [vmem:[#allocation6 + $0x5e0] sm:$0xff]
    %v2993 = vld [vmem:[#allocation6 + $0x5e8] sm:$0xff]
    %v2994 = vld [vmem:[#allocation6 + $0x5f0] sm:$0xff]
    %v2995 = vld [vmem:[#allocation6 + $0x5f8] sm:$0xff]
    %v2996 = vld [vmem:[#allocation6 + $0x600] sm:$0xff]
    %v2997 = vld [vmem:[#allocation6 + $0x608] sm:$0xff]
    %v2998 = vld [vmem:[#allocation6 + $0x610] sm:$0xff]
    %v2999 = vld [vmem:[#allocation6 + $0x618] sm:$0xff]
    %v3000 = vld [vmem:[#allocation6 + $0x620] sm:$0xff]
    %v3001 = vld [vmem:[#allocation6 + $0x628] sm:$0xff]
    %v3002 = vld [vmem:[#allocation6 + $0x630] sm:$0xff]
    %v3003 = vld [vmem:[#allocation6 + $0x638] sm:$0xff]
    %v3004 = vld [vmem:[#allocation6 + $0x640] sm:$0xff]
    %v3005 = vld [vmem:[#allocation6 + $0x648] sm:$0xff]
    %v3006 = vld [vmem:[#allocation6 + $0x650] sm:$0xff]
    %v3007 = vld [vmem:[#allocation6 + $0x658] sm:$0xff]
    %v3008 = vld [vmem:[#allocation6 + $0x660] sm:$0xff]
    %v3009 = vld [vmem:[#allocation6 + $0x668] sm:$0xff]
    %v3010 = vld [vmem:[#allocation6 + $0x670] sm:$0xff]
    %v3011 = vld [vmem:[#allocation6 + $0x678] sm:$0xff]
    %v3012 = vld [vmem:[#allocation6 + $0x680] sm:$0xff]
    %v3013 = vld [vmem:[#allocation6 + $0x688] sm:$0xff]
    %v3014 = vld [vmem:[#allocation6 + $0x690] sm:$0xff]
    %v3015 = vld [vmem:[#allocation6 + $0x698] sm:$0xff]
    %v3016 = vld [vmem:[#allocation6 + $0x6a0] sm:$0xff]
    %v3017 = vld [vmem:[#allocation6 + $0x6a8] sm:$0xff]
    %v3018 = vld [vmem:[#allocation6 + $0x6b0] sm:$0xff]
    %v3019 = vld [vmem:[#allocation6 + $0x6b8] sm:$0xff]
    %v3020 = vld [vmem:[#allocation6 + $0x6c0] sm:$0xff]
    %v3021 = vld [vmem:[#allocation6 + $0x6c8] sm:$0xff]
    %v3022 = vld [vmem:[#allocation6 + $0x6d0] sm:$0xff]
    %v3023 = vld [vmem:[#allocation6 + $0x6d8] sm:$0xff]
    %v3024 = vld [vmem:[#allocation6 + $0x6e0] sm:$0xff]
    %v3025 = vld [vmem:[#allocation6 + $0x6e8] sm:$0xff]
    %v3026 = vld [vmem:[#allocation6 + $0x6f0] sm:$0xff]
    %v3027 = vld [vmem:[#allocation6 + $0x6f8] sm:$0xff]
    %v3028 = vld [vmem:[#allocation6 + $0x700] sm:$0xff]
    %v3029 = vld [vmem:[#allocation6 + $0x708] sm:$0xff]
    %v3030 = vld [vmem:[#allocation6 + $0x710] sm:$0xff]
    %v3031 = vld [vmem:[#allocation6 + $0x718] sm:$0xff]
    %v3032 = vld [vmem:[#allocation6 + $0x720] sm:$0xff]
    %v3033 = vld [vmem:[#allocation6 + $0x728] sm:$0xff]
    %v3034 = vld [vmem:[#allocation6 + $0x730] sm:$0xff]
    %v3035 = vld [vmem:[#allocation6 + $0x738] sm:$0xff]
    %v3036 = vld [vmem:[#allocation6 + $0x740] sm:$0xff]
    %v3037 = vld [vmem:[#allocation6 + $0x748] sm:$0xff]
    %v3038 = vld [vmem:[#allocation6 + $0x750] sm:$0xff]
    %v3039 = vld [vmem:[#allocation6 + $0x758] sm:$0xff]
    %v3040 = vld [vmem:[#allocation6 + $0x760] sm:$0xff]
    %v3041 = vld [vmem:[#allocation6 + $0x768] sm:$0xff]
    %v3042 = vld [vmem:[#allocation6 + $0x770] sm:$0xff]
    %v3043 = vld [vmem:[#allocation6 + $0x778] sm:$0xff]
    %v3044 = vld [vmem:[#allocation6 + $0x780] sm:$0xff]
    %v3045 = vld [vmem:[#allocation6 + $0x788] sm:$0xff]
    %v3046 = vld [vmem:[#allocation6 + $0x790] sm:$0xff]
    %v3047 = vld [vmem:[#allocation6 + $0x798] sm:$0xff]
    %v3048 = vld [vmem:[#allocation6 + $0x7a0] sm:$0xff]
    %v3049 = vld [vmem:[#allocation6 + $0x7a8] sm:$0xff]
    %v3050 = vld [vmem:[#allocation6 + $0x7b0] sm:$0xff]
    %v3051 = vld [vmem:[#allocation6 + $0x7b8] sm:$0xff]
    %v3052 = vld [vmem:[#allocation6 + $0x7c0] sm:$0xff]
    %v3053 = vld [vmem:[#allocation6 + $0x7c8] sm:$0xff]
    %v3054 = vld [vmem:[#allocation6 + $0x7d0] sm:$0xff]
    %v3055 = vld [vmem:[#allocation6 + $0x7d8] sm:$0xff]
    %v3056 = vld [vmem:[#allocation6 + $0x7e0] sm:$0xff]
    %v3057 = vld [vmem:[#allocation6 + $0x7e8] sm:$0xff]
    %v3058 = vld [vmem:[#allocation6 + $0x7f0] sm:$0xff]
    %v3059 = vld [vmem:[#allocation6 + $0x7f8] sm:$0xff]
    %v3060 = vld [vmem:[#allocation6 + $0x800] sm:$0xff]
    %v3061 = vld [vmem:[#allocation6 + $0x808] sm:$0xff]
    %v3062 = vld [vmem:[#allocation6 + $0x810] sm:$0xff]
    %v3063 = vld [vmem:[#allocation6 + $0x818] sm:$0xff]
    %v3064 = vld [vmem:[#allocation6 + $0x820] sm:$0xff]
    %v3065 = vld [vmem:[#allocation6 + $0x828] sm:$0xff]
    %v3066 = vld [vmem:[#allocation6 + $0x830] sm:$0xff]
    %v3067 = vld [vmem:[#allocation6 + $0x838] sm:$0xff]
    %v3068 = vld [vmem:[#allocation6 + $0x840] sm:$0xff]
    %v3069 = vld [vmem:[#allocation6 + $0x848] sm:$0xff]
    %v3070 = vld [vmem:[#allocation6 + $0x850] sm:$0xff]
    %v3071 = vld [vmem:[#allocation6 + $0x858] sm:$0xff]
    %v3072 = vld [vmem:[#allocation6 + $0x860] sm:$0xff]
    %v3073 = vld [vmem:[#allocation6 + $0x868] sm:$0xff]
    %v3074 = vld [vmem:[#allocation6 + $0x870] sm:$0xff]
    %v3075 = vld [vmem:[#allocation6 + $0x878] sm:$0xff]
    %v3076 = vld [vmem:[#allocation6 + $0x880] sm:$0xff]
    %v3077 = vld [vmem:[#allocation6 + $0x888] sm:$0xff]
    %v3078 = vld [vmem:[#allocation6 + $0x890] sm:$0xff]
    %v3079 = vld [vmem:[#allocation6 + $0x898] sm:$0xff]
    %v3080 = vld [vmem:[#allocation6 + $0x8a0] sm:$0xff]
    %v3081 = vld [vmem:[#allocation6 + $0x8a8] sm:$0xff]
    %v3082 = vld [vmem:[#allocation6 + $0x8b0] sm:$0xff]
    %v3083 = vld [vmem:[#allocation6 + $0x8b8] sm:$0xff]
    %v3084 = vld [vmem:[#allocation6 + $0x8c0] sm:$0xff]
    %v3085 = vld [vmem:[#allocation6 + $0x8c8] sm:$0xff]
    %v3086 = vld [vmem:[#allocation6 + $0x8d0] sm:$0xff]
    %v3087 = vld [vmem:[#allocation6 + $0x8d8] sm:$0xff]
    %v3088 = vld [vmem:[#allocation6 + $0x8e0] sm:$0xff]
    %v3089 = vld [vmem:[#allocation6 + $0x8e8] sm:$0xff]
    %v3090 = vld [vmem:[#allocation6 + $0x8f0] sm:$0xff]
    %v3091 = vld [vmem:[#allocation6 + $0x8f8] sm:$0xff]
    %v3092 = vld [vmem:[#allocation6 + $0x900] sm:$0xff]
    %v3093 = vld [vmem:[#allocation6 + $0x908] sm:$0xff]
    %v3094 = vld [vmem:[#allocation6 + $0x910] sm:$0xff]
    %v3095 = vld [vmem:[#allocation6 + $0x918] sm:$0xff]
    %v3096 = vld [vmem:[#allocation6 + $0x920] sm:$0xff]
    %v3097 = vld [vmem:[#allocation6 + $0x928] sm:$0xff]
    %v3098 = vld [vmem:[#allocation6 + $0x930] sm:$0xff]
    %v3099 = vld [vmem:[#allocation6 + $0x938] sm:$0xff]
    %v3100 = vld [vmem:[#allocation6 + $0x940] sm:$0xff]
    %v3101 = vld [vmem:[#allocation6 + $0x948] sm:$0xff]
    %v3102 = vld [vmem:[#allocation6 + $0x950] sm:$0xff]
    %v3103 = vld [vmem:[#allocation6 + $0x958] sm:$0xff]
    %v3104 = vld [vmem:[#allocation6 + $0x960] sm:$0xff]
    %v3105 = vld [vmem:[#allocation6 + $0x968] sm:$0xff]
    %v3106 = vld [vmem:[#allocation6 + $0x970] sm:$0xff]
    %v3107 = vld [vmem:[#allocation6 + $0x978] sm:$0xff]
    %v3108 = vld [vmem:[#allocation6 + $0x980] sm:$0xff]
    %v3109 = vld [vmem:[#allocation6 + $0x988] sm:$0xff]
    %v3110 = vld [vmem:[#allocation6 + $0x990] sm:$0xff]
    %v3111 = vld [vmem:[#allocation6 + $0x998] sm:$0xff]
    %v3112 = vld [vmem:[#allocation6 + $0x9a0] sm:$0xff]
    %v3113 = vld [vmem:[#allocation6 + $0x9a8] sm:$0xff]
    %v3114 = vld [vmem:[#allocation6 + $0x9b0] sm:$0xff]
    %v3115 = vld [vmem:[#allocation6 + $0x9b8] sm:$0xff]
    %v3116 = vld [vmem:[#allocation6 + $0x9c0] sm:$0xff]
    %v3117 = vld [vmem:[#allocation6 + $0x9c8] sm:$0xff]
    %v3118 = vld [vmem:[#allocation6 + $0x9d0] sm:$0xff]
    %v3119 = vld [vmem:[#allocation6 + $0x9d8] sm:$0xff]
    %v3120 = vld [vmem:[#allocation6 + $0x9e0] sm:$0xff]
    %v3121 = vld [vmem:[#allocation6 + $0x9e8] sm:$0xff]
    %v3122 = vld [vmem:[#allocation6 + $0x9f0] sm:$0xff]
    %v3123 = vld [vmem:[#allocation6 + $0x9f8] sm:$0xff]
    %v3124 = vld [vmem:[#allocation6 + $0xa00] sm:$0xff]
    %v3125 = vld [vmem:[#allocation6 + $0xa08] sm:$0xff]
    %v3126 = vld [vmem:[#allocation6 + $0xa10] sm:$0xff]
    %v3127 = vld [vmem:[#allocation6 + $0xa18] sm:$0xff]
    %v3128 = vld [vmem:[#allocation6 + $0xa20] sm:$0xff]
    %v3129 = vld [vmem:[#allocation6 + $0xa28] sm:$0xff]
    %v3130 = vld [vmem:[#allocation6 + $0xa30] sm:$0xff]
    %v3131 = vld [vmem:[#allocation6 + $0xa38] sm:$0xff]
    %v3132 = vld [vmem:[#allocation6 + $0xa40] sm:$0xff]
    %v3133 = vld [vmem:[#allocation6 + $0xa48] sm:$0xff]
    %v3134 = vld [vmem:[#allocation6 + $0xa50] sm:$0xff]
    %v3135 = vld [vmem:[#allocation6 + $0xa58] sm:$0xff]
    %v3136 = vld [vmem:[#allocation6 + $0xa60] sm:$0xff]
    %v3137 = vld [vmem:[#allocation6 + $0xa68] sm:$0xff]
    %v3138 = vld [vmem:[#allocation6 + $0xa70] sm:$0xff]
    %v3139 = vld [vmem:[#allocation6 + $0xa78] sm:$0xff]
    %v3140 = vld [vmem:[#allocation6 + $0xa80] sm:$0xff]
    %v3141 = vld [vmem:[#allocation6 + $0xa88] sm:$0xff]
    %v3142 = vld [vmem:[#allocation6 + $0xa90] sm:$0xff]
    %v3143 = vld [vmem:[#allocation6 + $0xa98] sm:$0xff]
    %v3144 = vld [vmem:[#allocation6 + $0xaa0] sm:$0xff]
    %v3145 = vld [vmem:[#allocation6 + $0xaa8] sm:$0xff]
    %v3146 = vld [vmem:[#allocation6 + $0xab0] sm:$0xff]
    %v3147 = vld [vmem:[#allocation6 + $0xab8] sm:$0xff]
    %v3148 = vld [vmem:[#allocation6 + $0xac0] sm:$0xff]
    %v3149 = vld [vmem:[#allocation6 + $0xac8] sm:$0xff]
    %v3150 = vld [vmem:[#allocation6 + $0xad0] sm:$0xff]
    %v3151 = vld [vmem:[#allocation6 + $0xad8] sm:$0xff]
    %v3152 = vld [vmem:[#allocation6 + $0xae0] sm:$0xff]
    %v3153 = vld [vmem:[#allocation6 + $0xae8] sm:$0xff]
    %v3154 = vld [vmem:[#allocation6 + $0xaf0] sm:$0xff]
    %v3155 = vld [vmem:[#allocation6 + $0xaf8] sm:$0xff]
    %v3156 = vld [vmem:[#allocation6 + $0xb00] sm:$0xff]
    %v3157 = vld [vmem:[#allocation6 + $0xb08] sm:$0xff]
    %v3158 = vld [vmem:[#allocation6 + $0xb10] sm:$0xff]
    %v3159 = vld [vmem:[#allocation6 + $0xb18] sm:$0xff]
    %v3160 = vld [vmem:[#allocation6 + $0xb20] sm:$0xff]
    %v3161 = vld [vmem:[#allocation6 + $0xb28] sm:$0xff]
    %v3162 = vld [vmem:[#allocation6 + $0xb30] sm:$0xff]
    %v3163 = vld [vmem:[#allocation6 + $0xb38] sm:$0xff]
    %v3164 = vld [vmem:[#allocation6 + $0xb40] sm:$0xff]
    %v3165 = vld [vmem:[#allocation6 + $0xb48] sm:$0xff]
    %v3166 = vld [vmem:[#allocation6 + $0xb50] sm:$0xff]
    %v3167 = vld [vmem:[#allocation6 + $0xb58] sm:$0xff]
    %v3168 = vld [vmem:[#allocation6 + $0xb60] sm:$0xff]
    %v3169 = vld [vmem:[#allocation6 + $0xb68] sm:$0xff]
    %v3170 = vld [vmem:[#allocation6 + $0xb70] sm:$0xff]
    %v3171 = vld [vmem:[#allocation6 + $0xb78] sm:$0xff]
    %v3172 = vld [vmem:[#allocation6 + $0xb80] sm:$0xff]
    %v3173 = vld [vmem:[#allocation6 + $0xb88] sm:$0xff]
    %v3174 = vld [vmem:[#allocation6 + $0xb90] sm:$0xff]
    %v3175 = vld [vmem:[#allocation6 + $0xb98] sm:$0xff]
    %v3176 = vld [vmem:[#allocation6 + $0xba0] sm:$0xff]
    %v3177 = vld [vmem:[#allocation6 + $0xba8] sm:$0xff]
    %v3178 = vld [vmem:[#allocation6 + $0xbb0] sm:$0xff]
    %v3179 = vld [vmem:[#allocation6 + $0xbb8] sm:$0xff]
    %v3180 = vld [vmem:[#allocation6 + $0xbc0] sm:$0xff]
    %v3181 = vld [vmem:[#allocation6 + $0xbc8] sm:$0xff]
    %v3182 = vld [vmem:[#allocation6 + $0xbd0] sm:$0xff]
    %v3183 = vld [vmem:[#allocation6 + $0xbd8] sm:$0xff]
    %v3184 = vld [vmem:[#allocation6 + $0xbe0] sm:$0xff]
    %v3185 = vld [vmem:[#allocation6 + $0xbe8] sm:$0xff]
    %v3186 = vld [vmem:[#allocation6 + $0xbf0] sm:$0xff]
    %v3187 = vld [vmem:[#allocation6 + $0xbf8] sm:$0xff]
    %v3188 = vld [vmem:[#allocation6 + $0xc00] sm:$0xff]
    %v3189 = vld [vmem:[#allocation6 + $0xc08] sm:$0xff]
    %v3190 = vld [vmem:[#allocation6 + $0xc10] sm:$0xff]
    %v3191 = vld [vmem:[#allocation6 + $0xc18] sm:$0xff]
    %v3192 = vld [vmem:[#allocation6 + $0xc20] sm:$0xff]
    %v3193 = vld [vmem:[#allocation6 + $0xc28] sm:$0xff]
    %v3194 = vld [vmem:[#allocation6 + $0xc30] sm:$0xff]
    %v3195 = vld [vmem:[#allocation6 + $0xc38] sm:$0xff]
    %v3196 = vld [vmem:[#allocation6 + $0xc40] sm:$0xff]
    %v3197 = vld [vmem:[#allocation6 + $0xc48] sm:$0xff]
    %v3198 = vld [vmem:[#allocation6 + $0xc50] sm:$0xff]
    %v3199 = vld [vmem:[#allocation6 + $0xc58] sm:$0xff]
    %v3200 = vld [vmem:[#allocation6 + $0xc60] sm:$0xff]
    %v3201 = vld [vmem:[#allocation6 + $0xc68] sm:$0xff]
    %v3202 = vld [vmem:[#allocation6 + $0xc70] sm:$0xff]
    %v3203 = vld [vmem:[#allocation6 + $0xc78] sm:$0xff]
    %v3204 = vld [vmem:[#allocation6 + $0xc80] sm:$0xff]
    %v3205 = vld [vmem:[#allocation6 + $0xc88] sm:$0xff]
    %v3206 = vld [vmem:[#allocation6 + $0xc90] sm:$0xff]
    %v3207 = vld [vmem:[#allocation6 + $0xc98] sm:$0xff]
    %v3208 = vld [vmem:[#allocation6 + $0xca0] sm:$0xff]
    %v3209 = vld [vmem:[#allocation6 + $0xca8] sm:$0xff]
    %v3210 = vld [vmem:[#allocation6 + $0xcb0] sm:$0xff]
    %v3211 = vld [vmem:[#allocation6 + $0xcb8] sm:$0xff]
    %v3212 = vld [vmem:[#allocation6 + $0xcc0] sm:$0xff]
    %v3213 = vld [vmem:[#allocation6 + $0xcc8] sm:$0xff]
    %v3214 = vld [vmem:[#allocation6 + $0xcd0] sm:$0xff]
    %v3215 = vld [vmem:[#allocation6 + $0xcd8] sm:$0xff]
    %v3216 = vld [vmem:[#allocation6 + $0xce0] sm:$0xff]
    %v3217 = vld [vmem:[#allocation6 + $0xce8] sm:$0xff]
    %v3218 = vld [vmem:[#allocation6 + $0xcf0] sm:$0xff]
    %v3219 = vld [vmem:[#allocation6 + $0xcf8] sm:$0xff]
    %v3220 = vld [vmem:[#allocation6 + $0xd00] sm:$0xff]
    %v3221 = vld [vmem:[#allocation6 + $0xd08] sm:$0xff]
    %v3222 = vld [vmem:[#allocation6 + $0xd10] sm:$0xff]
    %v3223 = vld [vmem:[#allocation6 + $0xd18] sm:$0xff]
    %v3224 = vld [vmem:[#allocation6 + $0xd20] sm:$0xff]
    %v3225 = vld [vmem:[#allocation6 + $0xd28] sm:$0xff]
    %v3226 = vld [vmem:[#allocation6 + $0xd30] sm:$0xff]
    %v3227 = vld [vmem:[#allocation6 + $0xd38] sm:$0xff]
    %v3228 = vld [vmem:[#allocation6 + $0xd40] sm:$0xff]
    %v3229 = vld [vmem:[#allocation6 + $0xd48] sm:$0xff]
    %v3230 = vld [vmem:[#allocation6 + $0xd50] sm:$0xff]
    %v3231 = vld [vmem:[#allocation6 + $0xd58] sm:$0xff]
    %v3232 = vld [vmem:[#allocation6 + $0xd60] sm:$0xff]
    %v3233 = vld [vmem:[#allocation6 + $0xd68] sm:$0xff]
    %v3234 = vld [vmem:[#allocation6 + $0xd70] sm:$0xff]
    %v3235 = vld [vmem:[#allocation6 + $0xd78] sm:$0xff]
    %v3236 = vld [vmem:[#allocation6 + $0xd80] sm:$0xff]
    %v3237 = vld [vmem:[#allocation6 + $0xd88] sm:$0xff]
    %v3238 = vld [vmem:[#allocation6 + $0xd90] sm:$0xff]
    %v3239 = vld [vmem:[#allocation6 + $0xd98] sm:$0xff]
    %v3240 = vld [vmem:[#allocation6 + $0xda0] sm:$0xff]
    %v3241 = vld [vmem:[#allocation6 + $0xda8] sm:$0xff]
    %v3242 = vld [vmem:[#allocation6 + $0xdb0] sm:$0xff]
    %v3243 = vld [vmem:[#allocation6 + $0xdb8] sm:$0xff]
    %v3244 = vld [vmem:[#allocation6 + $0xdc0] sm:$0xff]
    %v3245 = vld [vmem:[#allocation6 + $0xdc8] sm:$0xff]
    %v3246 = vld [vmem:[#allocation6 + $0xdd0] sm:$0xff]
    %v3247 = vld [vmem:[#allocation6 + $0xdd8] sm:$0xff]
    %v3248 = vld [vmem:[#allocation6 + $0xde0] sm:$0xff]
    %v3249 = vld [vmem:[#allocation6 + $0xde8] sm:$0xff]
    %v3250 = vld [vmem:[#allocation6 + $0xdf0] sm:$0xff]
    %v3251 = vld [vmem:[#allocation6 + $0xdf8] sm:$0xff]
    %v3252 = vld [vmem:[#allocation6 + $0xe00] sm:$0xff]
    %v3253 = vld [vmem:[#allocation6 + $0xe08] sm:$0xff]
    %v3254 = vld [vmem:[#allocation6 + $0xe10] sm:$0xff]
    %v3255 = vld [vmem:[#allocation6 + $0xe18] sm:$0xff]
    %v3256 = vld [vmem:[#allocation6 + $0xe20] sm:$0xff]
    %v3257 = vld [vmem:[#allocation6 + $0xe28] sm:$0xff]
    %v3258 = vld [vmem:[#allocation6 + $0xe30] sm:$0xff]
    %v3259 = vld [vmem:[#allocation6 + $0xe38] sm:$0xff]
    %v3260 = vld [vmem:[#allocation6 + $0xe40] sm:$0xff]
    %v3261 = vld [vmem:[#allocation6 + $0xe48] sm:$0xff]
    %v3262 = vld [vmem:[#allocation6 + $0xe50] sm:$0xff]
    %v3263 = vld [vmem:[#allocation6 + $0xe58] sm:$0xff]
    %v3264 = vld [vmem:[#allocation6 + $0xe60] sm:$0xff]
    %v3265 = vld [vmem:[#allocation6 + $0xe68] sm:$0xff]
    %v3266 = vld [vmem:[#allocation6 + $0xe70] sm:$0xff]
    %v3267 = vld [vmem:[#allocation6 + $0xe78] sm:$0xff]
    %v3268 = vld [vmem:[#allocation6 + $0xe80] sm:$0xff]
    %v3269 = vld [vmem:[#allocation6 + $0xe88] sm:$0xff]
    %v3270 = vld [vmem:[#allocation6 + $0xe90] sm:$0xff]
    %v3271 = vld [vmem:[#allocation6 + $0xe98] sm:$0xff]
    %v3272 = vld [vmem:[#allocation6 + $0xea0] sm:$0xff]
    %v3273 = vld [vmem:[#allocation6 + $0xea8] sm:$0xff]
    %v3274 = vld [vmem:[#allocation6 + $0xeb0] sm:$0xff]
    %v3275 = vld [vmem:[#allocation6 + $0xeb8] sm:$0xff]
    %v3276 = vld [vmem:[#allocation6 + $0xec0] sm:$0xff]
    %v3277 = vld [vmem:[#allocation6 + $0xec8] sm:$0xff]
    %v3278 = vld [vmem:[#allocation6 + $0xed0] sm:$0xff]
    %v3279 = vld [vmem:[#allocation6 + $0xed8] sm:$0xff]
    %v3280 = vld [vmem:[#allocation6 + $0xee0] sm:$0xff]
    %v3281 = vld [vmem:[#allocation6 + $0xee8] sm:$0xff]
    %v3282 = vld [vmem:[#allocation6 + $0xef0] sm:$0xff]
    %v3283 = vld [vmem:[#allocation6 + $0xef8] sm:$0xff]
    %v3284 = vld [vmem:[#allocation6 + $0xf00] sm:$0xff]
    %v3285 = vld [vmem:[#allocation6 + $0xf08] sm:$0xff]
    %v3286 = vld [vmem:[#allocation6 + $0xf10] sm:$0xff]
    %v3287 = vld [vmem:[#allocation6 + $0xf18] sm:$0xff]
    %v3288 = vld [vmem:[#allocation6 + $0xf20] sm:$0xff]
    %v3289 = vld [vmem:[#allocation6 + $0xf28] sm:$0xff]
    %v3290 = vld [vmem:[#allocation6 + $0xf30] sm:$0xff]
    %v3291 = vld [vmem:[#allocation6 + $0xf38] sm:$0xff]
    %v3292 = vld [vmem:[#allocation6 + $0xf40] sm:$0xff]
    %v3293 = vld [vmem:[#allocation6 + $0xf48] sm:$0xff]
    %v3294 = vld [vmem:[#allocation6 + $0xf50] sm:$0xff]
    %v3295 = vld [vmem:[#allocation6 + $0xf58] sm:$0xff]
    %v3296 = vld [vmem:[#allocation6 + $0xf60] sm:$0xff]
    %v3297 = vld [vmem:[#allocation6 + $0xf68] sm:$0xff]
    %v3298 = vld [vmem:[#allocation6 + $0xf70] sm:$0xff]
    %v3299 = vld [vmem:[#allocation6 + $0xf78] sm:$0xff]
    %v3300 = vld [vmem:[#allocation6 + $0xf80] sm:$0xff]
    %v3301 = vld [vmem:[#allocation6 + $0xf88] sm:$0xff]
    %v3302 = vld [vmem:[#allocation6 + $0xf90] sm:$0xff]
    %v3303 = vld [vmem:[#allocation6 + $0xf98] sm:$0xff]
    %v3304 = vld [vmem:[#allocation6 + $0xfa0] sm:$0xff]
    %v3305 = vld [vmem:[#allocation6 + $0xfa8] sm:$0xff]
    %v3306 = vld [vmem:[#allocation6 + $0xfb0] sm:$0xff]
    %v3307 = vld [vmem:[#allocation6 + $0xfb8] sm:$0xff]
    %v3308 = vld [vmem:[#allocation6 + $0xfc0] sm:$0xff]
    %v3309 = vld [vmem:[#allocation6 + $0xfc8] sm:$0xff]
    %v3310 = vld [vmem:[#allocation6 + $0xfd0] sm:$0xff]
    %v3311 = vld [vmem:[#allocation6 + $0xfd8] sm:$0xff]
    %v3312 = vld [vmem:[#allocation6 + $0xfe0] sm:$0xff]
    %v3313 = vld [vmem:[#allocation6 + $0xfe8] sm:$0xff]
    %v3314 = vld [vmem:[#allocation6 + $0xff0] sm:$0xff]
    %v3315 = vld [vmem:[#allocation6 + $0xff8] sm:$0xff]
    %v3316 = vld [vmem:[#allocation7] sm:$0xff]
    %v3318 = vlaneseq
    %v3319 = vshrl.u32 %v3318, 7
    %v3320 = vsub.s32 0, %v3319
    %v3321 = vrot.slane %v3316, %v3320
    %v3322 = vlaneseq
    %v3323 = vshrl.u32 %v3322, 7
    %v3324 = vsub.s32 1, %v3323
    %v3325 = vrot.slane %v3316, %v3324
    %v3326 = vlaneseq
    %v3327 = vshrl.u32 %v3326, 7
    %v3328 = vsub.s32 2, %v3327
    %v3329 = vrot.slane %v3316, %v3328
    %v3330 = vlaneseq
    %v3331 = vshrl.u32 %v3330, 7
    %v3332 = vsub.s32 3, %v3331
    %v3333 = vrot.slane %v3316, %v3332
    %v3334 = vlaneseq
    %v3335 = vshrl.u32 %v3334, 7
    %v3336 = vsub.s32 4, %v3335
    %v3337 = vrot.slane %v3316, %v3336
    %v3338 = vlaneseq
    %v3339 = vshrl.u32 %v3338, 7
    %v3340 = vsub.s32 5, %v3339
    %v3341 = vrot.slane %v3316, %v3340
    %v3342 = vlaneseq
    %v3343 = vshrl.u32 %v3342, 7
    %v3344 = vsub.s32 6, %v3343
    %v3345 = vrot.slane %v3316, %v3344
    %v3346 = vlaneseq
    %v3347 = vshrl.u32 %v3346, 7
    %v3348 = vsub.s32 7, %v3347
    %v3349 = vrot.slane %v3316, %v3348
    %v3870 = vunpack.c.l.b16 %v2804
    %v3871 = vunpack.c.h.b16 %v2804
    %v3872 = vunpack.c.l.b16 %v2805
    %v3873 = vunpack.c.h.b16 %v2805
    %v3874 = vunpack.c.l.b16 %v2806
    %v3875 = vunpack.c.h.b16 %v2806
    %v3876 = vunpack.c.l.b16 %v2807
    %v3877 = vunpack.c.h.b16 %v2807
    %v3878 = vunpack.c.l.b16 %v2808
    %v3879 = vunpack.c.h.b16 %v2808
    %v3880 = vunpack.c.l.b16 %v2809
    %v3881 = vunpack.c.h.b16 %v2809
    %v3882 = vunpack.c.l.b16 %v2810
    %v3883 = vunpack.c.h.b16 %v2810
    %v3884 = vunpack.c.l.b16 %v2811
    %v3885 = vunpack.c.h.b16 %v2811
    %v3886 = vunpack.c.l.b16 %v2812
    %v3887 = vunpack.c.h.b16 %v2812
    %v3888 = vunpack.c.l.b16 %v2813
    %v3889 = vunpack.c.h.b16 %v2813
    %v3890 = vunpack.c.l.b16 %v2814
    %v3891 = vunpack.c.h.b16 %v2814
    %v3892 = vunpack.c.l.b16 %v2815
    %v3893 = vunpack.c.h.b16 %v2815
    %v3894 = vunpack.c.l.b16 %v2816
    %v3895 = vunpack.c.h.b16 %v2816
    %v3896 = vunpack.c.l.b16 %v2817
    %v3897 = vunpack.c.h.b16 %v2817
    %v3898 = vunpack.c.l.b16 %v2818
    %v3899 = vunpack.c.h.b16 %v2818
    %v3900 = vunpack.c.l.b16 %v2819
    %v3901 = vunpack.c.h.b16 %v2819
    %v3902 = vunpack.c.l.b16 %v2820
    %v3903 = vunpack.c.h.b16 %v2820
    %v3904 = vunpack.c.l.b16 %v2821
    %v3905 = vunpack.c.h.b16 %v2821
    %v3906 = vunpack.c.l.b16 %v2822
    %v3907 = vunpack.c.h.b16 %v2822
    %v3908 = vunpack.c.l.b16 %v2823
    %v3909 = vunpack.c.h.b16 %v2823
    %v3910 = vunpack.c.l.b16 %v2824
    %v3911 = vunpack.c.h.b16 %v2824
    %v3912 = vunpack.c.l.b16 %v2825
    %v3913 = vunpack.c.h.b16 %v2825
    %v3914 = vunpack.c.l.b16 %v2826
    %v3915 = vunpack.c.h.b16 %v2826
    %v3916 = vunpack.c.l.b16 %v2827
    %v3917 = vunpack.c.h.b16 %v2827
    %v3918 = vunpack.c.l.b16 %v2828
    %v3919 = vunpack.c.h.b16 %v2828
    %v3920 = vunpack.c.l.b16 %v2829
    %v3921 = vunpack.c.h.b16 %v2829
    %v3922 = vunpack.c.l.b16 %v2830
    %v3923 = vunpack.c.h.b16 %v2830
    %v3924 = vunpack.c.l.b16 %v2831
    %v3925 = vunpack.c.h.b16 %v2831
    %v3926 = vunpack.c.l.b16 %v2832
    %v3927 = vunpack.c.h.b16 %v2832
    %v3928 = vunpack.c.l.b16 %v2833
    %v3929 = vunpack.c.h.b16 %v2833
    %v3930 = vunpack.c.l.b16 %v2834
    %v3931 = vunpack.c.h.b16 %v2834
    %v3932 = vunpack.c.l.b16 %v2835
    %v3933 = vunpack.c.h.b16 %v2835
    %v3934 = vunpack.c.l.b16 %v2836
    %v3935 = vunpack.c.h.b16 %v2836
    %v3936 = vunpack.c.l.b16 %v2837
    %v3937 = vunpack.c.h.b16 %v2837
    %v3938 = vunpack.c.l.b16 %v2838
    %v3939 = vunpack.c.h.b16 %v2838
    %v3940 = vunpack.c.l.b16 %v2839
    %v3941 = vunpack.c.h.b16 %v2839
    %v3942 = vunpack.c.l.b16 %v2840
    %v3943 = vunpack.c.h.b16 %v2840
    %v3944 = vunpack.c.l.b16 %v2841
    %v3945 = vunpack.c.h.b16 %v2841
    %v3946 = vunpack.c.l.b16 %v2842
    %v3947 = vunpack.c.h.b16 %v2842
    %v3948 = vunpack.c.l.b16 %v2843
    %v3949 = vunpack.c.h.b16 %v2843
    %v3950 = vunpack.c.l.b16 %v2844
    %v3951 = vunpack.c.h.b16 %v2844
    %v3952 = vunpack.c.l.b16 %v2845
    %v3953 = vunpack.c.h.b16 %v2845
    %v3954 = vunpack.c.l.b16 %v2846
    %v3955 = vunpack.c.h.b16 %v2846
    %v3956 = vunpack.c.l.b16 %v2847
    %v3957 = vunpack.c.h.b16 %v2847
    %v3958 = vunpack.c.l.b16 %v2848
    %v3959 = vunpack.c.h.b16 %v2848
    %v3960 = vunpack.c.l.b16 %v2849
    %v3961 = vunpack.c.h.b16 %v2849
    %v3962 = vunpack.c.l.b16 %v2850
    %v3963 = vunpack.c.h.b16 %v2850
    %v3964 = vunpack.c.l.b16 %v2851
    %v3965 = vunpack.c.h.b16 %v2851
    %v3966 = vunpack.c.l.b16 %v2852
    %v3967 = vunpack.c.h.b16 %v2852
    %v3968 = vunpack.c.l.b16 %v2853
    %v3969 = vunpack.c.h.b16 %v2853
    %v3970 = vunpack.c.l.b16 %v2854
    %v3971 = vunpack.c.h.b16 %v2854
    %v3972 = vunpack.c.l.b16 %v2855
    %v3973 = vunpack.c.h.b16 %v2855
    %v3974 = vunpack.c.l.b16 %v2856
    %v3975 = vunpack.c.h.b16 %v2856
    %v3976 = vunpack.c.l.b16 %v2857
    %v3977 = vunpack.c.h.b16 %v2857
    %v3978 = vunpack.c.l.b16 %v2858
    %v3979 = vunpack.c.h.b16 %v2858
    %v3980 = vunpack.c.l.b16 %v2859
    %v3981 = vunpack.c.h.b16 %v2859
    %v3982 = vunpack.c.l.b16 %v2860
    %v3983 = vunpack.c.h.b16 %v2860
    %v3984 = vunpack.c.l.b16 %v2861
    %v3985 = vunpack.c.h.b16 %v2861
    %v3986 = vunpack.c.l.b16 %v2862
    %v3987 = vunpack.c.h.b16 %v2862
    %v3988 = vunpack.c.l.b16 %v2863
    %v3989 = vunpack.c.h.b16 %v2863
    %v3990 = vunpack.c.l.b16 %v2864
    %v3991 = vunpack.c.h.b16 %v2864
    %v3992 = vunpack.c.l.b16 %v2865
    %v3993 = vunpack.c.h.b16 %v2865
    %v3994 = vunpack.c.l.b16 %v2866
    %v3995 = vunpack.c.h.b16 %v2866
    %v3996 = vunpack.c.l.b16 %v2867
    %v3997 = vunpack.c.h.b16 %v2867
    %v3998 = vunpack.c.l.b16 %v2868
    %v3999 = vunpack.c.h.b16 %v2868
    %v4000 = vunpack.c.l.b16 %v2869
    %v4001 = vunpack.c.h.b16 %v2869
    %v4002 = vunpack.c.l.b16 %v2870
    %v4003 = vunpack.c.h.b16 %v2870
    %v4004 = vunpack.c.l.b16 %v2871
    %v4005 = vunpack.c.h.b16 %v2871
    %v4006 = vunpack.c.l.b16 %v2872
    %v4007 = vunpack.c.h.b16 %v2872
    %v4008 = vunpack.c.l.b16 %v2873
    %v4009 = vunpack.c.h.b16 %v2873
    %v4010 = vunpack.c.l.b16 %v2874
    %v4011 = vunpack.c.h.b16 %v2874
    %v4012 = vunpack.c.l.b16 %v2875
    %v4013 = vunpack.c.h.b16 %v2875
    %v4014 = vunpack.c.l.b16 %v2876
    %v4015 = vunpack.c.h.b16 %v2876
    %v4016 = vunpack.c.l.b16 %v2877
    %v4017 = vunpack.c.h.b16 %v2877
    %v4018 = vunpack.c.l.b16 %v2878
    %v4019 = vunpack.c.h.b16 %v2878
    %v4020 = vunpack.c.l.b16 %v2879
    %v4021 = vunpack.c.h.b16 %v2879
    %v4022 = vunpack.c.l.b16 %v2880
    %v4023 = vunpack.c.h.b16 %v2880
    %v4024 = vunpack.c.l.b16 %v2881
    %v4025 = vunpack.c.h.b16 %v2881
    %v4026 = vunpack.c.l.b16 %v2882
    %v4027 = vunpack.c.h.b16 %v2882
    %v4028 = vunpack.c.l.b16 %v2883
    %v4029 = vunpack.c.h.b16 %v2883
    %v4030 = vunpack.c.l.b16 %v2884
    %v4031 = vunpack.c.h.b16 %v2884
    %v4032 = vunpack.c.l.b16 %v2885
    %v4033 = vunpack.c.h.b16 %v2885
    %v4034 = vunpack.c.l.b16 %v2886
    %v4035 = vunpack.c.h.b16 %v2886
    %v4036 = vunpack.c.l.b16 %v2887
    %v4037 = vunpack.c.h.b16 %v2887
    %v4038 = vunpack.c.l.b16 %v2888
    %v4039 = vunpack.c.h.b16 %v2888
    %v4040 = vunpack.c.l.b16 %v2889
    %v4041 = vunpack.c.h.b16 %v2889
    %v4042 = vunpack.c.l.b16 %v2890
    %v4043 = vunpack.c.h.b16 %v2890
    %v4044 = vunpack.c.l.b16 %v2891
    %v4045 = vunpack.c.h.b16 %v2891
    %v4046 = vunpack.c.l.b16 %v2892
    %v4047 = vunpack.c.h.b16 %v2892
    %v4048 = vunpack.c.l.b16 %v2893
    %v4049 = vunpack.c.h.b16 %v2893
    %v4050 = vunpack.c.l.b16 %v2894
    %v4051 = vunpack.c.h.b16 %v2894
    %v4052 = vunpack.c.l.b16 %v2895
    %v4053 = vunpack.c.h.b16 %v2895
    %v4054 = vunpack.c.l.b16 %v2896
    %v4055 = vunpack.c.h.b16 %v2896
    %v4056 = vunpack.c.l.b16 %v2897
    %v4057 = vunpack.c.h.b16 %v2897
    %v4058 = vunpack.c.l.b16 %v2898
    %v4059 = vunpack.c.h.b16 %v2898
    %v4060 = vunpack.c.l.b16 %v2899
    %v4061 = vunpack.c.h.b16 %v2899
    %v4062 = vunpack.c.l.b16 %v2900
    %v4063 = vunpack.c.h.b16 %v2900
    %v4064 = vunpack.c.l.b16 %v2901
    %v4065 = vunpack.c.h.b16 %v2901
    %v4066 = vunpack.c.l.b16 %v2902
    %v4067 = vunpack.c.h.b16 %v2902
    %v4068 = vunpack.c.l.b16 %v2903
    %v4069 = vunpack.c.h.b16 %v2903
    %v4070 = vunpack.c.l.b16 %v2904
    %v4071 = vunpack.c.h.b16 %v2904
    %v4072 = vunpack.c.l.b16 %v2905
    %v4073 = vunpack.c.h.b16 %v2905
    %v4074 = vunpack.c.l.b16 %v2906
    %v4075 = vunpack.c.h.b16 %v2906
    %v4076 = vunpack.c.l.b16 %v2907
    %v4077 = vunpack.c.h.b16 %v2907
    %v4078 = vunpack.c.l.b16 %v2908
    %v4079 = vunpack.c.h.b16 %v2908
    %v4080 = vunpack.c.l.b16 %v2909
    %v4081 = vunpack.c.h.b16 %v2909
    %v4082 = vunpack.c.l.b16 %v2910
    %v4083 = vunpack.c.h.b16 %v2910
    %v4084 = vunpack.c.l.b16 %v2911
    %v4085 = vunpack.c.h.b16 %v2911
    %v4086 = vunpack.c.l.b16 %v2912
    %v4087 = vunpack.c.h.b16 %v2912
    %v4088 = vunpack.c.l.b16 %v2913
    %v4089 = vunpack.c.h.b16 %v2913
    %v4090 = vunpack.c.l.b16 %v2914
    %v4091 = vunpack.c.h.b16 %v2914
    %v4092 = vunpack.c.l.b16 %v2915
    %v4093 = vunpack.c.h.b16 %v2915
    %v4094 = vunpack.c.l.b16 %v2916
    %v4095 = vunpack.c.h.b16 %v2916
    %v4096 = vunpack.c.l.b16 %v2917
    %v4097 = vunpack.c.h.b16 %v2917
    %v4098 = vunpack.c.l.b16 %v2918
    %v4099 = vunpack.c.h.b16 %v2918
    %v4100 = vunpack.c.l.b16 %v2919
    %v4101 = vunpack.c.h.b16 %v2919
    %v4102 = vunpack.c.l.b16 %v2920
    %v4103 = vunpack.c.h.b16 %v2920
    %v4104 = vunpack.c.l.b16 %v2921
    %v4105 = vunpack.c.h.b16 %v2921
    %v4106 = vunpack.c.l.b16 %v2922
    %v4107 = vunpack.c.h.b16 %v2922
    %v4108 = vunpack.c.l.b16 %v2923
    %v4109 = vunpack.c.h.b16 %v2923
    %v4110 = vunpack.c.l.b16 %v2924
    %v4111 = vunpack.c.h.b16 %v2924
    %v4112 = vunpack.c.l.b16 %v2925
    %v4113 = vunpack.c.h.b16 %v2925
    %v4114 = vunpack.c.l.b16 %v2926
    %v4115 = vunpack.c.h.b16 %v2926
    %v4116 = vunpack.c.l.b16 %v2927
    %v4117 = vunpack.c.h.b16 %v2927
    %v4118 = vunpack.c.l.b16 %v2928
    %v4119 = vunpack.c.h.b16 %v2928
    %v4120 = vunpack.c.l.b16 %v2929
    %v4121 = vunpack.c.h.b16 %v2929
    %v4122 = vunpack.c.l.b16 %v2930
    %v4123 = vunpack.c.h.b16 %v2930
    %v4124 = vunpack.c.l.b16 %v2931
    %v4125 = vunpack.c.h.b16 %v2931
    %v4126 = vunpack.c.l.b16 %v2932
    %v4127 = vunpack.c.h.b16 %v2932
    %v4128 = vunpack.c.l.b16 %v2933
    %v4129 = vunpack.c.h.b16 %v2933
    %v4130 = vunpack.c.l.b16 %v2934
    %v4131 = vunpack.c.h.b16 %v2934
    %v4132 = vunpack.c.l.b16 %v2935
    %v4133 = vunpack.c.h.b16 %v2935
    %v4134 = vunpack.c.l.b16 %v2936
    %v4135 = vunpack.c.h.b16 %v2936
    %v4136 = vunpack.c.l.b16 %v2937
    %v4137 = vunpack.c.h.b16 %v2937
    %v4138 = vunpack.c.l.b16 %v2938
    %v4139 = vunpack.c.h.b16 %v2938
    %v4140 = vunpack.c.l.b16 %v2939
    %v4141 = vunpack.c.h.b16 %v2939
    %v4142 = vunpack.c.l.b16 %v2940
    %v4143 = vunpack.c.h.b16 %v2940
    %v4144 = vunpack.c.l.b16 %v2941
    %v4145 = vunpack.c.h.b16 %v2941
    %v4146 = vunpack.c.l.b16 %v2942
    %v4147 = vunpack.c.h.b16 %v2942
    %v4148 = vunpack.c.l.b16 %v2943
    %v4149 = vunpack.c.h.b16 %v2943
    %v4150 = vunpack.c.l.b16 %v2944
    %v4151 = vunpack.c.h.b16 %v2944
    %v4152 = vunpack.c.l.b16 %v2945
    %v4153 = vunpack.c.h.b16 %v2945
    %v4154 = vunpack.c.l.b16 %v2946
    %v4155 = vunpack.c.h.b16 %v2946
    %v4156 = vunpack.c.l.b16 %v2947
    %v4157 = vunpack.c.h.b16 %v2947
    %v4158 = vunpack.c.l.b16 %v2948
    %v4159 = vunpack.c.h.b16 %v2948
    %v4160 = vunpack.c.l.b16 %v2949
    %v4161 = vunpack.c.h.b16 %v2949
    %v4162 = vunpack.c.l.b16 %v2950
    %v4163 = vunpack.c.h.b16 %v2950
    %v4164 = vunpack.c.l.b16 %v2951
    %v4165 = vunpack.c.h.b16 %v2951
    %v4166 = vunpack.c.l.b16 %v2952
    %v4167 = vunpack.c.h.b16 %v2952
    %v4168 = vunpack.c.l.b16 %v2953
    %v4169 = vunpack.c.h.b16 %v2953
    %v4170 = vunpack.c.l.b16 %v2954
    %v4171 = vunpack.c.h.b16 %v2954
    %v4172 = vunpack.c.l.b16 %v2955
    %v4173 = vunpack.c.h.b16 %v2955
    %v4174 = vunpack.c.l.b16 %v2956
    %v4175 = vunpack.c.h.b16 %v2956
    %v4176 = vunpack.c.l.b16 %v2957
    %v4177 = vunpack.c.h.b16 %v2957
    %v4178 = vunpack.c.l.b16 %v2958
    %v4179 = vunpack.c.h.b16 %v2958
    %v4180 = vunpack.c.l.b16 %v2959
    %v4181 = vunpack.c.h.b16 %v2959
    %v4182 = vunpack.c.l.b16 %v2960
    %v4183 = vunpack.c.h.b16 %v2960
    %v4184 = vunpack.c.l.b16 %v2961
    %v4185 = vunpack.c.h.b16 %v2961
    %v4186 = vunpack.c.l.b16 %v2962
    %v4187 = vunpack.c.h.b16 %v2962
    %v4188 = vunpack.c.l.b16 %v2963
    %v4189 = vunpack.c.h.b16 %v2963
    %v4190 = vunpack.c.l.b16 %v2964
    %v4191 = vunpack.c.h.b16 %v2964
    %v4192 = vunpack.c.l.b16 %v2965
    %v4193 = vunpack.c.h.b16 %v2965
    %v4194 = vunpack.c.l.b16 %v2966
    %v4195 = vunpack.c.h.b16 %v2966
    %v4196 = vunpack.c.l.b16 %v2967
    %v4197 = vunpack.c.h.b16 %v2967
    %v4198 = vunpack.c.l.b16 %v2968
    %v4199 = vunpack.c.h.b16 %v2968
    %v4200 = vunpack.c.l.b16 %v2969
    %v4201 = vunpack.c.h.b16 %v2969
    %v4202 = vunpack.c.l.b16 %v2970
    %v4203 = vunpack.c.h.b16 %v2970
    %v4204 = vunpack.c.l.b16 %v2971
    %v4205 = vunpack.c.h.b16 %v2971
    %v4206 = vunpack.c.l.b16 %v2972
    %v4207 = vunpack.c.h.b16 %v2972
    %v4208 = vunpack.c.l.b16 %v2973
    %v4209 = vunpack.c.h.b16 %v2973
    %v4210 = vunpack.c.l.b16 %v2974
    %v4211 = vunpack.c.h.b16 %v2974
    %v4212 = vunpack.c.l.b16 %v2975
    %v4213 = vunpack.c.h.b16 %v2975
    %v4214 = vunpack.c.l.b16 %v2976
    %v4215 = vunpack.c.h.b16 %v2976
    %v4216 = vunpack.c.l.b16 %v2977
    %v4217 = vunpack.c.h.b16 %v2977
    %v4218 = vunpack.c.l.b16 %v2978
    %v4219 = vunpack.c.h.b16 %v2978
    %v4220 = vunpack.c.l.b16 %v2979
    %v4221 = vunpack.c.h.b16 %v2979
    %v4222 = vunpack.c.l.b16 %v2980
    %v4223 = vunpack.c.h.b16 %v2980
    %v4224 = vunpack.c.l.b16 %v2981
    %v4225 = vunpack.c.h.b16 %v2981
    %v4226 = vunpack.c.l.b16 %v2982
    %v4227 = vunpack.c.h.b16 %v2982
    %v4228 = vunpack.c.l.b16 %v2983
    %v4229 = vunpack.c.h.b16 %v2983
    %v4230 = vunpack.c.l.b16 %v2984
    %v4231 = vunpack.c.h.b16 %v2984
    %v4232 = vunpack.c.l.b16 %v2985
    %v4233 = vunpack.c.h.b16 %v2985
    %v4234 = vunpack.c.l.b16 %v2986
    %v4235 = vunpack.c.h.b16 %v2986
    %v4236 = vunpack.c.l.b16 %v2987
    %v4237 = vunpack.c.h.b16 %v2987
    %v4238 = vunpack.c.l.b16 %v2988
    %v4239 = vunpack.c.h.b16 %v2988
    %v4240 = vunpack.c.l.b16 %v2989
    %v4241 = vunpack.c.h.b16 %v2989
    %v4242 = vunpack.c.l.b16 %v2990
    %v4243 = vunpack.c.h.b16 %v2990
    %v4244 = vunpack.c.l.b16 %v2991
    %v4245 = vunpack.c.h.b16 %v2991
    %v4246 = vunpack.c.l.b16 %v2992
    %v4247 = vunpack.c.h.b16 %v2992
    %v4248 = vunpack.c.l.b16 %v2993
    %v4249 = vunpack.c.h.b16 %v2993
    %v4250 = vunpack.c.l.b16 %v2994
    %v4251 = vunpack.c.h.b16 %v2994
    %v4252 = vunpack.c.l.b16 %v2995
    %v4253 = vunpack.c.h.b16 %v2995
    %v4254 = vunpack.c.l.b16 %v2996
    %v4255 = vunpack.c.h.b16 %v2996
    %v4256 = vunpack.c.l.b16 %v2997
    %v4257 = vunpack.c.h.b16 %v2997
    %v4258 = vunpack.c.l.b16 %v2998
    %v4259 = vunpack.c.h.b16 %v2998
    %v4260 = vunpack.c.l.b16 %v2999
    %v4261 = vunpack.c.h.b16 %v2999
    %v4262 = vunpack.c.l.b16 %v3000
    %v4263 = vunpack.c.h.b16 %v3000
    %v4264 = vunpack.c.l.b16 %v3001
    %v4265 = vunpack.c.h.b16 %v3001
    %v4266 = vunpack.c.l.b16 %v3002
    %v4267 = vunpack.c.h.b16 %v3002
    %v4268 = vunpack.c.l.b16 %v3003
    %v4269 = vunpack.c.h.b16 %v3003
    %v4270 = vunpack.c.l.b16 %v3004
    %v4271 = vunpack.c.h.b16 %v3004
    %v4272 = vunpack.c.l.b16 %v3005
    %v4273 = vunpack.c.h.b16 %v3005
    %v4274 = vunpack.c.l.b16 %v3006
    %v4275 = vunpack.c.h.b16 %v3006
    %v4276 = vunpack.c.l.b16 %v3007
    %v4277 = vunpack.c.h.b16 %v3007
    %v4278 = vunpack.c.l.b16 %v3008
    %v4279 = vunpack.c.h.b16 %v3008
    %v4280 = vunpack.c.l.b16 %v3009
    %v4281 = vunpack.c.h.b16 %v3009
    %v4282 = vunpack.c.l.b16 %v3010
    %v4283 = vunpack.c.h.b16 %v3010
    %v4284 = vunpack.c.l.b16 %v3011
    %v4285 = vunpack.c.h.b16 %v3011
    %v4286 = vunpack.c.l.b16 %v3012
    %v4287 = vunpack.c.h.b16 %v3012
    %v4288 = vunpack.c.l.b16 %v3013
    %v4289 = vunpack.c.h.b16 %v3013
    %v4290 = vunpack.c.l.b16 %v3014
    %v4291 = vunpack.c.h.b16 %v3014
    %v4292 = vunpack.c.l.b16 %v3015
    %v4293 = vunpack.c.h.b16 %v3015
    %v4294 = vunpack.c.l.b16 %v3016
    %v4295 = vunpack.c.h.b16 %v3016
    %v4296 = vunpack.c.l.b16 %v3017
    %v4297 = vunpack.c.h.b16 %v3017
    %v4298 = vunpack.c.l.b16 %v3018
    %v4299 = vunpack.c.h.b16 %v3018
    %v4300 = vunpack.c.l.b16 %v3019
    %v4301 = vunpack.c.h.b16 %v3019
    %v4302 = vunpack.c.l.b16 %v3020
    %v4303 = vunpack.c.h.b16 %v3020
    %v4304 = vunpack.c.l.b16 %v3021
    %v4305 = vunpack.c.h.b16 %v3021
    %v4306 = vunpack.c.l.b16 %v3022
    %v4307 = vunpack.c.h.b16 %v3022
    %v4308 = vunpack.c.l.b16 %v3023
    %v4309 = vunpack.c.h.b16 %v3023
    %v4310 = vunpack.c.l.b16 %v3024
    %v4311 = vunpack.c.h.b16 %v3024
    %v4312 = vunpack.c.l.b16 %v3025
    %v4313 = vunpack.c.h.b16 %v3025
    %v4314 = vunpack.c.l.b16 %v3026
    %v4315 = vunpack.c.h.b16 %v3026
    %v4316 = vunpack.c.l.b16 %v3027
    %v4317 = vunpack.c.h.b16 %v3027
    %v4318 = vunpack.c.l.b16 %v3028
    %v4319 = vunpack.c.h.b16 %v3028
    %v4320 = vunpack.c.l.b16 %v3029
    %v4321 = vunpack.c.h.b16 %v3029
    %v4322 = vunpack.c.l.b16 %v3030
    %v4323 = vunpack.c.h.b16 %v3030
    %v4324 = vunpack.c.l.b16 %v3031
    %v4325 = vunpack.c.h.b16 %v3031
    %v4326 = vunpack.c.l.b16 %v3032
    %v4327 = vunpack.c.h.b16 %v3032
    %v4328 = vunpack.c.l.b16 %v3033
    %v4329 = vunpack.c.h.b16 %v3033
    %v4330 = vunpack.c.l.b16 %v3034
    %v4331 = vunpack.c.h.b16 %v3034
    %v4332 = vunpack.c.l.b16 %v3035
    %v4333 = vunpack.c.h.b16 %v3035
    %v4334 = vunpack.c.l.b16 %v3036
    %v4335 = vunpack.c.h.b16 %v3036
    %v4336 = vunpack.c.l.b16 %v3037
    %v4337 = vunpack.c.h.b16 %v3037
    %v4338 = vunpack.c.l.b16 %v3038
    %v4339 = vunpack.c.h.b16 %v3038
    %v4340 = vunpack.c.l.b16 %v3039
    %v4341 = vunpack.c.h.b16 %v3039
    %v4342 = vunpack.c.l.b16 %v3040
    %v4343 = vunpack.c.h.b16 %v3040
    %v4344 = vunpack.c.l.b16 %v3041
    %v4345 = vunpack.c.h.b16 %v3041
    %v4346 = vunpack.c.l.b16 %v3042
    %v4347 = vunpack.c.h.b16 %v3042
    %v4348 = vunpack.c.l.b16 %v3043
    %v4349 = vunpack.c.h.b16 %v3043
    %v4350 = vunpack.c.l.b16 %v3044
    %v4351 = vunpack.c.h.b16 %v3044
    %v4352 = vunpack.c.l.b16 %v3045
    %v4353 = vunpack.c.h.b16 %v3045
    %v4354 = vunpack.c.l.b16 %v3046
    %v4355 = vunpack.c.h.b16 %v3046
    %v4356 = vunpack.c.l.b16 %v3047
    %v4357 = vunpack.c.h.b16 %v3047
    %v4358 = vunpack.c.l.b16 %v3048
    %v4359 = vunpack.c.h.b16 %v3048
    %v4360 = vunpack.c.l.b16 %v3049
    %v4361 = vunpack.c.h.b16 %v3049
    %v4362 = vunpack.c.l.b16 %v3050
    %v4363 = vunpack.c.h.b16 %v3050
    %v4364 = vunpack.c.l.b16 %v3051
    %v4365 = vunpack.c.h.b16 %v3051
    %v4366 = vunpack.c.l.b16 %v3052
    %v4367 = vunpack.c.h.b16 %v3052
    %v4368 = vunpack.c.l.b16 %v3053
    %v4369 = vunpack.c.h.b16 %v3053
    %v4370 = vunpack.c.l.b16 %v3054
    %v4371 = vunpack.c.h.b16 %v3054
    %v4372 = vunpack.c.l.b16 %v3055
    %v4373 = vunpack.c.h.b16 %v3055
    %v4374 = vunpack.c.l.b16 %v3056
    %v4375 = vunpack.c.h.b16 %v3056
    %v4376 = vunpack.c.l.b16 %v3057
    %v4377 = vunpack.c.h.b16 %v3057
    %v4378 = vunpack.c.l.b16 %v3058
    %v4379 = vunpack.c.h.b16 %v3058
    %v4380 = vunpack.c.l.b16 %v3059
    %v4381 = vunpack.c.h.b16 %v3059
    %v4382 = vunpack.c.l.b16 %v3060
    %v4383 = vunpack.c.h.b16 %v3060
    %v4384 = vunpack.c.l.b16 %v3061
    %v4385 = vunpack.c.h.b16 %v3061
    %v4386 = vunpack.c.l.b16 %v3062
    %v4387 = vunpack.c.h.b16 %v3062
    %v4388 = vunpack.c.l.b16 %v3063
    %v4389 = vunpack.c.h.b16 %v3063
    %v4390 = vunpack.c.l.b16 %v3064
    %v4391 = vunpack.c.h.b16 %v3064
    %v4392 = vunpack.c.l.b16 %v3065
    %v4393 = vunpack.c.h.b16 %v3065
    %v4394 = vunpack.c.l.b16 %v3066
    %v4395 = vunpack.c.h.b16 %v3066
    %v4396 = vunpack.c.l.b16 %v3067
    %v4397 = vunpack.c.h.b16 %v3067
    %v4398 = vunpack.c.l.b16 %v3068
    %v4399 = vunpack.c.h.b16 %v3068
    %v4400 = vunpack.c.l.b16 %v3069
    %v4401 = vunpack.c.h.b16 %v3069
    %v4402 = vunpack.c.l.b16 %v3070
    %v4403 = vunpack.c.h.b16 %v3070
    %v4404 = vunpack.c.l.b16 %v3071
    %v4405 = vunpack.c.h.b16 %v3071
    %v4406 = vunpack.c.l.b16 %v3072
    %v4407 = vunpack.c.h.b16 %v3072
    %v4408 = vunpack.c.l.b16 %v3073
    %v4409 = vunpack.c.h.b16 %v3073
    %v4410 = vunpack.c.l.b16 %v3074
    %v4411 = vunpack.c.h.b16 %v3074
    %v4412 = vunpack.c.l.b16 %v3075
    %v4413 = vunpack.c.h.b16 %v3075
    %v4414 = vunpack.c.l.b16 %v3076
    %v4415 = vunpack.c.h.b16 %v3076
    %v4416 = vunpack.c.l.b16 %v3077
    %v4417 = vunpack.c.h.b16 %v3077
    %v4418 = vunpack.c.l.b16 %v3078
    %v4419 = vunpack.c.h.b16 %v3078
    %v4420 = vunpack.c.l.b16 %v3079
    %v4421 = vunpack.c.h.b16 %v3079
    %v4422 = vunpack.c.l.b16 %v3080
    %v4423 = vunpack.c.h.b16 %v3080
    %v4424 = vunpack.c.l.b16 %v3081
    %v4425 = vunpack.c.h.b16 %v3081
    %v4426 = vunpack.c.l.b16 %v3082
    %v4427 = vunpack.c.h.b16 %v3082
    %v4428 = vunpack.c.l.b16 %v3083
    %v4429 = vunpack.c.h.b16 %v3083
    %v4430 = vunpack.c.l.b16 %v3084
    %v4431 = vunpack.c.h.b16 %v3084
    %v4432 = vunpack.c.l.b16 %v3085
    %v4433 = vunpack.c.h.b16 %v3085
    %v4434 = vunpack.c.l.b16 %v3086
    %v4435 = vunpack.c.h.b16 %v3086
    %v4436 = vunpack.c.l.b16 %v3087
    %v4437 = vunpack.c.h.b16 %v3087
    %v4438 = vunpack.c.l.b16 %v3088
    %v4439 = vunpack.c.h.b16 %v3088
    %v4440 = vunpack.c.l.b16 %v3089
    %v4441 = vunpack.c.h.b16 %v3089
    %v4442 = vunpack.c.l.b16 %v3090
    %v4443 = vunpack.c.h.b16 %v3090
    %v4444 = vunpack.c.l.b16 %v3091
    %v4445 = vunpack.c.h.b16 %v3091
    %v4446 = vunpack.c.l.b16 %v3092
    %v4447 = vunpack.c.h.b16 %v3092
    %v4448 = vunpack.c.l.b16 %v3093
    %v4449 = vunpack.c.h.b16 %v3093
    %v4450 = vunpack.c.l.b16 %v3094
    %v4451 = vunpack.c.h.b16 %v3094
    %v4452 = vunpack.c.l.b16 %v3095
    %v4453 = vunpack.c.h.b16 %v3095
    %v4454 = vunpack.c.l.b16 %v3096
    %v4455 = vunpack.c.h.b16 %v3096
    %v4456 = vunpack.c.l.b16 %v3097
    %v4457 = vunpack.c.h.b16 %v3097
    %v4458 = vunpack.c.l.b16 %v3098
    %v4459 = vunpack.c.h.b16 %v3098
    %v4460 = vunpack.c.l.b16 %v3099
    %v4461 = vunpack.c.h.b16 %v3099
    %v4462 = vunpack.c.l.b16 %v3100
    %v4463 = vunpack.c.h.b16 %v3100
    %v4464 = vunpack.c.l.b16 %v3101
    %v4465 = vunpack.c.h.b16 %v3101
    %v4466 = vunpack.c.l.b16 %v3102
    %v4467 = vunpack.c.h.b16 %v3102
    %v4468 = vunpack.c.l.b16 %v3103
    %v4469 = vunpack.c.h.b16 %v3103
    %v4470 = vunpack.c.l.b16 %v3104
    %v4471 = vunpack.c.h.b16 %v3104
    %v4472 = vunpack.c.l.b16 %v3105
    %v4473 = vunpack.c.h.b16 %v3105
    %v4474 = vunpack.c.l.b16 %v3106
    %v4475 = vunpack.c.h.b16 %v3106
    %v4476 = vunpack.c.l.b16 %v3107
    %v4477 = vunpack.c.h.b16 %v3107
    %v4478 = vunpack.c.l.b16 %v3108
    %v4479 = vunpack.c.h.b16 %v3108
    %v4480 = vunpack.c.l.b16 %v3109
    %v4481 = vunpack.c.h.b16 %v3109
    %v4482 = vunpack.c.l.b16 %v3110
    %v4483 = vunpack.c.h.b16 %v3110
    %v4484 = vunpack.c.l.b16 %v3111
    %v4485 = vunpack.c.h.b16 %v3111
    %v4486 = vunpack.c.l.b16 %v3112
    %v4487 = vunpack.c.h.b16 %v3112
    %v4488 = vunpack.c.l.b16 %v3113
    %v4489 = vunpack.c.h.b16 %v3113
    %v4490 = vunpack.c.l.b16 %v3114
    %v4491 = vunpack.c.h.b16 %v3114
    %v4492 = vunpack.c.l.b16 %v3115
    %v4493 = vunpack.c.h.b16 %v3115
    %v4494 = vunpack.c.l.b16 %v3116
    %v4495 = vunpack.c.h.b16 %v3116
    %v4496 = vunpack.c.l.b16 %v3117
    %v4497 = vunpack.c.h.b16 %v3117
    %v4498 = vunpack.c.l.b16 %v3118
    %v4499 = vunpack.c.h.b16 %v3118
    %v4500 = vunpack.c.l.b16 %v3119
    %v4501 = vunpack.c.h.b16 %v3119
    %v4502 = vunpack.c.l.b16 %v3120
    %v4503 = vunpack.c.h.b16 %v3120
    %v4504 = vunpack.c.l.b16 %v3121
    %v4505 = vunpack.c.h.b16 %v3121
    %v4506 = vunpack.c.l.b16 %v3122
    %v4507 = vunpack.c.h.b16 %v3122
    %v4508 = vunpack.c.l.b16 %v3123
    %v4509 = vunpack.c.h.b16 %v3123
    %v4510 = vunpack.c.l.b16 %v3124
    %v4511 = vunpack.c.h.b16 %v3124
    %v4512 = vunpack.c.l.b16 %v3125
    %v4513 = vunpack.c.h.b16 %v3125
    %v4514 = vunpack.c.l.b16 %v3126
    %v4515 = vunpack.c.h.b16 %v3126
    %v4516 = vunpack.c.l.b16 %v3127
    %v4517 = vunpack.c.h.b16 %v3127
    %v4518 = vunpack.c.l.b16 %v3128
    %v4519 = vunpack.c.h.b16 %v3128
    %v4520 = vunpack.c.l.b16 %v3129
    %v4521 = vunpack.c.h.b16 %v3129
    %v4522 = vunpack.c.l.b16 %v3130
    %v4523 = vunpack.c.h.b16 %v3130
    %v4524 = vunpack.c.l.b16 %v3131
    %v4525 = vunpack.c.h.b16 %v3131
    %v4526 = vunpack.c.l.b16 %v3132
    %v4527 = vunpack.c.h.b16 %v3132
    %v4528 = vunpack.c.l.b16 %v3133
    %v4529 = vunpack.c.h.b16 %v3133
    %v4530 = vunpack.c.l.b16 %v3134
    %v4531 = vunpack.c.h.b16 %v3134
    %v4532 = vunpack.c.l.b16 %v3135
    %v4533 = vunpack.c.h.b16 %v3135
    %v4534 = vunpack.c.l.b16 %v3136
    %v4535 = vunpack.c.h.b16 %v3136
    %v4536 = vunpack.c.l.b16 %v3137
    %v4537 = vunpack.c.h.b16 %v3137
    %v4538 = vunpack.c.l.b16 %v3138
    %v4539 = vunpack.c.h.b16 %v3138
    %v4540 = vunpack.c.l.b16 %v3139
    %v4541 = vunpack.c.h.b16 %v3139
    %v4542 = vunpack.c.l.b16 %v3140
    %v4543 = vunpack.c.h.b16 %v3140
    %v4544 = vunpack.c.l.b16 %v3141
    %v4545 = vunpack.c.h.b16 %v3141
    %v4546 = vunpack.c.l.b16 %v3142
    %v4547 = vunpack.c.h.b16 %v3142
    %v4548 = vunpack.c.l.b16 %v3143
    %v4549 = vunpack.c.h.b16 %v3143
    %v4550 = vunpack.c.l.b16 %v3144
    %v4551 = vunpack.c.h.b16 %v3144
    %v4552 = vunpack.c.l.b16 %v3145
    %v4553 = vunpack.c.h.b16 %v3145
    %v4554 = vunpack.c.l.b16 %v3146
    %v4555 = vunpack.c.h.b16 %v3146
    %v4556 = vunpack.c.l.b16 %v3147
    %v4557 = vunpack.c.h.b16 %v3147
    %v4558 = vunpack.c.l.b16 %v3148
    %v4559 = vunpack.c.h.b16 %v3148
    %v4560 = vunpack.c.l.b16 %v3149
    %v4561 = vunpack.c.h.b16 %v3149
    %v4562 = vunpack.c.l.b16 %v3150
    %v4563 = vunpack.c.h.b16 %v3150
    %v4564 = vunpack.c.l.b16 %v3151
    %v4565 = vunpack.c.h.b16 %v3151
    %v4566 = vunpack.c.l.b16 %v3152
    %v4567 = vunpack.c.h.b16 %v3152
    %v4568 = vunpack.c.l.b16 %v3153
    %v4569 = vunpack.c.h.b16 %v3153
    %v4570 = vunpack.c.l.b16 %v3154
    %v4571 = vunpack.c.h.b16 %v3154
    %v4572 = vunpack.c.l.b16 %v3155
    %v4573 = vunpack.c.h.b16 %v3155
    %v4574 = vunpack.c.l.b16 %v3156
    %v4575 = vunpack.c.h.b16 %v3156
    %v4576 = vunpack.c.l.b16 %v3157
    %v4577 = vunpack.c.h.b16 %v3157
    %v4578 = vunpack.c.l.b16 %v3158
    %v4579 = vunpack.c.h.b16 %v3158
    %v4580 = vunpack.c.l.b16 %v3159
    %v4581 = vunpack.c.h.b16 %v3159
    %v4582 = vunpack.c.l.b16 %v3160
    %v4583 = vunpack.c.h.b16 %v3160
    %v4584 = vunpack.c.l.b16 %v3161
    %v4585 = vunpack.c.h.b16 %v3161
    %v4586 = vunpack.c.l.b16 %v3162
    %v4587 = vunpack.c.h.b16 %v3162
    %v4588 = vunpack.c.l.b16 %v3163
    %v4589 = vunpack.c.h.b16 %v3163
    %v4590 = vunpack.c.l.b16 %v3164
    %v4591 = vunpack.c.h.b16 %v3164
    %v4592 = vunpack.c.l.b16 %v3165
    %v4593 = vunpack.c.h.b16 %v3165
    %v4594 = vunpack.c.l.b16 %v3166
    %v4595 = vunpack.c.h.b16 %v3166
    %v4596 = vunpack.c.l.b16 %v3167
    %v4597 = vunpack.c.h.b16 %v3167
    %v4598 = vunpack.c.l.b16 %v3168
    %v4599 = vunpack.c.h.b16 %v3168
    %v4600 = vunpack.c.l.b16 %v3169
    %v4601 = vunpack.c.h.b16 %v3169
    %v4602 = vunpack.c.l.b16 %v3170
    %v4603 = vunpack.c.h.b16 %v3170
    %v4604 = vunpack.c.l.b16 %v3171
    %v4605 = vunpack.c.h.b16 %v3171
    %v4606 = vunpack.c.l.b16 %v3172
    %v4607 = vunpack.c.h.b16 %v3172
    %v4608 = vunpack.c.l.b16 %v3173
    %v4609 = vunpack.c.h.b16 %v3173
    %v4610 = vunpack.c.l.b16 %v3174
    %v4611 = vunpack.c.h.b16 %v3174
    %v4612 = vunpack.c.l.b16 %v3175
    %v4613 = vunpack.c.h.b16 %v3175
    %v4614 = vunpack.c.l.b16 %v3176
    %v4615 = vunpack.c.h.b16 %v3176
    %v4616 = vunpack.c.l.b16 %v3177
    %v4617 = vunpack.c.h.b16 %v3177
    %v4618 = vunpack.c.l.b16 %v3178
    %v4619 = vunpack.c.h.b16 %v3178
    %v4620 = vunpack.c.l.b16 %v3179
    %v4621 = vunpack.c.h.b16 %v3179
    %v4622 = vunpack.c.l.b16 %v3180
    %v4623 = vunpack.c.h.b16 %v3180
    %v4624 = vunpack.c.l.b16 %v3181
    %v4625 = vunpack.c.h.b16 %v3181
    %v4626 = vunpack.c.l.b16 %v3182
    %v4627 = vunpack.c.h.b16 %v3182
    %v4628 = vunpack.c.l.b16 %v3183
    %v4629 = vunpack.c.h.b16 %v3183
    %v4630 = vunpack.c.l.b16 %v3184
    %v4631 = vunpack.c.h.b16 %v3184
    %v4632 = vunpack.c.l.b16 %v3185
    %v4633 = vunpack.c.h.b16 %v3185
    %v4634 = vunpack.c.l.b16 %v3186
    %v4635 = vunpack.c.h.b16 %v3186
    %v4636 = vunpack.c.l.b16 %v3187
    %v4637 = vunpack.c.h.b16 %v3187
    %v4638 = vunpack.c.l.b16 %v3188
    %v4639 = vunpack.c.h.b16 %v3188
    %v4640 = vunpack.c.l.b16 %v3189
    %v4641 = vunpack.c.h.b16 %v3189
    %v4642 = vunpack.c.l.b16 %v3190
    %v4643 = vunpack.c.h.b16 %v3190
    %v4644 = vunpack.c.l.b16 %v3191
    %v4645 = vunpack.c.h.b16 %v3191
    %v4646 = vunpack.c.l.b16 %v3192
    %v4647 = vunpack.c.h.b16 %v3192
    %v4648 = vunpack.c.l.b16 %v3193
    %v4649 = vunpack.c.h.b16 %v3193
    %v4650 = vunpack.c.l.b16 %v3194
    %v4651 = vunpack.c.h.b16 %v3194
    %v4652 = vunpack.c.l.b16 %v3195
    %v4653 = vunpack.c.h.b16 %v3195
    %v4654 = vunpack.c.l.b16 %v3196
    %v4655 = vunpack.c.h.b16 %v3196
    %v4656 = vunpack.c.l.b16 %v3197
    %v4657 = vunpack.c.h.b16 %v3197
    %v4658 = vunpack.c.l.b16 %v3198
    %v4659 = vunpack.c.h.b16 %v3198
    %v4660 = vunpack.c.l.b16 %v3199
    %v4661 = vunpack.c.h.b16 %v3199
    %v4662 = vunpack.c.l.b16 %v3200
    %v4663 = vunpack.c.h.b16 %v3200
    %v4664 = vunpack.c.l.b16 %v3201
    %v4665 = vunpack.c.h.b16 %v3201
    %v4666 = vunpack.c.l.b16 %v3202
    %v4667 = vunpack.c.h.b16 %v3202
    %v4668 = vunpack.c.l.b16 %v3203
    %v4669 = vunpack.c.h.b16 %v3203
    %v4670 = vunpack.c.l.b16 %v3204
    %v4671 = vunpack.c.h.b16 %v3204
    %v4672 = vunpack.c.l.b16 %v3205
    %v4673 = vunpack.c.h.b16 %v3205
    %v4674 = vunpack.c.l.b16 %v3206
    %v4675 = vunpack.c.h.b16 %v3206
    %v4676 = vunpack.c.l.b16 %v3207
    %v4677 = vunpack.c.h.b16 %v3207
    %v4678 = vunpack.c.l.b16 %v3208
    %v4679 = vunpack.c.h.b16 %v3208
    %v4680 = vunpack.c.l.b16 %v3209
    %v4681 = vunpack.c.h.b16 %v3209
    %v4682 = vunpack.c.l.b16 %v3210
    %v4683 = vunpack.c.h.b16 %v3210
    %v4684 = vunpack.c.l.b16 %v3211
    %v4685 = vunpack.c.h.b16 %v3211
    %v4686 = vunpack.c.l.b16 %v3212
    %v4687 = vunpack.c.h.b16 %v3212
    %v4688 = vunpack.c.l.b16 %v3213
    %v4689 = vunpack.c.h.b16 %v3213
    %v4690 = vunpack.c.l.b16 %v3214
    %v4691 = vunpack.c.h.b16 %v3214
    %v4692 = vunpack.c.l.b16 %v3215
    %v4693 = vunpack.c.h.b16 %v3215
    %v4694 = vunpack.c.l.b16 %v3216
    %v4695 = vunpack.c.h.b16 %v3216
    %v4696 = vunpack.c.l.b16 %v3217
    %v4697 = vunpack.c.h.b16 %v3217
    %v4698 = vunpack.c.l.b16 %v3218
    %v4699 = vunpack.c.h.b16 %v3218
    %v4700 = vunpack.c.l.b16 %v3219
    %v4701 = vunpack.c.h.b16 %v3219
    %v4702 = vunpack.c.l.b16 %v3220
    %v4703 = vunpack.c.h.b16 %v3220
    %v4704 = vunpack.c.l.b16 %v3221
    %v4705 = vunpack.c.h.b16 %v3221
    %v4706 = vunpack.c.l.b16 %v3222
    %v4707 = vunpack.c.h.b16 %v3222
    %v4708 = vunpack.c.l.b16 %v3223
    %v4709 = vunpack.c.h.b16 %v3223
    %v4710 = vunpack.c.l.b16 %v3224
    %v4711 = vunpack.c.h.b16 %v3224
    %v4712 = vunpack.c.l.b16 %v3225
    %v4713 = vunpack.c.h.b16 %v3225
    %v4714 = vunpack.c.l.b16 %v3226
    %v4715 = vunpack.c.h.b16 %v3226
    %v4716 = vunpack.c.l.b16 %v3227
    %v4717 = vunpack.c.h.b16 %v3227
    %v4718 = vunpack.c.l.b16 %v3228
    %v4719 = vunpack.c.h.b16 %v3228
    %v4720 = vunpack.c.l.b16 %v3229
    %v4721 = vunpack.c.h.b16 %v3229
    %v4722 = vunpack.c.l.b16 %v3230
    %v4723 = vunpack.c.h.b16 %v3230
    %v4724 = vunpack.c.l.b16 %v3231
    %v4725 = vunpack.c.h.b16 %v3231
    %v4726 = vunpack.c.l.b16 %v3232
    %v4727 = vunpack.c.h.b16 %v3232
    %v4728 = vunpack.c.l.b16 %v3233
    %v4729 = vunpack.c.h.b16 %v3233
    %v4730 = vunpack.c.l.b16 %v3234
    %v4731 = vunpack.c.h.b16 %v3234
    %v4732 = vunpack.c.l.b16 %v3235
    %v4733 = vunpack.c.h.b16 %v3235
    %v4734 = vunpack.c.l.b16 %v3236
    %v4735 = vunpack.c.h.b16 %v3236
    %v4736 = vunpack.c.l.b16 %v3237
    %v4737 = vunpack.c.h.b16 %v3237
    %v4738 = vunpack.c.l.b16 %v3238
    %v4739 = vunpack.c.h.b16 %v3238
    %v4740 = vunpack.c.l.b16 %v3239
    %v4741 = vunpack.c.h.b16 %v3239
    %v4742 = vunpack.c.l.b16 %v3240
    %v4743 = vunpack.c.h.b16 %v3240
    %v4744 = vunpack.c.l.b16 %v3241
    %v4745 = vunpack.c.h.b16 %v3241
    %v4746 = vunpack.c.l.b16 %v3242
    %v4747 = vunpack.c.h.b16 %v3242
    %v4748 = vunpack.c.l.b16 %v3243
    %v4749 = vunpack.c.h.b16 %v3243
    %v4750 = vunpack.c.l.b16 %v3244
    %v4751 = vunpack.c.h.b16 %v3244
    %v4752 = vunpack.c.l.b16 %v3245
    %v4753 = vunpack.c.h.b16 %v3245
    %v4754 = vunpack.c.l.b16 %v3246
    %v4755 = vunpack.c.h.b16 %v3246
    %v4756 = vunpack.c.l.b16 %v3247
    %v4757 = vunpack.c.h.b16 %v3247
    %v4758 = vunpack.c.l.b16 %v3248
    %v4759 = vunpack.c.h.b16 %v3248
    %v4760 = vunpack.c.l.b16 %v3249
    %v4761 = vunpack.c.h.b16 %v3249
    %v4762 = vunpack.c.l.b16 %v3250
    %v4763 = vunpack.c.h.b16 %v3250
    %v4764 = vunpack.c.l.b16 %v3251
    %v4765 = vunpack.c.h.b16 %v3251
    %v4766 = vunpack.c.l.b16 %v3252
    %v4767 = vunpack.c.h.b16 %v3252
    %v4768 = vunpack.c.l.b16 %v3253
    %v4769 = vunpack.c.h.b16 %v3253
    %v4770 = vunpack.c.l.b16 %v3254
    %v4771 = vunpack.c.h.b16 %v3254
    %v4772 = vunpack.c.l.b16 %v3255
    %v4773 = vunpack.c.h.b16 %v3255
    %v4774 = vunpack.c.l.b16 %v3256
    %v4775 = vunpack.c.h.b16 %v3256
    %v4776 = vunpack.c.l.b16 %v3257
    %v4777 = vunpack.c.h.b16 %v3257
    %v4778 = vunpack.c.l.b16 %v3258
    %v4779 = vunpack.c.h.b16 %v3258
    %v4780 = vunpack.c.l.b16 %v3259
    %v4781 = vunpack.c.h.b16 %v3259
    %v4782 = vunpack.c.l.b16 %v3260
    %v4783 = vunpack.c.h.b16 %v3260
    %v4784 = vunpack.c.l.b16 %v3261
    %v4785 = vunpack.c.h.b16 %v3261
    %v4786 = vunpack.c.l.b16 %v3262
    %v4787 = vunpack.c.h.b16 %v3262
    %v4788 = vunpack.c.l.b16 %v3263
    %v4789 = vunpack.c.h.b16 %v3263
    %v4790 = vunpack.c.l.b16 %v3264
    %v4791 = vunpack.c.h.b16 %v3264
    %v4792 = vunpack.c.l.b16 %v3265
    %v4793 = vunpack.c.h.b16 %v3265
    %v4794 = vunpack.c.l.b16 %v3266
    %v4795 = vunpack.c.h.b16 %v3266
    %v4796 = vunpack.c.l.b16 %v3267
    %v4797 = vunpack.c.h.b16 %v3267
    %v4798 = vunpack.c.l.b16 %v3268
    %v4799 = vunpack.c.h.b16 %v3268
    %v4800 = vunpack.c.l.b16 %v3269
    %v4801 = vunpack.c.h.b16 %v3269
    %v4802 = vunpack.c.l.b16 %v3270
    %v4803 = vunpack.c.h.b16 %v3270
    %v4804 = vunpack.c.l.b16 %v3271
    %v4805 = vunpack.c.h.b16 %v3271
    %v4806 = vunpack.c.l.b16 %v3272
    %v4807 = vunpack.c.h.b16 %v3272
    %v4808 = vunpack.c.l.b16 %v3273
    %v4809 = vunpack.c.h.b16 %v3273
    %v4810 = vunpack.c.l.b16 %v3274
    %v4811 = vunpack.c.h.b16 %v3274
    %v4812 = vunpack.c.l.b16 %v3275
    %v4813 = vunpack.c.h.b16 %v3275
    %v4814 = vunpack.c.l.b16 %v3276
    %v4815 = vunpack.c.h.b16 %v3276
    %v4816 = vunpack.c.l.b16 %v3277
    %v4817 = vunpack.c.h.b16 %v3277
    %v4818 = vunpack.c.l.b16 %v3278
    %v4819 = vunpack.c.h.b16 %v3278
    %v4820 = vunpack.c.l.b16 %v3279
    %v4821 = vunpack.c.h.b16 %v3279
    %v4822 = vunpack.c.l.b16 %v3280
    %v4823 = vunpack.c.h.b16 %v3280
    %v4824 = vunpack.c.l.b16 %v3281
    %v4825 = vunpack.c.h.b16 %v3281
    %v4826 = vunpack.c.l.b16 %v3282
    %v4827 = vunpack.c.h.b16 %v3282
    %v4828 = vunpack.c.l.b16 %v3283
    %v4829 = vunpack.c.h.b16 %v3283
    %v4830 = vunpack.c.l.b16 %v3284
    %v4831 = vunpack.c.h.b16 %v3284
    %v4832 = vunpack.c.l.b16 %v3285
    %v4833 = vunpack.c.h.b16 %v3285
    %v4834 = vunpack.c.l.b16 %v3286
    %v4835 = vunpack.c.h.b16 %v3286
    %v4836 = vunpack.c.l.b16 %v3287
    %v4837 = vunpack.c.h.b16 %v3287
    %v4838 = vunpack.c.l.b16 %v3288
    %v4839 = vunpack.c.h.b16 %v3288
    %v4840 = vunpack.c.l.b16 %v3289
    %v4841 = vunpack.c.h.b16 %v3289
    %v4842 = vunpack.c.l.b16 %v3290
    %v4843 = vunpack.c.h.b16 %v3290
    %v4844 = vunpack.c.l.b16 %v3291
    %v4845 = vunpack.c.h.b16 %v3291
    %v4846 = vunpack.c.l.b16 %v3292
    %v4847 = vunpack.c.h.b16 %v3292
    %v4848 = vunpack.c.l.b16 %v3293
    %v4849 = vunpack.c.h.b16 %v3293
    %v4850 = vunpack.c.l.b16 %v3294
    %v4851 = vunpack.c.h.b16 %v3294
    %v4852 = vunpack.c.l.b16 %v3295
    %v4853 = vunpack.c.h.b16 %v3295
    %v4854 = vunpack.c.l.b16 %v3296
    %v4855 = vunpack.c.h.b16 %v3296
    %v4856 = vunpack.c.l.b16 %v3297
    %v4857 = vunpack.c.h.b16 %v3297
    %v4858 = vunpack.c.l.b16 %v3298
    %v4859 = vunpack.c.h.b16 %v3298
    %v4860 = vunpack.c.l.b16 %v3299
    %v4861 = vunpack.c.h.b16 %v3299
    %v4862 = vunpack.c.l.b16 %v3300
    %v4863 = vunpack.c.h.b16 %v3300
    %v4864 = vunpack.c.l.b16 %v3301
    %v4865 = vunpack.c.h.b16 %v3301
    %v4866 = vunpack.c.l.b16 %v3302
    %v4867 = vunpack.c.h.b16 %v3302
    %v4868 = vunpack.c.l.b16 %v3303
    %v4869 = vunpack.c.h.b16 %v3303
    %v4870 = vunpack.c.l.b16 %v3304
    %v4871 = vunpack.c.h.b16 %v3304
    %v4872 = vunpack.c.l.b16 %v3305
    %v4873 = vunpack.c.h.b16 %v3305
    %v4874 = vunpack.c.l.b16 %v3306
    %v4875 = vunpack.c.h.b16 %v3306
    %v4876 = vunpack.c.l.b16 %v3307
    %v4877 = vunpack.c.h.b16 %v3307
    %v4878 = vunpack.c.l.b16 %v3308
    %v4879 = vunpack.c.h.b16 %v3308
    %v4880 = vunpack.c.l.b16 %v3309
    %v4881 = vunpack.c.h.b16 %v3309
    %v4882 = vunpack.c.l.b16 %v3310
    %v4883 = vunpack.c.h.b16 %v3310
    %v4884 = vunpack.c.l.b16 %v3311
    %v4885 = vunpack.c.h.b16 %v3311
    %v4886 = vunpack.c.l.b16 %v3312
    %v4887 = vunpack.c.h.b16 %v3312
    %v4888 = vunpack.c.l.b16 %v3313
    %v4889 = vunpack.c.h.b16 %v3313
    %v4890 = vunpack.c.l.b16 %v3314
    %v4891 = vunpack.c.h.b16 %v3314
    %v4892 = vunpack.c.l.b16 %v3315
    %v4893 = vunpack.c.h.b16 %v3315
    %v4894 = vpack.c.b16 %v3878, %v3870
    %v4895 = vpack.c.b16 %v3879, %v3871
    %v4896 = vpack.c.b16 %v3880, %v3872
    %v4897 = vpack.c.b16 %v3881, %v3873
    %v4898 = vpack.c.b16 %v3882, %v3874
    %v4899 = vpack.c.b16 %v3883, %v3875
    %v4900 = vpack.c.b16 %v3884, %v3876
    %v4901 = vpack.c.b16 %v3885, %v3877
    %v4902 = vpack.c.b16 %v3894, %v3886
    %v4903 = vpack.c.b16 %v3895, %v3887
    %v4904 = vpack.c.b16 %v3896, %v3888
    %v4905 = vpack.c.b16 %v3897, %v3889
    %v4906 = vpack.c.b16 %v3898, %v3890
    %v4907 = vpack.c.b16 %v3899, %v3891
    %v4908 = vpack.c.b16 %v3900, %v3892
    %v4909 = vpack.c.b16 %v3901, %v3893
    %v4910 = vpack.c.b16 %v3910, %v3902
    %v4911 = vpack.c.b16 %v3911, %v3903
    %v4912 = vpack.c.b16 %v3912, %v3904
    %v4913 = vpack.c.b16 %v3913, %v3905
    %v4914 = vpack.c.b16 %v3914, %v3906
    %v4915 = vpack.c.b16 %v3915, %v3907
    %v4916 = vpack.c.b16 %v3916, %v3908
    %v4917 = vpack.c.b16 %v3917, %v3909
    %v4918 = vpack.c.b16 %v3926, %v3918
    %v4919 = vpack.c.b16 %v3927, %v3919
    %v4920 = vpack.c.b16 %v3928, %v3920
    %v4921 = vpack.c.b16 %v3929, %v3921
    %v4922 = vpack.c.b16 %v3930, %v3922
    %v4923 = vpack.c.b16 %v3931, %v3923
    %v4924 = vpack.c.b16 %v3932, %v3924
    %v4925 = vpack.c.b16 %v3933, %v3925
    %v4926 = vpack.c.b16 %v3942, %v3934
    %v4927 = vpack.c.b16 %v3943, %v3935
    %v4928 = vpack.c.b16 %v3944, %v3936
    %v4929 = vpack.c.b16 %v3945, %v3937
    %v4930 = vpack.c.b16 %v3946, %v3938
    %v4931 = vpack.c.b16 %v3947, %v3939
    %v4932 = vpack.c.b16 %v3948, %v3940
    %v4933 = vpack.c.b16 %v3949, %v3941
    %v4934 = vpack.c.b16 %v3958, %v3950
    %v4935 = vpack.c.b16 %v3959, %v3951
    %v4936 = vpack.c.b16 %v3960, %v3952
    %v4937 = vpack.c.b16 %v3961, %v3953
    %v4938 = vpack.c.b16 %v3962, %v3954
    %v4939 = vpack.c.b16 %v3963, %v3955
    %v4940 = vpack.c.b16 %v3964, %v3956
    %v4941 = vpack.c.b16 %v3965, %v3957
    %v4942 = vpack.c.b16 %v3974, %v3966
    %v4943 = vpack.c.b16 %v3975, %v3967
    %v4944 = vpack.c.b16 %v3976, %v3968
    %v4945 = vpack.c.b16 %v3977, %v3969
    %v4946 = vpack.c.b16 %v3978, %v3970
    %v4947 = vpack.c.b16 %v3979, %v3971
    %v4948 = vpack.c.b16 %v3980, %v3972
    %v4949 = vpack.c.b16 %v3981, %v3973
    %v4950 = vpack.c.b16 %v3990, %v3982
    %v4951 = vpack.c.b16 %v3991, %v3983
    %v4952 = vpack.c.b16 %v3992, %v3984
    %v4953 = vpack.c.b16 %v3993, %v3985
    %v4954 = vpack.c.b16 %v3994, %v3986
    %v4955 = vpack.c.b16 %v3995, %v3987
    %v4956 = vpack.c.b16 %v3996, %v3988
    %v4957 = vpack.c.b16 %v3997, %v3989
    %v4958 = vpack.c.b16 %v4006, %v3998
    %v4959 = vpack.c.b16 %v4007, %v3999
    %v4960 = vpack.c.b16 %v4008, %v4000
    %v4961 = vpack.c.b16 %v4009, %v4001
    %v4962 = vpack.c.b16 %v4010, %v4002
    %v4963 = vpack.c.b16 %v4011, %v4003
    %v4964 = vpack.c.b16 %v4012, %v4004
    %v4965 = vpack.c.b16 %v4013, %v4005
    %v4966 = vpack.c.b16 %v4022, %v4014
    %v4967 = vpack.c.b16 %v4023, %v4015
    %v4968 = vpack.c.b16 %v4024, %v4016
    %v4969 = vpack.c.b16 %v4025, %v4017
    %v4970 = vpack.c.b16 %v4026, %v4018
    %v4971 = vpack.c.b16 %v4027, %v4019
    %v4972 = vpack.c.b16 %v4028, %v4020
    %v4973 = vpack.c.b16 %v4029, %v4021
    %v4974 = vpack.c.b16 %v4038, %v4030
    %v4975 = vpack.c.b16 %v4039, %v4031
    %v4976 = vpack.c.b16 %v4040, %v4032
    %v4977 = vpack.c.b16 %v4041, %v4033
    %v4978 = vpack.c.b16 %v4042, %v4034
    %v4979 = vpack.c.b16 %v4043, %v4035
    %v4980 = vpack.c.b16 %v4044, %v4036
    %v4981 = vpack.c.b16 %v4045, %v4037
    %v4982 = vpack.c.b16 %v4054, %v4046
    %v4983 = vpack.c.b16 %v4055, %v4047
    %v4984 = vpack.c.b16 %v4056, %v4048
    %v4985 = vpack.c.b16 %v4057, %v4049
    %v4986 = vpack.c.b16 %v4058, %v4050
    %v4987 = vpack.c.b16 %v4059, %v4051
    %v4988 = vpack.c.b16 %v4060, %v4052
    %v4989 = vpack.c.b16 %v4061, %v4053
    %v4990 = vpack.c.b16 %v4070, %v4062
    %v4991 = vpack.c.b16 %v4071, %v4063
    %v4992 = vpack.c.b16 %v4072, %v4064
    %v4993 = vpack.c.b16 %v4073, %v4065
    %v4994 = vpack.c.b16 %v4074, %v4066
    %v4995 = vpack.c.b16 %v4075, %v4067
    %v4996 = vpack.c.b16 %v4076, %v4068
    %v4997 = vpack.c.b16 %v4077, %v4069
    %v4998 = vpack.c.b16 %v4086, %v4078
    %v4999 = vpack.c.b16 %v4087, %v4079
    %v5000 = vpack.c.b16 %v4088, %v4080
    %v5001 = vpack.c.b16 %v4089, %v4081
    %v5002 = vpack.c.b16 %v4090, %v4082
    %v5003 = vpack.c.b16 %v4091, %v4083
    %v5004 = vpack.c.b16 %v4092, %v4084
    %v5005 = vpack.c.b16 %v4093, %v4085
    %v5006 = vpack.c.b16 %v4102, %v4094
    %v5007 = vpack.c.b16 %v4103, %v4095
    %v5008 = vpack.c.b16 %v4104, %v4096
    %v5009 = vpack.c.b16 %v4105, %v4097
    %v5010 = vpack.c.b16 %v4106, %v4098
    %v5011 = vpack.c.b16 %v4107, %v4099
    %v5012 = vpack.c.b16 %v4108, %v4100
    %v5013 = vpack.c.b16 %v4109, %v4101
    %v5014 = vpack.c.b16 %v4118, %v4110
    %v5015 = vpack.c.b16 %v4119, %v4111
    %v5016 = vpack.c.b16 %v4120, %v4112
    %v5017 = vpack.c.b16 %v4121, %v4113
    %v5018 = vpack.c.b16 %v4122, %v4114
    %v5019 = vpack.c.b16 %v4123, %v4115
    %v5020 = vpack.c.b16 %v4124, %v4116
    %v5021 = vpack.c.b16 %v4125, %v4117
    %v5022 = vpack.c.b16 %v4134, %v4126
    %v5023 = vpack.c.b16 %v4135, %v4127
    %v5024 = vpack.c.b16 %v4136, %v4128
    %v5025 = vpack.c.b16 %v4137, %v4129
    %v5026 = vpack.c.b16 %v4138, %v4130
    %v5027 = vpack.c.b16 %v4139, %v4131
    %v5028 = vpack.c.b16 %v4140, %v4132
    %v5029 = vpack.c.b16 %v4141, %v4133
    %v5030 = vpack.c.b16 %v4150, %v4142
    %v5031 = vpack.c.b16 %v4151, %v4143
    %v5032 = vpack.c.b16 %v4152, %v4144
    %v5033 = vpack.c.b16 %v4153, %v4145
    %v5034 = vpack.c.b16 %v4154, %v4146
    %v5035 = vpack.c.b16 %v4155, %v4147
    %v5036 = vpack.c.b16 %v4156, %v4148
    %v5037 = vpack.c.b16 %v4157, %v4149
    %v5038 = vpack.c.b16 %v4166, %v4158
    %v5039 = vpack.c.b16 %v4167, %v4159
    %v5040 = vpack.c.b16 %v4168, %v4160
    %v5041 = vpack.c.b16 %v4169, %v4161
    %v5042 = vpack.c.b16 %v4170, %v4162
    %v5043 = vpack.c.b16 %v4171, %v4163
    %v5044 = vpack.c.b16 %v4172, %v4164
    %v5045 = vpack.c.b16 %v4173, %v4165
    %v5046 = vpack.c.b16 %v4182, %v4174
    %v5047 = vpack.c.b16 %v4183, %v4175
    %v5048 = vpack.c.b16 %v4184, %v4176
    %v5049 = vpack.c.b16 %v4185, %v4177
    %v5050 = vpack.c.b16 %v4186, %v4178
    %v5051 = vpack.c.b16 %v4187, %v4179
    %v5052 = vpack.c.b16 %v4188, %v4180
    %v5053 = vpack.c.b16 %v4189, %v4181
    %v5054 = vpack.c.b16 %v4198, %v4190
    %v5055 = vpack.c.b16 %v4199, %v4191
    %v5056 = vpack.c.b16 %v4200, %v4192
    %v5057 = vpack.c.b16 %v4201, %v4193
    %v5058 = vpack.c.b16 %v4202, %v4194
    %v5059 = vpack.c.b16 %v4203, %v4195
    %v5060 = vpack.c.b16 %v4204, %v4196
    %v5061 = vpack.c.b16 %v4205, %v4197
    %v5062 = vpack.c.b16 %v4214, %v4206
    %v5063 = vpack.c.b16 %v4215, %v4207
    %v5064 = vpack.c.b16 %v4216, %v4208
    %v5065 = vpack.c.b16 %v4217, %v4209
    %v5066 = vpack.c.b16 %v4218, %v4210
    %v5067 = vpack.c.b16 %v4219, %v4211
    %v5068 = vpack.c.b16 %v4220, %v4212
    %v5069 = vpack.c.b16 %v4221, %v4213
    %v5070 = vpack.c.b16 %v4230, %v4222
    %v5071 = vpack.c.b16 %v4231, %v4223
    %v5072 = vpack.c.b16 %v4232, %v4224
    %v5073 = vpack.c.b16 %v4233, %v4225
    %v5074 = vpack.c.b16 %v4234, %v4226
    %v5075 = vpack.c.b16 %v4235, %v4227
    %v5076 = vpack.c.b16 %v4236, %v4228
    %v5077 = vpack.c.b16 %v4237, %v4229
    %v5078 = vpack.c.b16 %v4246, %v4238
    %v5079 = vpack.c.b16 %v4247, %v4239
    %v5080 = vpack.c.b16 %v4248, %v4240
    %v5081 = vpack.c.b16 %v4249, %v4241
    %v5082 = vpack.c.b16 %v4250, %v4242
    %v5083 = vpack.c.b16 %v4251, %v4243
    %v5084 = vpack.c.b16 %v4252, %v4244
    %v5085 = vpack.c.b16 %v4253, %v4245
    %v5086 = vpack.c.b16 %v4262, %v4254
    %v5087 = vpack.c.b16 %v4263, %v4255
    %v5088 = vpack.c.b16 %v4264, %v4256
    %v5089 = vpack.c.b16 %v4265, %v4257
    %v5090 = vpack.c.b16 %v4266, %v4258
    %v5091 = vpack.c.b16 %v4267, %v4259
    %v5092 = vpack.c.b16 %v4268, %v4260
    %v5093 = vpack.c.b16 %v4269, %v4261
    %v5094 = vpack.c.b16 %v4278, %v4270
    %v5095 = vpack.c.b16 %v4279, %v4271
    %v5096 = vpack.c.b16 %v4280, %v4272
    %v5097 = vpack.c.b16 %v4281, %v4273
    %v5098 = vpack.c.b16 %v4282, %v4274
    %v5099 = vpack.c.b16 %v4283, %v4275
    %v5100 = vpack.c.b16 %v4284, %v4276
    %v5101 = vpack.c.b16 %v4285, %v4277
    %v5102 = vpack.c.b16 %v4294, %v4286
    %v5103 = vpack.c.b16 %v4295, %v4287
    %v5104 = vpack.c.b16 %v4296, %v4288
    %v5105 = vpack.c.b16 %v4297, %v4289
    %v5106 = vpack.c.b16 %v4298, %v4290
    %v5107 = vpack.c.b16 %v4299, %v4291
    %v5108 = vpack.c.b16 %v4300, %v4292
    %v5109 = vpack.c.b16 %v4301, %v4293
    %v5110 = vpack.c.b16 %v4310, %v4302
    %v5111 = vpack.c.b16 %v4311, %v4303
    %v5112 = vpack.c.b16 %v4312, %v4304
    %v5113 = vpack.c.b16 %v4313, %v4305
    %v5114 = vpack.c.b16 %v4314, %v4306
    %v5115 = vpack.c.b16 %v4315, %v4307
    %v5116 = vpack.c.b16 %v4316, %v4308
    %v5117 = vpack.c.b16 %v4317, %v4309
    %v5118 = vpack.c.b16 %v4326, %v4318
    %v5119 = vpack.c.b16 %v4327, %v4319
    %v5120 = vpack.c.b16 %v4328, %v4320
    %v5121 = vpack.c.b16 %v4329, %v4321
    %v5122 = vpack.c.b16 %v4330, %v4322
    %v5123 = vpack.c.b16 %v4331, %v4323
    %v5124 = vpack.c.b16 %v4332, %v4324
    %v5125 = vpack.c.b16 %v4333, %v4325
    %v5126 = vpack.c.b16 %v4342, %v4334
    %v5127 = vpack.c.b16 %v4343, %v4335
    %v5128 = vpack.c.b16 %v4344, %v4336
    %v5129 = vpack.c.b16 %v4345, %v4337
    %v5130 = vpack.c.b16 %v4346, %v4338
    %v5131 = vpack.c.b16 %v4347, %v4339
    %v5132 = vpack.c.b16 %v4348, %v4340
    %v5133 = vpack.c.b16 %v4349, %v4341
    %v5134 = vpack.c.b16 %v4358, %v4350
    %v5135 = vpack.c.b16 %v4359, %v4351
    %v5136 = vpack.c.b16 %v4360, %v4352
    %v5137 = vpack.c.b16 %v4361, %v4353
    %v5138 = vpack.c.b16 %v4362, %v4354
    %v5139 = vpack.c.b16 %v4363, %v4355
    %v5140 = vpack.c.b16 %v4364, %v4356
    %v5141 = vpack.c.b16 %v4365, %v4357
    %v5142 = vpack.c.b16 %v4374, %v4366
    %v5143 = vpack.c.b16 %v4375, %v4367
    %v5144 = vpack.c.b16 %v4376, %v4368
    %v5145 = vpack.c.b16 %v4377, %v4369
    %v5146 = vpack.c.b16 %v4378, %v4370
    %v5147 = vpack.c.b16 %v4379, %v4371
    %v5148 = vpack.c.b16 %v4380, %v4372
    %v5149 = vpack.c.b16 %v4381, %v4373
    %v5150 = vpack.c.b16 %v4390, %v4382
    %v5151 = vpack.c.b16 %v4391, %v4383
    %v5152 = vpack.c.b16 %v4392, %v4384
    %v5153 = vpack.c.b16 %v4393, %v4385
    %v5154 = vpack.c.b16 %v4394, %v4386
    %v5155 = vpack.c.b16 %v4395, %v4387
    %v5156 = vpack.c.b16 %v4396, %v4388
    %v5157 = vpack.c.b16 %v4397, %v4389
    %v5158 = vpack.c.b16 %v4406, %v4398
    %v5159 = vpack.c.b16 %v4407, %v4399
    %v5160 = vpack.c.b16 %v4408, %v4400
    %v5161 = vpack.c.b16 %v4409, %v4401
    %v5162 = vpack.c.b16 %v4410, %v4402
    %v5163 = vpack.c.b16 %v4411, %v4403
    %v5164 = vpack.c.b16 %v4412, %v4404
    %v5165 = vpack.c.b16 %v4413, %v4405
    %v5166 = vpack.c.b16 %v4422, %v4414
    %v5167 = vpack.c.b16 %v4423, %v4415
    %v5168 = vpack.c.b16 %v4424, %v4416
    %v5169 = vpack.c.b16 %v4425, %v4417
    %v5170 = vpack.c.b16 %v4426, %v4418
    %v5171 = vpack.c.b16 %v4427, %v4419
    %v5172 = vpack.c.b16 %v4428, %v4420
    %v5173 = vpack.c.b16 %v4429, %v4421
    %v5174 = vpack.c.b16 %v4438, %v4430
    %v5175 = vpack.c.b16 %v4439, %v4431
    %v5176 = vpack.c.b16 %v4440, %v4432
    %v5177 = vpack.c.b16 %v4441, %v4433
    %v5178 = vpack.c.b16 %v4442, %v4434
    %v5179 = vpack.c.b16 %v4443, %v4435
    %v5180 = vpack.c.b16 %v4444, %v4436
    %v5181 = vpack.c.b16 %v4445, %v4437
    %v5182 = vpack.c.b16 %v4454, %v4446
    %v5183 = vpack.c.b16 %v4455, %v4447
    %v5184 = vpack.c.b16 %v4456, %v4448
    %v5185 = vpack.c.b16 %v4457, %v4449
    %v5186 = vpack.c.b16 %v4458, %v4450
    %v5187 = vpack.c.b16 %v4459, %v4451
    %v5188 = vpack.c.b16 %v4460, %v4452
    %v5189 = vpack.c.b16 %v4461, %v4453
    %v5190 = vpack.c.b16 %v4470, %v4462
    %v5191 = vpack.c.b16 %v4471, %v4463
    %v5192 = vpack.c.b16 %v4472, %v4464
    %v5193 = vpack.c.b16 %v4473, %v4465
    %v5194 = vpack.c.b16 %v4474, %v4466
    %v5195 = vpack.c.b16 %v4475, %v4467
    %v5196 = vpack.c.b16 %v4476, %v4468
    %v5197 = vpack.c.b16 %v4477, %v4469
    %v5198 = vpack.c.b16 %v4486, %v4478
    %v5199 = vpack.c.b16 %v4487, %v4479
    %v5200 = vpack.c.b16 %v4488, %v4480
    %v5201 = vpack.c.b16 %v4489, %v4481
    %v5202 = vpack.c.b16 %v4490, %v4482
    %v5203 = vpack.c.b16 %v4491, %v4483
    %v5204 = vpack.c.b16 %v4492, %v4484
    %v5205 = vpack.c.b16 %v4493, %v4485
    %v5206 = vpack.c.b16 %v4502, %v4494
    %v5207 = vpack.c.b16 %v4503, %v4495
    %v5208 = vpack.c.b16 %v4504, %v4496
    %v5209 = vpack.c.b16 %v4505, %v4497
    %v5210 = vpack.c.b16 %v4506, %v4498
    %v5211 = vpack.c.b16 %v4507, %v4499
    %v5212 = vpack.c.b16 %v4508, %v4500
    %v5213 = vpack.c.b16 %v4509, %v4501
    %v5214 = vpack.c.b16 %v4518, %v4510
    %v5215 = vpack.c.b16 %v4519, %v4511
    %v5216 = vpack.c.b16 %v4520, %v4512
    %v5217 = vpack.c.b16 %v4521, %v4513
    %v5218 = vpack.c.b16 %v4522, %v4514
    %v5219 = vpack.c.b16 %v4523, %v4515
    %v5220 = vpack.c.b16 %v4524, %v4516
    %v5221 = vpack.c.b16 %v4525, %v4517
    %v5222 = vpack.c.b16 %v4534, %v4526
    %v5223 = vpack.c.b16 %v4535, %v4527
    %v5224 = vpack.c.b16 %v4536, %v4528
    %v5225 = vpack.c.b16 %v4537, %v4529
    %v5226 = vpack.c.b16 %v4538, %v4530
    %v5227 = vpack.c.b16 %v4539, %v4531
    %v5228 = vpack.c.b16 %v4540, %v4532
    %v5229 = vpack.c.b16 %v4541, %v4533
    %v5230 = vpack.c.b16 %v4550, %v4542
    %v5231 = vpack.c.b16 %v4551, %v4543
    %v5232 = vpack.c.b16 %v4552, %v4544
    %v5233 = vpack.c.b16 %v4553, %v4545
    %v5234 = vpack.c.b16 %v4554, %v4546
    %v5235 = vpack.c.b16 %v4555, %v4547
    %v5236 = vpack.c.b16 %v4556, %v4548
    %v5237 = vpack.c.b16 %v4557, %v4549
    %v5238 = vpack.c.b16 %v4566, %v4558
    %v5239 = vpack.c.b16 %v4567, %v4559
    %v5240 = vpack.c.b16 %v4568, %v4560
    %v5241 = vpack.c.b16 %v4569, %v4561
    %v5242 = vpack.c.b16 %v4570, %v4562
    %v5243 = vpack.c.b16 %v4571, %v4563
    %v5244 = vpack.c.b16 %v4572, %v4564
    %v5245 = vpack.c.b16 %v4573, %v4565
    %v5246 = vpack.c.b16 %v4582, %v4574
    %v5247 = vpack.c.b16 %v4583, %v4575
    %v5248 = vpack.c.b16 %v4584, %v4576
    %v5249 = vpack.c.b16 %v4585, %v4577
    %v5250 = vpack.c.b16 %v4586, %v4578
    %v5251 = vpack.c.b16 %v4587, %v4579
    %v5252 = vpack.c.b16 %v4588, %v4580
    %v5253 = vpack.c.b16 %v4589, %v4581
    %v5254 = vpack.c.b16 %v4598, %v4590
    %v5255 = vpack.c.b16 %v4599, %v4591
    %v5256 = vpack.c.b16 %v4600, %v4592
    %v5257 = vpack.c.b16 %v4601, %v4593
    %v5258 = vpack.c.b16 %v4602, %v4594
    %v5259 = vpack.c.b16 %v4603, %v4595
    %v5260 = vpack.c.b16 %v4604, %v4596
    %v5261 = vpack.c.b16 %v4605, %v4597
    %v5262 = vpack.c.b16 %v4614, %v4606
    %v5263 = vpack.c.b16 %v4615, %v4607
    %v5264 = vpack.c.b16 %v4616, %v4608
    %v5265 = vpack.c.b16 %v4617, %v4609
    %v5266 = vpack.c.b16 %v4618, %v4610
    %v5267 = vpack.c.b16 %v4619, %v4611
    %v5268 = vpack.c.b16 %v4620, %v4612
    %v5269 = vpack.c.b16 %v4621, %v4613
    %v5270 = vpack.c.b16 %v4630, %v4622
    %v5271 = vpack.c.b16 %v4631, %v4623
    %v5272 = vpack.c.b16 %v4632, %v4624
    %v5273 = vpack.c.b16 %v4633, %v4625
    %v5274 = vpack.c.b16 %v4634, %v4626
    %v5275 = vpack.c.b16 %v4635, %v4627
    %v5276 = vpack.c.b16 %v4636, %v4628
    %v5277 = vpack.c.b16 %v4637, %v4629
    %v5278 = vpack.c.b16 %v4646, %v4638
    %v5279 = vpack.c.b16 %v4647, %v4639
    %v5280 = vpack.c.b16 %v4648, %v4640
    %v5281 = vpack.c.b16 %v4649, %v4641
    %v5282 = vpack.c.b16 %v4650, %v4642
    %v5283 = vpack.c.b16 %v4651, %v4643
    %v5284 = vpack.c.b16 %v4652, %v4644
    %v5285 = vpack.c.b16 %v4653, %v4645
    %v5286 = vpack.c.b16 %v4662, %v4654
    %v5287 = vpack.c.b16 %v4663, %v4655
    %v5288 = vpack.c.b16 %v4664, %v4656
    %v5289 = vpack.c.b16 %v4665, %v4657
    %v5290 = vpack.c.b16 %v4666, %v4658
    %v5291 = vpack.c.b16 %v4667, %v4659
    %v5292 = vpack.c.b16 %v4668, %v4660
    %v5293 = vpack.c.b16 %v4669, %v4661
    %v5294 = vpack.c.b16 %v4678, %v4670
    %v5295 = vpack.c.b16 %v4679, %v4671
    %v5296 = vpack.c.b16 %v4680, %v4672
    %v5297 = vpack.c.b16 %v4681, %v4673
    %v5298 = vpack.c.b16 %v4682, %v4674
    %v5299 = vpack.c.b16 %v4683, %v4675
    %v5300 = vpack.c.b16 %v4684, %v4676
    %v5301 = vpack.c.b16 %v4685, %v4677
    %v5302 = vpack.c.b16 %v4694, %v4686
    %v5303 = vpack.c.b16 %v4695, %v4687
    %v5304 = vpack.c.b16 %v4696, %v4688
    %v5305 = vpack.c.b16 %v4697, %v4689
    %v5306 = vpack.c.b16 %v4698, %v4690
    %v5307 = vpack.c.b16 %v4699, %v4691
    %v5308 = vpack.c.b16 %v4700, %v4692
    %v5309 = vpack.c.b16 %v4701, %v4693
    %v5310 = vpack.c.b16 %v4710, %v4702
    %v5311 = vpack.c.b16 %v4711, %v4703
    %v5312 = vpack.c.b16 %v4712, %v4704
    %v5313 = vpack.c.b16 %v4713, %v4705
    %v5314 = vpack.c.b16 %v4714, %v4706
    %v5315 = vpack.c.b16 %v4715, %v4707
    %v5316 = vpack.c.b16 %v4716, %v4708
    %v5317 = vpack.c.b16 %v4717, %v4709
    %v5318 = vpack.c.b16 %v4726, %v4718
    %v5319 = vpack.c.b16 %v4727, %v4719
    %v5320 = vpack.c.b16 %v4728, %v4720
    %v5321 = vpack.c.b16 %v4729, %v4721
    %v5322 = vpack.c.b16 %v4730, %v4722
    %v5323 = vpack.c.b16 %v4731, %v4723
    %v5324 = vpack.c.b16 %v4732, %v4724
    %v5325 = vpack.c.b16 %v4733, %v4725
    %v5326 = vpack.c.b16 %v4742, %v4734
    %v5327 = vpack.c.b16 %v4743, %v4735
    %v5328 = vpack.c.b16 %v4744, %v4736
    %v5329 = vpack.c.b16 %v4745, %v4737
    %v5330 = vpack.c.b16 %v4746, %v4738
    %v5331 = vpack.c.b16 %v4747, %v4739
    %v5332 = vpack.c.b16 %v4748, %v4740
    %v5333 = vpack.c.b16 %v4749, %v4741
    %v5334 = vpack.c.b16 %v4758, %v4750
    %v5335 = vpack.c.b16 %v4759, %v4751
    %v5336 = vpack.c.b16 %v4760, %v4752
    %v5337 = vpack.c.b16 %v4761, %v4753
    %v5338 = vpack.c.b16 %v4762, %v4754
    %v5339 = vpack.c.b16 %v4763, %v4755
    %v5340 = vpack.c.b16 %v4764, %v4756
    %v5341 = vpack.c.b16 %v4765, %v4757
    %v5342 = vpack.c.b16 %v4774, %v4766
    %v5343 = vpack.c.b16 %v4775, %v4767
    %v5344 = vpack.c.b16 %v4776, %v4768
    %v5345 = vpack.c.b16 %v4777, %v4769
    %v5346 = vpack.c.b16 %v4778, %v4770
    %v5347 = vpack.c.b16 %v4779, %v4771
    %v5348 = vpack.c.b16 %v4780, %v4772
    %v5349 = vpack.c.b16 %v4781, %v4773
    %v5350 = vpack.c.b16 %v4790, %v4782
    %v5351 = vpack.c.b16 %v4791, %v4783
    %v5352 = vpack.c.b16 %v4792, %v4784
    %v5353 = vpack.c.b16 %v4793, %v4785
    %v5354 = vpack.c.b16 %v4794, %v4786
    %v5355 = vpack.c.b16 %v4795, %v4787
    %v5356 = vpack.c.b16 %v4796, %v4788
    %v5357 = vpack.c.b16 %v4797, %v4789
    %v5358 = vpack.c.b16 %v4806, %v4798
    %v5359 = vpack.c.b16 %v4807, %v4799
    %v5360 = vpack.c.b16 %v4808, %v4800
    %v5361 = vpack.c.b16 %v4809, %v4801
    %v5362 = vpack.c.b16 %v4810, %v4802
    %v5363 = vpack.c.b16 %v4811, %v4803
    %v5364 = vpack.c.b16 %v4812, %v4804
    %v5365 = vpack.c.b16 %v4813, %v4805
    %v5366 = vpack.c.b16 %v4822, %v4814
    %v5367 = vpack.c.b16 %v4823, %v4815
    %v5368 = vpack.c.b16 %v4824, %v4816
    %v5369 = vpack.c.b16 %v4825, %v4817
    %v5370 = vpack.c.b16 %v4826, %v4818
    %v5371 = vpack.c.b16 %v4827, %v4819
    %v5372 = vpack.c.b16 %v4828, %v4820
    %v5373 = vpack.c.b16 %v4829, %v4821
    %v5374 = vpack.c.b16 %v4838, %v4830
    %v5375 = vpack.c.b16 %v4839, %v4831
    %v5376 = vpack.c.b16 %v4840, %v4832
    %v5377 = vpack.c.b16 %v4841, %v4833
    %v5378 = vpack.c.b16 %v4842, %v4834
    %v5379 = vpack.c.b16 %v4843, %v4835
    %v5380 = vpack.c.b16 %v4844, %v4836
    %v5381 = vpack.c.b16 %v4845, %v4837
    %v5382 = vpack.c.b16 %v4854, %v4846
    %v5383 = vpack.c.b16 %v4855, %v4847
    %v5384 = vpack.c.b16 %v4856, %v4848
    %v5385 = vpack.c.b16 %v4857, %v4849
    %v5386 = vpack.c.b16 %v4858, %v4850
    %v5387 = vpack.c.b16 %v4859, %v4851
    %v5388 = vpack.c.b16 %v4860, %v4852
    %v5389 = vpack.c.b16 %v4861, %v4853
    %v5390 = vpack.c.b16 %v4870, %v4862
    %v5391 = vpack.c.b16 %v4871, %v4863
    %v5392 = vpack.c.b16 %v4872, %v4864
    %v5393 = vpack.c.b16 %v4873, %v4865
    %v5394 = vpack.c.b16 %v4874, %v4866
    %v5395 = vpack.c.b16 %v4875, %v4867
    %v5396 = vpack.c.b16 %v4876, %v4868
    %v5397 = vpack.c.b16 %v4877, %v4869
    %v5398 = vpack.c.b16 %v4886, %v4878
    %v5399 = vpack.c.b16 %v4887, %v4879
    %v5400 = vpack.c.b16 %v4888, %v4880
    %v5401 = vpack.c.b16 %v4889, %v4881
    %v5402 = vpack.c.b16 %v4890, %v4882
    %v5403 = vpack.c.b16 %v4891, %v4883
    %v5404 = vpack.c.b16 %v4892, %v4884
    %v5405 = vpack.c.b16 %v4893, %v4885
    %5918 = vmatprep.subr.bf16.mxu0 %v4895
    %5919 = vmatpush1.bf16.msra.mxu0 %v4894
    %5920 = vmatprep.subr.bf16.mxu0 %v4903
    %5921 = vmatpush1.bf16.msra.mxu0 %v4902
    %5922 = vmatprep.subr.bf16.mxu0 %v4911
    %5923 = vmatpush1.bf16.msra.mxu0 %v4910
    %5924 = vmatprep.subr.bf16.mxu0 %v4919
    %5925 = vmatpush1.bf16.msra.mxu0 %v4918
    %5926 = vmatprep.subr.bf16.mxu0 %v4927
    %5927 = vmatpush1.bf16.msra.mxu0 %v4926
    %5928 = vmatprep.subr.bf16.mxu0 %v4935
    %5929 = vmatpush1.bf16.msra.mxu0 %v4934
    %5930 = vmatprep.subr.bf16.mxu0 %v4943
    %5931 = vmatpush1.bf16.msra.mxu0 %v4942
    %5932 = vmatprep.subr.bf16.mxu0 %v4951
    %5933 = vmatpush1.bf16.msra.mxu0 %v4950
    %5934 = vmatprep.subr.bf16.mxu0 %v4959
    %5935 = vmatpush1.bf16.msra.mxu0 %v4958
    %5936 = vmatprep.subr.bf16.mxu0 %v4967
    %5937 = vmatpush1.bf16.msra.mxu0 %v4966
    %5938 = vmatprep.subr.bf16.mxu0 %v4975
    %5939 = vmatpush1.bf16.msra.mxu0 %v4974
    %5940 = vmatprep.subr.bf16.mxu0 %v4983
    %5941 = vmatpush1.bf16.msra.mxu0 %v4982
    %5942 = vmatprep.subr.bf16.mxu0 %v4991
    %5943 = vmatpush1.bf16.msra.mxu0 %v4990
    %5944 = vmatprep.subr.bf16.mxu0 %v4999
    %5945 = vmatpush1.bf16.msra.mxu0 %v4998
    %5946 = vmatprep.subr.bf16.mxu0 %v5007
    %5947 = vmatpush1.bf16.msra.mxu0 %v5006
    %5948 = vmatprep.subr.bf16.mxu0 %v5015
    %5949 = vmatpush1.bf16.msra.mxu0 %v5014
    %5950 = vmatprep.mubr.bf16.mxu0 %v2797
    %5951 = vmatmul.mubr.bf16.gmra.mrb[0].mxu0 %v2796
    %v5952 = vpop.f32.mrb[0].mxu0
    %v5953 = vadd.f32 %v3321, %v5952
    %v5954 = vpop.f32.mrb[0].mxu0
    %v5955 = vadd.f32 %v3325, %v5954
    %v5956 = vpop.f32.mrb[0].mxu0
    %v5957 = vpop.f32.mrb[0].mxu0
    %5958 = vdwg.mxu0
    %5959 = vmatprep.subr.bf16.mxu0 %v5023
    %5960 = vmatpush1.bf16.msra.mxu0 %v5022
    %5961 = vmatprep.subr.bf16.mxu0 %v5031
    %5962 = vmatpush1.bf16.msra.mxu0 %v5030
    %5963 = vmatprep.subr.bf16.mxu0 %v5039
    %5964 = vmatpush1.bf16.msra.mxu0 %v5038
    %5965 = vmatprep.subr.bf16.mxu0 %v5047
    %5966 = vmatpush1.bf16.msra.mxu0 %v5046
    %5967 = vmatprep.subr.bf16.mxu0 %v5055
    %5968 = vmatpush1.bf16.msra.mxu0 %v5054
    %5969 = vmatprep.subr.bf16.mxu0 %v5063
    %5970 = vmatpush1.bf16.msra.mxu0 %v5062
    %5971 = vmatprep.subr.bf16.mxu0 %v5071
    %5972 = vmatpush1.bf16.msra.mxu0 %v5070
    %5973 = vmatprep.subr.bf16.mxu0 %v5079
    %5974 = vmatpush1.bf16.msra.mxu0 %v5078
    %5975 = vmatprep.subr.bf16.mxu0 %v5087
    %5976 = vmatpush1.bf16.msra.mxu0 %v5086
    %5977 = vmatprep.subr.bf16.mxu0 %v5095
    %5978 = vmatpush1.bf16.msra.mxu0 %v5094
    %5979 = vmatprep.subr.bf16.mxu0 %v5103
    %5980 = vmatpush1.bf16.msra.mxu0 %v5102
    %5981 = vmatprep.subr.bf16.mxu0 %v5111
    %5982 = vmatpush1.bf16.msra.mxu0 %v5110
    %5983 = vmatprep.subr.bf16.mxu0 %v5119
    %5984 = vmatpush1.bf16.msra.mxu0 %v5118
    %5985 = vmatprep.subr.bf16.mxu0 %v5127
    %5986 = vmatpush1.bf16.msra.mxu0 %v5126
    %5987 = vmatprep.subr.bf16.mxu0 %v5135
    %5988 = vmatpush1.bf16.msra.mxu0 %v5134
    %5989 = vmatprep.subr.bf16.mxu0 %v5143
    %5990 = vmatpush1.bf16.msra.mxu0 %v5142
    %5991 = vmatprep.mubr.bf16.mxu0 %v2799
    %5992 = vmatmul.mubr.bf16.gmra.mrb[0].mxu0 %v2798
    %v5993 = vpop.f32.mrb[0].mxu0
    %v5994 = vadd.f32 %v5953, %v5993
    %v5995 = vpop.f32.mrb[0].mxu0
    %v5996 = vadd.f32 %v5955, %v5995
    %v5997 = vpop.f32.mrb[0].mxu0
    %v5998 = vpop.f32.mrb[0].mxu0
    %5999 = vdwg.mxu0
    %6000 = vmatprep.subr.bf16.mxu0 %v5151
    %6001 = vmatpush1.bf16.msra.mxu0 %v5150
    %6002 = vmatprep.subr.bf16.mxu0 %v5159
    %6003 = vmatpush1.bf16.msra.mxu0 %v5158
    %6004 = vmatprep.subr.bf16.mxu0 %v5167
    %6005 = vmatpush1.bf16.msra.mxu0 %v5166
    %6006 = vmatprep.subr.bf16.mxu0 %v5175
    %6007 = vmatpush1.bf16.msra.mxu0 %v5174
    %6008 = vmatprep.subr.bf16.mxu0 %v5183
    %6009 = vmatpush1.bf16.msra.mxu0 %v5182
    %6010 = vmatprep.subr.bf16.mxu0 %v5191
    %6011 = vmatpush1.bf16.msra.mxu0 %v5190
    %6012 = vmatprep.subr.bf16.mxu0 %v5199
    %6013 = vmatpush1.bf16.msra.mxu0 %v5198
    %6014 = vmatprep.subr.bf16.mxu0 %v5207
    %6015 = vmatpush1.bf16.msra.mxu0 %v5206
    %6016 = vmatprep.subr.bf16.mxu0 %v5215
    %6017 = vmatpush1.bf16.msra.mxu0 %v5214
    %6018 = vmatprep.subr.bf16.mxu0 %v5223
    %6019 = vmatpush1.bf16.msra.mxu0 %v5222
    %6020 = vmatprep.subr.bf16.mxu0 %v5231
    %6021 = vmatpush1.bf16.msra.mxu0 %v5230
    %6022 = vmatprep.subr.bf16.mxu0 %v5239
    %6023 = vmatpush1.bf16.msra.mxu0 %v5238
    %6024 = vmatprep.subr.bf16.mxu0 %v5247
    %6025 = vmatpush1.bf16.msra.mxu0 %v5246
    %6026 = vmatprep.subr.bf16.mxu0 %v5255
    %6027 = vmatpush1.bf16.msra.mxu0 %v5254
    %6028 = vmatprep.subr.bf16.mxu0 %v5263
    %6029 = vmatpush1.bf16.msra.mxu0 %v5262
    %6030 = vmatprep.subr.bf16.mxu0 %v5271
    %6031 = vmatpush1.bf16.msra.mxu0 %v5270
    %6032 = vmatprep.mubr.bf16.mxu0 %v2801
    %6033 = vmatmul.mubr.bf16.gmra.mrb[0].mxu0 %v2800
    %v6034 = vpop.f32.mrb[0].mxu0
    %v6035 = vadd.f32 %v5994, %v6034
    %v6036 = vpop.f32.mrb[0].mxu0
    %v6037 = vadd.f32 %v5996, %v6036
    %v6038 = vpop.f32.mrb[0].mxu0
    %v6039 = vpop.f32.mrb[0].mxu0
    %6040 = vdwg.mxu0
    %6041 = vmatprep.subr.bf16.mxu0 %v5279
    %6042 = vmatpush1.bf16.msra.mxu0 %v5278
    %6043 = vmatprep.subr.bf16.mxu0 %v5287
    %6044 = vmatpush1.bf16.msra.mxu0 %v5286
    %6045 = vmatprep.subr.bf16.mxu0 %v5295
    %6046 = vmatpush1.bf16.msra.mxu0 %v5294
    %6047 = vmatprep.subr.bf16.mxu0 %v5303
    %6048 = vmatpush1.bf16.msra.mxu0 %v5302
    %6049 = vmatprep.subr.bf16.mxu0 %v5311
    %6050 = vmatpush1.bf16.msra.mxu0 %v5310
    %6051 = vmatprep.subr.bf16.mxu0 %v5319
    %6052 = vmatpush1.bf16.msra.mxu0 %v5318
    %6053 = vmatprep.subr.bf16.mxu0 %v5327
    %6054 = vmatpush1.bf16.msra.mxu0 %v5326
    %6055 = vmatprep.subr.bf16.mxu0 %v5335
    %6056 = vmatpush1.bf16.msra.mxu0 %v5334
    %6057 = vmatprep.subr.bf16.mxu0 %v5343
    %6058 = vmatpush1.bf16.msra.mxu0 %v5342
    %6059 = vmatprep.subr.bf16.mxu0 %v5351
    %6060 = vmatpush1.bf16.msra.mxu0 %v5350
    %6061 = vmatprep.subr.bf16.mxu0 %v5359
    %6062 = vmatpush1.bf16.msra.mxu0 %v5358
    %6063 = vmatprep.subr.bf16.mxu0 %v5367
    %6064 = vmatpush1.bf16.msra.mxu0 %v5366
    %6065 = vmatprep.subr.bf16.mxu0 %v5375
    %6066 = vmatpush1.bf16.msra.mxu0 %v5374
    %6067 = vmatprep.subr.bf16.mxu0 %v5383
    %6068 = vmatpush1.bf16.msra.mxu0 %v5382
    %6069 = vmatprep.subr.bf16.mxu0 %v5391
    %6070 = vmatpush1.bf16.msra.mxu0 %v5390
    %6071 = vmatprep.subr.bf16.mxu0 %v5399
    %6072 = vmatpush1.bf16.msra.mxu0 %v5398
    %6073 = vmatprep.mubr.bf16.mxu0 %v2803
    %6074 = vmatmul.mubr.bf16.gmra.mrb[0].mxu0 %v2802
    %v6075 = vpop.f32.mrb[0].mxu0
    %v6076 = vadd.f32 %v6035, %v6075
    %v6077 = vpop.f32.mrb[0].mxu0
    %v6078 = vadd.f32 %v6037, %v6077
    %v6079 = vpop.f32.mrb[0].mxu0
    %v6080 = vpop.f32.mrb[0].mxu0
    %6081 = vdwg.mxu0
    %6082 = vmatprep.subr.bf16.mxu0 %v4897
    %6083 = vmatpush1.bf16.msra.mxu0 %v4896
    %6084 = vmatprep.subr.bf16.mxu0 %v4905
    %6085 = vmatpush1.bf16.msra.mxu0 %v4904
    %6086 = vmatprep.subr.bf16.mxu0 %v4913
    %6087 = vmatpush1.bf16.msra.mxu0 %v4912
    %6088 = vmatprep.subr.bf16.mxu0 %v4921
    %6089 = vmatpush1.bf16.msra.mxu0 %v4920
    %6090 = vmatprep.subr.bf16.mxu0 %v4929
    %6091 = vmatpush1.bf16.msra.mxu0 %v4928
    %6092 = vmatprep.subr.bf16.mxu0 %v4937
    %6093 = vmatpush1.bf16.msra.mxu0 %v4936
    %6094 = vmatprep.subr.bf16.mxu0 %v4945
    %6095 = vmatpush1.bf16.msra.mxu0 %v4944
    %6096 = vmatprep.subr.bf16.mxu0 %v4953
    %6097 = vmatpush1.bf16.msra.mxu0 %v4952
    %6098 = vmatprep.subr.bf16.mxu0 %v4961
    %6099 = vmatpush1.bf16.msra.mxu0 %v4960
    %6100 = vmatprep.subr.bf16.mxu0 %v4969
    %6101 = vmatpush1.bf16.msra.mxu0 %v4968
    %6102 = vmatprep.subr.bf16.mxu0 %v4977
    %6103 = vmatpush1.bf16.msra.mxu0 %v4976
    %6104 = vmatprep.subr.bf16.mxu0 %v4985
    %6105 = vmatpush1.bf16.msra.mxu0 %v4984
    %6106 = vmatprep.subr.bf16.mxu0 %v4993
    %6107 = vmatpush1.bf16.msra.mxu0 %v4992
    %6108 = vmatprep.subr.bf16.mxu0 %v5001
    %6109 = vmatpush1.bf16.msra.mxu0 %v5000
    %6110 = vmatprep.subr.bf16.mxu0 %v5009
    %6111 = vmatpush1.bf16.msra.mxu0 %v5008
    %6112 = vmatprep.subr.bf16.mxu0 %v5017
    %6113 = vmatpush1.bf16.msra.mxu0 %v5016
    %6114 = vmatprep.mubr.bf16.mxu0 %v2797
    %6115 = vmatmul.mubr.bf16.gmra.mrb[0].mxu0 %v2796
    %v6116 = vpop.f32.mrb[0].mxu0
    %v6117 = vadd.f32 %v3329, %v6116
    %v6118 = vpop.f32.mrb[0].mxu0
    %v6119 = vadd.f32 %v3333, %v6118
    %v6120 = vpop.f32.mrb[0].mxu0
    %v6121 = vpop.f32.mrb[0].mxu0
    %6122 = vdwg.mxu0
    %6123 = vmatprep.subr.bf16.mxu0 %v5025
    %6124 = vmatpush1.bf16.msra.mxu0 %v5024
    %6125 = vmatprep.subr.bf16.mxu0 %v5033
    %6126 = vmatpush1.bf16.msra.mxu0 %v5032
    %6127 = vmatprep.subr.bf16.mxu0 %v5041
    %6128 = vmatpush1.bf16.msra.mxu0 %v5040
    %6129 = vmatprep.subr.bf16.mxu0 %v5049
    %6130 = vmatpush1.bf16.msra.mxu0 %v5048
    %6131 = vmatprep.subr.bf16.mxu0 %v5057
    %6132 = vmatpush1.bf16.msra.mxu0 %v5056
    %6133 = vmatprep.subr.bf16.mxu0 %v5065
    %6134 = vmatpush1.bf16.msra.mxu0 %v5064
    %6135 = vmatprep.subr.bf16.mxu0 %v5073
    %6136 = vmatpush1.bf16.msra.mxu0 %v5072
    %6137 = vmatprep.subr.bf16.mxu0 %v5081
    %6138 = vmatpush1.bf16.msra.mxu0 %v5080
    %6139 = vmatprep.subr.bf16.mxu0 %v5089
    %6140 = vmatpush1.bf16.msra.mxu0 %v5088
    %6141 = vmatprep.subr.bf16.mxu0 %v5097
    %6142 = vmatpush1.bf16.msra.mxu0 %v5096
    %6143 = vmatprep.subr.bf16.mxu0 %v5105
    %6144 = vmatpush1.bf16.msra.mxu0 %v5104
    %6145 = vmatprep.subr.bf16.mxu0 %v5113
    %6146 = vmatpush1.bf16.msra.mxu0 %v5112
    %6147 = vmatprep.subr.bf16.mxu0 %v5121
    %6148 = vmatpush1.bf16.msra.mxu0 %v5120
    %6149 = vmatprep.subr.bf16.mxu0 %v5129
    %6150 = vmatpush1.bf16.msra.mxu0 %v5128
    %6151 = vmatprep.subr.bf16.mxu0 %v5137
    %6152 = vmatpush1.bf16.msra.mxu0 %v5136
    %6153 = vmatprep.subr.bf16.mxu0 %v5145
    %6154 = vmatpush1.bf16.msra.mxu0 %v5144
    %6155 = vmatprep.mubr.bf16.mxu0 %v2799
    %6156 = vmatmul.mubr.bf16.gmra.mrb[0].mxu0 %v2798
    %v6157 = vpop.f32.mrb[0].mxu0
    %v6158 = vadd.f32 %v6117, %v6157
    %v6159 = vpop.f32.mrb[0].mxu0
    %v6160 = vadd.f32 %v6119, %v6159
    %v6161 = vpop.f32.mrb[0].mxu0
    %v6162 = vpop.f32.mrb[0].mxu0
    %6163 = vdwg.mxu0
    %6164 = vmatprep.subr.bf16.mxu0 %v5153
    %6165 = vmatpush1.bf16.msra.mxu0 %v5152
    %6166 = vmatprep.subr.bf16.mxu0 %v5161
    %6167 = vmatpush1.bf16.msra.mxu0 %v5160
    %6168 = vmatprep.subr.bf16.mxu0 %v5169
    %6169 = vmatpush1.bf16.msra.mxu0 %v5168
    %6170 = vmatprep.subr.bf16.mxu0 %v5177
    %6171 = vmatpush1.bf16.msra.mxu0 %v5176
    %6172 = vmatprep.subr.bf16.mxu0 %v5185
    %6173 = vmatpush1.bf16.msra.mxu0 %v5184
    %6174 = vmatprep.subr.bf16.mxu0 %v5193
    %6175 = vmatpush1.bf16.msra.mxu0 %v5192
    %6176 = vmatprep.subr.bf16.mxu0 %v5201
    %6177 = vmatpush1.bf16.msra.mxu0 %v5200
    %6178 = vmatprep.subr.bf16.mxu0 %v5209
    %6179 = vmatpush1.bf16.msra.mxu0 %v5208
    %6180 = vmatprep.subr.bf16.mxu0 %v5217
    %6181 = vmatpush1.bf16.msra.mxu0 %v5216
    %6182 = vmatprep.subr.bf16.mxu0 %v5225
    %6183 = vmatpush1.bf16.msra.mxu0 %v5224
    %6184 = vmatprep.subr.bf16.mxu0 %v5233
    %6185 = vmatpush1.bf16.msra.mxu0 %v5232
    %6186 = vmatprep.subr.bf16.mxu0 %v5241
    %6187 = vmatpush1.bf16.msra.mxu0 %v5240
    %6188 = vmatprep.subr.bf16.mxu0 %v5249
    %6189 = vmatpush1.bf16.msra.mxu0 %v5248
    %6190 = vmatprep.subr.bf16.mxu0 %v5257
    %6191 = vmatpush1.bf16.msra.mxu0 %v5256
    %6192 = vmatprep.subr.bf16.mxu0 %v5265
    %6193 = vmatpush1.bf16.msra.mxu0 %v5264
    %6194 = vmatprep.subr.bf16.mxu0 %v5273
    %6195 = vmatpush1.bf16.msra.mxu0 %v5272
    %6196 = vmatprep.mubr.bf16.mxu0 %v2801
    %6197 = vmatmul.mubr.bf16.gmra.mrb[0].mxu0 %v2800
    %v6198 = vpop.f32.mrb[0].mxu0
    %v6199 = vadd.f32 %v6158, %v6198
    %v6200 = vpop.f32.mrb[0].mxu0
    %v6201 = vadd.f32 %v6160, %v6200
    %v6202 = vpop.f32.mrb[0].mxu0
    %v6203 = vpop.f32.mrb[0].mxu0
    %6204 = vdwg.mxu0
    %6205 = vmatprep.subr.bf16.mxu0 %v5281
    %6206 = vmatpush1.bf16.msra.mxu0 %v5280
    %6207 = vmatprep.subr.bf16.mxu0 %v5289
    %6208 = vmatpush1.bf16.msra.mxu0 %v5288
    %6209 = vmatprep.subr.bf16.mxu0 %v5297
    %6210 = vmatpush1.bf16.msra.mxu0 %v5296
    %6211 = vmatprep.subr.bf16.mxu0 %v5305
    %6212 = vmatpush1.bf16.msra.mxu0 %v5304
    %6213 = vmatprep.subr.bf16.mxu0 %v5313
    %6214 = vmatpush1.bf16.msra.mxu0 %v5312
    %6215 = vmatprep.subr.bf16.mxu0 %v5321
    %6216 = vmatpush1.bf16.msra.mxu0 %v5320
    %6217 = vmatprep.subr.bf16.mxu0 %v5329
    %6218 = vmatpush1.bf16.msra.mxu0 %v5328
    %6219 = vmatprep.subr.bf16.mxu0 %v5337
    %6220 = vmatpush1.bf16.msra.mxu0 %v5336
    %6221 = vmatprep.subr.bf16.mxu0 %v5345
    %6222 = vmatpush1.bf16.msra.mxu0 %v5344
    %6223 = vmatprep.subr.bf16.mxu0 %v5353
    %6224 = vmatpush1.bf16.msra.mxu0 %v5352
    %6225 = vmatprep.subr.bf16.mxu0 %v5361
    %6226 = vmatpush1.bf16.msra.mxu0 %v5360
    %6227 = vmatprep.subr.bf16.mxu0 %v5369
    %6228 = vmatpush1.bf16.msra.mxu0 %v5368
    %6229 = vmatprep.subr.bf16.mxu0 %v5377
    %6230 = vmatpush1.bf16.msra.mxu0 %v5376
    %6231 = vmatprep.subr.bf16.mxu0 %v5385
    %6232 = vmatpush1.bf16.msra.mxu0 %v5384
    %6233 = vmatprep.subr.bf16.mxu0 %v5393
    %6234 = vmatpush1.bf16.msra.mxu0 %v5392
    %6235 = vmatprep.subr.bf16.mxu0 %v5401
    %6236 = vmatpush1.bf16.msra.mxu0 %v5400
    %6237 = vmatprep.mubr.bf16.mxu0 %v2803
    %6238 = vmatmul.mubr.bf16.gmra.mrb[0].mxu0 %v2802
    %v6239 = vpop.f32.mrb[0].mxu0
    %v6240 = vadd.f32 %v6199, %v6239
    %v6241 = vpop.f32.mrb[0].mxu0
    %v6242 = vadd.f32 %v6201, %v6241
    %v6243 = vpop.f32.mrb[0].mxu0
    %v6244 = vpop.f32.mrb[0].mxu0
    %6245 = vdwg.mxu0
    %6246 = vmatprep.subr.bf16.mxu0 %v4899
    %6247 = vmatpush1.bf16.msra.mxu0 %v4898
    %6248 = vmatprep.subr.bf16.mxu0 %v4907
    %6249 = vmatpush1.bf16.msra.mxu0 %v4906
    %6250 = vmatprep.subr.bf16.mxu0 %v4915
    %6251 = vmatpush1.bf16.msra.mxu0 %v4914
    %6252 = vmatprep.subr.bf16.mxu0 %v4923
    %6253 = vmatpush1.bf16.msra.mxu0 %v4922
    %6254 = vmatprep.subr.bf16.mxu0 %v4931
    %6255 = vmatpush1.bf16.msra.mxu0 %v4930
    %6256 = vmatprep.subr.bf16.mxu0 %v4939
    %6257 = vmatpush1.bf16.msra.mxu0 %v4938
    %6258 = vmatprep.subr.bf16.mxu0 %v4947
    %6259 = vmatpush1.bf16.msra.mxu0 %v4946
    %6260 = vmatprep.subr.bf16.mxu0 %v4955
    %6261 = vmatpush1.bf16.msra.mxu0 %v4954
    %6262 = vmatprep.subr.bf16.mxu0 %v4963
    %6263 = vmatpush1.bf16.msra.mxu0 %v4962
    %6264 = vmatprep.subr.bf16.mxu0 %v4971
    %6265 = vmatpush1.bf16.msra.mxu0 %v4970
    %6266 = vmatprep.subr.bf16.mxu0 %v4979
    %6267 = vmatpush1.bf16.msra.mxu0 %v4978
    %6268 = vmatprep.subr.bf16.mxu0 %v4987
    %6269 = vmatpush1.bf16.msra.mxu0 %v4986
    %6270 = vmatprep.subr.bf16.mxu0 %v4995
    %6271 = vmatpush1.bf16.msra.mxu0 %v4994
    %6272 = vmatprep.subr.bf16.mxu0 %v5003
    %6273 = vmatpush1.bf16.msra.mxu0 %v5002
    %6274 = vmatprep.subr.bf16.mxu0 %v5011
    %6275 = vmatpush1.bf16.msra.mxu0 %v5010
    %6276 = vmatprep.subr.bf16.mxu0 %v5019
    %6277 = vmatpush1.bf16.msra.mxu0 %v5018
    %6278 = vmatprep.mubr.bf16.mxu0 %v2797
    %6279 = vmatmul.mubr.bf16.gmra.mrb[0].mxu0 %v2796
    %v6280 = vpop.f32.mrb[0].mxu0
    %v6281 = vadd.f32 %v3337, %v6280
    %v6282 = vpop.f32.mrb[0].mxu0
    %v6283 = vadd.f32 %v3341, %v6282
    %v6284 = vpop.f32.mrb[0].mxu0
    %v6285 = vpop.f32.mrb[0].mxu0
    %6286 = vdwg.mxu0
    %6287 = vmatprep.subr.bf16.mxu0 %v5027
    %6288 = vmatpush1.bf16.msra.mxu0 %v5026
    %6289 = vmatprep.subr.bf16.mxu0 %v5035
    %6290 = vmatpush1.bf16.msra.mxu0 %v5034
    %6291 = vmatprep.subr.bf16.mxu0 %v5043
    %6292 = vmatpush1.bf16.msra.mxu0 %v5042
    %6293 = vmatprep.subr.bf16.mxu0 %v5051
    %6294 = vmatpush1.bf16.msra.mxu0 %v5050
    %6295 = vmatprep.subr.bf16.mxu0 %v5059
    %6296 = vmatpush1.bf16.msra.mxu0 %v5058
    %6297 = vmatprep.subr.bf16.mxu0 %v5067
    %6298 = vmatpush1.bf16.msra.mxu0 %v5066
    %6299 = vmatprep.subr.bf16.mxu0 %v5075
    %6300 = vmatpush1.bf16.msra.mxu0 %v5074
    %6301 = vmatprep.subr.bf16.mxu0 %v5083
    %6302 = vmatpush1.bf16.msra.mxu0 %v5082
    %6303 = vmatprep.subr.bf16.mxu0 %v5091
    %6304 = vmatpush1.bf16.msra.mxu0 %v5090
    %6305 = vmatprep.subr.bf16.mxu0 %v5099
    %6306 = vmatpush1.bf16.msra.mxu0 %v5098
    %6307 = vmatprep.subr.bf16.mxu0 %v5107
    %6308 = vmatpush1.bf16.msra.mxu0 %v5106
    %6309 = vmatprep.subr.bf16.mxu0 %v5115
    %6310 = vmatpush1.bf16.msra.mxu0 %v5114
    %6311 = vmatprep.subr.bf16.mxu0 %v5123
    %6312 = vmatpush1.bf16.msra.mxu0 %v5122
    %6313 = vmatprep.subr.bf16.mxu0 %v5131
    %6314 = vmatpush1.bf16.msra.mxu0 %v5130
    %6315 = vmatprep.subr.bf16.mxu0 %v5139
    %6316 = vmatpush1.bf16.msra.mxu0 %v5138
    %6317 = vmatprep.subr.bf16.mxu0 %v5147
    %6318 = vmatpush1.bf16.msra.mxu0 %v5146
    %6319 = vmatprep.mubr.bf16.mxu0 %v2799
    %6320 = vmatmul.mubr.bf16.gmra.mrb[0].mxu0 %v2798
    %v6321 = vpop.f32.mrb[0].mxu0
    %v6322 = vadd.f32 %v6281, %v6321
    %v6323 = vpop.f32.mrb[0].mxu0
    %v6324 = vadd.f32 %v6283, %v6323
    %v6325 = vpop.f32.mrb[0].mxu0
    %v6326 = vpop.f32.mrb[0].mxu0
    %6327 = vdwg.mxu0
    %6328 = vmatprep.subr.bf16.mxu0 %v5155
    %6329 = vmatpush1.bf16.msra.mxu0 %v5154
    %6330 = vmatprep.subr.bf16.mxu0 %v5163
    %6331 = vmatpush1.bf16.msra.mxu0 %v5162
    %6332 = vmatprep.subr.bf16.mxu0 %v5171
    %6333 = vmatpush1.bf16.msra.mxu0 %v5170
    %6334 = vmatprep.subr.bf16.mxu0 %v5179
    %6335 = vmatpush1.bf16.msra.mxu0 %v5178
    %6336 = vmatprep.subr.bf16.mxu0 %v5187
    %6337 = vmatpush1.bf16.msra.mxu0 %v5186
    %6338 = vmatprep.subr.bf16.mxu0 %v5195
    %6339 = vmatpush1.bf16.msra.mxu0 %v5194
    %6340 = vmatprep.subr.bf16.mxu0 %v5203
    %6341 = vmatpush1.bf16.msra.mxu0 %v5202
    %6342 = vmatprep.subr.bf16.mxu0 %v5211
    %6343 = vmatpush1.bf16.msra.mxu0 %v5210
    %6344 = vmatprep.subr.bf16.mxu0 %v5219
    %6345 = vmatpush1.bf16.msra.mxu0 %v5218
    %6346 = vmatprep.subr.bf16.mxu0 %v5227
    %6347 = vmatpush1.bf16.msra.mxu0 %v5226
    %6348 = vmatprep.subr.bf16.mxu0 %v5235
    %6349 = vmatpush1.bf16.msra.mxu0 %v5234
    %6350 = vmatprep.subr.bf16.mxu0 %v5243
    %6351 = vmatpush1.bf16.msra.mxu0 %v5242
    %6352 = vmatprep.subr.bf16.mxu0 %v5251
    %6353 = vmatpush1.bf16.msra.mxu0 %v5250
    %6354 = vmatprep.subr.bf16.mxu0 %v5259
    %6355 = vmatpush1.bf16.msra.mxu0 %v5258
    %6356 = vmatprep.subr.bf16.mxu0 %v5267
    %6357 = vmatpush1.bf16.msra.mxu0 %v5266
    %6358 = vmatprep.subr.bf16.mxu0 %v5275
    %6359 = vmatpush1.bf16.msra.mxu0 %v5274
    %6360 = vmatprep.mubr.bf16.mxu0 %v2801
    %6361 = vmatmul.mubr.bf16.gmra.mrb[0].mxu0 %v2800
    %v6362 = vpop.f32.mrb[0].mxu0
    %v6363 = vadd.f32 %v6322, %v6362
    %v6364 = vpop.f32.mrb[0].mxu0
    %v6365 = vadd.f32 %v6324, %v6364
    %v6366 = vpop.f32.mrb[0].mxu0
    %v6367 = vpop.f32.mrb[0].mxu0
    %6368 = vdwg.mxu0
    %6369 = vmatprep.subr.bf16.mxu0 %v5283
    %6370 = vmatpush1.bf16.msra.mxu0 %v5282
    %6371 = vmatprep.subr.bf16.mxu0 %v5291
    %6372 = vmatpush1.bf16.msra.mxu0 %v5290
    %6373 = vmatprep.subr.bf16.mxu0 %v5299
    %6374 = vmatpush1.bf16.msra.mxu0 %v5298
    %6375 = vmatprep.subr.bf16.mxu0 %v5307
    %6376 = vmatpush1.bf16.msra.mxu0 %v5306
    %6377 = vmatprep.subr.bf16.mxu0 %v5315
    %6378 = vmatpush1.bf16.msra.mxu0 %v5314
    %6379 = vmatprep.subr.bf16.mxu0 %v5323
    %6380 = vmatpush1.bf16.msra.mxu0 %v5322
    %6381 = vmatprep.subr.bf16.mxu0 %v5331
    %6382 = vmatpush1.bf16.msra.mxu0 %v5330
    %6383 = vmatprep.subr.bf16.mxu0 %v5339
    %6384 = vmatpush1.bf16.msra.mxu0 %v5338
    %6385 = vmatprep.subr.bf16.mxu0 %v5347
    %6386 = vmatpush1.bf16.msra.mxu0 %v5346
    %6387 = vmatprep.subr.bf16.mxu0 %v5355
    %6388 = vmatpush1.bf16.msra.mxu0 %v5354
    %6389 = vmatprep.subr.bf16.mxu0 %v5363
    %6390 = vmatpush1.bf16.msra.mxu0 %v5362
    %6391 = vmatprep.subr.bf16.mxu0 %v5371
    %6392 = vmatpush1.bf16.msra.mxu0 %v5370
    %6393 = vmatprep.subr.bf16.mxu0 %v5379
    %6394 = vmatpush1.bf16.msra.mxu0 %v5378
    %6395 = vmatprep.subr.bf16.mxu0 %v5387
    %6396 = vmatpush1.bf16.msra.mxu0 %v5386
    %6397 = vmatprep.subr.bf16.mxu0 %v5395
    %6398 = vmatpush1.bf16.msra.mxu0 %v5394
    %6399 = vmatprep.subr.bf16.mxu0 %v5403
    %6400 = vmatpush1.bf16.msra.mxu0 %v5402
    %6401 = vmatprep.mubr.bf16.mxu0 %v2803
    %6402 = vmatmul.mubr.bf16.gmra.mrb[0].mxu0 %v2802
    %v6403 = vpop.f32.mrb[0].mxu0
    %v6404 = vadd.f32 %v6363, %v6403
    %v6405 = vpop.f32.mrb[0].mxu0
    %v6406 = vadd.f32 %v6365, %v6405
    %v6407 = vpop.f32.mrb[0].mxu0
    %v6408 = vpop.f32.mrb[0].mxu0
    %6409 = vdwg.mxu0
    %6410 = vmatprep.subr.bf16.mxu0 %v4901
    %6411 = vmatpush1.bf16.msra.mxu0 %v4900
    %6412 = vmatprep.subr.bf16.mxu0 %v4909
    %6413 = vmatpush1.bf16.msra.mxu0 %v4908
    %6414 = vmatprep.subr.bf16.mxu0 %v4917
    %6415 = vmatpush1.bf16.msra.mxu0 %v4916
    %6416 = vmatprep.subr.bf16.mxu0 %v4925
    %6417 = vmatpush1.bf16.msra.mxu0 %v4924
    %6418 = vmatprep.subr.bf16.mxu0 %v4933
    %6419 = vmatpush1.bf16.msra.mxu0 %v4932
    %6420 = vmatprep.subr.bf16.mxu0 %v4941
    %6421 = vmatpush1.bf16.msra.mxu0 %v4940
    %6422 = vmatprep.subr.bf16.mxu0 %v4949
    %6423 = vmatpush1.bf16.msra.mxu0 %v4948
    %6424 = vmatprep.subr.bf16.mxu0 %v4957
    %6425 = vmatpush1.bf16.msra.mxu0 %v4956
    %6426 = vmatprep.subr.bf16.mxu0 %v4965
    %6427 = vmatpush1.bf16.msra.mxu0 %v4964
    %6428 = vmatprep.subr.bf16.mxu0 %v4973
    %6429 = vmatpush1.bf16.msra.mxu0 %v4972
    %6430 = vmatprep.subr.bf16.mxu0 %v4981
    %6431 = vmatpush1.bf16.msra.mxu0 %v4980
    %6432 = vmatprep.subr.bf16.mxu0 %v4989
    %6433 = vmatpush1.bf16.msra.mxu0 %v4988
    %6434 = vmatprep.subr.bf16.mxu0 %v4997
    %6435 = vmatpush1.bf16.msra.mxu0 %v4996
    %6436 = vmatprep.subr.bf16.mxu0 %v5005
    %6437 = vmatpush1.bf16.msra.mxu0 %v5004
    %6438 = vmatprep.subr.bf16.mxu0 %v5013
    %6439 = vmatpush1.bf16.msra.mxu0 %v5012
    %6440 = vmatprep.subr.bf16.mxu0 %v5021
    %6441 = vmatpush1.bf16.msra.mxu0 %v5020
    %6442 = vmatprep.mubr.bf16.mxu0 %v2797
    %6443 = vmatmul.mubr.bf16.gmra.mrb[0].mxu0 %v2796
    %v6444 = vpop.f32.mrb[0].mxu0
    %v6445 = vadd.f32 %v3345, %v6444
    %v6446 = vpop.f32.mrb[0].mxu0
    %v6447 = vadd.f32 %v3349, %v6446
    %v6448 = vpop.f32.mrb[0].mxu0
    %v6449 = vpop.f32.mrb[0].mxu0
    %6450 = vdwg.mxu0
    %6451 = vmatprep.subr.bf16.mxu0 %v5029
    %6452 = vmatpush1.bf16.msra.mxu0 %v5028
    %6453 = vmatprep.subr.bf16.mxu0 %v5037
    %6454 = vmatpush1.bf16.msra.mxu0 %v5036
    %6455 = vmatprep.subr.bf16.mxu0 %v5045
    %6456 = vmatpush1.bf16.msra.mxu0 %v5044
    %6457 = vmatprep.subr.bf16.mxu0 %v5053
    %6458 = vmatpush1.bf16.msra.mxu0 %v5052
    %6459 = vmatprep.subr.bf16.mxu0 %v5061
    %6460 = vmatpush1.bf16.msra.mxu0 %v5060
    %6461 = vmatprep.subr.bf16.mxu0 %v5069
    %6462 = vmatpush1.bf16.msra.mxu0 %v5068
    %6463 = vmatprep.subr.bf16.mxu0 %v5077
    %6464 = vmatpush1.bf16.msra.mxu0 %v5076
    %6465 = vmatprep.subr.bf16.mxu0 %v5085
    %6466 = vmatpush1.bf16.msra.mxu0 %v5084
    %6467 = vmatprep.subr.bf16.mxu0 %v5093
    %6468 = vmatpush1.bf16.msra.mxu0 %v5092
    %6469 = vmatprep.subr.bf16.mxu0 %v5101
    %6470 = vmatpush1.bf16.msra.mxu0 %v5100
    %6471 = vmatprep.subr.bf16.mxu0 %v5109
    %6472 = vmatpush1.bf16.msra.mxu0 %v5108
    %6473 = vmatprep.subr.bf16.mxu0 %v5117
    %6474 = vmatpush1.bf16.msra.mxu0 %v5116
    %6475 = vmatprep.subr.bf16.mxu0 %v5125
    %6476 = vmatpush1.bf16.msra.mxu0 %v5124
    %6477 = vmatprep.subr.bf16.mxu0 %v5133
    %6478 = vmatpush1.bf16.msra.mxu0 %v5132
    %6479 = vmatprep.subr.bf16.mxu0 %v5141
    %6480 = vmatpush1.bf16.msra.mxu0 %v5140
    %6481 = vmatprep.subr.bf16.mxu0 %v5149
    %6482 = vmatpush1.bf16.msra.mxu0 %v5148
    %6483 = vmatprep.mubr.bf16.mxu0 %v2799
    %6484 = vmatmul.mubr.bf16.gmra.mrb[0].mxu0 %v2798
    %v6485 = vpop.f32.mrb[0].mxu0
    %v6486 = vadd.f32 %v6445, %v6485
    %v6487 = vpop.f32.mrb[0].mxu0
    %v6488 = vadd.f32 %v6447, %v6487
    %v6489 = vpop.f32.mrb[0].mxu0
    %v6490 = vpop.f32.mrb[0].mxu0
    %6491 = vdwg.mxu0
    %6492 = vmatprep.subr.bf16.mxu0 %v5157
    %6493 = vmatpush1.bf16.msra.mxu0 %v5156
    %6494 = vmatprep.subr.bf16.mxu0 %v5165
    %6495 = vmatpush1.bf16.msra.mxu0 %v5164
    %6496 = vmatprep.subr.bf16.mxu0 %v5173
    %6497 = vmatpush1.bf16.msra.mxu0 %v5172
    %6498 = vmatprep.subr.bf16.mxu0 %v5181
    %6499 = vmatpush1.bf16.msra.mxu0 %v5180
    %6500 = vmatprep.subr.bf16.mxu0 %v5189
    %6501 = vmatpush1.bf16.msra.mxu0 %v5188
    %6502 = vmatprep.subr.bf16.mxu0 %v5197
    %6503 = vmatpush1.bf16.msra.mxu0 %v5196
    %6504 = vmatprep.subr.bf16.mxu0 %v5205
    %6505 = vmatpush1.bf16.msra.mxu0 %v5204
    %6506 = vmatprep.subr.bf16.mxu0 %v5213
    %6507 = vmatpush1.bf16.msra.mxu0 %v5212
    %6508 = vmatprep.subr.bf16.mxu0 %v5221
    %6509 = vmatpush1.bf16.msra.mxu0 %v5220
    %6510 = vmatprep.subr.bf16.mxu0 %v5229
    %6511 = vmatpush1.bf16.msra.mxu0 %v5228
    %6512 = vmatprep.subr.bf16.mxu0 %v5237
    %6513 = vmatpush1.bf16.msra.mxu0 %v5236
    %6514 = vmatprep.subr.bf16.mxu0 %v5245
    %6515 = vmatpush1.bf16.msra.mxu0 %v5244
    %6516 = vmatprep.subr.bf16.mxu0 %v5253
    %6517 = vmatpush1.bf16.msra.mxu0 %v5252
    %6518 = vmatprep.subr.bf16.mxu0 %v5261
    %6519 = vmatpush1.bf16.msra.mxu0 %v5260
    %6520 = vmatprep.subr.bf16.mxu0 %v5269
    %6521 = vmatpush1.bf16.msra.mxu0 %v5268
    %6522 = vmatprep.subr.bf16.mxu0 %v5277
    %6523 = vmatpush1.bf16.msra.mxu0 %v5276
    %6524 = vmatprep.mubr.bf16.mxu0 %v2801
    %6525 = vmatmul.mubr.bf16.gmra.mrb[0].mxu0 %v2800
    %v6526 = vpop.f32.mrb[0].mxu0
    %v6527 = vadd.f32 %v6486, %v6526
    %v6528 = vpop.f32.mrb[0].mxu0
    %v6529 = vadd.f32 %v6488, %v6528
    %v6530 = vpop.f32.mrb[0].mxu0
    %v6531 = vpop.f32.mrb[0].mxu0
    %6532 = vdwg.mxu0
    %6533 = vmatprep.subr.bf16.mxu0 %v5285
    %6534 = vmatpush1.bf16.msra.mxu0 %v5284
    %6535 = vmatprep.subr.bf16.mxu0 %v5293
    %6536 = vmatpush1.bf16.msra.mxu0 %v5292
    %6537 = vmatprep.subr.bf16.mxu0 %v5301
    %6538 = vmatpush1.bf16.msra.mxu0 %v5300
    %6539 = vmatprep.subr.bf16.mxu0 %v5309
    %6540 = vmatpush1.bf16.msra.mxu0 %v5308
    %6541 = vmatprep.subr.bf16.mxu0 %v5317
    %6542 = vmatpush1.bf16.msra.mxu0 %v5316
    %6543 = vmatprep.subr.bf16.mxu0 %v5325
    %6544 = vmatpush1.bf16.msra.mxu0 %v5324
    %6545 = vmatprep.subr.bf16.mxu0 %v5333
    %6546 = vmatpush1.bf16.msra.mxu0 %v5332
    %6547 = vmatprep.subr.bf16.mxu0 %v5341
    %6548 = vmatpush1.bf16.msra.mxu0 %v5340
    %6549 = vmatprep.subr.bf16.mxu0 %v5349
    %6550 = vmatpush1.bf16.msra.mxu0 %v5348
    %6551 = vmatprep.subr.bf16.mxu0 %v5357
    %6552 = vmatpush1.bf16.msra.mxu0 %v5356
    %6553 = vmatprep.subr.bf16.mxu0 %v5365
    %6554 = vmatpush1.bf16.msra.mxu0 %v5364
    %6555 = vmatprep.subr.bf16.mxu0 %v5373
    %6556 = vmatpush1.bf16.msra.mxu0 %v5372
    %6557 = vmatprep.subr.bf16.mxu0 %v5381
    %6558 = vmatpush1.bf16.msra.mxu0 %v5380
    %6559 = vmatprep.subr.bf16.mxu0 %v5389
    %6560 = vmatpush1.bf16.msra.mxu0 %v5388
    %6561 = vmatprep.subr.bf16.mxu0 %v5397
    %6562 = vmatpush1.bf16.msra.mxu0 %v5396
    %6563 = vmatprep.subr.bf16.mxu0 %v5405
    %6564 = vmatpush1.bf16.msra.mxu0 %v5404
    %6565 = vmatprep.mubr.bf16.mxu0 %v2803
    %6566 = vmatmul.mubr.bf16.gmra.mrb[0].mxu0 %v2802
    %v6567 = vpop.f32.mrb[0].mxu0
    %v6568 = vadd.f32 %v6527, %v6567
    %v6569 = vpop.f32.mrb[0].mxu0
    %v6570 = vadd.f32 %v6529, %v6569
    %v6571 = vpop.f32.mrb[0].mxu0
    %v6572 = vpop.f32.mrb[0].mxu0
    %6573 = vdwg.mxu0
    %v6574 = vmul.f32 %v6076, 0.2
    %v6575 = vmul.f32 %v6078, 0.2
    %v6576 = vmul.f32 %v6240, 0.2
    %v6577 = vmul.f32 %v6242, 0.2
    %v6578 = vmul.f32 %v6404, 0.2
    %v6579 = vmul.f32 %v6406, 0.2
    %v6580 = vmul.f32 %v6568, 0.2
    %v6581 = vmul.f32 %v6570, 0.2
    %v6582 = vmax.f32 %v6076, %v6574
    %v6583 = vmax.f32 %v6078, %v6575
    %v6584 = vmax.f32 %v6240, %v6576
    %v6585 = vmax.f32 %v6242, %v6577
    %v6586 = vmax.f32 %v6404, %v6578
    %v6587 = vmax.f32 %v6406, %v6579
    %v6588 = vmax.f32 %v6568, %v6580
    %v6589 = vmax.f32 %v6570, %v6581
    %6591 = vrot.lane.b32.xlu0 %v6582, 64
    %v6592 = vpop.permute.xlu0 %6591
    %6595 = vrot.lane.b32.xlu0 %v6583, 64
    %v6596 = vpop.permute.xlu0 %6595
    %6599 = vrot.lane.b32.xlu0 %v6584, 64
    %v6600 = vpop.permute.xlu0 %6599
    %6603 = vrot.lane.b32.xlu0 %v6585, 64
    %v6604 = vpop.permute.xlu0 %6603
    %6607 = vrot.lane.b32.xlu0 %v6586, 64
    %v6608 = vpop.permute.xlu0 %6607
    %6611 = vrot.lane.b32.xlu0 %v6587, 64
    %v6612 = vpop.permute.xlu0 %6611
    %6615 = vrot.lane.b32.xlu0 %v6588, 64
    %v6616 = vpop.permute.xlu0 %6615
    %6619 = vrot.lane.b32.xlu0 %v6589, 64
    %v6620 = vpop.permute.xlu0 %6619
    %v6622 = vcombine.low %v6582, %v6583
    %v6623 = vcombine.high %v6582, %v6583
    %v6625 = vunpack.c.l.s4 1983009808
    %v6626 = vunpack.c.0.s8 %v6625
    %v6627 = vlaneseq
    %v6628 = vshrl.u32 %v6627, 7
    %v6629 = vsub.s32 %v6626, %v6628
    %v6630 = vrot.slane %v6622, %v6629
    %v6632 = vunpack.c.l.s4 1983009808
    %v6633 = vunpack.c.0.s8 %v6632
    %v6634 = vlaneseq
    %v6635 = vshrl.u32 %v6634, 7
    %v6636 = vsub.s32 %v6633, %v6635
    %v6637 = vrot.slane %v6623, %v6636
    %v6638 = vcombine.low %v6592, %v6596
    %v6639 = vcombine.high %v6592, %v6596
    %v6641 = vunpack.c.l.s4 1983009808
    %v6642 = vunpack.c.0.s8 %v6641
    %v6643 = vlaneseq
    %v6644 = vshrl.u32 %v6643, 7
    %v6645 = vsub.s32 %v6642, %v6644
    %v6646 = vrot.slane %v6638, %v6645
    %v6648 = vunpack.c.l.s4 1983009808
    %v6649 = vunpack.c.0.s8 %v6648
    %v6650 = vlaneseq
    %v6651 = vshrl.u32 %v6650, 7
    %v6652 = vsub.s32 %v6649, %v6651
    %v6653 = vrot.slane %v6639, %v6652
    %v6654 = vcombine.low %v6584, %v6585
    %v6655 = vcombine.high %v6584, %v6585
    %v6657 = vunpack.c.l.s4 1983009808
    %v6658 = vunpack.c.0.s8 %v6657
    %v6659 = vlaneseq
    %v6660 = vshrl.u32 %v6659, 7
    %v6661 = vsub.s32 %v6658, %v6660
    %v6662 = vrot.slane %v6654, %v6661
    %v6664 = vunpack.c.l.s4 1983009808
    %v6665 = vunpack.c.0.s8 %v6664
    %v6666 = vlaneseq
    %v6667 = vshrl.u32 %v6666, 7
    %v6668 = vsub.s32 %v6665, %v6667
    %v6669 = vrot.slane %v6655, %v6668
    %v6670 = vcombine.low %v6600, %v6604
    %v6671 = vcombine.high %v6600, %v6604
    %v6673 = vunpack.c.l.s4 1983009808
    %v6674 = vunpack.c.0.s8 %v6673
    %v6675 = vlaneseq
    %v6676 = vshrl.u32 %v6675, 7
    %v6677 = vsub.s32 %v6674, %v6676
    %v6678 = vrot.slane %v6670, %v6677
    %v6680 = vunpack.c.l.s4 1983009808
    %v6681 = vunpack.c.0.s8 %v6680
    %v6682 = vlaneseq
    %v6683 = vshrl.u32 %v6682, 7
    %v6684 = vsub.s32 %v6681, %v6683
    %v6685 = vrot.slane %v6671, %v6684
    %v6686 = vcombine.low %v6630, %v6646
    %v6687 = vcombine.high %v6630, %v6646
    %v6689 = vunpack.c.l.s4 1934713408
    %v6690 = vunpack.c.0.s8 %v6689
    %v6691 = vlaneseq
    %v6692 = vshrl.u32 %v6691, 7
    %v6693 = vsub.s32 %v6690, %v6692
    %v6694 = vrot.slane %v6686, %v6693
    %v6696 = vunpack.c.l.s4 1934713408
    %v6697 = vunpack.c.0.s8 %v6696
    %v6698 = vlaneseq
    %v6699 = vshrl.u32 %v6698, 7
    %v6700 = vsub.s32 %v6697, %v6699
    %v6701 = vrot.slane %v6687, %v6700
    %v6702 = vcombine.low %v6637, %v6653
    %v6703 = vcombine.high %v6637, %v6653
    %v6705 = vunpack.c.l.s4 1934713408
    %v6706 = vunpack.c.0.s8 %v6705
    %v6707 = vlaneseq
    %v6708 = vshrl.u32 %v6707, 7
    %v6709 = vsub.s32 %v6706, %v6708
    %v6710 = vrot.slane %v6702, %v6709
    %v6712 = vunpack.c.l.s4 1934713408
    %v6713 = vunpack.c.0.s8 %v6712
    %v6714 = vlaneseq
    %v6715 = vshrl.u32 %v6714, 7
    %v6716 = vsub.s32 %v6713, %v6715
    %v6717 = vrot.slane %v6703, %v6716
    %v6718 = vcombine.low %v6662, %v6678
    %v6719 = vcombine.high %v6662, %v6678
    %v6721 = vunpack.c.l.s4 1934713408
    %v6722 = vunpack.c.0.s8 %v6721
    %v6723 = vlaneseq
    %v6724 = vshrl.u32 %v6723, 7
    %v6725 = vsub.s32 %v6722, %v6724
    %v6726 = vrot.slane %v6718, %v6725
    %v6728 = vunpack.c.l.s4 1934713408
    %v6729 = vunpack.c.0.s8 %v6728
    %v6730 = vlaneseq
    %v6731 = vshrl.u32 %v6730, 7
    %v6732 = vsub.s32 %v6729, %v6731
    %v6733 = vrot.slane %v6719, %v6732
    %v6734 = vcombine.low %v6669, %v6685
    %v6735 = vcombine.high %v6669, %v6685
    %v6737 = vunpack.c.l.s4 1934713408
    %v6738 = vunpack.c.0.s8 %v6737
    %v6739 = vlaneseq
    %v6740 = vshrl.u32 %v6739, 7
    %v6741 = vsub.s32 %v6738, %v6740
    %v6742 = vrot.slane %v6734, %v6741
    %v6744 = vunpack.c.l.s4 1934713408
    %v6745 = vunpack.c.0.s8 %v6744
    %v6746 = vlaneseq
    %v6747 = vshrl.u32 %v6746, 7
    %v6748 = vsub.s32 %v6745, %v6747
    %v6749 = vrot.slane %v6735, %v6748
    %v6750 = vcombine.low %v6694, %v6726
    %v6751 = vcombine.high %v6694, %v6726
    %v6752 = vcombine.low %v6701, %v6733
    %v6753 = vcombine.high %v6701, %v6733
    %v6754 = vcombine.low %v6710, %v6742
    %v6755 = vcombine.high %v6710, %v6742
    %v6756 = vcombine.low %v6717, %v6749
    %v6757 = vcombine.high %v6717, %v6749
    %v6758 = vcombine.low %v6586, %v6587
    %v6759 = vcombine.high %v6586, %v6587
    %v6761 = vunpack.c.l.s4 1983009808
    %v6762 = vunpack.c.0.s8 %v6761
    %v6763 = vlaneseq
    %v6764 = vshrl.u32 %v6763, 7
    %v6765 = vsub.s32 %v6762, %v6764
    %v6766 = vrot.slane %v6758, %v6765
    %v6768 = vunpack.c.l.s4 1983009808
    %v6769 = vunpack.c.0.s8 %v6768
    %v6770 = vlaneseq
    %v6771 = vshrl.u32 %v6770, 7
    %v6772 = vsub.s32 %v6769, %v6771
    %v6773 = vrot.slane %v6759, %v6772
    %v6774 = vcombine.low %v6608, %v6612
    %v6775 = vcombine.high %v6608, %v6612
    %v6777 = vunpack.c.l.s4 1983009808
    %v6778 = vunpack.c.0.s8 %v6777
    %v6779 = vlaneseq
    %v6780 = vshrl.u32 %v6779, 7
    %v6781 = vsub.s32 %v6778, %v6780
    %v6782 = vrot.slane %v6774, %v6781
    %v6784 = vunpack.c.l.s4 1983009808
    %v6785 = vunpack.c.0.s8 %v6784
    %v6786 = vlaneseq
    %v6787 = vshrl.u32 %v6786, 7
    %v6788 = vsub.s32 %v6785, %v6787
    %v6789 = vrot.slane %v6775, %v6788
    %v6790 = vcombine.low %v6588, %v6589
    %v6791 = vcombine.high %v6588, %v6589
    %v6793 = vunpack.c.l.s4 1983009808
    %v6794 = vunpack.c.0.s8 %v6793
    %v6795 = vlaneseq
    %v6796 = vshrl.u32 %v6795, 7
    %v6797 = vsub.s32 %v6794, %v6796
    %v6798 = vrot.slane %v6790, %v6797
    %v6800 = vunpack.c.l.s4 1983009808
    %v6801 = vunpack.c.0.s8 %v6800
    %v6802 = vlaneseq
    %v6803 = vshrl.u32 %v6802, 7
    %v6804 = vsub.s32 %v6801, %v6803
    %v6805 = vrot.slane %v6791, %v6804
    %v6806 = vcombine.low %v6616, %v6620
    %v6807 = vcombine.high %v6616, %v6620
    %v6809 = vunpack.c.l.s4 1983009808
    %v6810 = vunpack.c.0.s8 %v6809
    %v6811 = vlaneseq
    %v6812 = vshrl.u32 %v6811, 7
    %v6813 = vsub.s32 %v6810, %v6812
    %v6814 = vrot.slane %v6806, %v6813
    %v6816 = vunpack.c.l.s4 1983009808
    %v6817 = vunpack.c.0.s8 %v6816
    %v6818 = vlaneseq
    %v6819 = vshrl.u32 %v6818, 7
    %v6820 = vsub.s32 %v6817, %v6819
    %v6821 = vrot.slane %v6807, %v6820
    %v6822 = vcombine.low %v6766, %v6782
    %v6823 = vcombine.high %v6766, %v6782
    %v6825 = vunpack.c.l.s4 1934713408
    %v6826 = vunpack.c.0.s8 %v6825
    %v6827 = vlaneseq
    %v6828 = vshrl.u32 %v6827, 7
    %v6829 = vsub.s32 %v6826, %v6828
    %v6830 = vrot.slane %v6822, %v6829
    %v6832 = vunpack.c.l.s4 1934713408
    %v6833 = vunpack.c.0.s8 %v6832
    %v6834 = vlaneseq
    %v6835 = vshrl.u32 %v6834, 7
    %v6836 = vsub.s32 %v6833, %v6835
    %v6837 = vrot.slane %v6823, %v6836
    %v6838 = vcombine.low %v6773, %v6789
    %v6839 = vcombine.high %v6773, %v6789
    %v6841 = vunpack.c.l.s4 1934713408
    %v6842 = vunpack.c.0.s8 %v6841
    %v6843 = vlaneseq
    %v6844 = vshrl.u32 %v6843, 7
    %v6845 = vsub.s32 %v6842, %v6844
    %v6846 = vrot.slane %v6838, %v6845
    %v6848 = vunpack.c.l.s4 1934713408
    %v6849 = vunpack.c.0.s8 %v6848
    %v6850 = vlaneseq
    %v6851 = vshrl.u32 %v6850, 7
    %v6852 = vsub.s32 %v6849, %v6851
    %v6853 = vrot.slane %v6839, %v6852
    %v6854 = vcombine.low %v6798, %v6814
    %v6855 = vcombine.high %v6798, %v6814
    %v6857 = vunpack.c.l.s4 1934713408
    %v6858 = vunpack.c.0.s8 %v6857
    %v6859 = vlaneseq
    %v6860 = vshrl.u32 %v6859, 7
    %v6861 = vsub.s32 %v6858, %v6860
    %v6862 = vrot.slane %v6854, %v6861
    %v6864 = vunpack.c.l.s4 1934713408
    %v6865 = vunpack.c.0.s8 %v6864
    %v6866 = vlaneseq
    %v6867 = vshrl.u32 %v6866, 7
    %v6868 = vsub.s32 %v6865, %v6867
    %v6869 = vrot.slane %v6855, %v6868
    %v6870 = vcombine.low %v6805, %v6821
    %v6871 = vcombine.high %v6805, %v6821
    %v6873 = vunpack.c.l.s4 1934713408
    %v6874 = vunpack.c.0.s8 %v6873
    %v6875 = vlaneseq
    %v6876 = vshrl.u32 %v6875, 7
    %v6877 = vsub.s32 %v6874, %v6876
    %v6878 = vrot.slane %v6870, %v6877
    %v6880 = vunpack.c.l.s4 1934713408
    %v6881 = vunpack.c.0.s8 %v6880
    %v6882 = vlaneseq
    %v6883 = vshrl.u32 %v6882, 7
    %v6884 = vsub.s32 %v6881, %v6883
    %v6885 = vrot.slane %v6871, %v6884
    %v6886 = vcombine.low %v6830, %v6862
    %v6887 = vcombine.high %v6830, %v6862
    %v6888 = vcombine.low %v6837, %v6869
    %v6889 = vcombine.high %v6837, %v6869
    %v6890 = vcombine.low %v6846, %v6878
    %v6891 = vcombine.high %v6846, %v6878
    %v6892 = vcombine.low %v6853, %v6885
    %v6893 = vcombine.high %v6853, %v6885
    %v6894 = vmul.f32 %v6750, %v6750
    %v6895 = vmul.f32 %v6886, %v6886
    %v6896 = vmul.f32 %v6751, %v6751
    %v6897 = vmul.f32 %v6887, %v6887
    %v6898 = vmul.f32 %v6752, %v6752
    %v6899 = vmul.f32 %v6888, %v6888
    %v6900 = vmul.f32 %v6753, %v6753
    %v6901 = vmul.f32 %v6889, %v6889
    %v6902 = vmul.f32 %v6754, %v6754
    %v6903 = vmul.f32 %v6890, %v6890
    %v6904 = vmul.f32 %v6755, %v6755
    %v6905 = vmul.f32 %v6891, %v6891
    %v6906 = vmul.f32 %v6756, %v6756
    %v6907 = vmul.f32 %v6892, %v6892
    %v6908 = vmul.f32 %v6757, %v6757
    %v6909 = vmul.f32 %v6893, %v6893
    %v6910 = vsel %vm2370, %v6894, 0.0
    %6911 = vadd.xlane.f32.xlu0 %v6910
    %v6912 = vpop.xlane.xlu0 %6911
    %v6913 = vsel %vm2370, %v6895, 0.0
    %6914 = vadd.xlane.f32.xlu0 %v6913
    %v6915 = vpop.xlane.xlu0 %6914
    %v6916 = vsel %vm2370, %v6896, 0.0
    %6917 = vadd.xlane.f32.xlu0 %v6916
    %v6918 = vpop.xlane.xlu0 %6917
    %v6919 = vsel %vm2370, %v6897, 0.0
    %6920 = vadd.xlane.f32.xlu0 %v6919
    %v6921 = vpop.xlane.xlu0 %6920
    %v6922 = vsel %vm2370, %v6898, 0.0
    %6923 = vadd.xlane.f32.xlu0 %v6922
    %v6924 = vpop.xlane.xlu0 %6923
    %v6925 = vsel %vm2370, %v6899, 0.0
    %6926 = vadd.xlane.f32.xlu0 %v6925
    %v6927 = vpop.xlane.xlu0 %6926
    %v6928 = vsel %vm2370, %v6900, 0.0
    %6929 = vadd.xlane.f32.xlu0 %v6928
    %v6930 = vpop.xlane.xlu0 %6929
    %v6931 = vsel %vm2370, %v6901, 0.0
    %6932 = vadd.xlane.f32.xlu0 %v6931
    %v6933 = vpop.xlane.xlu0 %6932
    %v6934 = vsel %vm2370, %v6902, 0.0
    %6935 = vadd.xlane.f32.xlu0 %v6934
    %v6936 = vpop.xlane.xlu0 %6935
    %v6937 = vsel %vm2370, %v6903, 0.0
    %6938 = vadd.xlane.f32.xlu0 %v6937
    %v6939 = vpop.xlane.xlu0 %6938
    %v6940 = vsel %vm2370, %v6904, 0.0
    %6941 = vadd.xlane.f32.xlu0 %v6940
    %v6942 = vpop.xlane.xlu0 %6941
    %v6943 = vsel %vm2370, %v6905, 0.0
    %6944 = vadd.xlane.f32.xlu0 %v6943
    %v6945 = vpop.xlane.xlu0 %6944
    %v6946 = vsel %vm2370, %v6906, 0.0
    %6947 = vadd.xlane.f32.xlu0 %v6946
    %v6948 = vpop.xlane.xlu0 %6947
    %v6949 = vsel %vm2370, %v6907, 0.0
    %6950 = vadd.xlane.f32.xlu0 %v6949
    %v6951 = vpop.xlane.xlu0 %6950
    %v6952 = vsel %vm2370, %v6908, 0.0
    %6953 = vadd.xlane.f32.xlu0 %v6952
    %v6954 = vpop.xlane.xlu0 %6953
    %v6955 = vsel %vm2370, %v6909, 0.0
    %6956 = vadd.xlane.f32.xlu0 %v6955
    %v6957 = vpop.xlane.xlu0 %6956
    %v6958 = vmul.f32 %v6912, %v2419
    %v6959 = vmul.f32 %v6915, %v2419
    %v6960 = vmul.f32 %v6918, %v2419
    %v6961 = vmul.f32 %v6921, %v2419
    %v6962 = vmul.f32 %v6924, %v2419
    %v6963 = vmul.f32 %v6927, %v2419
    %v6964 = vmul.f32 %v6930, %v2419
    %v6965 = vmul.f32 %v6933, %v2419
    %v6966 = vmul.f32 %v6936, %v2419
    %v6967 = vmul.f32 %v6939, %v2419
    %v6968 = vmul.f32 %v6942, %v2419
    %v6969 = vmul.f32 %v6945, %v2419
    %v6970 = vmul.f32 %v6948, %v2419
    %v6971 = vmul.f32 %v6951, %v2419
    %v6972 = vmul.f32 %v6954, %v2419
    %v6973 = vmul.f32 %v6957, %v2419
    %v6974 = vadd.f32 %v6958, 1e-08
    %v6975 = vadd.f32 %v6959, 1e-08
    %v6976 = vadd.f32 %v6960, 1e-08
    %v6977 = vadd.f32 %v6961, 1e-08
    %v6978 = vadd.f32 %v6962, 1e-08
    %v6979 = vadd.f32 %v6963, 1e-08
    %v6980 = vadd.f32 %v6964, 1e-08
    %v6981 = vadd.f32 %v6965, 1e-08
    %v6982 = vadd.f32 %v6966, 1e-08
    %v6983 = vadd.f32 %v6967, 1e-08
    %v6984 = vadd.f32 %v6968, 1e-08
    %v6985 = vadd.f32 %v6969, 1e-08
    %v6986 = vadd.f32 %v6970, 1e-08
    %v6987 = vadd.f32 %v6971, 1e-08
    %v6988 = vadd.f32 %v6972, 1e-08
    %v6989 = vadd.f32 %v6973, 1e-08
    %v6990 = vrsqrt.pop %v6974
    %v6991 = vrsqrt.pop %v6975
    %v6992 = vrsqrt.pop %v6976
    %v6993 = vrsqrt.pop %v6977
    %v6994 = vrsqrt.pop %v6978
    %v6995 = vrsqrt.pop %v6979
    %v6996 = vrsqrt.pop %v6980
    %v6997 = vrsqrt.pop %v6981
    %v6998 = vrsqrt.pop %v6982
    %v6999 = vrsqrt.pop %v6983
    %v7000 = vrsqrt.pop %v6984
    %v7001 = vrsqrt.pop %v6985
    %v7002 = vrsqrt.pop %v6986
    %v7003 = vrsqrt.pop %v6987
    %v7004 = vrsqrt.pop %v6988
    %v7005 = vrsqrt.pop %v6989
    %v7006 = vmul.f32 %v6750, %v6990
    %v7007 = vmul.f32 %v6886, %v6991
    %v7008 = vmul.f32 %v6751, %v6992
    %v7009 = vmul.f32 %v6887, %v6993
    %v7010 = vmul.f32 %v6752, %v6994
    %v7011 = vmul.f32 %v6888, %v6995
    %v7012 = vmul.f32 %v6753, %v6996
    %v7013 = vmul.f32 %v6889, %v6997
    %v7014 = vmul.f32 %v6754, %v6998
    %v7015 = vmul.f32 %v6890, %v6999
    %v7016 = vmul.f32 %v6755, %v7000
    %v7017 = vmul.f32 %v6891, %v7001
    %v7018 = vmul.f32 %v6756, %v7002
    %v7019 = vmul.f32 %v6892, %v7003
    %v7020 = vmul.f32 %v6757, %v7004
    %v7021 = vmul.f32 %v6893, %v7005
    %v7022 = vcombine.low %v7006, %v7010
    %v7023 = vcombine.high %v7006, %v7010
    %v7025 = vunpack.c.l.s4 1983009808
    %v7026 = vunpack.c.0.s8 %v7025
    %v7027 = vlaneseq
    %v7028 = vshrl.u32 %v7027, 7
    %v7029 = vsub.s32 %v7026, %v7028
    %v7030 = vrot.slane %v7022, %v7029
    %v7032 = vunpack.c.l.s4 1983009808
    %v7033 = vunpack.c.0.s8 %v7032
    %v7034 = vlaneseq
    %v7035 = vshrl.u32 %v7034, 7
    %v7036 = vsub.s32 %v7033, %v7035
    %v7037 = vrot.slane %v7023, %v7036
    %v7038 = vcombine.low %v7008, %v7012
    %v7039 = vcombine.high %v7008, %v7012
    %v7041 = vunpack.c.l.s4 1983009808
    %v7042 = vunpack.c.0.s8 %v7041
    %v7043 = vlaneseq
    %v7044 = vshrl.u32 %v7043, 7
    %v7045 = vsub.s32 %v7042, %v7044
    %v7046 = vrot.slane %v7038, %v7045
    %v7048 = vunpack.c.l.s4 1983009808
    %v7049 = vunpack.c.0.s8 %v7048
    %v7050 = vlaneseq
    %v7051 = vshrl.u32 %v7050, 7
    %v7052 = vsub.s32 %v7049, %v7051
    %v7053 = vrot.slane %v7039, %v7052
    %v7054 = vcombine.low %v7014, %v7018
    %v7055 = vcombine.high %v7014, %v7018
    %v7057 = vunpack.c.l.s4 1983009808
    %v7058 = vunpack.c.0.s8 %v7057
    %v7059 = vlaneseq
    %v7060 = vshrl.u32 %v7059, 7
    %v7061 = vsub.s32 %v7058, %v7060
    %v7062 = vrot.slane %v7054, %v7061
    %v7064 = vunpack.c.l.s4 1983009808
    %v7065 = vunpack.c.0.s8 %v7064
    %v7066 = vlaneseq
    %v7067 = vshrl.u32 %v7066, 7
    %v7068 = vsub.s32 %v7065, %v7067
    %v7069 = vrot.slane %v7055, %v7068
    %v7070 = vcombine.low %v7016, %v7020
    %v7071 = vcombine.high %v7016, %v7020
    %v7073 = vunpack.c.l.s4 1983009808
    %v7074 = vunpack.c.0.s8 %v7073
    %v7075 = vlaneseq
    %v7076 = vshrl.u32 %v7075, 7
    %v7077 = vsub.s32 %v7074, %v7076
    %v7078 = vrot.slane %v7070, %v7077
    %v7080 = vunpack.c.l.s4 1983009808
    %v7081 = vunpack.c.0.s8 %v7080
    %v7082 = vlaneseq
    %v7083 = vshrl.u32 %v7082, 7
    %v7084 = vsub.s32 %v7081, %v7083
    %v7085 = vrot.slane %v7071, %v7084
    %v7086 = vcombine.low %v7030, %v7046
    %v7087 = vcombine.high %v7030, %v7046
    %v7089 = vunpack.c.l.s4 1934713408
    %v7090 = vunpack.c.0.s8 %v7089
    %v7091 = vlaneseq
    %v7092 = vshrl.u32 %v7091, 7
    %v7093 = vsub.s32 %v7090, %v7092
    %v7094 = vrot.slane %v7086, %v7093
    %v7096 = vunpack.c.l.s4 1934713408
    %v7097 = vunpack.c.0.s8 %v7096
    %v7098 = vlaneseq
    %v7099 = vshrl.u32 %v7098, 7
    %v7100 = vsub.s32 %v7097, %v7099
    %v7101 = vrot.slane %v7087, %v7100
    %v7102 = vcombine.low %v7037, %v7053
    %v7103 = vcombine.high %v7037, %v7053
    %v7105 = vunpack.c.l.s4 1934713408
    %v7106 = vunpack.c.0.s8 %v7105
    %v7107 = vlaneseq
    %v7108 = vshrl.u32 %v7107, 7
    %v7109 = vsub.s32 %v7106, %v7108
    %v7110 = vrot.slane %v7102, %v7109
    %v7112 = vunpack.c.l.s4 1934713408
    %v7113 = vunpack.c.0.s8 %v7112
    %v7114 = vlaneseq
    %v7115 = vshrl.u32 %v7114, 7
    %v7116 = vsub.s32 %v7113, %v7115
    %v7117 = vrot.slane %v7103, %v7116
    %v7118 = vcombine.low %v7062, %v7078
    %v7119 = vcombine.high %v7062, %v7078
    %v7121 = vunpack.c.l.s4 1934713408
    %v7122 = vunpack.c.0.s8 %v7121
    %v7123 = vlaneseq
    %v7124 = vshrl.u32 %v7123, 7
    %v7125 = vsub.s32 %v7122, %v7124
    %v7126 = vrot.slane %v7118, %v7125
    %v7128 = vunpack.c.l.s4 1934713408
    %v7129 = vunpack.c.0.s8 %v7128
    %v7130 = vlaneseq
    %v7131 = vshrl.u32 %v7130, 7
    %v7132 = vsub.s32 %v7129, %v7131
    %v7133 = vrot.slane %v7119, %v7132
    %v7134 = vcombine.low %v7069, %v7085
    %v7135 = vcombine.high %v7069, %v7085
    %v7137 = vunpack.c.l.s4 1934713408
    %v7138 = vunpack.c.0.s8 %v7137
    %v7139 = vlaneseq
    %v7140 = vshrl.u32 %v7139, 7
    %v7141 = vsub.s32 %v7138, %v7140
    %v7142 = vrot.slane %v7134, %v7141
    %v7144 = vunpack.c.l.s4 1934713408
    %v7145 = vunpack.c.0.s8 %v7144
    %v7146 = vlaneseq
    %v7147 = vshrl.u32 %v7146, 7
    %v7148 = vsub.s32 %v7145, %v7147
    %v7149 = vrot.slane %v7135, %v7148
    %v7150 = vcombine.low %v7094, %v7126
    %v7151 = vcombine.high %v7094, %v7126
    %v7152 = vcombine.low %v7101, %v7133
    %v7153 = vcombine.high %v7101, %v7133
    %v7154 = vcombine.low %v7110, %v7142
    %v7155 = vcombine.high %v7110, %v7142
    %v7156 = vcombine.low %v7117, %v7149
    %v7157 = vcombine.high %v7117, %v7149
    %v7158 = vcombine.low %v7007, %v7011
    %v7159 = vcombine.high %v7007, %v7011
    %v7161 = vunpack.c.l.s4 1983009808
    %v7162 = vunpack.c.0.s8 %v7161
    %v7163 = vlaneseq
    %v7164 = vshrl.u32 %v7163, 7
    %v7165 = vsub.s32 %v7162, %v7164
    %v7166 = vrot.slane %v7158, %v7165
    %v7168 = vunpack.c.l.s4 1983009808
    %v7169 = vunpack.c.0.s8 %v7168
    %v7170 = vlaneseq
    %v7171 = vshrl.u32 %v7170, 7
    %v7172 = vsub.s32 %v7169, %v7171
    %v7173 = vrot.slane %v7159, %v7172
    %v7174 = vcombine.low %v7009, %v7013
    %v7175 = vcombine.high %v7009, %v7013
    %v7177 = vunpack.c.l.s4 1983009808
    %v7178 = vunpack.c.0.s8 %v7177
    %v7179 = vlaneseq
    %v7180 = vshrl.u32 %v7179, 7
    %v7181 = vsub.s32 %v7178, %v7180
    %v7182 = vrot.slane %v7174, %v7181
    %v7184 = vunpack.c.l.s4 1983009808
    %v7185 = vunpack.c.0.s8 %v7184
    %v7186 = vlaneseq
    %v7187 = vshrl.u32 %v7186, 7
    %v7188 = vsub.s32 %v7185, %v7187
    %v7189 = vrot.slane %v7175, %v7188
    %v7190 = vcombine.low %v7015, %v7019
    %v7191 = vcombine.high %v7015, %v7019
    %v7193 = vunpack.c.l.s4 1983009808
    %v7194 = vunpack.c.0.s8 %v7193
    %v7195 = vlaneseq
    %v7196 = vshrl.u32 %v7195, 7
    %v7197 = vsub.s32 %v7194, %v7196
    %v7198 = vrot.slane %v7190, %v7197
    %v7200 = vunpack.c.l.s4 1983009808
    %v7201 = vunpack.c.0.s8 %v7200
    %v7202 = vlaneseq
    %v7203 = vshrl.u32 %v7202, 7
    %v7204 = vsub.s32 %v7201, %v7203
    %v7205 = vrot.slane %v7191, %v7204
    %v7206 = vcombine.low %v7017, %v7021
    %v7207 = vcombine.high %v7017, %v7021
    %v7209 = vunpack.c.l.s4 1983009808
    %v7210 = vunpack.c.0.s8 %v7209
    %v7211 = vlaneseq
    %v7212 = vshrl.u32 %v7211, 7
    %v7213 = vsub.s32 %v7210, %v7212
    %v7214 = vrot.slane %v7206, %v7213
    %v7216 = vunpack.c.l.s4 1983009808
    %v7217 = vunpack.c.0.s8 %v7216
    %v7218 = vlaneseq
    %v7219 = vshrl.u32 %v7218, 7
    %v7220 = vsub.s32 %v7217, %v7219
    %v7221 = vrot.slane %v7207, %v7220
    %v7222 = vcombine.low %v7166, %v7182
    %v7223 = vcombine.high %v7166, %v7182
    %v7225 = vunpack.c.l.s4 1934713408
    %v7226 = vunpack.c.0.s8 %v7225
    %v7227 = vlaneseq
    %v7228 = vshrl.u32 %v7227, 7
    %v7229 = vsub.s32 %v7226, %v7228
    %v7230 = vrot.slane %v7222, %v7229
    %v7232 = vunpack.c.l.s4 1934713408
    %v7233 = vunpack.c.0.s8 %v7232
    %v7234 = vlaneseq
    %v7235 = vshrl.u32 %v7234, 7
    %v7236 = vsub.s32 %v7233, %v7235
    %v7237 = vrot.slane %v7223, %v7236
    %v7238 = vcombine.low %v7173, %v7189
    %v7239 = vcombine.high %v7173, %v7189
    %v7241 = vunpack.c.l.s4 1934713408
    %v7242 = vunpack.c.0.s8 %v7241
    %v7243 = vlaneseq
    %v7244 = vshrl.u32 %v7243, 7
    %v7245 = vsub.s32 %v7242, %v7244
    %v7246 = vrot.slane %v7238, %v7245
    %v7248 = vunpack.c.l.s4 1934713408
    %v7249 = vunpack.c.0.s8 %v7248
    %v7250 = vlaneseq
    %v7251 = vshrl.u32 %v7250, 7
    %v7252 = vsub.s32 %v7249, %v7251
    %v7253 = vrot.slane %v7239, %v7252
    %v7254 = vcombine.low %v7198, %v7214
    %v7255 = vcombine.high %v7198, %v7214
    %v7257 = vunpack.c.l.s4 1934713408
    %v7258 = vunpack.c.0.s8 %v7257
    %v7259 = vlaneseq
    %v7260 = vshrl.u32 %v7259, 7
    %v7261 = vsub.s32 %v7258, %v7260
    %v7262 = vrot.slane %v7254, %v7261
    %v7264 = vunpack.c.l.s4 1934713408
    %v7265 = vunpack.c.0.s8 %v7264
    %v7266 = vlaneseq
    %v7267 = vshrl.u32 %v7266, 7
    %v7268 = vsub.s32 %v7265, %v7267
    %v7269 = vrot.slane %v7255, %v7268
    %v7270 = vcombine.low %v7205, %v7221
    %v7271 = vcombine.high %v7205, %v7221
    %v7273 = vunpack.c.l.s4 1934713408
    %v7274 = vunpack.c.0.s8 %v7273
    %v7275 = vlaneseq
    %v7276 = vshrl.u32 %v7275, 7
    %v7277 = vsub.s32 %v7274, %v7276
    %v7278 = vrot.slane %v7270, %v7277
    %v7280 = vunpack.c.l.s4 1934713408
    %v7281 = vunpack.c.0.s8 %v7280
    %v7282 = vlaneseq
    %v7283 = vshrl.u32 %v7282, 7
    %v7284 = vsub.s32 %v7281, %v7283
    %v7285 = vrot.slane %v7271, %v7284
    %v7286 = vcombine.low %v7230, %v7262
    %v7287 = vcombine.high %v7230, %v7262
    %v7288 = vcombine.low %v7237, %v7269
    %v7289 = vcombine.high %v7237, %v7269
    %v7290 = vcombine.low %v7246, %v7278
    %v7291 = vcombine.high %v7246, %v7278
    %v7292 = vcombine.low %v7253, %v7285
    %v7293 = vcombine.high %v7253, %v7285
    %7295 = vrot.lane.b32.xlu0 %v7151, 64
    %v7296 = vpop.permute.xlu0 %7295
    %7299 = vrot.lane.b32.xlu0 %v7153, 64
    %v7300 = vpop.permute.xlu0 %7299
    %7303 = vrot.lane.b32.xlu0 %v7155, 64
    %v7304 = vpop.permute.xlu0 %7303
    %7307 = vrot.lane.b32.xlu0 %v7157, 64
    %v7308 = vpop.permute.xlu0 %7307
    %7311 = vrot.lane.b32.xlu0 %v7287, 64
    %v7312 = vpop.permute.xlu0 %7311
    %7315 = vrot.lane.b32.xlu0 %v7289, 64
    %v7316 = vpop.permute.xlu0 %7315
    %7319 = vrot.lane.b32.xlu0 %v7291, 64
    %v7320 = vpop.permute.xlu0 %7319
    %7323 = vrot.lane.b32.xlu0 %v7293, 64
    %v7324 = vpop.permute.xlu0 %7323
    %v7326 = vsel %vm2370, %v7150, %v7296
    %v7327 = vsel %vm2370, %v7152, %v7300
    %v7328 = vsel %vm2370, %v7154, %v7304
    %v7329 = vsel %vm2370, %v7156, %v7308
    %v7330 = vsel %vm2370, %v7286, %v7312
    %v7331 = vsel %vm2370, %v7288, %v7316
    %v7332 = vsel %vm2370, %v7290, %v7320
    %v7333 = vsel %vm2370, %v7292, %v7324
    %v7334 = vpack.c.bf16 %v7326, %v7326
    %v7335 = vpack.c.bf16 %v7327, %v7327
    %v7336 = vpack.c.bf16 %v7328, %v7328
    %v7337 = vpack.c.bf16 %v7329, %v7329
    %v7338 = vpack.c.bf16 %v7330, %v7330
    %v7339 = vpack.c.bf16 %v7331, %v7331
    %v7340 = vpack.c.bf16 %v7332, %v7332
    %v7341 = vpack.c.bf16 %v7333, %v7333
    %v7342 = vld [vmem:[#allocation9] sm:$0xf]
    %v7343 = vld [vmem:[#allocation9 + $0x4] sm:$0xf]
    %v7344 = vld [vmem:[#allocation9 + $0x8] sm:$0xf]
    %v7345 = vld [vmem:[#allocation9 + $0xc] sm:$0xf]
    %v7346 = vld [vmem:[#allocation9 + $0x10] sm:$0xf]
    %v7347 = vld [vmem:[#allocation9 + $0x14] sm:$0xf]
    %v7348 = vld [vmem:[#allocation9 + $0x18] sm:$0xf]
    %v7349 = vld [vmem:[#allocation9 + $0x1c] sm:$0xf]
    %v7350 = vld [vmem:[#allocation9 + $0x20] sm:$0xf]
    %v7351 = vld [vmem:[#allocation9 + $0x24] sm:$0xf]
    %v7352 = vld [vmem:[#allocation9 + $0x28] sm:$0xf]
    %v7353 = vld [vmem:[#allocation9 + $0x2c] sm:$0xf]
    %v7354 = vld [vmem:[#allocation9 + $0x30] sm:$0xf]
    %v7355 = vld [vmem:[#allocation9 + $0x34] sm:$0xf]
    %v7356 = vld [vmem:[#allocation9 + $0x38] sm:$0xf]
    %v7357 = vld [vmem:[#allocation9 + $0x3c] sm:$0xf]
    %v7358 = vld [vmem:[#allocation9 + $0x40] sm:$0xf]
    %v7359 = vld [vmem:[#allocation9 + $0x44] sm:$0xf]
    %v7360 = vld [vmem:[#allocation9 + $0x48] sm:$0xf]
    %v7361 = vld [vmem:[#allocation9 + $0x4c] sm:$0xf]
    %v7362 = vld [vmem:[#allocation9 + $0x50] sm:$0xf]
    %v7363 = vld [vmem:[#allocation9 + $0x54] sm:$0xf]
    %v7364 = vld [vmem:[#allocation9 + $0x58] sm:$0xf]
    %v7365 = vld [vmem:[#allocation9 + $0x5c] sm:$0xf]
    %v7366 = vld [vmem:[#allocation9 + $0x60] sm:$0xf]
    %v7367 = vld [vmem:[#allocation9 + $0x64] sm:$0xf]
    %v7368 = vld [vmem:[#allocation9 + $0x68] sm:$0xf]
    %v7369 = vld [vmem:[#allocation9 + $0x6c] sm:$0xf]
    %v7370 = vld [vmem:[#allocation9 + $0x70] sm:$0xf]
    %v7371 = vld [vmem:[#allocation9 + $0x74] sm:$0xf]
    %v7372 = vld [vmem:[#allocation9 + $0x78] sm:$0xf]
    %v7373 = vld [vmem:[#allocation9 + $0x7c] sm:$0xf]
    %v7374 = vld [vmem:[#allocation9 + $0x80] sm:$0xf]
    %v7375 = vld [vmem:[#allocation9 + $0x84] sm:$0xf]
    %v7376 = vld [vmem:[#allocation9 + $0x88] sm:$0xf]
    %v7377 = vld [vmem:[#allocation9 + $0x8c] sm:$0xf]
    %v7378 = vld [vmem:[#allocation9 + $0x90] sm:$0xf]
    %v7379 = vld [vmem:[#allocation9 + $0x94] sm:$0xf]
    %v7380 = vld [vmem:[#allocation9 + $0x98] sm:$0xf]
    %v7381 = vld [vmem:[#allocation9 + $0x9c] sm:$0xf]
    %v7382 = vld [vmem:[#allocation9 + $0xa0] sm:$0xf]
    %v7383 = vld [vmem:[#allocation9 + $0xa4] sm:$0xf]
    %v7384 = vld [vmem:[#allocation9 + $0xa8] sm:$0xf]
    %v7385 = vld [vmem:[#allocation9 + $0xac] sm:$0xf]
    %v7386 = vld [vmem:[#allocation9 + $0xb0] sm:$0xf]
    %v7387 = vld [vmem:[#allocation9 + $0xb4] sm:$0xf]
    %v7388 = vld [vmem:[#allocation9 + $0xb8] sm:$0xf]
    %v7389 = vld [vmem:[#allocation9 + $0xbc] sm:$0xf]
    %v7390 = vld [vmem:[#allocation9 + $0xc0] sm:$0xf]
    %v7391 = vld [vmem:[#allocation9 + $0xc4] sm:$0xf]
    %v7392 = vld [vmem:[#allocation9 + $0xc8] sm:$0xf]
    %v7393 = vld [vmem:[#allocation9 + $0xcc] sm:$0xf]
    %v7394 = vld [vmem:[#allocation9 + $0xd0] sm:$0xf]
    %v7395 = vld [vmem:[#allocation9 + $0xd4] sm:$0xf]
    %v7396 = vld [vmem:[#allocation9 + $0xd8] sm:$0xf]
    %v7397 = vld [vmem:[#allocation9 + $0xdc] sm:$0xf]
    %v7398 = vld [vmem:[#allocation9 + $0xe0] sm:$0xf]
    %v7399 = vld [vmem:[#allocation9 + $0xe4] sm:$0xf]
    %v7400 = vld [vmem:[#allocation9 + $0xe8] sm:$0xf]
    %v7401 = vld [vmem:[#allocation9 + $0xec] sm:$0xf]
    %v7402 = vld [vmem:[#allocation9 + $0xf0] sm:$0xf]
    %v7403 = vld [vmem:[#allocation9 + $0xf4] sm:$0xf]
    %v7404 = vld [vmem:[#allocation9 + $0xf8] sm:$0xf]
    %v7405 = vld [vmem:[#allocation9 + $0xfc] sm:$0xf]
    %v7406 = vld [vmem:[#allocation9 + $0x100] sm:$0xf]
    %v7407 = vld [vmem:[#allocation9 + $0x104] sm:$0xf]
    %v7408 = vld [vmem:[#allocation9 + $0x108] sm:$0xf]
    %v7409 = vld [vmem:[#allocation9 + $0x10c] sm:$0xf]
    %v7410 = vld [vmem:[#allocation9 + $0x110] sm:$0xf]
    %v7411 = vld [vmem:[#allocation9 + $0x114] sm:$0xf]
    %v7412 = vld [vmem:[#allocation9 + $0x118] sm:$0xf]
    %v7413 = vld [vmem:[#allocation9 + $0x11c] sm:$0xf]
    %v7414 = vld [vmem:[#allocation9 + $0x120] sm:$0xf]
    %v7415 = vld [vmem:[#allocation9 + $0x124] sm:$0xf]
    %v7416 = vld [vmem:[#allocation9 + $0x128] sm:$0xf]
    %v7417 = vld [vmem:[#allocation9 + $0x12c] sm:$0xf]
    %v7418 = vld [vmem:[#allocation9 + $0x130] sm:$0xf]
    %v7419 = vld [vmem:[#allocation9 + $0x134] sm:$0xf]
    %v7420 = vld [vmem:[#allocation9 + $0x138] sm:$0xf]
    %v7421 = vld [vmem:[#allocation9 + $0x13c] sm:$0xf]
    %v7422 = vld [vmem:[#allocation9 + $0x140] sm:$0xf]
    %v7423 = vld [vmem:[#allocation9 + $0x144] sm:$0xf]
    %v7424 = vld [vmem:[#allocation9 + $0x148] sm:$0xf]
    %v7425 = vld [vmem:[#allocation9 + $0x14c] sm:$0xf]
    %v7426 = vld [vmem:[#allocation9 + $0x150] sm:$0xf]
    %v7427 = vld [vmem:[#allocation9 + $0x154] sm:$0xf]
    %v7428 = vld [vmem:[#allocation9 + $0x158] sm:$0xf]
    %v7429 = vld [vmem:[#allocation9 + $0x15c] sm:$0xf]
    %v7430 = vld [vmem:[#allocation9 + $0x160] sm:$0xf]
    %v7431 = vld [vmem:[#allocation9 + $0x164] sm:$0xf]
    %v7432 = vld [vmem:[#allocation9 + $0x168] sm:$0xf]
    %v7433 = vld [vmem:[#allocation9 + $0x16c] sm:$0xf]
    %v7434 = vld [vmem:[#allocation9 + $0x170] sm:$0xf]
    %v7435 = vld [vmem:[#allocation9 + $0x174] sm:$0xf]
    %v7436 = vld [vmem:[#allocation9 + $0x178] sm:$0xf]
    %v7437 = vld [vmem:[#allocation9 + $0x17c] sm:$0xf]
    %v7438 = vld [vmem:[#allocation9 + $0x180] sm:$0xf]
    %v7439 = vld [vmem:[#allocation9 + $0x184] sm:$0xf]
    %v7440 = vld [vmem:[#allocation9 + $0x188] sm:$0xf]
    %v7441 = vld [vmem:[#allocation9 + $0x18c] sm:$0xf]
    %v7442 = vld [vmem:[#allocation9 + $0x190] sm:$0xf]
    %v7443 = vld [vmem:[#allocation9 + $0x194] sm:$0xf]
    %v7444 = vld [vmem:[#allocation9 + $0x198] sm:$0xf]
    %v7445 = vld [vmem:[#allocation9 + $0x19c] sm:$0xf]
    %v7446 = vld [vmem:[#allocation9 + $0x1a0] sm:$0xf]
    %v7447 = vld [vmem:[#allocation9 + $0x1a4] sm:$0xf]
    %v7448 = vld [vmem:[#allocation9 + $0x1a8] sm:$0xf]
    %v7449 = vld [vmem:[#allocation9 + $0x1ac] sm:$0xf]
    %v7450 = vld [vmem:[#allocation9 + $0x1b0] sm:$0xf]
    %v7451 = vld [vmem:[#allocation9 + $0x1b4] sm:$0xf]
    %v7452 = vld [vmem:[#allocation9 + $0x1b8] sm:$0xf]
    %v7453 = vld [vmem:[#allocation9 + $0x1bc] sm:$0xf]
    %v7454 = vld [vmem:[#allocation9 + $0x1c0] sm:$0xf]
    %v7455 = vld [vmem:[#allocation9 + $0x1c4] sm:$0xf]
    %v7456 = vld [vmem:[#allocation9 + $0x1c8] sm:$0xf]
    %v7457 = vld [vmem:[#allocation9 + $0x1cc] sm:$0xf]
    %v7458 = vld [vmem:[#allocation9 + $0x1d0] sm:$0xf]
    %v7459 = vld [vmem:[#allocation9 + $0x1d4] sm:$0xf]
    %v7460 = vld [vmem:[#allocation9 + $0x1d8] sm:$0xf]
    %v7461 = vld [vmem:[#allocation9 + $0x1dc] sm:$0xf]
    %v7462 = vld [vmem:[#allocation9 + $0x1e0] sm:$0xf]
    %v7463 = vld [vmem:[#allocation9 + $0x1e4] sm:$0xf]
    %v7464 = vld [vmem:[#allocation9 + $0x1e8] sm:$0xf]
    %v7465 = vld [vmem:[#allocation9 + $0x1ec] sm:$0xf]
    %v7466 = vld [vmem:[#allocation9 + $0x1f0] sm:$0xf]
    %v7467 = vld [vmem:[#allocation9 + $0x1f4] sm:$0xf]
    %v7468 = vld [vmem:[#allocation9 + $0x1f8] sm:$0xf]
    %v7469 = vld [vmem:[#allocation9 + $0x1fc] sm:$0xf]
    %v7470 = vld [vmem:[#allocation10] sm:$0x1]
    %v7472 = vlaneseq
    %v7473 = vshrl.u32 %v7472, 7
    %v7474 = vsub.s32 0, %v7473
    %v7475 = vrot.slane %v7470, %v7474
    %v7605 = vunpack.c.l.b16 %v7342
    %v7606 = vunpack.c.l.b16 %v7343
    %v7607 = vunpack.c.l.b16 %v7344
    %v7608 = vunpack.c.l.b16 %v7345
    %v7609 = vunpack.c.l.b16 %v7346
    %v7610 = vunpack.c.l.b16 %v7347
    %v7611 = vunpack.c.l.b16 %v7348
    %v7612 = vunpack.c.l.b16 %v7349
    %v7613 = vunpack.c.l.b16 %v7350
    %v7614 = vunpack.c.l.b16 %v7351
    %v7615 = vunpack.c.l.b16 %v7352
    %v7616 = vunpack.c.l.b16 %v7353
    %v7617 = vunpack.c.l.b16 %v7354
    %v7618 = vunpack.c.l.b16 %v7355
    %v7619 = vunpack.c.l.b16 %v7356
    %v7620 = vunpack.c.l.b16 %v7357
    %v7621 = vunpack.c.l.b16 %v7358
    %v7622 = vunpack.c.l.b16 %v7359
    %v7623 = vunpack.c.l.b16 %v7360
    %v7624 = vunpack.c.l.b16 %v7361
    %v7625 = vunpack.c.l.b16 %v7362
    %v7626 = vunpack.c.l.b16 %v7363
    %v7627 = vunpack.c.l.b16 %v7364
    %v7628 = vunpack.c.l.b16 %v7365
    %v7629 = vunpack.c.l.b16 %v7366
    %v7630 = vunpack.c.l.b16 %v7367
    %v7631 = vunpack.c.l.b16 %v7368
    %v7632 = vunpack.c.l.b16 %v7369
    %v7633 = vunpack.c.l.b16 %v7370
    %v7634 = vunpack.c.l.b16 %v7371
    %v7635 = vunpack.c.l.b16 %v7372
    %v7636 = vunpack.c.l.b16 %v7373
    %v7637 = vunpack.c.l.b16 %v7374
    %v7638 = vunpack.c.l.b16 %v7375
    %v7639 = vunpack.c.l.b16 %v7376
    %v7640 = vunpack.c.l.b16 %v7377
    %v7641 = vunpack.c.l.b16 %v7378
    %v7642 = vunpack.c.l.b16 %v7379
    %v7643 = vunpack.c.l.b16 %v7380
    %v7644 = vunpack.c.l.b16 %v7381
    %v7645 = vunpack.c.l.b16 %v7382
    %v7646 = vunpack.c.l.b16 %v7383
    %v7647 = vunpack.c.l.b16 %v7384
    %v7648 = vunpack.c.l.b16 %v7385
    %v7649 = vunpack.c.l.b16 %v7386
    %v7650 = vunpack.c.l.b16 %v7387
    %v7651 = vunpack.c.l.b16 %v7388
    %v7652 = vunpack.c.l.b16 %v7389
    %v7653 = vunpack.c.l.b16 %v7390
    %v7654 = vunpack.c.l.b16 %v7391
    %v7655 = vunpack.c.l.b16 %v7392
    %v7656 = vunpack.c.l.b16 %v7393
    %v7657 = vunpack.c.l.b16 %v7394
    %v7658 = vunpack.c.l.b16 %v7395
    %v7659 = vunpack.c.l.b16 %v7396
    %v7660 = vunpack.c.l.b16 %v7397
    %v7661 = vunpack.c.l.b16 %v7398
    %v7662 = vunpack.c.l.b16 %v7399
    %v7663 = vunpack.c.l.b16 %v7400
    %v7664 = vunpack.c.l.b16 %v7401
    %v7665 = vunpack.c.l.b16 %v7402
    %v7666 = vunpack.c.l.b16 %v7403
    %v7667 = vunpack.c.l.b16 %v7404
    %v7668 = vunpack.c.l.b16 %v7405
    %v7669 = vunpack.c.l.b16 %v7406
    %v7670 = vunpack.c.l.b16 %v7407
    %v7671 = vunpack.c.l.b16 %v7408
    %v7672 = vunpack.c.l.b16 %v7409
    %v7673 = vunpack.c.l.b16 %v7410
    %v7674 = vunpack.c.l.b16 %v7411
    %v7675 = vunpack.c.l.b16 %v7412
    %v7676 = vunpack.c.l.b16 %v7413
    %v7677 = vunpack.c.l.b16 %v7414
    %v7678 = vunpack.c.l.b16 %v7415
    %v7679 = vunpack.c.l.b16 %v7416
    %v7680 = vunpack.c.l.b16 %v7417
    %v7681 = vunpack.c.l.b16 %v7418
    %v7682 = vunpack.c.l.b16 %v7419
    %v7683 = vunpack.c.l.b16 %v7420
    %v7684 = vunpack.c.l.b16 %v7421
    %v7685 = vunpack.c.l.b16 %v7422
    %v7686 = vunpack.c.l.b16 %v7423
    %v7687 = vunpack.c.l.b16 %v7424
    %v7688 = vunpack.c.l.b16 %v7425
    %v7689 = vunpack.c.l.b16 %v7426
    %v7690 = vunpack.c.l.b16 %v7427
    %v7691 = vunpack.c.l.b16 %v7428
    %v7692 = vunpack.c.l.b16 %v7429
    %v7693 = vunpack.c.l.b16 %v7430
    %v7694 = vunpack.c.l.b16 %v7431
    %v7695 = vunpack.c.l.b16 %v7432
    %v7696 = vunpack.c.l.b16 %v7433
    %v7697 = vunpack.c.l.b16 %v7434
    %v7698 = vunpack.c.l.b16 %v7435
    %v7699 = vunpack.c.l.b16 %v7436
    %v7700 = vunpack.c.l.b16 %v7437
    %v7701 = vunpack.c.l.b16 %v7438
    %v7702 = vunpack.c.l.b16 %v7439
    %v7703 = vunpack.c.l.b16 %v7440
    %v7704 = vunpack.c.l.b16 %v7441
    %v7705 = vunpack.c.l.b16 %v7442
    %v7706 = vunpack.c.l.b16 %v7443
    %v7707 = vunpack.c.l.b16 %v7444
    %v7708 = vunpack.c.l.b16 %v7445
    %v7709 = vunpack.c.l.b16 %v7446
    %v7710 = vunpack.c.l.b16 %v7447
    %v7711 = vunpack.c.l.b16 %v7448
    %v7712 = vunpack.c.l.b16 %v7449
    %v7713 = vunpack.c.l.b16 %v7450
    %v7714 = vunpack.c.l.b16 %v7451
    %v7715 = vunpack.c.l.b16 %v7452
    %v7716 = vunpack.c.l.b16 %v7453
    %v7717 = vunpack.c.l.b16 %v7454
    %v7718 = vunpack.c.l.b16 %v7455
    %v7719 = vunpack.c.l.b16 %v7456
    %v7720 = vunpack.c.l.b16 %v7457
    %v7721 = vunpack.c.l.b16 %v7458
    %v7722 = vunpack.c.l.b16 %v7459
    %v7723 = vunpack.c.l.b16 %v7460
    %v7724 = vunpack.c.l.b16 %v7461
    %v7725 = vunpack.c.l.b16 %v7462
    %v7726 = vunpack.c.l.b16 %v7463
    %v7727 = vunpack.c.l.b16 %v7464
    %v7728 = vunpack.c.l.b16 %v7465
    %v7729 = vunpack.c.l.b16 %v7466
    %v7730 = vunpack.c.l.b16 %v7467
    %v7731 = vunpack.c.l.b16 %v7468
    %v7732 = vunpack.c.l.b16 %v7469
    %v7733 = vpack.c.b16 %v7606, %v7605
    %v7734 = vpack.c.b16 %v7608, %v7607
    %v7735 = vpack.c.b16 %v7610, %v7609
    %v7736 = vpack.c.b16 %v7612, %v7611
    %v7737 = vpack.c.b16 %v7614, %v7613
    %v7738 = vpack.c.b16 %v7616, %v7615
    %v7739 = vpack.c.b16 %v7618, %v7617
    %v7740 = vpack.c.b16 %v7620, %v7619
    %v7741 = vpack.c.b16 %v7622, %v7621
    %v7742 = vpack.c.b16 %v7624, %v7623
    %v7743 = vpack.c.b16 %v7626, %v7625
    %v7744 = vpack.c.b16 %v7628, %v7627
    %v7745 = vpack.c.b16 %v7630, %v7629
    %v7746 = vpack.c.b16 %v7632, %v7631
    %v7747 = vpack.c.b16 %v7634, %v7633
    %v7748 = vpack.c.b16 %v7636, %v7635
    %v7749 = vpack.c.b16 %v7638, %v7637
    %v7750 = vpack.c.b16 %v7640, %v7639
    %v7751 = vpack.c.b16 %v7642, %v7641
    %v7752 = vpack.c.b16 %v7644, %v7643
    %v7753 = vpack.c.b16 %v7646, %v7645
    %v7754 = vpack.c.b16 %v7648, %v7647
    %v7755 = vpack.c.b16 %v7650, %v7649
    %v7756 = vpack.c.b16 %v7652, %v7651
    %v7757 = vpack.c.b16 %v7654, %v7653
    %v7758 = vpack.c.b16 %v7656, %v7655
    %v7759 = vpack.c.b16 %v7658, %v7657
    %v7760 = vpack.c.b16 %v7660, %v7659
    %v7761 = vpack.c.b16 %v7662, %v7661
    %v7762 = vpack.c.b16 %v7664, %v7663
    %v7763 = vpack.c.b16 %v7666, %v7665
    %v7764 = vpack.c.b16 %v7668, %v7667
    %v7765 = vpack.c.b16 %v7670, %v7669
    %v7766 = vpack.c.b16 %v7672, %v7671
    %v7767 = vpack.c.b16 %v7674, %v7673
    %v7768 = vpack.c.b16 %v7676, %v7675
    %v7769 = vpack.c.b16 %v7678, %v7677
    %v7770 = vpack.c.b16 %v7680, %v7679
    %v7771 = vpack.c.b16 %v7682, %v7681
    %v7772 = vpack.c.b16 %v7684, %v7683
    %v7773 = vpack.c.b16 %v7686, %v7685
    %v7774 = vpack.c.b16 %v7688, %v7687
    %v7775 = vpack.c.b16 %v7690, %v7689
    %v7776 = vpack.c.b16 %v7692, %v7691
    %v7777 = vpack.c.b16 %v7694, %v7693
    %v7778 = vpack.c.b16 %v7696, %v7695
    %v7779 = vpack.c.b16 %v7698, %v7697
    %v7780 = vpack.c.b16 %v7700, %v7699
    %v7781 = vpack.c.b16 %v7702, %v7701
    %v7782 = vpack.c.b16 %v7704, %v7703
    %v7783 = vpack.c.b16 %v7706, %v7705
    %v7784 = vpack.c.b16 %v7708, %v7707
    %v7785 = vpack.c.b16 %v7710, %v7709
    %v7786 = vpack.c.b16 %v7712, %v7711
    %v7787 = vpack.c.b16 %v7714, %v7713
    %v7788 = vpack.c.b16 %v7716, %v7715
    %v7789 = vpack.c.b16 %v7718, %v7717
    %v7790 = vpack.c.b16 %v7720, %v7719
    %v7791 = vpack.c.b16 %v7722, %v7721
    %v7792 = vpack.c.b16 %v7724, %v7723
    %v7793 = vpack.c.b16 %v7726, %v7725
    %v7794 = vpack.c.b16 %v7728, %v7727
    %v7795 = vpack.c.b16 %v7730, %v7729
    %v7796 = vpack.c.b16 %v7732, %v7731
    %7861 = vmatprep.subr.bf16.mxu0 0
    %7862 = vmatpush1.bf16.msra.mxu0 %v7733
    %7863 = vmatprep.subr.bf16.mxu0 0
    %7864 = vmatpush1.bf16.msra.mxu0 %v7734
    %7865 = vmatprep.subr.bf16.mxu0 0
    %7866 = vmatpush1.bf16.msra.mxu0 %v7735
    %7867 = vmatprep.subr.bf16.mxu0 0
    %7868 = vmatpush1.bf16.msra.mxu0 %v7736
    %7869 = vmatprep.subr.bf16.mxu0 0
    %7870 = vmatpush1.bf16.msra.mxu0 %v7737
    %7871 = vmatprep.subr.bf16.mxu0 0
    %7872 = vmatpush1.bf16.msra.mxu0 %v7738
    %7873 = vmatprep.subr.bf16.mxu0 0
    %7874 = vmatpush1.bf16.msra.mxu0 %v7739
    %7875 = vmatprep.subr.bf16.mxu0 0
    %7876 = vmatpush1.bf16.msra.mxu0 %v7740
    %7877 = vmatprep.subr.bf16.mxu0 0
    %7878 = vmatpush1.bf16.msra.mxu0 %v7741
    %7879 = vmatprep.subr.bf16.mxu0 0
    %7880 = vmatpush1.bf16.msra.mxu0 %v7742
    %7881 = vmatprep.subr.bf16.mxu0 0
    %7882 = vmatpush1.bf16.msra.mxu0 %v7743
    %7883 = vmatprep.subr.bf16.mxu0 0
    %7884 = vmatpush1.bf16.msra.mxu0 %v7744
    %7885 = vmatprep.subr.bf16.mxu0 0
    %7886 = vmatpush1.bf16.msra.mxu0 %v7745
    %7887 = vmatprep.subr.bf16.mxu0 0
    %7888 = vmatpush1.bf16.msra.mxu0 %v7746
    %7889 = vmatprep.subr.bf16.mxu0 0
    %7890 = vmatpush1.bf16.msra.mxu0 %v7747
    %7891 = vmatprep.subr.bf16.mxu0 0
    %7892 = vmatpush1.bf16.msra.mxu0 %v7748
    %7893 = vmatprep.mubr.bf16.mxu0 %v7335
    %7894 = vmatmul.mubr.bf16.gmra.mrb[0].mxu0 %v7334
    %v7895 = vpop.f32.mrb[0].mxu0
    %v7896 = vadd.f32 %v7475, %v7895
    %v7897 = vpop.f32.mrb[0].mxu0
    %v7898 = vpop.f32.mrb[0].mxu0
    %v7899 = vpop.f32.mrb[0].mxu0
    %7900 = vdwg.mxu0
    %7901 = vmatprep.subr.bf16.mxu0 0
    %7902 = vmatpush1.bf16.msra.mxu0 %v7749
    %7903 = vmatprep.subr.bf16.mxu0 0
    %7904 = vmatpush1.bf16.msra.mxu0 %v7750
    %7905 = vmatprep.subr.bf16.mxu0 0
    %7906 = vmatpush1.bf16.msra.mxu0 %v7751
    %7907 = vmatprep.subr.bf16.mxu0 0
    %7908 = vmatpush1.bf16.msra.mxu0 %v7752
    %7909 = vmatprep.subr.bf16.mxu0 0
    %7910 = vmatpush1.bf16.msra.mxu0 %v7753
    %7911 = vmatprep.subr.bf16.mxu0 0
    %7912 = vmatpush1.bf16.msra.mxu0 %v7754
    %7913 = vmatprep.subr.bf16.mxu0 0
    %7914 = vmatpush1.bf16.msra.mxu0 %v7755
    %7915 = vmatprep.subr.bf16.mxu0 0
    %7916 = vmatpush1.bf16.msra.mxu0 %v7756
    %7917 = vmatprep.subr.bf16.mxu0 0
    %7918 = vmatpush1.bf16.msra.mxu0 %v7757
    %7919 = vmatprep.subr.bf16.mxu0 0
    %7920 = vmatpush1.bf16.msra.mxu0 %v7758
    %7921 = vmatprep.subr.bf16.mxu0 0
    %7922 = vmatpush1.bf16.msra.mxu0 %v7759
    %7923 = vmatprep.subr.bf16.mxu0 0
    %7924 = vmatpush1.bf16.msra.mxu0 %v7760
    %7925 = vmatprep.subr.bf16.mxu0 0
    %7926 = vmatpush1.bf16.msra.mxu0 %v7761
    %7927 = vmatprep.subr.bf16.mxu0 0
    %7928 = vmatpush1.bf16.msra.mxu0 %v7762
    %7929 = vmatprep.subr.bf16.mxu0 0
    %7930 = vmatpush1.bf16.msra.mxu0 %v7763
    %7931 = vmatprep.subr.bf16.mxu0 0
    %7932 = vmatpush1.bf16.msra.mxu0 %v7764
    %7933 = vmatprep.mubr.bf16.mxu0 %v7337
    %7934 = vmatmul.mubr.bf16.gmra.mrb[0].mxu0 %v7336
    %v7935 = vpop.f32.mrb[0].mxu0
    %v7936 = vadd.f32 %v7896, %v7935
    %v7937 = vpop.f32.mrb[0].mxu0
    %v7938 = vpop.f32.mrb[0].mxu0
    %v7939 = vpop.f32.mrb[0].mxu0
    %7940 = vdwg.mxu0
    %7941 = vmatprep.subr.bf16.mxu0 0
    %7942 = vmatpush1.bf16.msra.mxu0 %v7765
    %7943 = vmatprep.subr.bf16.mxu0 0
    %7944 = vmatpush1.bf16.msra.mxu0 %v7766
    %7945 = vmatprep.subr.bf16.mxu0 0
    %7946 = vmatpush1.bf16.msra.mxu0 %v7767
    %7947 = vmatprep.subr.bf16.mxu0 0
    %7948 = vmatpush1.bf16.msra.mxu0 %v7768
    %7949 = vmatprep.subr.bf16.mxu0 0
    %7950 = vmatpush1.bf16.msra.mxu0 %v7769
    %7951 = vmatprep.subr.bf16.mxu0 0
    %7952 = vmatpush1.bf16.msra.mxu0 %v7770
    %7953 = vmatprep.subr.bf16.mxu0 0
    %7954 = vmatpush1.bf16.msra.mxu0 %v7771
    %7955 = vmatprep.subr.bf16.mxu0 0
    %7956 = vmatpush1.bf16.msra.mxu0 %v7772
    %7957 = vmatprep.subr.bf16.mxu0 0
    %7958 = vmatpush1.bf16.msra.mxu0 %v7773
    %7959 = vmatprep.subr.bf16.mxu0 0
    %7960 = vmatpush1.bf16.msra.mxu0 %v7774
    %7961 = vmatprep.subr.bf16.mxu0 0
    %7962 = vmatpush1.bf16.msra.mxu0 %v7775
    %7963 = vmatprep.subr.bf16.mxu0 0
    %7964 = vmatpush1.bf16.msra.mxu0 %v7776
    %7965 = vmatprep.subr.bf16.mxu0 0
    %7966 = vmatpush1.bf16.msra.mxu0 %v7777
    %7967 = vmatprep.subr.bf16.mxu0 0
    %7968 = vmatpush1.bf16.msra.mxu0 %v7778
    %7969 = vmatprep.subr.bf16.mxu0 0
    %7970 = vmatpush1.bf16.msra.mxu0 %v7779
    %7971 = vmatprep.subr.bf16.mxu0 0
    %7972 = vmatpush1.bf16.msra.mxu0 %v7780
    %7973 = vmatprep.mubr.bf16.mxu0 %v7339
    %7974 = vmatmul.mubr.bf16.gmra.mrb[0].mxu0 %v7338
    %v7975 = vpop.f32.mrb[0].mxu0
    %v7976 = vadd.f32 %v7936, %v7975
    %v7977 = vpop.f32.mrb[0].mxu0
    %v7978 = vpop.f32.mrb[0].mxu0
    %v7979 = vpop.f32.mrb[0].mxu0
    %7980 = vdwg.mxu0
    %7981 = vmatprep.subr.bf16.mxu0 0
    %7982 = vmatpush1.bf16.msra.mxu0 %v7781
    %7983 = vmatprep.subr.bf16.mxu0 0
    %7984 = vmatpush1.bf16.msra.mxu0 %v7782
    %7985 = vmatprep.subr.bf16.mxu0 0
    %7986 = vmatpush1.bf16.msra.mxu0 %v7783
    %7987 = vmatprep.subr.bf16.mxu0 0
    %7988 = vmatpush1.bf16.msra.mxu0 %v7784
    %7989 = vmatprep.subr.bf16.mxu0 0
    %7990 = vmatpush1.bf16.msra.mxu0 %v7785
    %7991 = vmatprep.subr.bf16.mxu0 0
    %7992 = vmatpush1.bf16.msra.mxu0 %v7786
    %7993 = vmatprep.subr.bf16.mxu0 0
    %7994 = vmatpush1.bf16.msra.mxu0 %v7787
    %7995 = vmatprep.subr.bf16.mxu0 0
    %7996 = vmatpush1.bf16.msra.mxu0 %v7788
    %7997 = vmatprep.subr.bf16.mxu0 0
    %7998 = vmatpush1.bf16.msra.mxu0 %v7789
    %7999 = vmatprep.subr.bf16.mxu0 0
    %8000 = vmatpush1.bf16.msra.mxu0 %v7790
    %8001 = vmatprep.subr.bf16.mxu0 0
    %8002 = vmatpush1.bf16.msra.mxu0 %v7791
    %8003 = vmatprep.subr.bf16.mxu0 0
    %8004 = vmatpush1.bf16.msra.mxu0 %v7792
    %8005 = vmatprep.subr.bf16.mxu0 0
    %8006 = vmatpush1.bf16.msra.mxu0 %v7793
    %8007 = vmatprep.subr.bf16.mxu0 0
    %8008 = vmatpush1.bf16.msra.mxu0 %v7794
    %8009 = vmatprep.subr.bf16.mxu0 0
    %8010 = vmatpush1.bf16.msra.mxu0 %v7795
    %8011 = vmatprep.subr.bf16.mxu0 0
    %8012 = vmatpush1.bf16.msra.mxu0 %v7796
    %8013 = vmatprep.mubr.bf16.mxu0 %v7341
    %8014 = vmatmul.mubr.bf16.gmra.mrb[0].mxu0 %v7340
    %v8015 = vpop.f32.mrb[0].mxu0
    %v8016 = vadd.f32 %v7976, %v8015
    %v8017 = vpop.f32.mrb[0].mxu0
    %v8018 = vpop.f32.mrb[0].mxu0
    %v8019 = vpop.f32.mrb[0].mxu0
    %8020 = vdwg.mxu0
    %8021 = vst [vmem:[%s7] sm:$0xff] %v8016
    // Predicated region
    $region54: #{fn.1} parent=1 // pred_check
      _
    $region55: #{fn.1} parent=1 // pred_check_branch
      %8023 = sbr.rel (0) target = $region57
    $region56: #{fn.1} parent=1 // pred_region
      _
    $region57: #{fn.1} parent=1 // pred_fallthru
      _
    // Predicated region
    $region58: #{fn.1} parent=1 // pred_check
      _
    $region59: #{fn.1} parent=1 // pred_check_branch
      %8025 = sbr.rel (0) target = $region61
    $region60: #{fn.1} parent=1 // pred_region
      _
    $region61: #{fn.1} parent=1 // pred_fallthru
      _
    %8026 = vsyncpa [#allocation3], 1
    %8027 = vsyncpa [#allocation5], 1
    %8028 = vsyncpa [#allocation8], 1
    %8029 = vsyncpa [#allocation11], 1

</llo_original>
